<compile_context>
chip_gen: v7x
topology: tpu7x:2x2x1
jax: 0.10.0
libtpu: 0.0.40
codegen_flags: <defaults>
</compile_context>

<pallas_src>
import jax
import jax.numpy as jnp
from jax import lax
from jax.experimental import pallas as pl
from jax.experimental.pallas import tpu as pltpu

# ----- model hyper-parameters (Seq2SeqModel defaults) -----
N_VOCAB = 28      # num_classes
HIDDEN = 64       # hidden_dim
EMBED = 28        # embed_dim
CNN_OUT = 26      # encoder cnn_output_dim
PAD_IDX = 0

# ----- kernel padding constants -----
HP = 128          # hidden padded to a full 128-lane tile
GP = 4 * HP       # padded gate width (i|f|g|o, each HP wide)
VP = 128          # vocab padded to a full lane tile for a lane-dense logits store
BB = 8            # batch tile = f32 sublane tile

# ----- small example geometry -----
IMG_H, IMG_W, IMG_C = 8, 8, 1
FRAME_FEAT = IMG_H * IMG_W * IMG_C


# ------------------------------ fused seq2seq kernel ------------------------------
def _seq2seq_kernel(frames_ref,                    # (S, BB, F)   flattened frames, time-major
                    mask_ref,                      # (S, BB, 1)   1.0 where t < length
                    tok_ref,                       # (S, BB, 1)   int32 decoder tokens
                    cnn_w_ref, cnn_b_ref,          # (F, CNN_OUT), (1, CNN_OUT)
                    e_wih0_ref, e_whh0_ref, e_b0_ref,   # encoder L0: (CNN_OUT,GP),(HP,GP),(1,GP)
                    e_w1_ref, e_b1_ref,            # encoder L1 fused: (2HP, GP), (1, GP)
                    emb_ref,                       # (V, E) embedding table (pad row zeroed)
                    d_wih0_ref, d_whh0_ref, d_b0_ref,   # decoder L0: (E,GP),(HP,GP),(1,GP)
                    d_w1_ref, d_b1_ref,            # decoder L1 fused: (2HP, GP), (1, GP)
                    lm_w_ref, lm_b_ref,            # (HP, VP), (1, VP)
                    logits_ref,                    # out (S, BB, VP)
                    gin_e_ref,                     # scratch (S, BB, GP) encoder L0 input gates
                    gin_d_ref,                     # scratch (S, BB, GP) decoder L0 input gates
                    hseq_ref):                     # scratch (S, BB, HP) decoder top-layer h
    S, B, F = frames_ref.shape

    def gate_act(gates, c):
        # gates: (B, GP); each gate occupies a full 128-lane tile -> aligned slices.
        i = jax.nn.sigmoid(gates[:, 0 * HP:1 * HP])
        f = jax.nn.sigmoid(gates[:, 1 * HP:2 * HP])
        g = jnp.tanh(gates[:, 2 * HP:3 * HP])
        o = jax.nn.sigmoid(gates[:, 3 * HP:4 * HP])
        c_new = f * c + i * g
        h_new = o * jnp.tanh(c_new)
        return h_new, c_new

    # ---- encoder: stand-in CustomCNN projection + hoisted layer-0 input projection ----
    feat = (jnp.dot(frames_ref[...].reshape(S * B, F), cnn_w_ref[...],
                    preferred_element_type=jnp.float32) + cnn_b_ref[...])           # (S*B, C)
    gin_e = (jnp.dot(feat, e_wih0_ref[...], preferred_element_type=jnp.float32)
             + e_b0_ref[...])                                                        # (S*B, GP)
    gin_e_ref[...] = gin_e.reshape(S, B, GP)

    e_whh0 = e_whh0_ref[...]
    e_w1 = e_w1_ref[...]
    e_b1 = jnp.broadcast_to(e_b1_ref[...], (B, GP))   # hoisted bias broadcast

    zero = jnp.zeros((B, HP), jnp.float32)

    def enc_step(t, carry):
        h0, c0, h1, c1 = carry
        gates0 = gin_e_ref[t] + jnp.dot(h0, e_whh0, preferred_element_type=jnp.float32)
        h0n, c0n = gate_act(gates0, c0)
        gates1 = (jnp.dot(jnp.concatenate([h0n, h1], axis=-1), e_w1,
                          preferred_element_type=jnp.float32) + e_b1)
        h1n, c1n = gate_act(gates1, c1)
        m = mask_ref[t] > 0.0                         # (B, 1) bool: t < length[b]
        h0 = jnp.where(m, h0n, h0)
        c0 = jnp.where(m, c0n, c0)
        h1 = jnp.where(m, h1n, h1)
        c1 = jnp.where(m, c1n, c1)
        return h0, c0, h1, c1

    h0, c0, h1, c1 = lax.fori_loop(0, S, enc_step, (zero, zero, zero, zero), unroll=True)

    # ---- decoder: embedding folded into layer-0 input projection, hoisted over time ----
    V = emb_ref.shape[0]
    din_proj = jnp.dot(emb_ref[...], d_wih0_ref[...],
                       preferred_element_type=jnp.float32)                           # (V, GP)
    onehot = (lax.broadcasted_iota(jnp.int32, (S, B, V), 2) == tok_ref[...])
    onehot = onehot.astype(jnp.float32).reshape(S * B, V)
    gin_d = (jnp.dot(onehot, din_proj, preferred_element_type=jnp.float32)
             + d_b0_ref[...])                                                        # (S*B, GP)
    gin_d_ref[...] = gin_d.reshape(S, B, GP)

    d_whh0 = d_whh0_ref[...]
    d_w1 = d_w1_ref[...]
    d_b1 = jnp.broadcast_to(d_b1_ref[...], (B, GP))

    def dec_step(t, carry):
        h0, c0, h1, c1 = carry
        gates0 = gin_d_ref[t] + jnp.dot(h0, d_whh0, preferred_element_type=jnp.float32)
        h0, c0 = gate_act(gates0, c0)
        gates1 = (jnp.dot(jnp.concatenate([h0, h1], axis=-1), d_w1,
                          preferred_element_type=jnp.float32) + d_b1)
        h1, c1 = gate_act(gates1, c1)
        hseq_ref[t] = h1
        return h0, c0, h1, c1

    lax.fori_loop(0, S, dec_step, (h0, c0, h1, c1), unroll=True)

    # ---- lm_head over all timesteps at once; lane-dense (VP = 128) store ----
    logits = (jnp.dot(hseq_ref[...].reshape(S * B, HP), lm_w_ref[...],
                      preferred_element_type=jnp.float32) + lm_b_ref[...])           # (S*B, VP)
    logits_ref[...] = logits.reshape(S, B, VP)


# ------------------------------ pallas_call wrapper ------------------------------
def _wspec(shape):
    nd = len(shape)
    return pl.BlockSpec(shape, lambda i, _nd=nd: (0,) * _nd)


def seq2seq_forward(kp, inputs, lengths, inp_seq):
    """inputs: (B,S,H,W,C) f32; lengths: (B,) i32; inp_seq: (B,S) i32 -> (B,S,N_VOCAB) f32."""
    B, S = inputs.shape[0], inputs.shape[1]
    F = inputs.shape[2] * inputs.shape[3] * inputs.shape[4]
    B_pad = ((B + BB - 1) // BB) * BB
    nb = B_pad // BB

    frames = inputs.reshape(B, S, F).astype(jnp.float32)
    frames = jnp.pad(frames, ((0, B_pad - B), (0, 0), (0, 0))).transpose(1, 0, 2)   # (S,B_pad,F)
    lengths_p = jnp.pad(lengths.astype(jnp.int32), (0, B_pad - B))                  # pad rows -> len 0
    mask = (jnp.arange(S)[:, None] < lengths_p[None, :]).astype(jnp.float32)[..., None]  # (S,B_pad,1)
    toks = jnp.pad(inp_seq.astype(jnp.int32), ((0, B_pad - B), (0, 0)))
    toks = toks.transpose(1, 0)[..., None]                                          # (S,B_pad,1)

    weights = [kp["cnn_w"], kp["cnn_b"],
               kp["e_wih0"], kp["e_whh0"], kp["e_b0"], kp["e_w1"], kp["e_b1"],
               kp["emb"],
               kp["d_wih0"], kp["d_whh0"], kp["d_b0"], kp["d_w1"], kp["d_b1"],
               kp["lm_w"], kp["lm_b"]]

    in_specs = ([pl.BlockSpec((S, BB, F), lambda i: (0, i, 0)),
                 pl.BlockSpec((S, BB, 1), lambda i: (0, i, 0)),
                 pl.BlockSpec((S, BB, 1), lambda i: (0, i, 0))]
                + [_wspec(w.shape) for w in weights])

    out_shape = jax.ShapeDtypeStruct((S, B_pad, VP), jnp.float32)
    logits_p = pl.pallas_call(
        _seq2seq_kernel,
        out_shape=out_shape,
        grid=(nb,),
        in_specs=in_specs,
        out_specs=pl.BlockSpec((S, BB, VP), lambda i: (0, i, 0)),
        scratch_shapes=[pltpu.VMEM((S, BB, GP), jnp.float32),
                        pltpu.VMEM((S, BB, GP), jnp.float32),
                        pltpu.VMEM((S, BB, HP), jnp.float32)],
        compiler_params=pltpu.CompilerParams(dimension_semantics=("parallel",)),
    )(frames, mask, toks, *weights)

    # slice padding back off, return PyTorch layout (B, S, N_vocab)
    return logits_p[:, :B, :N_VOCAB].transpose(1, 0, 2)


# ------------------------------ parameter preparation ------------------------------
def _pad_gate_cols(w, out_rows=None):
    """w: (rows, 4*HIDDEN) with gate blocks i|f|g|o of width HIDDEN -> (out_rows, 4*HP),
    each gate moved to its own full 128-lane tile; padding columns/rows are zero."""
    rows = w.shape[0] if out_rows is None else out_rows
    out = jnp.zeros((rows, GP), jnp.float32)
    for k in range(4):
        out = out.at[:w.shape[0], k * HP:k * HP + HIDDEN].set(
            w[:, k * HIDDEN:(k + 1) * HIDDEN])
    return out


def prepare_kernel_params(p):
    """One-time layout prep (done outside the per-call jit): gate-column padding to HP,
    layer-1 W_ih/W_hh fusion, lm_head lane padding."""
    kp = {"cnn_w": p["cnn_w"], "cnn_b": p["cnn_b"], "emb": p["emb"]}
    # encoder
    kp["e_wih0"] = _pad_gate_cols(p["enc_wih0"])
    kp["e_whh0"] = _pad_gate_cols(p["enc_whh0"], out_rows=HP)
    kp["e_b0"] = _pad_gate_cols(p["enc_b0"])
    kp["e_w1"] = jnp.concatenate([_pad_gate_cols(p["enc_wih1"], out_rows=HP),
                                  _pad_gate_cols(p["enc_whh1"], out_rows=HP)], axis=0)
    kp["e_b1"] = _pad_gate_cols(p["enc_b1"])
    # decoder
    kp["d_wih0"] = _pad_gate_cols(p["dec_wih0"])
    kp["d_whh0"] = _pad_gate_cols(p["dec_whh0"], out_rows=HP)
    kp["d_b0"] = _pad_gate_cols(p["dec_b0"])
    kp["d_w1"] = jnp.concatenate([_pad_gate_cols(p["dec_wih1"], out_rows=HP),
                                  _pad_gate_cols(p["dec_whh1"], out_rows=HP)], axis=0)
    kp["d_b1"] = _pad_gate_cols(p["dec_b1"])
    # lm_head, lane-dense
    kp["lm_w"] = jnp.zeros((HP, VP), jnp.float32).at[:HIDDEN, :N_VOCAB].set(p["lm_w"])
    kp["lm_b"] = jnp.zeros((1, VP), jnp.float32).at[:, :N_VOCAB].set(p["lm_b"])
    return kp


# ------------------------------ deterministic parameter init ------------------------------
def init_params(key):
    def nrm(k, shape, scale=0.1):
        return scale * jax.random.normal(k, shape, dtype=jnp.float32)

    keys = iter(jax.random.split(key, 20))
    p = {}
    p["cnn_w"] = nrm(next(keys), (FRAME_FEAT, CNN_OUT))
    p["cnn_b"] = jnp.zeros((1, CNN_OUT), jnp.float32)
    # encoder LSTM (layer0 in = CNN_OUT, layer1 in = HIDDEN); weights stored transposed,
    # bias = b_ih + b_hh combined, gate order i|f|g|o (PyTorch).
    p["enc_wih0"] = nrm(next(keys), (CNN_OUT, 4 * HIDDEN))
    p["enc_whh0"] = nrm(next(keys), (HIDDEN, 4 * HIDDEN))
    p["enc_b0"] = nrm(next(keys), (1, 4 * HIDDEN))
    p["enc_wih1"] = nrm(next(keys), (HIDDEN, 4 * HIDDEN))
    p["enc_whh1"] = nrm(next(keys), (HIDDEN, 4 * HIDDEN))
    p["enc_b1"] = nrm(next(keys), (1, 4 * HIDDEN))
    # decoder embedding (padding_idx row zeroed, as nn.Embedding(padding_idx=0) does)
    emb = nrm(next(keys), (N_VOCAB, EMBED), scale=1.0)
    p["emb"] = emb.at[PAD_IDX].set(0.0)
    # decoder LSTM (layer0 in = EMBED, layer1 in = HIDDEN)
    p["dec_wih0"] = nrm(next(keys), (EMBED, 4 * HIDDEN))
    p["dec_whh0"] = nrm(next(keys), (HIDDEN, 4 * HIDDEN))
    p["dec_b0"] = nrm(next(keys), (1, 4 * HIDDEN))
    p["dec_wih1"] = nrm(next(keys), (HIDDEN, 4 * HIDDEN))
    p["dec_whh1"] = nrm(next(keys), (HIDDEN, 4 * HIDDEN))
    p["dec_b1"] = nrm(next(keys), (1, 4 * HIDDEN))
    # lm_head
    p["lm_w"] = nrm(next(keys), (HIDDEN, N_VOCAB))
    p["lm_b"] = jnp.zeros((1, N_VOCAB), jnp.float32)
    # NOTE: the encoder's Conv1d parameters are intentionally omitted: its output
    # (cnn3_outputs) never influences the logits in the reference forward().
    return p


if __name__ == "__main__":
    key = jax.random.PRNGKey(0)
    pkey, ikey, skey = jax.random.split(key, 3)
    params = init_params(pkey)
    kparams = prepare_kernel_params(params)   # one-time layout prep, outside the jitted forward

    B, S = 2, 8
    inputs = jax.random.normal(ikey, (B, S, IMG_H, IMG_W, IMG_C), dtype=jnp.float32)
    lengths = jnp.array([8, 5], dtype=jnp.int32)
    inp_seq = jax.random.randint(skey, (B, S), 0, N_VOCAB, dtype=jnp.int32)

    logits = jax.jit(seq2seq_forward)(kparams, inputs, lengths, inp_seq)
    logits = jax.block_until_ready(logits)
    assert logits.shape == (B, S, N_VOCAB), logits.shape
    assert logits.dtype == jnp.float32
    print("KERNEL_OK")
</pallas_src>

<mosaic_0001>
module attributes {stable_mosaic.version = 11 : i64} {
  func.func @_seq2seq_kernel(%arg0: i32, %arg1: memref<8x8x64xf32, #tpu.memory_space<vmem>>, %arg2: memref<8x8x1xf32, #tpu.memory_space<vmem>>, %arg3: memref<8x8x1xi32, #tpu.memory_space<vmem>>, %arg4: memref<64x26xf32, #tpu.memory_space<vmem>>, %arg5: memref<1x26xf32, #tpu.memory_space<vmem>>, %arg6: memref<26x512xf32, #tpu.memory_space<vmem>>, %arg7: memref<128x512xf32, #tpu.memory_space<vmem>>, %arg8: memref<1x512xf32, #tpu.memory_space<vmem>>, %arg9: memref<256x512xf32, #tpu.memory_space<vmem>>, %arg10: memref<1x512xf32, #tpu.memory_space<vmem>>, %arg11: memref<28x28xf32, #tpu.memory_space<vmem>>, %arg12: memref<28x512xf32, #tpu.memory_space<vmem>>, %arg13: memref<128x512xf32, #tpu.memory_space<vmem>>, %arg14: memref<1x512xf32, #tpu.memory_space<vmem>>, %arg15: memref<256x512xf32, #tpu.memory_space<vmem>>, %arg16: memref<1x512xf32, #tpu.memory_space<vmem>>, %arg17: memref<128x128xf32, #tpu.memory_space<vmem>>, %arg18: memref<1x128xf32, #tpu.memory_space<vmem>>, %arg19: memref<8x8x128xf32, #tpu.memory_space<vmem>>, %arg20: memref<8x8x512xf32, #tpu.memory_space<vmem>>, %arg21: memref<8x8x512xf32, #tpu.memory_space<vmem>>, %arg22: memref<8x8x128xf32, #tpu.memory_space<vmem>>) attributes {dimension_semantics = [#tpu.dimension_semantics<parallel>], iteration_bounds = array<i64: 1>, scalar_prefetch = 0 : i64, scratch_operands = 3 : i64, tpu.core_type = #tpu.core_type<tc>, window_params = [{transform_indices = @transform_0, window_bounds = array<i64: 8, 8, 64>}, {transform_indices = @transform_1, window_bounds = array<i64: 8, 8, 1>}, {transform_indices = @transform_2, window_bounds = array<i64: 8, 8, 1>}, {pipeline_mode = #tpu.pipeline_mode<synchronous>, transform_indices = @transform_3, window_bounds = array<i64: 64, 26>}, {pipeline_mode = #tpu.pipeline_mode<synchronous>, transform_indices = @transform_4, window_bounds = array<i64: 1, 26>}, {pipeline_mode = #tpu.pipeline_mode<synchronous>, transform_indices = @transform_5, window_bounds = array<i64: 26, 512>}, {pipeline_mode = #tpu.pipeline_mode<synchronous>, transform_indices = @transform_6, window_bounds = array<i64: 128, 512>}, {pipeline_mode = #tpu.pipeline_mode<synchronous>, transform_indices = @transform_7, window_bounds = array<i64: 1, 512>}, {pipeline_mode = #tpu.pipeline_mode<synchronous>, transform_indices = @transform_8, window_bounds = array<i64: 256, 512>}, {pipeline_mode = #tpu.pipeline_mode<synchronous>, transform_indices = @transform_9, window_bounds = array<i64: 1, 512>}, {pipeline_mode = #tpu.pipeline_mode<synchronous>, transform_indices = @transform_10, window_bounds = array<i64: 28, 28>}, {pipeline_mode = #tpu.pipeline_mode<synchronous>, transform_indices = @transform_11, window_bounds = array<i64: 28, 512>}, {pipeline_mode = #tpu.pipeline_mode<synchronous>, transform_indices = @transform_12, window_bounds = array<i64: 128, 512>}, {pipeline_mode = #tpu.pipeline_mode<synchronous>, transform_indices = @transform_13, window_bounds = array<i64: 1, 512>}, {pipeline_mode = #tpu.pipeline_mode<synchronous>, transform_indices = @transform_14, window_bounds = array<i64: 256, 512>}, {pipeline_mode = #tpu.pipeline_mode<synchronous>, transform_indices = @transform_15, window_bounds = array<i64: 1, 512>}, {pipeline_mode = #tpu.pipeline_mode<synchronous>, transform_indices = @transform_16, window_bounds = array<i64: 128, 128>}, {pipeline_mode = #tpu.pipeline_mode<synchronous>, transform_indices = @transform_17, window_bounds = array<i64: 1, 128>}, {transform_indices = @transform_18, window_bounds = array<i64: 8, 8, 128>}]} {
    %c0 = arith.constant 0 : index
    %c0_0 = arith.constant 0 : index
    %c0_1 = arith.constant 0 : index
    %0 = vector.load %arg1[%c0, %c0_0, %c0_1] : memref<8x8x64xf32, #tpu.memory_space<vmem>>, vector<8x8x64xf32>
    %1 = vector.shape_cast %0 : vector<8x8x64xf32> to vector<64x64xf32>
    %c0_2 = arith.constant 0 : index
    %c0_3 = arith.constant 0 : index
    %2 = vector.load %arg4[%c0_2, %c0_3] : memref<64x26xf32, #tpu.memory_space<vmem>>, vector<64x26xf32>
    %cst = arith.constant dense<0.000000e+00> : vector<64x26xf32>
    %3 = tpu.matmul %1, %2, %cst {dimension_numbers = #tpu.dot_dimension_numbers<[1], [0], [0], [1], [0, 0, 1, 1], [], []>} : vector<64x64xf32>, vector<64x26xf32>, vector<64x26xf32> -> vector<64x26xf32>
    %c0_4 = arith.constant 0 : index
    %c0_5 = arith.constant 0 : index
    %4 = vector.load %arg5[%c0_4, %c0_5] : memref<1x26xf32, #tpu.memory_space<vmem>>, vector<1x26xf32>
    %5 = vector.broadcast %4 : vector<1x26xf32> to vector<64x26xf32>
    %6 = arith.addf %3, %5 : vector<64x26xf32>
    %c0_6 = arith.constant 0 : index
    %c0_7 = arith.constant 0 : index
    %7 = vector.load %arg6[%c0_6, %c0_7] : memref<26x512xf32, #tpu.memory_space<vmem>>, vector<26x512xf32>
    %cst_8 = arith.constant dense<0.000000e+00> : vector<64x512xf32>
    %8 = tpu.matmul %6, %7, %cst_8 {dimension_numbers = #tpu.dot_dimension_numbers<[1], [0], [0], [1], [0, 0, 1, 1], [], []>} : vector<64x26xf32>, vector<26x512xf32>, vector<64x512xf32> -> vector<64x512xf32>
    %c0_9 = arith.constant 0 : index
    %c0_10 = arith.constant 0 : index
    %9 = vector.load %arg8[%c0_9, %c0_10] : memref<1x512xf32, #tpu.memory_space<vmem>>, vector<1x512xf32>
    %10 = vector.broadcast %9 : vector<1x512xf32> to vector<64x512xf32>
    %11 = arith.addf %8, %10 : vector<64x512xf32>
    %12 = vector.shape_cast %11 : vector<64x512xf32> to vector<8x8x512xf32>
    %c0_11 = arith.constant 0 : index
    %c0_12 = arith.constant 0 : index
    %c0_13 = arith.constant 0 : index
    %13 = vector.load %arg20[%c0_11, %c0_12, %c0_13] : memref<8x8x512xf32, #tpu.memory_space<vmem>>, vector<8x8x512xf32>
    tpu.vector_store %arg20[%c0_11, %c0_12, %c0_13], %12 {strides = array<i32>} : memref<8x8x512xf32, #tpu.memory_space<vmem>>, vector<8x8x512xf32>,
    %c0_14 = arith.constant 0 : index
    %c0_15 = arith.constant 0 : index
    %14 = vector.load %arg7[%c0_14, %c0_15] : memref<128x512xf32, #tpu.memory_space<vmem>>, vector<128x512xf32>
    %c0_16 = arith.constant 0 : index
    %c0_17 = arith.constant 0 : index
    %15 = vector.load %arg9[%c0_16, %c0_17] : memref<256x512xf32, #tpu.memory_space<vmem>>, vector<256x512xf32>
    %c0_18 = arith.constant 0 : index
    %c0_19 = arith.constant 0 : index
    %16 = vector.load %arg10[%c0_18, %c0_19] : memref<1x512xf32, #tpu.memory_space<vmem>>, vector<1x512xf32>
    %17 = vector.shape_cast %16 : vector<1x512xf32> to vector<1x512xf32>
    %18 = vector.broadcast %17 : vector<1x512xf32> to vector<8x512xf32>
    %cst_20 = arith.constant 0.000000e+00 : f32
    %19 = vector.broadcast %cst_20 : f32 to vector<8x128xf32>
    %c0_i32 = arith.constant 0 : i32
    %20 = arith.index_cast %c0_i32 : i32 to index
    %c0_21 = arith.constant 0 : index
    %c0_22 = arith.constant 0 : index
    %21 = vector.load %arg20[%20, %c0_21, %c0_22] : memref<8x8x512xf32, #tpu.memory_space<vmem>>, vector<1x8x512xf32>
    %22 = vector.shape_cast %21 : vector<1x8x512xf32> to vector<8x512xf32>
    %cst_23 = arith.constant dense<0.000000e+00> : vector<8x512xf32>
    %23 = tpu.matmul %19, %14, %cst_23 {dimension_numbers = #tpu.dot_dimension_numbers<[1], [0], [0], [1], [0, 0, 1, 1], [], []>} : vector<8x128xf32>, vector<128x512xf32>, vector<8x512xf32> -> vector<8x512xf32>
    %24 = arith.addf %22, %23 : vector<8x512xf32>
    %25 = vector.extract_strided_slice %24 {offsets = [0, 0], sizes = [8, 128], strides = [1, 1]} : vector<8x512xf32> to vector<8x128xf32>
    %26 = arith.negf %25 : vector<8x128xf32>
    %27 = math.exp %26 : vector<8x128xf32>
    %cst_24 = arith.constant 1.000000e+00 : f32
    %28 = vector.broadcast %cst_24 : f32 to vector<8x128xf32>
    %29 = arith.addf %28, %27 : vector<8x128xf32>
    %30 = arith.divf %28, %29 : vector<8x128xf32>
    %31 = vector.extract_strided_slice %24 {offsets = [0, 128], sizes = [8, 128], strides = [1, 1]} : vector<8x512xf32> to vector<8x128xf32>
    %32 = arith.negf %31 : vector<8x128xf32>
    %33 = math.exp %32 : vector<8x128xf32>
    %cst_25 = arith.constant 1.000000e+00 : f32
    %34 = vector.broadcast %cst_25 : f32 to vector<8x128xf32>
    %35 = arith.addf %34, %33 : vector<8x128xf32>
    %36 = arith.divf %34, %35 : vector<8x128xf32>
    %37 = vector.extract_strided_slice %24 {offsets = [0, 256], sizes = [8, 128], strides = [1, 1]} : vector<8x512xf32> to vector<8x128xf32>
    %38 = math.tanh %37 : vector<8x128xf32>
    %39 = vector.extract_strided_slice %24 {offsets = [0, 384], sizes = [8, 128], strides = [1, 1]} : vector<8x512xf32> to vector<8x128xf32>
    %40 = arith.negf %39 : vector<8x128xf32>
    %41 = math.exp %40 : vector<8x128xf32>
    %cst_26 = arith.constant 1.000000e+00 : f32
    %42 = vector.broadcast %cst_26 : f32 to vector<8x128xf32>
    %43 = arith.addf %42, %41 : vector<8x128xf32>
    %44 = arith.divf %42, %43 : vector<8x128xf32>
    %45 = arith.mulf %36, %19 : vector<8x128xf32>
    %46 = arith.mulf %30, %38 : vector<8x128xf32>
    %47 = arith.addf %45, %46 : vector<8x128xf32>
    %48 = math.tanh %47 : vector<8x128xf32>
    %49 = arith.mulf %44, %48 : vector<8x128xf32>
    %50 = tpu.concatenate %49, %19 in 1 : vector<8x128xf32>, vector<8x128xf32> -> vector<8x256xf32>
    %cst_27 = arith.constant dense<0.000000e+00> : vector<8x512xf32>
    %51 = tpu.matmul %50, %15, %cst_27 {dimension_numbers = #tpu.dot_dimension_numbers<[1], [0], [0], [1], [0, 0, 1, 1], [], []>} : vector<8x256xf32>, vector<256x512xf32>, vector<8x512xf32> -> vector<8x512xf32>
    %52 = arith.addf %51, %18 : vector<8x512xf32>
    %53 = vector.extract_strided_slice %52 {offsets = [0, 0], sizes = [8, 128], strides = [1, 1]} : vector<8x512xf32> to vector<8x128xf32>
    %54 = arith.negf %53 : vector<8x128xf32>
    %55 = math.exp %54 : vector<8x128xf32>
    %cst_28 = arith.constant 1.000000e+00 : f32
    %56 = vector.broadcast %cst_28 : f32 to vector<8x128xf32>
    %57 = arith.addf %56, %55 : vector<8x128xf32>
    %58 = arith.divf %56, %57 : vector<8x128xf32>
    %59 = vector.extract_strided_slice %52 {offsets = [0, 128], sizes = [8, 128], strides = [1, 1]} : vector<8x512xf32> to vector<8x128xf32>
    %60 = arith.negf %59 : vector<8x128xf32>
    %61 = math.exp %60 : vector<8x128xf32>
    %cst_29 = arith.constant 1.000000e+00 : f32
    %62 = vector.broadcast %cst_29 : f32 to vector<8x128xf32>
    %63 = arith.addf %62, %61 : vector<8x128xf32>
    %64 = arith.divf %62, %63 : vector<8x128xf32>
    %65 = vector.extract_strided_slice %52 {offsets = [0, 256], sizes = [8, 128], strides = [1, 1]} : vector<8x512xf32> to vector<8x128xf32>
    %66 = math.tanh %65 : vector<8x128xf32>
    %67 = vector.extract_strided_slice %52 {offsets = [0, 384], sizes = [8, 128], strides = [1, 1]} : vector<8x512xf32> to vector<8x128xf32>
    %68 = arith.negf %67 : vector<8x128xf32>
    %69 = math.exp %68 : vector<8x128xf32>
    %cst_30 = arith.constant 1.000000e+00 : f32
    %70 = vector.broadcast %cst_30 : f32 to vector<8x128xf32>
    %71 = arith.addf %70, %69 : vector<8x128xf32>
    %72 = arith.divf %70, %71 : vector<8x128xf32>
    %73 = arith.mulf %64, %19 : vector<8x128xf32>
    %74 = arith.mulf %58, %66 : vector<8x128xf32>
    %75 = arith.addf %73, %74 : vector<8x128xf32>
    %76 = math.tanh %75 : vector<8x128xf32>
    %77 = arith.mulf %72, %76 : vector<8x128xf32>
    %78 = arith.index_cast %c0_i32 : i32 to index
    %c0_31 = arith.constant 0 : index
    %c0_32 = arith.constant 0 : index
    %79 = vector.load %arg2[%78, %c0_31, %c0_32] : memref<8x8x1xf32, #tpu.memory_space<vmem>>, vector<1x8x1xf32>
    %80 = vector.shape_cast %79 : vector<1x8x1xf32> to vector<8x1xf32>
    %cst_33 = arith.constant 0.000000e+00 : f32
    %81 = vector.broadcast %cst_33 : f32 to vector<8x1xf32>
    %82 = arith.cmpf ogt, %80, %81 : vector<8x1xf32>
    %83 = vector.shape_cast %82 : vector<8x1xi1> to vector<8x1xi1>
    %84 = vector.broadcast %83 : vector<8x1xi1> to vector<8x128xi1>
    %85 = arith.select %84, %49, %19 : vector<8x128xi1>, vector<8x128xf32>
    %86 = vector.shape_cast %82 : vector<8x1xi1> to vector<8x1xi1>
    %87 = vector.broadcast %86 : vector<8x1xi1> to vector<8x128xi1>
    %88 = arith.select %87, %47, %19 : vector<8x128xi1>, vector<8x128xf32>
    %89 = vector.shape_cast %82 : vector<8x1xi1> to vector<8x1xi1>
    %90 = vector.broadcast %89 : vector<8x1xi1> to vector<8x128xi1>
    %91 = arith.select %90, %77, %19 : vector<8x128xi1>, vector<8x128xf32>
    %92 = vector.shape_cast %82 : vector<8x1xi1> to vector<8x1xi1>
    %93 = vector.broadcast %92 : vector<8x1xi1> to vector<8x128xi1>
    %94 = arith.select %93, %75, %19 : vector<8x128xi1>, vector<8x128xf32>
    %c1_i32 = arith.constant 1 : i32
    %95 = arith.index_cast %c1_i32 : i32 to index
    %c0_34 = arith.constant 0 : index
    %c0_35 = arith.constant 0 : index
    %96 = vector.load %arg20[%95, %c0_34, %c0_35] : memref<8x8x512xf32, #tpu.memory_space<vmem>>, vector<1x8x512xf32>
    %97 = vector.shape_cast %96 : vector<1x8x512xf32> to vector<8x512xf32>
    %cst_36 = arith.constant dense<0.000000e+00> : vector<8x512xf32>
    %98 = tpu.matmul %85, %14, %cst_36 {dimension_numbers = #tpu.dot_dimension_numbers<[1], [0], [0], [1], [0, 0, 1, 1], [], []>} : vector<8x128xf32>, vector<128x512xf32>, vector<8x512xf32> -> vector<8x512xf32>
    %99 = arith.addf %97, %98 : vector<8x512xf32>
    %100 = vector.extract_strided_slice %99 {offsets = [0, 0], sizes = [8, 128], strides = [1, 1]} : vector<8x512xf32> to vector<8x128xf32>
    %101 = arith.negf %100 : vector<8x128xf32>
    %102 = math.exp %101 : vector<8x128xf32>
    %cst_37 = arith.constant 1.000000e+00 : f32
    %103 = vector.broadcast %cst_37 : f32 to vector<8x128xf32>
    %104 = arith.addf %103, %102 : vector<8x128xf32>
    %105 = arith.divf %103, %104 : vector<8x128xf32>
    %106 = vector.extract_strided_slice %99 {offsets = [0, 128], sizes = [8, 128], strides = [1, 1]} : vector<8x512xf32> to vector<8x128xf32>
    %107 = arith.negf %106 : vector<8x128xf32>
    %108 = math.exp %107 : vector<8x128xf32>
    %cst_38 = arith.constant 1.000000e+00 : f32
    %109 = vector.broadcast %cst_38 : f32 to vector<8x128xf32>
    %110 = arith.addf %109, %108 : vector<8x128xf32>
    %111 = arith.divf %109, %110 : vector<8x128xf32>
    %112 = vector.extract_strided_slice %99 {offsets = [0, 256], sizes = [8, 128], strides = [1, 1]} : vector<8x512xf32> to vector<8x128xf32>
    %113 = math.tanh %112 : vector<8x128xf32>
    %114 = vector.extract_strided_slice %99 {offsets = [0, 384], sizes = [8, 128], strides = [1, 1]} : vector<8x512xf32> to vector<8x128xf32>
    %115 = arith.negf %114 : vector<8x128xf32>
    %116 = math.exp %115 : vector<8x128xf32>
    %cst_39 = arith.constant 1.000000e+00 : f32
    %117 = vector.broadcast %cst_39 : f32 to vector<8x128xf32>
    %118 = arith.addf %117, %116 : vector<8x128xf32>
    %119 = arith.divf %117, %118 : vector<8x128xf32>
    %120 = arith.mulf %111, %88 : vector<8x128xf32>
    %121 = arith.mulf %105, %113 : vector<8x128xf32>
    %122 = arith.addf %120, %121 : vector<8x128xf32>
    %123 = math.tanh %122 : vector<8x128xf32>
    %124 = arith.mulf %119, %123 : vector<8x128xf32>
    %125 = tpu.concatenate %124, %91 in 1 : vector<8x128xf32>, vector<8x128xf32> -> vector<8x256xf32>
    %cst_40 = arith.constant dense<0.000000e+00> : vector<8x512xf32>
    %126 = tpu.matmul %125, %15, %cst_40 {dimension_numbers = #tpu.dot_dimension_numbers<[1], [0], [0], [1], [0, 0, 1, 1], [], []>} : vector<8x256xf32>, vector<256x512xf32>, vector<8x512xf32> -> vector<8x512xf32>
    %127 = arith.addf %126, %18 : vector<8x512xf32>
    %128 = vector.extract_strided_slice %127 {offsets = [0, 0], sizes = [8, 128], strides = [1, 1]} : vector<8x512xf32> to vector<8x128xf32>
    %129 = arith.negf %128 : vector<8x128xf32>
    %130 = math.exp %129 : vector<8x128xf32>
    %cst_41 = arith.constant 1.000000e+00 : f32
    %131 = vector.broadcast %cst_41 : f32 to vector<8x128xf32>
    %132 = arith.addf %131, %130 : vector<8x128xf32>
    %133 = arith.divf %131, %132 : vector<8x128xf32>
    %134 = vector.extract_strided_slice %127 {offsets = [0, 128], sizes = [8, 128], strides = [1, 1]} : vector<8x512xf32> to vector<8x128xf32>
    %135 = arith.negf %134 : vector<8x128xf32>
    %136 = math.exp %135 : vector<8x128xf32>
    %cst_42 = arith.constant 1.000000e+00 : f32
    %137 = vector.broadcast %cst_42 : f32 to vector<8x128xf32>
    %138 = arith.addf %137, %136 : vector<8x128xf32>
    %139 = arith.divf %137, %138 : vector<8x128xf32>
    %140 = vector.extract_strided_slice %127 {offsets = [0, 256], sizes = [8, 128], strides = [1, 1]} : vector<8x512xf32> to vector<8x128xf32>
    %141 = math.tanh %140 : vector<8x128xf32>
    %142 = vector.extract_strided_slice %127 {offsets = [0, 384], sizes = [8, 128], strides = [1, 1]} : vector<8x512xf32> to vector<8x128xf32>
    %143 = arith.negf %142 : vector<8x128xf32>
    %144 = math.exp %143 : vector<8x128xf32>
    %cst_43 = arith.constant 1.000000e+00 : f32
    %145 = vector.broadcast %cst_43 : f32 to vector<8x128xf32>
    %146 = arith.addf %145, %144 : vector<8x128xf32>
    %147 = arith.divf %145, %146 : vector<8x128xf32>
    %148 = arith.mulf %139, %94 : vector<8x128xf32>
    %149 = arith.mulf %133, %141 : vector<8x128xf32>
    %150 = arith.addf %148, %149 : vector<8x128xf32>
    %151 = math.tanh %150 : vector<8x128xf32>
    %152 = arith.mulf %147, %151 : vector<8x128xf32>
    %153 = arith.index_cast %c1_i32 : i32 to index
    %c0_44 = arith.constant 0 : index
    %c0_45 = arith.constant 0 : index
    %154 = vector.load %arg2[%153, %c0_44, %c0_45] : memref<8x8x1xf32, #tpu.memory_space<vmem>>, vector<1x8x1xf32>
    %155 = vector.shape_cast %154 : vector<1x8x1xf32> to vector<8x1xf32>
    %cst_46 = arith.constant 0.000000e+00 : f32
    %156 = vector.broadcast %cst_46 : f32 to vector<8x1xf32>
    %157 = arith.cmpf ogt, %155, %156 : vector<8x1xf32>
    %158 = vector.shape_cast %157 : vector<8x1xi1> to vector<8x1xi1>
    %159 = vector.broadcast %158 : vector<8x1xi1> to vector<8x128xi1>
    %160 = arith.select %159, %124, %85 : vector<8x128xi1>, vector<8x128xf32>
    %161 = vector.shape_cast %157 : vector<8x1xi1> to vector<8x1xi1>
    %162 = vector.broadcast %161 : vector<8x1xi1> to vector<8x128xi1>
    %163 = arith.select %162, %122, %88 : vector<8x128xi1>, vector<8x128xf32>
    %164 = vector.shape_cast %157 : vector<8x1xi1> to vector<8x1xi1>
    %165 = vector.broadcast %164 : vector<8x1xi1> to vector<8x128xi1>
    %166 = arith.select %165, %152, %91 : vector<8x128xi1>, vector<8x128xf32>
    %167 = vector.shape_cast %157 : vector<8x1xi1> to vector<8x1xi1>
    %168 = vector.broadcast %167 : vector<8x1xi1> to vector<8x128xi1>
    %169 = arith.select %168, %150, %94 : vector<8x128xi1>, vector<8x128xf32>
    %c2_i32 = arith.constant 2 : i32
    %170 = arith.index_cast %c2_i32 : i32 to index
    %c0_47 = arith.constant 0 : index
    %c0_48 = arith.constant 0 : index
    %171 = vector.load %arg20[%170, %c0_47, %c0_48] : memref<8x8x512xf32, #tpu.memory_space<vmem>>, vector<1x8x512xf32>
    %172 = vector.shape_cast %171 : vector<1x8x512xf32> to vector<8x512xf32>
    %cst_49 = arith.constant dense<0.000000e+00> : vector<8x512xf32>
    %173 = tpu.matmul %160, %14, %cst_49 {dimension_numbers = #tpu.dot_dimension_numbers<[1], [0], [0], [1], [0, 0, 1, 1], [], []>} : vector<8x128xf32>, vector<128x512xf32>, vector<8x512xf32> -> vector<8x512xf32>
    %174 = arith.addf %172, %173 : vector<8x512xf32>
    %175 = vector.extract_strided_slice %174 {offsets = [0, 0], sizes = [8, 128], strides = [1, 1]} : vector<8x512xf32> to vector<8x128xf32>
    %176 = arith.negf %175 : vector<8x128xf32>
    %177 = math.exp %176 : vector<8x128xf32>
    %cst_50 = arith.constant 1.000000e+00 : f32
    %178 = vector.broadcast %cst_50 : f32 to vector<8x128xf32>
    %179 = arith.addf %178, %177 : vector<8x128xf32>
    %180 = arith.divf %178, %179 : vector<8x128xf32>
    %181 = vector.extract_strided_slice %174 {offsets = [0, 128], sizes = [8, 128], strides = [1, 1]} : vector<8x512xf32> to vector<8x128xf32>
    %182 = arith.negf %181 : vector<8x128xf32>
    %183 = math.exp %182 : vector<8x128xf32>
    %cst_51 = arith.constant 1.000000e+00 : f32
    %184 = vector.broadcast %cst_51 : f32 to vector<8x128xf32>
    %185 = arith.addf %184, %183 : vector<8x128xf32>
    %186 = arith.divf %184, %185 : vector<8x128xf32>
    %187 = vector.extract_strided_slice %174 {offsets = [0, 256], sizes = [8, 128], strides = [1, 1]} : vector<8x512xf32> to vector<8x128xf32>
    %188 = math.tanh %187 : vector<8x128xf32>
    %189 = vector.extract_strided_slice %174 {offsets = [0, 384], sizes = [8, 128], strides = [1, 1]} : vector<8x512xf32> to vector<8x128xf32>
    %190 = arith.negf %189 : vector<8x128xf32>
    %191 = math.exp %190 : vector<8x128xf32>
    %cst_52 = arith.constant 1.000000e+00 : f32
    %192 = vector.broadcast %cst_52 : f32 to vector<8x128xf32>
    %193 = arith.addf %192, %191 : vector<8x128xf32>
    %194 = arith.divf %192, %193 : vector<8x128xf32>
    %195 = arith.mulf %186, %163 : vector<8x128xf32>
    %196 = arith.mulf %180, %188 : vector<8x128xf32>
    %197 = arith.addf %195, %196 : vector<8x128xf32>
    %198 = math.tanh %197 : vector<8x128xf32>
    %199 = arith.mulf %194, %198 : vector<8x128xf32>
    %200 = tpu.concatenate %199, %166 in 1 : vector<8x128xf32>, vector<8x128xf32> -> vector<8x256xf32>
    %cst_53 = arith.constant dense<0.000000e+00> : vector<8x512xf32>
    %201 = tpu.matmul %200, %15, %cst_53 {dimension_numbers = #tpu.dot_dimension_numbers<[1], [0], [0], [1], [0, 0, 1, 1], [], []>} : vector<8x256xf32>, vector<256x512xf32>, vector<8x512xf32> -> vector<8x512xf32>
    %202 = arith.addf %201, %18 : vector<8x512xf32>
    %203 = vector.extract_strided_slice %202 {offsets = [0, 0], sizes = [8, 128], strides = [1, 1]} : vector<8x512xf32> to vector<8x128xf32>
    %204 = arith.negf %203 : vector<8x128xf32>
    %205 = math.exp %204 : vector<8x128xf32>
    %cst_54 = arith.constant 1.000000e+00 : f32
    %206 = vector.broadcast %cst_54 : f32 to vector<8x128xf32>
    %207 = arith.addf %206, %205 : vector<8x128xf32>
    %208 = arith.divf %206, %207 : vector<8x128xf32>
    %209 = vector.extract_strided_slice %202 {offsets = [0, 128], sizes = [8, 128], strides = [1, 1]} : vector<8x512xf32> to vector<8x128xf32>
    %210 = arith.negf %209 : vector<8x128xf32>
    %211 = math.exp %210 : vector<8x128xf32>
    %cst_55 = arith.constant 1.000000e+00 : f32
    %212 = vector.broadcast %cst_55 : f32 to vector<8x128xf32>
    %213 = arith.addf %212, %211 : vector<8x128xf32>
    %214 = arith.divf %212, %213 : vector<8x128xf32>
    %215 = vector.extract_strided_slice %202 {offsets = [0, 256], sizes = [8, 128], strides = [1, 1]} : vector<8x512xf32> to vector<8x128xf32>
    %216 = math.tanh %215 : vector<8x128xf32>
    %217 = vector.extract_strided_slice %202 {offsets = [0, 384], sizes = [8, 128], strides = [1, 1]} : vector<8x512xf32> to vector<8x128xf32>
    %218 = arith.negf %217 : vector<8x128xf32>
    %219 = math.exp %218 : vector<8x128xf32>
    %cst_56 = arith.constant 1.000000e+00 : f32
    %220 = vector.broadcast %cst_56 : f32 to vector<8x128xf32>
    %221 = arith.addf %220, %219 : vector<8x128xf32>
    %222 = arith.divf %220, %221 : vector<8x128xf32>
    %223 = arith.mulf %214, %169 : vector<8x128xf32>
    %224 = arith.mulf %208, %216 : vector<8x128xf32>
    %225 = arith.addf %223, %224 : vector<8x128xf32>
    %226 = math.tanh %225 : vector<8x128xf32>
    %227 = arith.mulf %222, %226 : vector<8x128xf32>
    %228 = arith.index_cast %c2_i32 : i32 to index
    %c0_57 = arith.constant 0 : index
    %c0_58 = arith.constant 0 : index
    %229 = vector.load %arg2[%228, %c0_57, %c0_58] : memref<8x8x1xf32, #tpu.memory_space<vmem>>, vector<1x8x1xf32>
    %230 = vector.shape_cast %229 : vector<1x8x1xf32> to vector<8x1xf32>
    %cst_59 = arith.constant 0.000000e+00 : f32
    %231 = vector.broadcast %cst_59 : f32 to vector<8x1xf32>
    %232 = arith.cmpf ogt, %230, %231 : vector<8x1xf32>
    %233 = vector.shape_cast %232 : vector<8x1xi1> to vector<8x1xi1>
    %234 = vector.broadcast %233 : vector<8x1xi1> to vector<8x128xi1>
    %235 = arith.select %234, %199, %160 : vector<8x128xi1>, vector<8x128xf32>
    %236 = vector.shape_cast %232 : vector<8x1xi1> to vector<8x1xi1>
    %237 = vector.broadcast %236 : vector<8x1xi1> to vector<8x128xi1>
    %238 = arith.select %237, %197, %163 : vector<8x128xi1>, vector<8x128xf32>
    %239 = vector.shape_cast %232 : vector<8x1xi1> to vector<8x1xi1>
    %240 = vector.broadcast %239 : vector<8x1xi1> to vector<8x128xi1>
    %241 = arith.select %240, %227, %166 : vector<8x128xi1>, vector<8x128xf32>
    %242 = vector.shape_cast %232 : vector<8x1xi1> to vector<8x1xi1>
    %243 = vector.broadcast %242 : vector<8x1xi1> to vector<8x128xi1>
    %244 = arith.select %243, %225, %169 : vector<8x128xi1>, vector<8x128xf32>
    %c3_i32 = arith.constant 3 : i32
    %245 = arith.index_cast %c3_i32 : i32 to index
    %c0_60 = arith.constant 0 : index
    %c0_61 = arith.constant 0 : index
    %246 = vector.load %arg20[%245, %c0_60, %c0_61] : memref<8x8x512xf32, #tpu.memory_space<vmem>>, vector<1x8x512xf32>
    %247 = vector.shape_cast %246 : vector<1x8x512xf32> to vector<8x512xf32>
    %cst_62 = arith.constant dense<0.000000e+00> : vector<8x512xf32>
    %248 = tpu.matmul %235, %14, %cst_62 {dimension_numbers = #tpu.dot_dimension_numbers<[1], [0], [0], [1], [0, 0, 1, 1], [], []>} : vector<8x128xf32>, vector<128x512xf32>, vector<8x512xf32> -> vector<8x512xf32>
    %249 = arith.addf %247, %248 : vector<8x512xf32>
    %250 = vector.extract_strided_slice %249 {offsets = [0, 0], sizes = [8, 128], strides = [1, 1]} : vector<8x512xf32> to vector<8x128xf32>
    %251 = arith.negf %250 : vector<8x128xf32>
    %252 = math.exp %251 : vector<8x128xf32>
    %cst_63 = arith.constant 1.000000e+00 : f32
    %253 = vector.broadcast %cst_63 : f32 to vector<8x128xf32>
    %254 = arith.addf %253, %252 : vector<8x128xf32>
    %255 = arith.divf %253, %254 : vector<8x128xf32>
    %256 = vector.extract_strided_slice %249 {offsets = [0, 128], sizes = [8, 128], strides = [1, 1]} : vector<8x512xf32> to vector<8x128xf32>
    %257 = arith.negf %256 : vector<8x128xf32>
    %258 = math.exp %257 : vector<8x128xf32>
    %cst_64 = arith.constant 1.000000e+00 : f32
    %259 = vector.broadcast %cst_64 : f32 to vector<8x128xf32>
    %260 = arith.addf %259, %258 : vector<8x128xf32>
    %261 = arith.divf %259, %260 : vector<8x128xf32>
    %262 = vector.extract_strided_slice %249 {offsets = [0, 256], sizes = [8, 128], strides = [1, 1]} : vector<8x512xf32> to vector<8x128xf32>
    %263 = math.tanh %262 : vector<8x128xf32>
    %264 = vector.extract_strided_slice %249 {offsets = [0, 384], sizes = [8, 128], strides = [1, 1]} : vector<8x512xf32> to vector<8x128xf32>
    %265 = arith.negf %264 : vector<8x128xf32>
    %266 = math.exp %265 : vector<8x128xf32>
    %cst_65 = arith.constant 1.000000e+00 : f32
    %267 = vector.broadcast %cst_65 : f32 to vector<8x128xf32>
    %268 = arith.addf %267, %266 : vector<8x128xf32>
    %269 = arith.divf %267, %268 : vector<8x128xf32>
    %270 = arith.mulf %261, %238 : vector<8x128xf32>
    %271 = arith.mulf %255, %263 : vector<8x128xf32>
    %272 = arith.addf %270, %271 : vector<8x128xf32>
    %273 = math.tanh %272 : vector<8x128xf32>
    %274 = arith.mulf %269, %273 : vector<8x128xf32>
    %275 = tpu.concatenate %274, %241 in 1 : vector<8x128xf32>, vector<8x128xf32> -> vector<8x256xf32>
    %cst_66 = arith.constant dense<0.000000e+00> : vector<8x512xf32>
    %276 = tpu.matmul %275, %15, %cst_66 {dimension_numbers = #tpu.dot_dimension_numbers<[1], [0], [0], [1], [0, 0, 1, 1], [], []>} : vector<8x256xf32>, vector<256x512xf32>, vector<8x512xf32> -> vector<8x512xf32>
    %277 = arith.addf %276, %18 : vector<8x512xf32>
    %278 = vector.extract_strided_slice %277 {offsets = [0, 0], sizes = [8, 128], strides = [1, 1]} : vector<8x512xf32> to vector<8x128xf32>
    %279 = arith.negf %278 : vector<8x128xf32>
    %280 = math.exp %279 : vector<8x128xf32>
    %cst_67 = arith.constant 1.000000e+00 : f32
    %281 = vector.broadcast %cst_67 : f32 to vector<8x128xf32>
    %282 = arith.addf %281, %280 : vector<8x128xf32>
    %283 = arith.divf %281, %282 : vector<8x128xf32>
    %284 = vector.extract_strided_slice %277 {offsets = [0, 128], sizes = [8, 128], strides = [1, 1]} : vector<8x512xf32> to vector<8x128xf32>
    %285 = arith.negf %284 : vector<8x128xf32>
    %286 = math.exp %285 : vector<8x128xf32>
    %cst_68 = arith.constant 1.000000e+00 : f32
    %287 = vector.broadcast %cst_68 : f32 to vector<8x128xf32>
    %288 = arith.addf %287, %286 : vector<8x128xf32>
    %289 = arith.divf %287, %288 : vector<8x128xf32>
    %290 = vector.extract_strided_slice %277 {offsets = [0, 256], sizes = [8, 128], strides = [1, 1]} : vector<8x512xf32> to vector<8x128xf32>
    %291 = math.tanh %290 : vector<8x128xf32>
    %292 = vector.extract_strided_slice %277 {offsets = [0, 384], sizes = [8, 128], strides = [1, 1]} : vector<8x512xf32> to vector<8x128xf32>
    %293 = arith.negf %292 : vector<8x128xf32>
    %294 = math.exp %293 : vector<8x128xf32>
    %cst_69 = arith.constant 1.000000e+00 : f32
    %295 = vector.broadcast %cst_69 : f32 to vector<8x128xf32>
    %296 = arith.addf %295, %294 : vector<8x128xf32>
    %297 = arith.divf %295, %296 : vector<8x128xf32>
    %298 = arith.mulf %289, %244 : vector<8x128xf32>
    %299 = arith.mulf %283, %291 : vector<8x128xf32>
    %300 = arith.addf %298, %299 : vector<8x128xf32>
    %301 = math.tanh %300 : vector<8x128xf32>
    %302 = arith.mulf %297, %301 : vector<8x128xf32>
    %303 = arith.index_cast %c3_i32 : i32 to index
    %c0_70 = arith.constant 0 : index
    %c0_71 = arith.constant 0 : index
    %304 = vector.load %arg2[%303, %c0_70, %c0_71] : memref<8x8x1xf32, #tpu.memory_space<vmem>>, vector<1x8x1xf32>
    %305 = vector.shape_cast %304 : vector<1x8x1xf32> to vector<8x1xf32>
    %cst_72 = arith.constant 0.000000e+00 : f32
    %306 = vector.broadcast %cst_72 : f32 to vector<8x1xf32>
    %307 = arith.cmpf ogt, %305, %306 : vector<8x1xf32>
    %308 = vector.shape_cast %307 : vector<8x1xi1> to vector<8x1xi1>
    %309 = vector.broadcast %308 : vector<8x1xi1> to vector<8x128xi1>
    %310 = arith.select %309, %274, %235 : vector<8x128xi1>, vector<8x128xf32>
    %311 = vector.shape_cast %307 : vector<8x1xi1> to vector<8x1xi1>
    %312 = vector.broadcast %311 : vector<8x1xi1> to vector<8x128xi1>
    %313 = arith.select %312, %272, %238 : vector<8x128xi1>, vector<8x128xf32>
    %314 = vector.shape_cast %307 : vector<8x1xi1> to vector<8x1xi1>
    %315 = vector.broadcast %314 : vector<8x1xi1> to vector<8x128xi1>
    %316 = arith.select %315, %302, %241 : vector<8x128xi1>, vector<8x128xf32>
    %317 = vector.shape_cast %307 : vector<8x1xi1> to vector<8x1xi1>
    %318 = vector.broadcast %317 : vector<8x1xi1> to vector<8x128xi1>
    %319 = arith.select %318, %300, %244 : vector<8x128xi1>, vector<8x128xf32>
    %c4_i32 = arith.constant 4 : i32
    %320 = arith.index_cast %c4_i32 : i32 to index
    %c0_73 = arith.constant 0 : index
    %c0_74 = arith.constant 0 : index
    %321 = vector.load %arg20[%320, %c0_73, %c0_74] : memref<8x8x512xf32, #tpu.memory_space<vmem>>, vector<1x8x512xf32>
    %322 = vector.shape_cast %321 : vector<1x8x512xf32> to vector<8x512xf32>
    %cst_75 = arith.constant dense<0.000000e+00> : vector<8x512xf32>
    %323 = tpu.matmul %310, %14, %cst_75 {dimension_numbers = #tpu.dot_dimension_numbers<[1], [0], [0], [1], [0, 0, 1, 1], [], []>} : vector<8x128xf32>, vector<128x512xf32>, vector<8x512xf32> -> vector<8x512xf32>
    %324 = arith.addf %322, %323 : vector<8x512xf32>
    %325 = vector.extract_strided_slice %324 {offsets = [0, 0], sizes = [8, 128], strides = [1, 1]} : vector<8x512xf32> to vector<8x128xf32>
    %326 = arith.negf %325 : vector<8x128xf32>
    %327 = math.exp %326 : vector<8x128xf32>
    %cst_76 = arith.constant 1.000000e+00 : f32
    %328 = vector.broadcast %cst_76 : f32 to vector<8x128xf32>
    %329 = arith.addf %328, %327 : vector<8x128xf32>
    %330 = arith.divf %328, %329 : vector<8x128xf32>
    %331 = vector.extract_strided_slice %324 {offsets = [0, 128], sizes = [8, 128], strides = [1, 1]} : vector<8x512xf32> to vector<8x128xf32>
    %332 = arith.negf %331 : vector<8x128xf32>
    %333 = math.exp %332 : vector<8x128xf32>
    %cst_77 = arith.constant 1.000000e+00 : f32
    %334 = vector.broadcast %cst_77 : f32 to vector<8x128xf32>
    %335 = arith.addf %334, %333 : vector<8x128xf32>
    %336 = arith.divf %334, %335 : vector<8x128xf32>
    %337 = vector.extract_strided_slice %324 {offsets = [0, 256], sizes = [8, 128], strides = [1, 1]} : vector<8x512xf32> to vector<8x128xf32>
    %338 = math.tanh %337 : vector<8x128xf32>
    %339 = vector.extract_strided_slice %324 {offsets = [0, 384], sizes = [8, 128], strides = [1, 1]} : vector<8x512xf32> to vector<8x128xf32>
    %340 = arith.negf %339 : vector<8x128xf32>
    %341 = math.exp %340 : vector<8x128xf32>
    %cst_78 = arith.constant 1.000000e+00 : f32
    %342 = vector.broadcast %cst_78 : f32 to vector<8x128xf32>
    %343 = arith.addf %342, %341 : vector<8x128xf32>
    %344 = arith.divf %342, %343 : vector<8x128xf32>
    %345 = arith.mulf %336, %313 : vector<8x128xf32>
    %346 = arith.mulf %330, %338 : vector<8x128xf32>
    %347 = arith.addf %345, %346 : vector<8x128xf32>
    %348 = math.tanh %347 : vector<8x128xf32>
    %349 = arith.mulf %344, %348 : vector<8x128xf32>
    %350 = tpu.concatenate %349, %316 in 1 : vector<8x128xf32>, vector<8x128xf32> -> vector<8x256xf32>
    %cst_79 = arith.constant dense<0.000000e+00> : vector<8x512xf32>
    %351 = tpu.matmul %350, %15, %cst_79 {dimension_numbers = #tpu.dot_dimension_numbers<[1], [0], [0], [1], [0, 0, 1, 1], [], []>} : vector<8x256xf32>, vector<256x512xf32>, vector<8x512xf32> -> vector<8x512xf32>
    %352 = arith.addf %351, %18 : vector<8x512xf32>
    %353 = vector.extract_strided_slice %352 {offsets = [0, 0], sizes = [8, 128], strides = [1, 1]} : vector<8x512xf32> to vector<8x128xf32>
    %354 = arith.negf %353 : vector<8x128xf32>
    %355 = math.exp %354 : vector<8x128xf32>
    %cst_80 = arith.constant 1.000000e+00 : f32
    %356 = vector.broadcast %cst_80 : f32 to vector<8x128xf32>
    %357 = arith.addf %356, %355 : vector<8x128xf32>
    %358 = arith.divf %356, %357 : vector<8x128xf32>
    %359 = vector.extract_strided_slice %352 {offsets = [0, 128], sizes = [8, 128], strides = [1, 1]} : vector<8x512xf32> to vector<8x128xf32>
    %360 = arith.negf %359 : vector<8x128xf32>
    %361 = math.exp %360 : vector<8x128xf32>
    %cst_81 = arith.constant 1.000000e+00 : f32
    %362 = vector.broadcast %cst_81 : f32 to vector<8x128xf32>
    %363 = arith.addf %362, %361 : vector<8x128xf32>
    %364 = arith.divf %362, %363 : vector<8x128xf32>
    %365 = vector.extract_strided_slice %352 {offsets = [0, 256], sizes = [8, 128], strides = [1, 1]} : vector<8x512xf32> to vector<8x128xf32>
    %366 = math.tanh %365 : vector<8x128xf32>
    %367 = vector.extract_strided_slice %352 {offsets = [0, 384], sizes = [8, 128], strides = [1, 1]} : vector<8x512xf32> to vector<8x128xf32>
    %368 = arith.negf %367 : vector<8x128xf32>
    %369 = math.exp %368 : vector<8x128xf32>
    %cst_82 = arith.constant 1.000000e+00 : f32
    %370 = vector.broadcast %cst_82 : f32 to vector<8x128xf32>
    %371 = arith.addf %370, %369 : vector<8x128xf32>
    %372 = arith.divf %370, %371 : vector<8x128xf32>
    %373 = arith.mulf %364, %319 : vector<8x128xf32>
    %374 = arith.mulf %358, %366 : vector<8x128xf32>
    %375 = arith.addf %373, %374 : vector<8x128xf32>
    %376 = math.tanh %375 : vector<8x128xf32>
    %377 = arith.mulf %372, %376 : vector<8x128xf32>
    %378 = arith.index_cast %c4_i32 : i32 to index
    %c0_83 = arith.constant 0 : index
    %c0_84 = arith.constant 0 : index
    %379 = vector.load %arg2[%378, %c0_83, %c0_84] : memref<8x8x1xf32, #tpu.memory_space<vmem>>, vector<1x8x1xf32>
    %380 = vector.shape_cast %379 : vector<1x8x1xf32> to vector<8x1xf32>
    %cst_85 = arith.constant 0.000000e+00 : f32
    %381 = vector.broadcast %cst_85 : f32 to vector<8x1xf32>
    %382 = arith.cmpf ogt, %380, %381 : vector<8x1xf32>
    %383 = vector.shape_cast %382 : vector<8x1xi1> to vector<8x1xi1>
    %384 = vector.broadcast %383 : vector<8x1xi1> to vector<8x128xi1>
    %385 = arith.select %384, %349, %310 : vector<8x128xi1>, vector<8x128xf32>
    %386 = vector.shape_cast %382 : vector<8x1xi1> to vector<8x1xi1>
    %387 = vector.broadcast %386 : vector<8x1xi1> to vector<8x128xi1>
    %388 = arith.select %387, %347, %313 : vector<8x128xi1>, vector<8x128xf32>
    %389 = vector.shape_cast %382 : vector<8x1xi1> to vector<8x1xi1>
    %390 = vector.broadcast %389 : vector<8x1xi1> to vector<8x128xi1>
    %391 = arith.select %390, %377, %316 : vector<8x128xi1>, vector<8x128xf32>
    %392 = vector.shape_cast %382 : vector<8x1xi1> to vector<8x1xi1>
    %393 = vector.broadcast %392 : vector<8x1xi1> to vector<8x128xi1>
    %394 = arith.select %393, %375, %319 : vector<8x128xi1>, vector<8x128xf32>
    %c5_i32 = arith.constant 5 : i32
    %395 = arith.index_cast %c5_i32 : i32 to index
    %c0_86 = arith.constant 0 : index
    %c0_87 = arith.constant 0 : index
    %396 = vector.load %arg20[%395, %c0_86, %c0_87] : memref<8x8x512xf32, #tpu.memory_space<vmem>>, vector<1x8x512xf32>
    %397 = vector.shape_cast %396 : vector<1x8x512xf32> to vector<8x512xf32>
    %cst_88 = arith.constant dense<0.000000e+00> : vector<8x512xf32>
    %398 = tpu.matmul %385, %14, %cst_88 {dimension_numbers = #tpu.dot_dimension_numbers<[1], [0], [0], [1], [0, 0, 1, 1], [], []>} : vector<8x128xf32>, vector<128x512xf32>, vector<8x512xf32> -> vector<8x512xf32>
    %399 = arith.addf %397, %398 : vector<8x512xf32>
    %400 = vector.extract_strided_slice %399 {offsets = [0, 0], sizes = [8, 128], strides = [1, 1]} : vector<8x512xf32> to vector<8x128xf32>
    %401 = arith.negf %400 : vector<8x128xf32>
    %402 = math.exp %401 : vector<8x128xf32>
    %cst_89 = arith.constant 1.000000e+00 : f32
    %403 = vector.broadcast %cst_89 : f32 to vector<8x128xf32>
    %404 = arith.addf %403, %402 : vector<8x128xf32>
    %405 = arith.divf %403, %404 : vector<8x128xf32>
    %406 = vector.extract_strided_slice %399 {offsets = [0, 128], sizes = [8, 128], strides = [1, 1]} : vector<8x512xf32> to vector<8x128xf32>
    %407 = arith.negf %406 : vector<8x128xf32>
    %408 = math.exp %407 : vector<8x128xf32>
    %cst_90 = arith.constant 1.000000e+00 : f32
    %409 = vector.broadcast %cst_90 : f32 to vector<8x128xf32>
    %410 = arith.addf %409, %408 : vector<8x128xf32>
    %411 = arith.divf %409, %410 : vector<8x128xf32>
    %412 = vector.extract_strided_slice %399 {offsets = [0, 256], sizes = [8, 128], strides = [1, 1]} : vector<8x512xf32> to vector<8x128xf32>
    %413 = math.tanh %412 : vector<8x128xf32>
    %414 = vector.extract_strided_slice %399 {offsets = [0, 384], sizes = [8, 128], strides = [1, 1]} : vector<8x512xf32> to vector<8x128xf32>
    %415 = arith.negf %414 : vector<8x128xf32>
    %416 = math.exp %415 : vector<8x128xf32>
    %cst_91 = arith.constant 1.000000e+00 : f32
    %417 = vector.broadcast %cst_91 : f32 to vector<8x128xf32>
    %418 = arith.addf %417, %416 : vector<8x128xf32>
    %419 = arith.divf %417, %418 : vector<8x128xf32>
    %420 = arith.mulf %411, %388 : vector<8x128xf32>
    %421 = arith.mulf %405, %413 : vector<8x128xf32>
    %422 = arith.addf %420, %421 : vector<8x128xf32>
    %423 = math.tanh %422 : vector<8x128xf32>
    %424 = arith.mulf %419, %423 : vector<8x128xf32>
    %425 = tpu.concatenate %424, %391 in 1 : vector<8x128xf32>, vector<8x128xf32> -> vector<8x256xf32>
    %cst_92 = arith.constant dense<0.000000e+00> : vector<8x512xf32>
    %426 = tpu.matmul %425, %15, %cst_92 {dimension_numbers = #tpu.dot_dimension_numbers<[1], [0], [0], [1], [0, 0, 1, 1], [], []>} : vector<8x256xf32>, vector<256x512xf32>, vector<8x512xf32> -> vector<8x512xf32>
    %427 = arith.addf %426, %18 : vector<8x512xf32>
    %428 = vector.extract_strided_slice %427 {offsets = [0, 0], sizes = [8, 128], strides = [1, 1]} : vector<8x512xf32> to vector<8x128xf32>
    %429 = arith.negf %428 : vector<8x128xf32>
    %430 = math.exp %429 : vector<8x128xf32>
    %cst_93 = arith.constant 1.000000e+00 : f32
    %431 = vector.broadcast %cst_93 : f32 to vector<8x128xf32>
    %432 = arith.addf %431, %430 : vector<8x128xf32>
    %433 = arith.divf %431, %432 : vector<8x128xf32>
    %434 = vector.extract_strided_slice %427 {offsets = [0, 128], sizes = [8, 128], strides = [1, 1]} : vector<8x512xf32> to vector<8x128xf32>
    %435 = arith.negf %434 : vector<8x128xf32>
    %436 = math.exp %435 : vector<8x128xf32>
    %cst_94 = arith.constant 1.000000e+00 : f32
    %437 = vector.broadcast %cst_94 : f32 to vector<8x128xf32>
    %438 = arith.addf %437, %436 : vector<8x128xf32>
    %439 = arith.divf %437, %438 : vector<8x128xf32>
    %440 = vector.extract_strided_slice %427 {offsets = [0, 256], sizes = [8, 128], strides = [1, 1]} : vector<8x512xf32> to vector<8x128xf32>
    %441 = math.tanh %440 : vector<8x128xf32>
    %442 = vector.extract_strided_slice %427 {offsets = [0, 384], sizes = [8, 128], strides = [1, 1]} : vector<8x512xf32> to vector<8x128xf32>
    %443 = arith.negf %442 : vector<8x128xf32>
    %444 = math.exp %443 : vector<8x128xf32>
    %cst_95 = arith.constant 1.000000e+00 : f32
    %445 = vector.broadcast %cst_95 : f32 to vector<8x128xf32>
    %446 = arith.addf %445, %444 : vector<8x128xf32>
    %447 = arith.divf %445, %446 : vector<8x128xf32>
    %448 = arith.mulf %439, %394 : vector<8x128xf32>
    %449 = arith.mulf %433, %441 : vector<8x128xf32>
    %450 = arith.addf %448, %449 : vector<8x128xf32>
    %451 = math.tanh %450 : vector<8x128xf32>
    %452 = arith.mulf %447, %451 : vector<8x128xf32>
    %453 = arith.index_cast %c5_i32 : i32 to index
    %c0_96 = arith.constant 0 : index
    %c0_97 = arith.constant 0 : index
    %454 = vector.load %arg2[%453, %c0_96, %c0_97] : memref<8x8x1xf32, #tpu.memory_space<vmem>>, vector<1x8x1xf32>
    %455 = vector.shape_cast %454 : vector<1x8x1xf32> to vector<8x1xf32>
    %cst_98 = arith.constant 0.000000e+00 : f32
    %456 = vector.broadcast %cst_98 : f32 to vector<8x1xf32>
    %457 = arith.cmpf ogt, %455, %456 : vector<8x1xf32>
    %458 = vector.shape_cast %457 : vector<8x1xi1> to vector<8x1xi1>
    %459 = vector.broadcast %458 : vector<8x1xi1> to vector<8x128xi1>
    %460 = arith.select %459, %424, %385 : vector<8x128xi1>, vector<8x128xf32>
    %461 = vector.shape_cast %457 : vector<8x1xi1> to vector<8x1xi1>
    %462 = vector.broadcast %461 : vector<8x1xi1> to vector<8x128xi1>
    %463 = arith.select %462, %422, %388 : vector<8x128xi1>, vector<8x128xf32>
    %464 = vector.shape_cast %457 : vector<8x1xi1> to vector<8x1xi1>
    %465 = vector.broadcast %464 : vector<8x1xi1> to vector<8x128xi1>
    %466 = arith.select %465, %452, %391 : vector<8x128xi1>, vector<8x128xf32>
    %467 = vector.shape_cast %457 : vector<8x1xi1> to vector<8x1xi1>
    %468 = vector.broadcast %467 : vector<8x1xi1> to vector<8x128xi1>
    %469 = arith.select %468, %450, %394 : vector<8x128xi1>, vector<8x128xf32>
    %c6_i32 = arith.constant 6 : i32
    %470 = arith.index_cast %c6_i32 : i32 to index
    %c0_99 = arith.constant 0 : index
    %c0_100 = arith.constant 0 : index
    %471 = vector.load %arg20[%470, %c0_99, %c0_100] : memref<8x8x512xf32, #tpu.memory_space<vmem>>, vector<1x8x512xf32>
    %472 = vector.shape_cast %471 : vector<1x8x512xf32> to vector<8x512xf32>
    %cst_101 = arith.constant dense<0.000000e+00> : vector<8x512xf32>
    %473 = tpu.matmul %460, %14, %cst_101 {dimension_numbers = #tpu.dot_dimension_numbers<[1], [0], [0], [1], [0, 0, 1, 1], [], []>} : vector<8x128xf32>, vector<128x512xf32>, vector<8x512xf32> -> vector<8x512xf32>
    %474 = arith.addf %472, %473 : vector<8x512xf32>
    %475 = vector.extract_strided_slice %474 {offsets = [0, 0], sizes = [8, 128], strides = [1, 1]} : vector<8x512xf32> to vector<8x128xf32>
    %476 = arith.negf %475 : vector<8x128xf32>
    %477 = math.exp %476 : vector<8x128xf32>
    %cst_102 = arith.constant 1.000000e+00 : f32
    %478 = vector.broadcast %cst_102 : f32 to vector<8x128xf32>
    %479 = arith.addf %478, %477 : vector<8x128xf32>
    %480 = arith.divf %478, %479 : vector<8x128xf32>
    %481 = vector.extract_strided_slice %474 {offsets = [0, 128], sizes = [8, 128], strides = [1, 1]} : vector<8x512xf32> to vector<8x128xf32>
    %482 = arith.negf %481 : vector<8x128xf32>
    %483 = math.exp %482 : vector<8x128xf32>
    %cst_103 = arith.constant 1.000000e+00 : f32
    %484 = vector.broadcast %cst_103 : f32 to vector<8x128xf32>
    %485 = arith.addf %484, %483 : vector<8x128xf32>
    %486 = arith.divf %484, %485 : vector<8x128xf32>
    %487 = vector.extract_strided_slice %474 {offsets = [0, 256], sizes = [8, 128], strides = [1, 1]} : vector<8x512xf32> to vector<8x128xf32>
    %488 = math.tanh %487 : vector<8x128xf32>
    %489 = vector.extract_strided_slice %474 {offsets = [0, 384], sizes = [8, 128], strides = [1, 1]} : vector<8x512xf32> to vector<8x128xf32>
    %490 = arith.negf %489 : vector<8x128xf32>
    %491 = math.exp %490 : vector<8x128xf32>
    %cst_104 = arith.constant 1.000000e+00 : f32
    %492 = vector.broadcast %cst_104 : f32 to vector<8x128xf32>
    %493 = arith.addf %492, %491 : vector<8x128xf32>
    %494 = arith.divf %492, %493 : vector<8x128xf32>
    %495 = arith.mulf %486, %463 : vector<8x128xf32>
    %496 = arith.mulf %480, %488 : vector<8x128xf32>
    %497 = arith.addf %495, %496 : vector<8x128xf32>
    %498 = math.tanh %497 : vector<8x128xf32>
    %499 = arith.mulf %494, %498 : vector<8x128xf32>
    %500 = tpu.concatenate %499, %466 in 1 : vector<8x128xf32>, vector<8x128xf32> -> vector<8x256xf32>
    %cst_105 = arith.constant dense<0.000000e+00> : vector<8x512xf32>
    %501 = tpu.matmul %500, %15, %cst_105 {dimension_numbers = #tpu.dot_dimension_numbers<[1], [0], [0], [1], [0, 0, 1, 1], [], []>} : vector<8x256xf32>, vector<256x512xf32>, vector<8x512xf32> -> vector<8x512xf32>
    %502 = arith.addf %501, %18 : vector<8x512xf32>
    %503 = vector.extract_strided_slice %502 {offsets = [0, 0], sizes = [8, 128], strides = [1, 1]} : vector<8x512xf32> to vector<8x128xf32>
    %504 = arith.negf %503 : vector<8x128xf32>
    %505 = math.exp %504 : vector<8x128xf32>
    %cst_106 = arith.constant 1.000000e+00 : f32
    %506 = vector.broadcast %cst_106 : f32 to vector<8x128xf32>
    %507 = arith.addf %506, %505 : vector<8x128xf32>
    %508 = arith.divf %506, %507 : vector<8x128xf32>
    %509 = vector.extract_strided_slice %502 {offsets = [0, 128], sizes = [8, 128], strides = [1, 1]} : vector<8x512xf32> to vector<8x128xf32>
    %510 = arith.negf %509 : vector<8x128xf32>
    %511 = math.exp %510 : vector<8x128xf32>
    %cst_107 = arith.constant 1.000000e+00 : f32
    %512 = vector.broadcast %cst_107 : f32 to vector<8x128xf32>
    %513 = arith.addf %512, %511 : vector<8x128xf32>
    %514 = arith.divf %512, %513 : vector<8x128xf32>
    %515 = vector.extract_strided_slice %502 {offsets = [0, 256], sizes = [8, 128], strides = [1, 1]} : vector<8x512xf32> to vector<8x128xf32>
    %516 = math.tanh %515 : vector<8x128xf32>
    %517 = vector.extract_strided_slice %502 {offsets = [0, 384], sizes = [8, 128], strides = [1, 1]} : vector<8x512xf32> to vector<8x128xf32>
    %518 = arith.negf %517 : vector<8x128xf32>
    %519 = math.exp %518 : vector<8x128xf32>
    %cst_108 = arith.constant 1.000000e+00 : f32
    %520 = vector.broadcast %cst_108 : f32 to vector<8x128xf32>
    %521 = arith.addf %520, %519 : vector<8x128xf32>
    %522 = arith.divf %520, %521 : vector<8x128xf32>
    %523 = arith.mulf %514, %469 : vector<8x128xf32>
    %524 = arith.mulf %508, %516 : vector<8x128xf32>
    %525 = arith.addf %523, %524 : vector<8x128xf32>
    %526 = math.tanh %525 : vector<8x128xf32>
    %527 = arith.mulf %522, %526 : vector<8x128xf32>
    %528 = arith.index_cast %c6_i32 : i32 to index
    %c0_109 = arith.constant 0 : index
    %c0_110 = arith.constant 0 : index
    %529 = vector.load %arg2[%528, %c0_109, %c0_110] : memref<8x8x1xf32, #tpu.memory_space<vmem>>, vector<1x8x1xf32>
    %530 = vector.shape_cast %529 : vector<1x8x1xf32> to vector<8x1xf32>
    %cst_111 = arith.constant 0.000000e+00 : f32
    %531 = vector.broadcast %cst_111 : f32 to vector<8x1xf32>
    %532 = arith.cmpf ogt, %530, %531 : vector<8x1xf32>
    %533 = vector.shape_cast %532 : vector<8x1xi1> to vector<8x1xi1>
    %534 = vector.broadcast %533 : vector<8x1xi1> to vector<8x128xi1>
    %535 = arith.select %534, %499, %460 : vector<8x128xi1>, vector<8x128xf32>
    %536 = vector.shape_cast %532 : vector<8x1xi1> to vector<8x1xi1>
    %537 = vector.broadcast %536 : vector<8x1xi1> to vector<8x128xi1>
    %538 = arith.select %537, %497, %463 : vector<8x128xi1>, vector<8x128xf32>
    %539 = vector.shape_cast %532 : vector<8x1xi1> to vector<8x1xi1>
    %540 = vector.broadcast %539 : vector<8x1xi1> to vector<8x128xi1>
    %541 = arith.select %540, %527, %466 : vector<8x128xi1>, vector<8x128xf32>
    %542 = vector.shape_cast %532 : vector<8x1xi1> to vector<8x1xi1>
    %543 = vector.broadcast %542 : vector<8x1xi1> to vector<8x128xi1>
    %544 = arith.select %543, %525, %469 : vector<8x128xi1>, vector<8x128xf32>
    %c7_i32 = arith.constant 7 : i32
    %545 = arith.index_cast %c7_i32 : i32 to index
    %c0_112 = arith.constant 0 : index
    %c0_113 = arith.constant 0 : index
    %546 = vector.load %arg20[%545, %c0_112, %c0_113] : memref<8x8x512xf32, #tpu.memory_space<vmem>>, vector<1x8x512xf32>
    %547 = vector.shape_cast %546 : vector<1x8x512xf32> to vector<8x512xf32>
    %cst_114 = arith.constant dense<0.000000e+00> : vector<8x512xf32>
    %548 = tpu.matmul %535, %14, %cst_114 {dimension_numbers = #tpu.dot_dimension_numbers<[1], [0], [0], [1], [0, 0, 1, 1], [], []>} : vector<8x128xf32>, vector<128x512xf32>, vector<8x512xf32> -> vector<8x512xf32>
    %549 = arith.addf %547, %548 : vector<8x512xf32>
    %550 = vector.extract_strided_slice %549 {offsets = [0, 0], sizes = [8, 128], strides = [1, 1]} : vector<8x512xf32> to vector<8x128xf32>
    %551 = arith.negf %550 : vector<8x128xf32>
    %552 = math.exp %551 : vector<8x128xf32>
    %cst_115 = arith.constant 1.000000e+00 : f32
    %553 = vector.broadcast %cst_115 : f32 to vector<8x128xf32>
    %554 = arith.addf %553, %552 : vector<8x128xf32>
    %555 = arith.divf %553, %554 : vector<8x128xf32>
    %556 = vector.extract_strided_slice %549 {offsets = [0, 128], sizes = [8, 128], strides = [1, 1]} : vector<8x512xf32> to vector<8x128xf32>
    %557 = arith.negf %556 : vector<8x128xf32>
    %558 = math.exp %557 : vector<8x128xf32>
    %cst_116 = arith.constant 1.000000e+00 : f32
    %559 = vector.broadcast %cst_116 : f32 to vector<8x128xf32>
    %560 = arith.addf %559, %558 : vector<8x128xf32>
    %561 = arith.divf %559, %560 : vector<8x128xf32>
    %562 = vector.extract_strided_slice %549 {offsets = [0, 256], sizes = [8, 128], strides = [1, 1]} : vector<8x512xf32> to vector<8x128xf32>
    %563 = math.tanh %562 : vector<8x128xf32>
    %564 = vector.extract_strided_slice %549 {offsets = [0, 384], sizes = [8, 128], strides = [1, 1]} : vector<8x512xf32> to vector<8x128xf32>
    %565 = arith.negf %564 : vector<8x128xf32>
    %566 = math.exp %565 : vector<8x128xf32>
    %cst_117 = arith.constant 1.000000e+00 : f32
    %567 = vector.broadcast %cst_117 : f32 to vector<8x128xf32>
    %568 = arith.addf %567, %566 : vector<8x128xf32>
    %569 = arith.divf %567, %568 : vector<8x128xf32>
    %570 = arith.mulf %561, %538 : vector<8x128xf32>
    %571 = arith.mulf %555, %563 : vector<8x128xf32>
    %572 = arith.addf %570, %571 : vector<8x128xf32>
    %573 = math.tanh %572 : vector<8x128xf32>
    %574 = arith.mulf %569, %573 : vector<8x128xf32>
    %575 = tpu.concatenate %574, %541 in 1 : vector<8x128xf32>, vector<8x128xf32> -> vector<8x256xf32>
    %cst_118 = arith.constant dense<0.000000e+00> : vector<8x512xf32>
    %576 = tpu.matmul %575, %15, %cst_118 {dimension_numbers = #tpu.dot_dimension_numbers<[1], [0], [0], [1], [0, 0, 1, 1], [], []>} : vector<8x256xf32>, vector<256x512xf32>, vector<8x512xf32> -> vector<8x512xf32>
    %577 = arith.addf %576, %18 : vector<8x512xf32>
    %578 = vector.extract_strided_slice %577 {offsets = [0, 0], sizes = [8, 128], strides = [1, 1]} : vector<8x512xf32> to vector<8x128xf32>
    %579 = arith.negf %578 : vector<8x128xf32>
    %580 = math.exp %579 : vector<8x128xf32>
    %cst_119 = arith.constant 1.000000e+00 : f32
    %581 = vector.broadcast %cst_119 : f32 to vector<8x128xf32>
    %582 = arith.addf %581, %580 : vector<8x128xf32>
    %583 = arith.divf %581, %582 : vector<8x128xf32>
    %584 = vector.extract_strided_slice %577 {offsets = [0, 128], sizes = [8, 128], strides = [1, 1]} : vector<8x512xf32> to vector<8x128xf32>
    %585 = arith.negf %584 : vector<8x128xf32>
    %586 = math.exp %585 : vector<8x128xf32>
    %cst_120 = arith.constant 1.000000e+00 : f32
    %587 = vector.broadcast %cst_120 : f32 to vector<8x128xf32>
    %588 = arith.addf %587, %586 : vector<8x128xf32>
    %589 = arith.divf %587, %588 : vector<8x128xf32>
    %590 = vector.extract_strided_slice %577 {offsets = [0, 256], sizes = [8, 128], strides = [1, 1]} : vector<8x512xf32> to vector<8x128xf32>
    %591 = math.tanh %590 : vector<8x128xf32>
    %592 = vector.extract_strided_slice %577 {offsets = [0, 384], sizes = [8, 128], strides = [1, 1]} : vector<8x512xf32> to vector<8x128xf32>
    %593 = arith.negf %592 : vector<8x128xf32>
    %594 = math.exp %593 : vector<8x128xf32>
    %cst_121 = arith.constant 1.000000e+00 : f32
    %595 = vector.broadcast %cst_121 : f32 to vector<8x128xf32>
    %596 = arith.addf %595, %594 : vector<8x128xf32>
    %597 = arith.divf %595, %596 : vector<8x128xf32>
    %598 = arith.mulf %589, %544 : vector<8x128xf32>
    %599 = arith.mulf %583, %591 : vector<8x128xf32>
    %600 = arith.addf %598, %599 : vector<8x128xf32>
    %601 = math.tanh %600 : vector<8x128xf32>
    %602 = arith.mulf %597, %601 : vector<8x128xf32>
    %603 = arith.index_cast %c7_i32 : i32 to index
    %c0_122 = arith.constant 0 : index
    %c0_123 = arith.constant 0 : index
    %604 = vector.load %arg2[%603, %c0_122, %c0_123] : memref<8x8x1xf32, #tpu.memory_space<vmem>>, vector<1x8x1xf32>
    %605 = vector.shape_cast %604 : vector<1x8x1xf32> to vector<8x1xf32>
    %cst_124 = arith.constant 0.000000e+00 : f32
    %606 = vector.broadcast %cst_124 : f32 to vector<8x1xf32>
    %607 = arith.cmpf ogt, %605, %606 : vector<8x1xf32>
    %608 = vector.shape_cast %607 : vector<8x1xi1> to vector<8x1xi1>
    %609 = vector.broadcast %608 : vector<8x1xi1> to vector<8x128xi1>
    %610 = arith.select %609, %574, %535 : vector<8x128xi1>, vector<8x128xf32>
    %611 = vector.shape_cast %607 : vector<8x1xi1> to vector<8x1xi1>
    %612 = vector.broadcast %611 : vector<8x1xi1> to vector<8x128xi1>
    %613 = arith.select %612, %572, %538 : vector<8x128xi1>, vector<8x128xf32>
    %614 = vector.shape_cast %607 : vector<8x1xi1> to vector<8x1xi1>
    %615 = vector.broadcast %614 : vector<8x1xi1> to vector<8x128xi1>
    %616 = arith.select %615, %602, %541 : vector<8x128xi1>, vector<8x128xf32>
    %617 = vector.shape_cast %607 : vector<8x1xi1> to vector<8x1xi1>
    %618 = vector.broadcast %617 : vector<8x1xi1> to vector<8x128xi1>
    %619 = arith.select %618, %600, %544 : vector<8x128xi1>, vector<8x128xf32>
    %c8_i32 = arith.constant 8 : i32
    %c0_125 = arith.constant 0 : index
    %c0_126 = arith.constant 0 : index
    %620 = vector.load %arg11[%c0_125, %c0_126] : memref<28x28xf32, #tpu.memory_space<vmem>>, vector<28x28xf32>
    %c0_127 = arith.constant 0 : index
    %c0_128 = arith.constant 0 : index
    %621 = vector.load %arg12[%c0_127, %c0_128] : memref<28x512xf32, #tpu.memory_space<vmem>>, vector<28x512xf32>
    %cst_129 = arith.constant dense<0.000000e+00> : vector<28x512xf32>
    %622 = tpu.matmul %620, %621, %cst_129 {dimension_numbers = #tpu.dot_dimension_numbers<[1], [0], [0], [1], [0, 0, 1, 1], [], []>} : vector<28x28xf32>, vector<28x512xf32>, vector<28x512xf32> -> vector<28x512xf32>
    %623 = tpu.iota {dimensions = array<i32: 2>} : vector<8x8x28xi32>
    %c0_130 = arith.constant 0 : index
    %c0_131 = arith.constant 0 : index
    %c0_132 = arith.constant 0 : index
    %624 = vector.load %arg3[%c0_130, %c0_131, %c0_132] : memref<8x8x1xi32, #tpu.memory_space<vmem>>, vector<8x8x1xi32>
    %625 = vector.broadcast %624 : vector<8x8x1xi32> to vector<8x8x28xi32>
    %626 = arith.cmpi eq, %623, %625 : vector<8x8x28xi32>
    %627 = arith.extui %626 : vector<8x8x28xi1> to vector<8x8x28xi32>
    %628 = arith.sitofp %627 : vector<8x8x28xi32> to vector<8x8x28xf32>
    %629 = vector.shape_cast %628 : vector<8x8x28xf32> to vector<64x28xf32>
    %cst_133 = arith.constant dense<0.000000e+00> : vector<64x512xf32>
    %630 = tpu.matmul %629, %622, %cst_133 {dimension_numbers = #tpu.dot_dimension_numbers<[1], [0], [0], [1], [0, 0, 1, 1], [], []>} : vector<64x28xf32>, vector<28x512xf32>, vector<64x512xf32> -> vector<64x512xf32>
    %c0_134 = arith.constant 0 : index
    %c0_135 = arith.constant 0 : index
    %631 = vector.load %arg14[%c0_134, %c0_135] : memref<1x512xf32, #tpu.memory_space<vmem>>, vector<1x512xf32>
    %632 = vector.broadcast %631 : vector<1x512xf32> to vector<64x512xf32>
    %633 = arith.addf %630, %632 : vector<64x512xf32>
    %634 = vector.shape_cast %633 : vector<64x512xf32> to vector<8x8x512xf32>
    %c0_136 = arith.constant 0 : index
    %c0_137 = arith.constant 0 : index
    %c0_138 = arith.constant 0 : index
    %635 = vector.load %arg21[%c0_136, %c0_137, %c0_138] : memref<8x8x512xf32, #tpu.memory_space<vmem>>, vector<8x8x512xf32>
    tpu.vector_store %arg21[%c0_136, %c0_137, %c0_138], %634 {strides = array<i32>} : memref<8x8x512xf32, #tpu.memory_space<vmem>>, vector<8x8x512xf32>,
    %c0_139 = arith.constant 0 : index
    %c0_140 = arith.constant 0 : index
    %636 = vector.load %arg13[%c0_139, %c0_140] : memref<128x512xf32, #tpu.memory_space<vmem>>, vector<128x512xf32>
    %c0_141 = arith.constant 0 : index
    %c0_142 = arith.constant 0 : index
    %637 = vector.load %arg15[%c0_141, %c0_142] : memref<256x512xf32, #tpu.memory_space<vmem>>, vector<256x512xf32>
    %c0_143 = arith.constant 0 : index
    %c0_144 = arith.constant 0 : index
    %638 = vector.load %arg16[%c0_143, %c0_144] : memref<1x512xf32, #tpu.memory_space<vmem>>, vector<1x512xf32>
    %639 = vector.shape_cast %638 : vector<1x512xf32> to vector<1x512xf32>
    %640 = vector.broadcast %639 : vector<1x512xf32> to vector<8x512xf32>
    %c0_i32_145 = arith.constant 0 : i32
    %641 = arith.index_cast %c0_i32_145 : i32 to index
    %c0_146 = arith.constant 0 : index
    %c0_147 = arith.constant 0 : index
    %642 = vector.load %arg21[%641, %c0_146, %c0_147] : memref<8x8x512xf32, #tpu.memory_space<vmem>>, vector<1x8x512xf32>
    %643 = vector.shape_cast %642 : vector<1x8x512xf32> to vector<8x512xf32>
    %cst_148 = arith.constant dense<0.000000e+00> : vector<8x512xf32>
    %644 = tpu.matmul %610, %636, %cst_148 {dimension_numbers = #tpu.dot_dimension_numbers<[1], [0], [0], [1], [0, 0, 1, 1], [], []>} : vector<8x128xf32>, vector<128x512xf32>, vector<8x512xf32> -> vector<8x512xf32>
    %645 = arith.addf %643, %644 : vector<8x512xf32>
    %646 = vector.extract_strided_slice %645 {offsets = [0, 0], sizes = [8, 128], strides = [1, 1]} : vector<8x512xf32> to vector<8x128xf32>
    %647 = arith.negf %646 : vector<8x128xf32>
    %648 = math.exp %647 : vector<8x128xf32>
    %cst_149 = arith.constant 1.000000e+00 : f32
    %649 = vector.broadcast %cst_149 : f32 to vector<8x128xf32>
    %650 = arith.addf %649, %648 : vector<8x128xf32>
    %651 = arith.divf %649, %650 : vector<8x128xf32>
    %652 = vector.extract_strided_slice %645 {offsets = [0, 128], sizes = [8, 128], strides = [1, 1]} : vector<8x512xf32> to vector<8x128xf32>
    %653 = arith.negf %652 : vector<8x128xf32>
    %654 = math.exp %653 : vector<8x128xf32>
    %cst_150 = arith.constant 1.000000e+00 : f32
    %655 = vector.broadcast %cst_150 : f32 to vector<8x128xf32>
    %656 = arith.addf %655, %654 : vector<8x128xf32>
    %657 = arith.divf %655, %656 : vector<8x128xf32>
    %658 = vector.extract_strided_slice %645 {offsets = [0, 256], sizes = [8, 128], strides = [1, 1]} : vector<8x512xf32> to vector<8x128xf32>
    %659 = math.tanh %658 : vector<8x128xf32>
    %660 = vector.extract_strided_slice %645 {offsets = [0, 384], sizes = [8, 128], strides = [1, 1]} : vector<8x512xf32> to vector<8x128xf32>
    %661 = arith.negf %660 : vector<8x128xf32>
    %662 = math.exp %661 : vector<8x128xf32>
    %cst_151 = arith.constant 1.000000e+00 : f32
    %663 = vector.broadcast %cst_151 : f32 to vector<8x128xf32>
    %664 = arith.addf %663, %662 : vector<8x128xf32>
    %665 = arith.divf %663, %664 : vector<8x128xf32>
    %666 = arith.mulf %657, %613 : vector<8x128xf32>
    %667 = arith.mulf %651, %659 : vector<8x128xf32>
    %668 = arith.addf %666, %667 : vector<8x128xf32>
    %669 = math.tanh %668 : vector<8x128xf32>
    %670 = arith.mulf %665, %669 : vector<8x128xf32>
    %671 = tpu.concatenate %670, %616 in 1 : vector<8x128xf32>, vector<8x128xf32> -> vector<8x256xf32>
    %cst_152 = arith.constant dense<0.000000e+00> : vector<8x512xf32>
    %672 = tpu.matmul %671, %637, %cst_152 {dimension_numbers = #tpu.dot_dimension_numbers<[1], [0], [0], [1], [0, 0, 1, 1], [], []>} : vector<8x256xf32>, vector<256x512xf32>, vector<8x512xf32> -> vector<8x512xf32>
    %673 = arith.addf %672, %640 : vector<8x512xf32>
    %674 = vector.extract_strided_slice %673 {offsets = [0, 0], sizes = [8, 128], strides = [1, 1]} : vector<8x512xf32> to vector<8x128xf32>
    %675 = arith.negf %674 : vector<8x128xf32>
    %676 = math.exp %675 : vector<8x128xf32>
    %cst_153 = arith.constant 1.000000e+00 : f32
    %677 = vector.broadcast %cst_153 : f32 to vector<8x128xf32>
    %678 = arith.addf %677, %676 : vector<8x128xf32>
    %679 = arith.divf %677, %678 : vector<8x128xf32>
    %680 = vector.extract_strided_slice %673 {offsets = [0, 128], sizes = [8, 128], strides = [1, 1]} : vector<8x512xf32> to vector<8x128xf32>
    %681 = arith.negf %680 : vector<8x128xf32>
    %682 = math.exp %681 : vector<8x128xf32>
    %cst_154 = arith.constant 1.000000e+00 : f32
    %683 = vector.broadcast %cst_154 : f32 to vector<8x128xf32>
    %684 = arith.addf %683, %682 : vector<8x128xf32>
    %685 = arith.divf %683, %684 : vector<8x128xf32>
    %686 = vector.extract_strided_slice %673 {offsets = [0, 256], sizes = [8, 128], strides = [1, 1]} : vector<8x512xf32> to vector<8x128xf32>
    %687 = math.tanh %686 : vector<8x128xf32>
    %688 = vector.extract_strided_slice %673 {offsets = [0, 384], sizes = [8, 128], strides = [1, 1]} : vector<8x512xf32> to vector<8x128xf32>
    %689 = arith.negf %688 : vector<8x128xf32>
    %690 = math.exp %689 : vector<8x128xf32>
    %cst_155 = arith.constant 1.000000e+00 : f32
    %691 = vector.broadcast %cst_155 : f32 to vector<8x128xf32>
    %692 = arith.addf %691, %690 : vector<8x128xf32>
    %693 = arith.divf %691, %692 : vector<8x128xf32>
    %694 = arith.mulf %685, %619 : vector<8x128xf32>
    %695 = arith.mulf %679, %687 : vector<8x128xf32>
    %696 = arith.addf %694, %695 : vector<8x128xf32>
    %697 = math.tanh %696 : vector<8x128xf32>
    %698 = arith.mulf %693, %697 : vector<8x128xf32>
    %699 = arith.index_cast %c0_i32_145 : i32 to index
    %c0_156 = arith.constant 0 : index
    %c0_157 = arith.constant 0 : index
    %700 = vector.load %arg22[%699, %c0_156, %c0_157] : memref<8x8x128xf32, #tpu.memory_space<vmem>>, vector<1x8x128xf32>
    %701 = vector.shape_cast %700 : vector<1x8x128xf32> to vector<8x128xf32>
    %702 = vector.shape_cast %698 : vector<8x128xf32> to vector<1x8x128xf32>
    tpu.vector_store %arg22[%699, %c0_156, %c0_157], %702 {strides = array<i32>} : memref<8x8x128xf32, #tpu.memory_space<vmem>>, vector<1x8x128xf32>,
    %c1_i32_158 = arith.constant 1 : i32
    %703 = arith.index_cast %c1_i32_158 : i32 to index
    %c0_159 = arith.constant 0 : index
    %c0_160 = arith.constant 0 : index
    %704 = vector.load %arg21[%703, %c0_159, %c0_160] : memref<8x8x512xf32, #tpu.memory_space<vmem>>, vector<1x8x512xf32>
    %705 = vector.shape_cast %704 : vector<1x8x512xf32> to vector<8x512xf32>
    %cst_161 = arith.constant dense<0.000000e+00> : vector<8x512xf32>
    %706 = tpu.matmul %670, %636, %cst_161 {dimension_numbers = #tpu.dot_dimension_numbers<[1], [0], [0], [1], [0, 0, 1, 1], [], []>} : vector<8x128xf32>, vector<128x512xf32>, vector<8x512xf32> -> vector<8x512xf32>
    %707 = arith.addf %705, %706 : vector<8x512xf32>
    %708 = vector.extract_strided_slice %707 {offsets = [0, 0], sizes = [8, 128], strides = [1, 1]} : vector<8x512xf32> to vector<8x128xf32>
    %709 = arith.negf %708 : vector<8x128xf32>
    %710 = math.exp %709 : vector<8x128xf32>
    %cst_162 = arith.constant 1.000000e+00 : f32
    %711 = vector.broadcast %cst_162 : f32 to vector<8x128xf32>
    %712 = arith.addf %711, %710 : vector<8x128xf32>
    %713 = arith.divf %711, %712 : vector<8x128xf32>
    %714 = vector.extract_strided_slice %707 {offsets = [0, 128], sizes = [8, 128], strides = [1, 1]} : vector<8x512xf32> to vector<8x128xf32>
    %715 = arith.negf %714 : vector<8x128xf32>
    %716 = math.exp %715 : vector<8x128xf32>
    %cst_163 = arith.constant 1.000000e+00 : f32
    %717 = vector.broadcast %cst_163 : f32 to vector<8x128xf32>
    %718 = arith.addf %717, %716 : vector<8x128xf32>
    %719 = arith.divf %717, %718 : vector<8x128xf32>
    %720 = vector.extract_strided_slice %707 {offsets = [0, 256], sizes = [8, 128], strides = [1, 1]} : vector<8x512xf32> to vector<8x128xf32>
    %721 = math.tanh %720 : vector<8x128xf32>
    %722 = vector.extract_strided_slice %707 {offsets = [0, 384], sizes = [8, 128], strides = [1, 1]} : vector<8x512xf32> to vector<8x128xf32>
    %723 = arith.negf %722 : vector<8x128xf32>
    %724 = math.exp %723 : vector<8x128xf32>
    %cst_164 = arith.constant 1.000000e+00 : f32
    %725 = vector.broadcast %cst_164 : f32 to vector<8x128xf32>
    %726 = arith.addf %725, %724 : vector<8x128xf32>
    %727 = arith.divf %725, %726 : vector<8x128xf32>
    %728 = arith.mulf %719, %668 : vector<8x128xf32>
    %729 = arith.mulf %713, %721 : vector<8x128xf32>
    %730 = arith.addf %728, %729 : vector<8x128xf32>
    %731 = math.tanh %730 : vector<8x128xf32>
    %732 = arith.mulf %727, %731 : vector<8x128xf32>
    %733 = tpu.concatenate %732, %698 in 1 : vector<8x128xf32>, vector<8x128xf32> -> vector<8x256xf32>
    %cst_165 = arith.constant dense<0.000000e+00> : vector<8x512xf32>
    %734 = tpu.matmul %733, %637, %cst_165 {dimension_numbers = #tpu.dot_dimension_numbers<[1], [0], [0], [1], [0, 0, 1, 1], [], []>} : vector<8x256xf32>, vector<256x512xf32>, vector<8x512xf32> -> vector<8x512xf32>
    %735 = arith.addf %734, %640 : vector<8x512xf32>
    %736 = vector.extract_strided_slice %735 {offsets = [0, 0], sizes = [8, 128], strides = [1, 1]} : vector<8x512xf32> to vector<8x128xf32>
    %737 = arith.negf %736 : vector<8x128xf32>
    %738 = math.exp %737 : vector<8x128xf32>
    %cst_166 = arith.constant 1.000000e+00 : f32
    %739 = vector.broadcast %cst_166 : f32 to vector<8x128xf32>
    %740 = arith.addf %739, %738 : vector<8x128xf32>
    %741 = arith.divf %739, %740 : vector<8x128xf32>
    %742 = vector.extract_strided_slice %735 {offsets = [0, 128], sizes = [8, 128], strides = [1, 1]} : vector<8x512xf32> to vector<8x128xf32>
    %743 = arith.negf %742 : vector<8x128xf32>
    %744 = math.exp %743 : vector<8x128xf32>
    %cst_167 = arith.constant 1.000000e+00 : f32
    %745 = vector.broadcast %cst_167 : f32 to vector<8x128xf32>
    %746 = arith.addf %745, %744 : vector<8x128xf32>
    %747 = arith.divf %745, %746 : vector<8x128xf32>
    %748 = vector.extract_strided_slice %735 {offsets = [0, 256], sizes = [8, 128], strides = [1, 1]} : vector<8x512xf32> to vector<8x128xf32>
    %749 = math.tanh %748 : vector<8x128xf32>
    %750 = vector.extract_strided_slice %735 {offsets = [0, 384], sizes = [8, 128], strides = [1, 1]} : vector<8x512xf32> to vector<8x128xf32>
    %751 = arith.negf %750 : vector<8x128xf32>
    %752 = math.exp %751 : vector<8x128xf32>
    %cst_168 = arith.constant 1.000000e+00 : f32
    %753 = vector.broadcast %cst_168 : f32 to vector<8x128xf32>
    %754 = arith.addf %753, %752 : vector<8x128xf32>
    %755 = arith.divf %753, %754 : vector<8x128xf32>
    %756 = arith.mulf %747, %696 : vector<8x128xf32>
    %757 = arith.mulf %741, %749 : vector<8x128xf32>
    %758 = arith.addf %756, %757 : vector<8x128xf32>
    %759 = math.tanh %758 : vector<8x128xf32>
    %760 = arith.mulf %755, %759 : vector<8x128xf32>
    %761 = arith.index_cast %c1_i32_158 : i32 to index
    %c0_169 = arith.constant 0 : index
    %c0_170 = arith.constant 0 : index
    %762 = vector.load %arg22[%761, %c0_169, %c0_170] : memref<8x8x128xf32, #tpu.memory_space<vmem>>, vector<1x8x128xf32>
    %763 = vector.shape_cast %762 : vector<1x8x128xf32> to vector<8x128xf32>
    %764 = vector.shape_cast %760 : vector<8x128xf32> to vector<1x8x128xf32>
    tpu.vector_store %arg22[%761, %c0_169, %c0_170], %764 {strides = array<i32>} : memref<8x8x128xf32, #tpu.memory_space<vmem>>, vector<1x8x128xf32>,
    %c2_i32_171 = arith.constant 2 : i32
    %765 = arith.index_cast %c2_i32_171 : i32 to index
    %c0_172 = arith.constant 0 : index
    %c0_173 = arith.constant 0 : index
    %766 = vector.load %arg21[%765, %c0_172, %c0_173] : memref<8x8x512xf32, #tpu.memory_space<vmem>>, vector<1x8x512xf32>
    %767 = vector.shape_cast %766 : vector<1x8x512xf32> to vector<8x512xf32>
    %cst_174 = arith.constant dense<0.000000e+00> : vector<8x512xf32>
    %768 = tpu.matmul %732, %636, %cst_174 {dimension_numbers = #tpu.dot_dimension_numbers<[1], [0], [0], [1], [0, 0, 1, 1], [], []>} : vector<8x128xf32>, vector<128x512xf32>, vector<8x512xf32> -> vector<8x512xf32>
    %769 = arith.addf %767, %768 : vector<8x512xf32>
    %770 = vector.extract_strided_slice %769 {offsets = [0, 0], sizes = [8, 128], strides = [1, 1]} : vector<8x512xf32> to vector<8x128xf32>
    %771 = arith.negf %770 : vector<8x128xf32>
    %772 = math.exp %771 : vector<8x128xf32>
    %cst_175 = arith.constant 1.000000e+00 : f32
    %773 = vector.broadcast %cst_175 : f32 to vector<8x128xf32>
    %774 = arith.addf %773, %772 : vector<8x128xf32>
    %775 = arith.divf %773, %774 : vector<8x128xf32>
    %776 = vector.extract_strided_slice %769 {offsets = [0, 128], sizes = [8, 128], strides = [1, 1]} : vector<8x512xf32> to vector<8x128xf32>
    %777 = arith.negf %776 : vector<8x128xf32>
    %778 = math.exp %777 : vector<8x128xf32>
    %cst_176 = arith.constant 1.000000e+00 : f32
    %779 = vector.broadcast %cst_176 : f32 to vector<8x128xf32>
    %780 = arith.addf %779, %778 : vector<8x128xf32>
    %781 = arith.divf %779, %780 : vector<8x128xf32>
    %782 = vector.extract_strided_slice %769 {offsets = [0, 256], sizes = [8, 128], strides = [1, 1]} : vector<8x512xf32> to vector<8x128xf32>
    %783 = math.tanh %782 : vector<8x128xf32>
    %784 = vector.extract_strided_slice %769 {offsets = [0, 384], sizes = [8, 128], strides = [1, 1]} : vector<8x512xf32> to vector<8x128xf32>
    %785 = arith.negf %784 : vector<8x128xf32>
    %786 = math.exp %785 : vector<8x128xf32>
    %cst_177 = arith.constant 1.000000e+00 : f32
    %787 = vector.broadcast %cst_177 : f32 to vector<8x128xf32>
    %788 = arith.addf %787, %786 : vector<8x128xf32>
    %789 = arith.divf %787, %788 : vector<8x128xf32>
    %790 = arith.mulf %781, %730 : vector<8x128xf32>
    %791 = arith.mulf %775, %783 : vector<8x128xf32>
    %792 = arith.addf %790, %791 : vector<8x128xf32>
    %793 = math.tanh %792 : vector<8x128xf32>
    %794 = arith.mulf %789, %793 : vector<8x128xf32>
    %795 = tpu.concatenate %794, %760 in 1 : vector<8x128xf32>, vector<8x128xf32> -> vector<8x256xf32>
    %cst_178 = arith.constant dense<0.000000e+00> : vector<8x512xf32>
    %796 = tpu.matmul %795, %637, %cst_178 {dimension_numbers = #tpu.dot_dimension_numbers<[1], [0], [0], [1], [0, 0, 1, 1], [], []>} : vector<8x256xf32>, vector<256x512xf32>, vector<8x512xf32> -> vector<8x512xf32>
    %797 = arith.addf %796, %640 : vector<8x512xf32>
    %798 = vector.extract_strided_slice %797 {offsets = [0, 0], sizes = [8, 128], strides = [1, 1]} : vector<8x512xf32> to vector<8x128xf32>
    %799 = arith.negf %798 : vector<8x128xf32>
    %800 = math.exp %799 : vector<8x128xf32>
    %cst_179 = arith.constant 1.000000e+00 : f32
    %801 = vector.broadcast %cst_179 : f32 to vector<8x128xf32>
    %802 = arith.addf %801, %800 : vector<8x128xf32>
    %803 = arith.divf %801, %802 : vector<8x128xf32>
    %804 = vector.extract_strided_slice %797 {offsets = [0, 128], sizes = [8, 128], strides = [1, 1]} : vector<8x512xf32> to vector<8x128xf32>
    %805 = arith.negf %804 : vector<8x128xf32>
    %806 = math.exp %805 : vector<8x128xf32>
    %cst_180 = arith.constant 1.000000e+00 : f32
    %807 = vector.broadcast %cst_180 : f32 to vector<8x128xf32>
    %808 = arith.addf %807, %806 : vector<8x128xf32>
    %809 = arith.divf %807, %808 : vector<8x128xf32>
    %810 = vector.extract_strided_slice %797 {offsets = [0, 256], sizes = [8, 128], strides = [1, 1]} : vector<8x512xf32> to vector<8x128xf32>
    %811 = math.tanh %810 : vector<8x128xf32>
    %812 = vector.extract_strided_slice %797 {offsets = [0, 384], sizes = [8, 128], strides = [1, 1]} : vector<8x512xf32> to vector<8x128xf32>
    %813 = arith.negf %812 : vector<8x128xf32>
    %814 = math.exp %813 : vector<8x128xf32>
    %cst_181 = arith.constant 1.000000e+00 : f32
    %815 = vector.broadcast %cst_181 : f32 to vector<8x128xf32>
    %816 = arith.addf %815, %814 : vector<8x128xf32>
    %817 = arith.divf %815, %816 : vector<8x128xf32>
    %818 = arith.mulf %809, %758 : vector<8x128xf32>
    %819 = arith.mulf %803, %811 : vector<8x128xf32>
    %820 = arith.addf %818, %819 : vector<8x128xf32>
    %821 = math.tanh %820 : vector<8x128xf32>
    %822 = arith.mulf %817, %821 : vector<8x128xf32>
    %823 = arith.index_cast %c2_i32_171 : i32 to index
    %c0_182 = arith.constant 0 : index
    %c0_183 = arith.constant 0 : index
    %824 = vector.load %arg22[%823, %c0_182, %c0_183] : memref<8x8x128xf32, #tpu.memory_space<vmem>>, vector<1x8x128xf32>
    %825 = vector.shape_cast %824 : vector<1x8x128xf32> to vector<8x128xf32>
    %826 = vector.shape_cast %822 : vector<8x128xf32> to vector<1x8x128xf32>
    tpu.vector_store %arg22[%823, %c0_182, %c0_183], %826 {strides = array<i32>} : memref<8x8x128xf32, #tpu.memory_space<vmem>>, vector<1x8x128xf32>,
    %c3_i32_184 = arith.constant 3 : i32
    %827 = arith.index_cast %c3_i32_184 : i32 to index
    %c0_185 = arith.constant 0 : index
    %c0_186 = arith.constant 0 : index
    %828 = vector.load %arg21[%827, %c0_185, %c0_186] : memref<8x8x512xf32, #tpu.memory_space<vmem>>, vector<1x8x512xf32>
    %829 = vector.shape_cast %828 : vector<1x8x512xf32> to vector<8x512xf32>
    %cst_187 = arith.constant dense<0.000000e+00> : vector<8x512xf32>
    %830 = tpu.matmul %794, %636, %cst_187 {dimension_numbers = #tpu.dot_dimension_numbers<[1], [0], [0], [1], [0, 0, 1, 1], [], []>} : vector<8x128xf32>, vector<128x512xf32>, vector<8x512xf32> -> vector<8x512xf32>
    %831 = arith.addf %829, %830 : vector<8x512xf32>
    %832 = vector.extract_strided_slice %831 {offsets = [0, 0], sizes = [8, 128], strides = [1, 1]} : vector<8x512xf32> to vector<8x128xf32>
    %833 = arith.negf %832 : vector<8x128xf32>
    %834 = math.exp %833 : vector<8x128xf32>
    %cst_188 = arith.constant 1.000000e+00 : f32
    %835 = vector.broadcast %cst_188 : f32 to vector<8x128xf32>
    %836 = arith.addf %835, %834 : vector<8x128xf32>
    %837 = arith.divf %835, %836 : vector<8x128xf32>
    %838 = vector.extract_strided_slice %831 {offsets = [0, 128], sizes = [8, 128], strides = [1, 1]} : vector<8x512xf32> to vector<8x128xf32>
    %839 = arith.negf %838 : vector<8x128xf32>
    %840 = math.exp %839 : vector<8x128xf32>
    %cst_189 = arith.constant 1.000000e+00 : f32
    %841 = vector.broadcast %cst_189 : f32 to vector<8x128xf32>
    %842 = arith.addf %841, %840 : vector<8x128xf32>
    %843 = arith.divf %841, %842 : vector<8x128xf32>
    %844 = vector.extract_strided_slice %831 {offsets = [0, 256], sizes = [8, 128], strides = [1, 1]} : vector<8x512xf32> to vector<8x128xf32>
    %845 = math.tanh %844 : vector<8x128xf32>
    %846 = vector.extract_strided_slice %831 {offsets = [0, 384], sizes = [8, 128], strides = [1, 1]} : vector<8x512xf32> to vector<8x128xf32>
    %847 = arith.negf %846 : vector<8x128xf32>
    %848 = math.exp %847 : vector<8x128xf32>
    %cst_190 = arith.constant 1.000000e+00 : f32
    %849 = vector.broadcast %cst_190 : f32 to vector<8x128xf32>
    %850 = arith.addf %849, %848 : vector<8x128xf32>
    %851 = arith.divf %849, %850 : vector<8x128xf32>
    %852 = arith.mulf %843, %792 : vector<8x128xf32>
    %853 = arith.mulf %837, %845 : vector<8x128xf32>
    %854 = arith.addf %852, %853 : vector<8x128xf32>
    %855 = math.tanh %854 : vector<8x128xf32>
    %856 = arith.mulf %851, %855 : vector<8x128xf32>
    %857 = tpu.concatenate %856, %822 in 1 : vector<8x128xf32>, vector<8x128xf32> -> vector<8x256xf32>
    %cst_191 = arith.constant dense<0.000000e+00> : vector<8x512xf32>
    %858 = tpu.matmul %857, %637, %cst_191 {dimension_numbers = #tpu.dot_dimension_numbers<[1], [0], [0], [1], [0, 0, 1, 1], [], []>} : vector<8x256xf32>, vector<256x512xf32>, vector<8x512xf32> -> vector<8x512xf32>
    %859 = arith.addf %858, %640 : vector<8x512xf32>
    %860 = vector.extract_strided_slice %859 {offsets = [0, 0], sizes = [8, 128], strides = [1, 1]} : vector<8x512xf32> to vector<8x128xf32>
    %861 = arith.negf %860 : vector<8x128xf32>
    %862 = math.exp %861 : vector<8x128xf32>
    %cst_192 = arith.constant 1.000000e+00 : f32
    %863 = vector.broadcast %cst_192 : f32 to vector<8x128xf32>
    %864 = arith.addf %863, %862 : vector<8x128xf32>
    %865 = arith.divf %863, %864 : vector<8x128xf32>
    %866 = vector.extract_strided_slice %859 {offsets = [0, 128], sizes = [8, 128], strides = [1, 1]} : vector<8x512xf32> to vector<8x128xf32>
    %867 = arith.negf %866 : vector<8x128xf32>
    %868 = math.exp %867 : vector<8x128xf32>
    %cst_193 = arith.constant 1.000000e+00 : f32
    %869 = vector.broadcast %cst_193 : f32 to vector<8x128xf32>
    %870 = arith.addf %869, %868 : vector<8x128xf32>
    %871 = arith.divf %869, %870 : vector<8x128xf32>
    %872 = vector.extract_strided_slice %859 {offsets = [0, 256], sizes = [8, 128], strides = [1, 1]} : vector<8x512xf32> to vector<8x128xf32>
    %873 = math.tanh %872 : vector<8x128xf32>
    %874 = vector.extract_strided_slice %859 {offsets = [0, 384], sizes = [8, 128], strides = [1, 1]} : vector<8x512xf32> to vector<8x128xf32>
    %875 = arith.negf %874 : vector<8x128xf32>
    %876 = math.exp %875 : vector<8x128xf32>
    %cst_194 = arith.constant 1.000000e+00 : f32
    %877 = vector.broadcast %cst_194 : f32 to vector<8x128xf32>
    %878 = arith.addf %877, %876 : vector<8x128xf32>
    %879 = arith.divf %877, %878 : vector<8x128xf32>
    %880 = arith.mulf %871, %820 : vector<8x128xf32>
    %881 = arith.mulf %865, %873 : vector<8x128xf32>
    %882 = arith.addf %880, %881 : vector<8x128xf32>
    %883 = math.tanh %882 : vector<8x128xf32>
    %884 = arith.mulf %879, %883 : vector<8x128xf32>
    %885 = arith.index_cast %c3_i32_184 : i32 to index
    %c0_195 = arith.constant 0 : index
    %c0_196 = arith.constant 0 : index
    %886 = vector.load %arg22[%885, %c0_195, %c0_196] : memref<8x8x128xf32, #tpu.memory_space<vmem>>, vector<1x8x128xf32>
    %887 = vector.shape_cast %886 : vector<1x8x128xf32> to vector<8x128xf32>
    %888 = vector.shape_cast %884 : vector<8x128xf32> to vector<1x8x128xf32>
    tpu.vector_store %arg22[%885, %c0_195, %c0_196], %888 {strides = array<i32>} : memref<8x8x128xf32, #tpu.memory_space<vmem>>, vector<1x8x128xf32>,
    %c4_i32_197 = arith.constant 4 : i32
    %889 = arith.index_cast %c4_i32_197 : i32 to index
    %c0_198 = arith.constant 0 : index
    %c0_199 = arith.constant 0 : index
    %890 = vector.load %arg21[%889, %c0_198, %c0_199] : memref<8x8x512xf32, #tpu.memory_space<vmem>>, vector<1x8x512xf32>
    %891 = vector.shape_cast %890 : vector<1x8x512xf32> to vector<8x512xf32>
    %cst_200 = arith.constant dense<0.000000e+00> : vector<8x512xf32>
    %892 = tpu.matmul %856, %636, %cst_200 {dimension_numbers = #tpu.dot_dimension_numbers<[1], [0], [0], [1], [0, 0, 1, 1], [], []>} : vector<8x128xf32>, vector<128x512xf32>, vector<8x512xf32> -> vector<8x512xf32>
    %893 = arith.addf %891, %892 : vector<8x512xf32>
    %894 = vector.extract_strided_slice %893 {offsets = [0, 0], sizes = [8, 128], strides = [1, 1]} : vector<8x512xf32> to vector<8x128xf32>
    %895 = arith.negf %894 : vector<8x128xf32>
    %896 = math.exp %895 : vector<8x128xf32>
    %cst_201 = arith.constant 1.000000e+00 : f32
    %897 = vector.broadcast %cst_201 : f32 to vector<8x128xf32>
    %898 = arith.addf %897, %896 : vector<8x128xf32>
    %899 = arith.divf %897, %898 : vector<8x128xf32>
    %900 = vector.extract_strided_slice %893 {offsets = [0, 128], sizes = [8, 128], strides = [1, 1]} : vector<8x512xf32> to vector<8x128xf32>
    %901 = arith.negf %900 : vector<8x128xf32>
    %902 = math.exp %901 : vector<8x128xf32>
    %cst_202 = arith.constant 1.000000e+00 : f32
    %903 = vector.broadcast %cst_202 : f32 to vector<8x128xf32>
    %904 = arith.addf %903, %902 : vector<8x128xf32>
    %905 = arith.divf %903, %904 : vector<8x128xf32>
    %906 = vector.extract_strided_slice %893 {offsets = [0, 256], sizes = [8, 128], strides = [1, 1]} : vector<8x512xf32> to vector<8x128xf32>
    %907 = math.tanh %906 : vector<8x128xf32>
    %908 = vector.extract_strided_slice %893 {offsets = [0, 384], sizes = [8, 128], strides = [1, 1]} : vector<8x512xf32> to vector<8x128xf32>
    %909 = arith.negf %908 : vector<8x128xf32>
    %910 = math.exp %909 : vector<8x128xf32>
    %cst_203 = arith.constant 1.000000e+00 : f32
    %911 = vector.broadcast %cst_203 : f32 to vector<8x128xf32>
    %912 = arith.addf %911, %910 : vector<8x128xf32>
    %913 = arith.divf %911, %912 : vector<8x128xf32>
    %914 = arith.mulf %905, %854 : vector<8x128xf32>
    %915 = arith.mulf %899, %907 : vector<8x128xf32>
    %916 = arith.addf %914, %915 : vector<8x128xf32>
    %917 = math.tanh %916 : vector<8x128xf32>
    %918 = arith.mulf %913, %917 : vector<8x128xf32>
    %919 = tpu.concatenate %918, %884 in 1 : vector<8x128xf32>, vector<8x128xf32> -> vector<8x256xf32>
    %cst_204 = arith.constant dense<0.000000e+00> : vector<8x512xf32>
    %920 = tpu.matmul %919, %637, %cst_204 {dimension_numbers = #tpu.dot_dimension_numbers<[1], [0], [0], [1], [0, 0, 1, 1], [], []>} : vector<8x256xf32>, vector<256x512xf32>, vector<8x512xf32> -> vector<8x512xf32>
    %921 = arith.addf %920, %640 : vector<8x512xf32>
    %922 = vector.extract_strided_slice %921 {offsets = [0, 0], sizes = [8, 128], strides = [1, 1]} : vector<8x512xf32> to vector<8x128xf32>
    %923 = arith.negf %922 : vector<8x128xf32>
    %924 = math.exp %923 : vector<8x128xf32>
    %cst_205 = arith.constant 1.000000e+00 : f32
    %925 = vector.broadcast %cst_205 : f32 to vector<8x128xf32>
    %926 = arith.addf %925, %924 : vector<8x128xf32>
    %927 = arith.divf %925, %926 : vector<8x128xf32>
    %928 = vector.extract_strided_slice %921 {offsets = [0, 128], sizes = [8, 128], strides = [1, 1]} : vector<8x512xf32> to vector<8x128xf32>
    %929 = arith.negf %928 : vector<8x128xf32>
    %930 = math.exp %929 : vector<8x128xf32>
    %cst_206 = arith.constant 1.000000e+00 : f32
    %931 = vector.broadcast %cst_206 : f32 to vector<8x128xf32>
    %932 = arith.addf %931, %930 : vector<8x128xf32>
    %933 = arith.divf %931, %932 : vector<8x128xf32>
    %934 = vector.extract_strided_slice %921 {offsets = [0, 256], sizes = [8, 128], strides = [1, 1]} : vector<8x512xf32> to vector<8x128xf32>
    %935 = math.tanh %934 : vector<8x128xf32>
    %936 = vector.extract_strided_slice %921 {offsets = [0, 384], sizes = [8, 128], strides = [1, 1]} : vector<8x512xf32> to vector<8x128xf32>
    %937 = arith.negf %936 : vector<8x128xf32>
    %938 = math.exp %937 : vector<8x128xf32>
    %cst_207 = arith.constant 1.000000e+00 : f32
    %939 = vector.broadcast %cst_207 : f32 to vector<8x128xf32>
    %940 = arith.addf %939, %938 : vector<8x128xf32>
    %941 = arith.divf %939, %940 : vector<8x128xf32>
    %942 = arith.mulf %933, %882 : vector<8x128xf32>
    %943 = arith.mulf %927, %935 : vector<8x128xf32>
    %944 = arith.addf %942, %943 : vector<8x128xf32>
    %945 = math.tanh %944 : vector<8x128xf32>
    %946 = arith.mulf %941, %945 : vector<8x128xf32>
    %947 = arith.index_cast %c4_i32_197 : i32 to index
    %c0_208 = arith.constant 0 : index
    %c0_209 = arith.constant 0 : index
    %948 = vector.load %arg22[%947, %c0_208, %c0_209] : memref<8x8x128xf32, #tpu.memory_space<vmem>>, vector<1x8x128xf32>
    %949 = vector.shape_cast %948 : vector<1x8x128xf32> to vector<8x128xf32>
    %950 = vector.shape_cast %946 : vector<8x128xf32> to vector<1x8x128xf32>
    tpu.vector_store %arg22[%947, %c0_208, %c0_209], %950 {strides = array<i32>} : memref<8x8x128xf32, #tpu.memory_space<vmem>>, vector<1x8x128xf32>,
    %c5_i32_210 = arith.constant 5 : i32
    %951 = arith.index_cast %c5_i32_210 : i32 to index
    %c0_211 = arith.constant 0 : index
    %c0_212 = arith.constant 0 : index
    %952 = vector.load %arg21[%951, %c0_211, %c0_212] : memref<8x8x512xf32, #tpu.memory_space<vmem>>, vector<1x8x512xf32>
    %953 = vector.shape_cast %952 : vector<1x8x512xf32> to vector<8x512xf32>
    %cst_213 = arith.constant dense<0.000000e+00> : vector<8x512xf32>
    %954 = tpu.matmul %918, %636, %cst_213 {dimension_numbers = #tpu.dot_dimension_numbers<[1], [0], [0], [1], [0, 0, 1, 1], [], []>} : vector<8x128xf32>, vector<128x512xf32>, vector<8x512xf32> -> vector<8x512xf32>
    %955 = arith.addf %953, %954 : vector<8x512xf32>
    %956 = vector.extract_strided_slice %955 {offsets = [0, 0], sizes = [8, 128], strides = [1, 1]} : vector<8x512xf32> to vector<8x128xf32>
    %957 = arith.negf %956 : vector<8x128xf32>
    %958 = math.exp %957 : vector<8x128xf32>
    %cst_214 = arith.constant 1.000000e+00 : f32
    %959 = vector.broadcast %cst_214 : f32 to vector<8x128xf32>
    %960 = arith.addf %959, %958 : vector<8x128xf32>
    %961 = arith.divf %959, %960 : vector<8x128xf32>
    %962 = vector.extract_strided_slice %955 {offsets = [0, 128], sizes = [8, 128], strides = [1, 1]} : vector<8x512xf32> to vector<8x128xf32>
    %963 = arith.negf %962 : vector<8x128xf32>
    %964 = math.exp %963 : vector<8x128xf32>
    %cst_215 = arith.constant 1.000000e+00 : f32
    %965 = vector.broadcast %cst_215 : f32 to vector<8x128xf32>
    %966 = arith.addf %965, %964 : vector<8x128xf32>
    %967 = arith.divf %965, %966 : vector<8x128xf32>
    %968 = vector.extract_strided_slice %955 {offsets = [0, 256], sizes = [8, 128], strides = [1, 1]} : vector<8x512xf32> to vector<8x128xf32>
    %969 = math.tanh %968 : vector<8x128xf32>
    %970 = vector.extract_strided_slice %955 {offsets = [0, 384], sizes = [8, 128], strides = [1, 1]} : vector<8x512xf32> to vector<8x128xf32>
    %971 = arith.negf %970 : vector<8x128xf32>
    %972 = math.exp %971 : vector<8x128xf32>
    %cst_216 = arith.constant 1.000000e+00 : f32
    %973 = vector.broadcast %cst_216 : f32 to vector<8x128xf32>
    %974 = arith.addf %973, %972 : vector<8x128xf32>
    %975 = arith.divf %973, %974 : vector<8x128xf32>
    %976 = arith.mulf %967, %916 : vector<8x128xf32>
    %977 = arith.mulf %961, %969 : vector<8x128xf32>
    %978 = arith.addf %976, %977 : vector<8x128xf32>
    %979 = math.tanh %978 : vector<8x128xf32>
    %980 = arith.mulf %975, %979 : vector<8x128xf32>
    %981 = tpu.concatenate %980, %946 in 1 : vector<8x128xf32>, vector<8x128xf32> -> vector<8x256xf32>
    %cst_217 = arith.constant dense<0.000000e+00> : vector<8x512xf32>
    %982 = tpu.matmul %981, %637, %cst_217 {dimension_numbers = #tpu.dot_dimension_numbers<[1], [0], [0], [1], [0, 0, 1, 1], [], []>} : vector<8x256xf32>, vector<256x512xf32>, vector<8x512xf32> -> vector<8x512xf32>
    %983 = arith.addf %982, %640 : vector<8x512xf32>
    %984 = vector.extract_strided_slice %983 {offsets = [0, 0], sizes = [8, 128], strides = [1, 1]} : vector<8x512xf32> to vector<8x128xf32>
    %985 = arith.negf %984 : vector<8x128xf32>
    %986 = math.exp %985 : vector<8x128xf32>
    %cst_218 = arith.constant 1.000000e+00 : f32
    %987 = vector.broadcast %cst_218 : f32 to vector<8x128xf32>
    %988 = arith.addf %987, %986 : vector<8x128xf32>
    %989 = arith.divf %987, %988 : vector<8x128xf32>
    %990 = vector.extract_strided_slice %983 {offsets = [0, 128], sizes = [8, 128], strides = [1, 1]} : vector<8x512xf32> to vector<8x128xf32>
    %991 = arith.negf %990 : vector<8x128xf32>
    %992 = math.exp %991 : vector<8x128xf32>
    %cst_219 = arith.constant 1.000000e+00 : f32
    %993 = vector.broadcast %cst_219 : f32 to vector<8x128xf32>
    %994 = arith.addf %993, %992 : vector<8x128xf32>
    %995 = arith.divf %993, %994 : vector<8x128xf32>
    %996 = vector.extract_strided_slice %983 {offsets = [0, 256], sizes = [8, 128], strides = [1, 1]} : vector<8x512xf32> to vector<8x128xf32>
    %997 = math.tanh %996 : vector<8x128xf32>
    %998 = vector.extract_strided_slice %983 {offsets = [0, 384], sizes = [8, 128], strides = [1, 1]} : vector<8x512xf32> to vector<8x128xf32>
    %999 = arith.negf %998 : vector<8x128xf32>
    %1000 = math.exp %999 : vector<8x128xf32>
    %cst_220 = arith.constant 1.000000e+00 : f32
    %1001 = vector.broadcast %cst_220 : f32 to vector<8x128xf32>
    %1002 = arith.addf %1001, %1000 : vector<8x128xf32>
    %1003 = arith.divf %1001, %1002 : vector<8x128xf32>
    %1004 = arith.mulf %995, %944 : vector<8x128xf32>
    %1005 = arith.mulf %989, %997 : vector<8x128xf32>
    %1006 = arith.addf %1004, %1005 : vector<8x128xf32>
    %1007 = math.tanh %1006 : vector<8x128xf32>
    %1008 = arith.mulf %1003, %1007 : vector<8x128xf32>
    %1009 = arith.index_cast %c5_i32_210 : i32 to index
    %c0_221 = arith.constant 0 : index
    %c0_222 = arith.constant 0 : index
    %1010 = vector.load %arg22[%1009, %c0_221, %c0_222] : memref<8x8x128xf32, #tpu.memory_space<vmem>>, vector<1x8x128xf32>
    %1011 = vector.shape_cast %1010 : vector<1x8x128xf32> to vector<8x128xf32>
    %1012 = vector.shape_cast %1008 : vector<8x128xf32> to vector<1x8x128xf32>
    tpu.vector_store %arg22[%1009, %c0_221, %c0_222], %1012 {strides = array<i32>} : memref<8x8x128xf32, #tpu.memory_space<vmem>>, vector<1x8x128xf32>,
    %c6_i32_223 = arith.constant 6 : i32
    %1013 = arith.index_cast %c6_i32_223 : i32 to index
    %c0_224 = arith.constant 0 : index
    %c0_225 = arith.constant 0 : index
    %1014 = vector.load %arg21[%1013, %c0_224, %c0_225] : memref<8x8x512xf32, #tpu.memory_space<vmem>>, vector<1x8x512xf32>
    %1015 = vector.shape_cast %1014 : vector<1x8x512xf32> to vector<8x512xf32>
    %cst_226 = arith.constant dense<0.000000e+00> : vector<8x512xf32>
    %1016 = tpu.matmul %980, %636, %cst_226 {dimension_numbers = #tpu.dot_dimension_numbers<[1], [0], [0], [1], [0, 0, 1, 1], [], []>} : vector<8x128xf32>, vector<128x512xf32>, vector<8x512xf32> -> vector<8x512xf32>
    %1017 = arith.addf %1015, %1016 : vector<8x512xf32>
    %1018 = vector.extract_strided_slice %1017 {offsets = [0, 0], sizes = [8, 128], strides = [1, 1]} : vector<8x512xf32> to vector<8x128xf32>
    %1019 = arith.negf %1018 : vector<8x128xf32>
    %1020 = math.exp %1019 : vector<8x128xf32>
    %cst_227 = arith.constant 1.000000e+00 : f32
    %1021 = vector.broadcast %cst_227 : f32 to vector<8x128xf32>
    %1022 = arith.addf %1021, %1020 : vector<8x128xf32>
    %1023 = arith.divf %1021, %1022 : vector<8x128xf32>
    %1024 = vector.extract_strided_slice %1017 {offsets = [0, 128], sizes = [8, 128], strides = [1, 1]} : vector<8x512xf32> to vector<8x128xf32>
    %1025 = arith.negf %1024 : vector<8x128xf32>
    %1026 = math.exp %1025 : vector<8x128xf32>
    %cst_228 = arith.constant 1.000000e+00 : f32
    %1027 = vector.broadcast %cst_228 : f32 to vector<8x128xf32>
    %1028 = arith.addf %1027, %1026 : vector<8x128xf32>
    %1029 = arith.divf %1027, %1028 : vector<8x128xf32>
    %1030 = vector.extract_strided_slice %1017 {offsets = [0, 256], sizes = [8, 128], strides = [1, 1]} : vector<8x512xf32> to vector<8x128xf32>
    %1031 = math.tanh %1030 : vector<8x128xf32>
    %1032 = vector.extract_strided_slice %1017 {offsets = [0, 384], sizes = [8, 128], strides = [1, 1]} : vector<8x512xf32> to vector<8x128xf32>
    %1033 = arith.negf %1032 : vector<8x128xf32>
    %1034 = math.exp %1033 : vector<8x128xf32>
    %cst_229 = arith.constant 1.000000e+00 : f32
    %1035 = vector.broadcast %cst_229 : f32 to vector<8x128xf32>
    %1036 = arith.addf %1035, %1034 : vector<8x128xf32>
    %1037 = arith.divf %1035, %1036 : vector<8x128xf32>
    %1038 = arith.mulf %1029, %978 : vector<8x128xf32>
    %1039 = arith.mulf %1023, %1031 : vector<8x128xf32>
    %1040 = arith.addf %1038, %1039 : vector<8x128xf32>
    %1041 = math.tanh %1040 : vector<8x128xf32>
    %1042 = arith.mulf %1037, %1041 : vector<8x128xf32>
    %1043 = tpu.concatenate %1042, %1008 in 1 : vector<8x128xf32>, vector<8x128xf32> -> vector<8x256xf32>
    %cst_230 = arith.constant dense<0.000000e+00> : vector<8x512xf32>
    %1044 = tpu.matmul %1043, %637, %cst_230 {dimension_numbers = #tpu.dot_dimension_numbers<[1], [0], [0], [1], [0, 0, 1, 1], [], []>} : vector<8x256xf32>, vector<256x512xf32>, vector<8x512xf32> -> vector<8x512xf32>
    %1045 = arith.addf %1044, %640 : vector<8x512xf32>
    %1046 = vector.extract_strided_slice %1045 {offsets = [0, 0], sizes = [8, 128], strides = [1, 1]} : vector<8x512xf32> to vector<8x128xf32>
    %1047 = arith.negf %1046 : vector<8x128xf32>
    %1048 = math.exp %1047 : vector<8x128xf32>
    %cst_231 = arith.constant 1.000000e+00 : f32
    %1049 = vector.broadcast %cst_231 : f32 to vector<8x128xf32>
    %1050 = arith.addf %1049, %1048 : vector<8x128xf32>
    %1051 = arith.divf %1049, %1050 : vector<8x128xf32>
    %1052 = vector.extract_strided_slice %1045 {offsets = [0, 128], sizes = [8, 128], strides = [1, 1]} : vector<8x512xf32> to vector<8x128xf32>
    %1053 = arith.negf %1052 : vector<8x128xf32>
    %1054 = math.exp %1053 : vector<8x128xf32>
    %cst_232 = arith.constant 1.000000e+00 : f32
    %1055 = vector.broadcast %cst_232 : f32 to vector<8x128xf32>
    %1056 = arith.addf %1055, %1054 : vector<8x128xf32>
    %1057 = arith.divf %1055, %1056 : vector<8x128xf32>
    %1058 = vector.extract_strided_slice %1045 {offsets = [0, 256], sizes = [8, 128], strides = [1, 1]} : vector<8x512xf32> to vector<8x128xf32>
    %1059 = math.tanh %1058 : vector<8x128xf32>
    %1060 = vector.extract_strided_slice %1045 {offsets = [0, 384], sizes = [8, 128], strides = [1, 1]} : vector<8x512xf32> to vector<8x128xf32>
    %1061 = arith.negf %1060 : vector<8x128xf32>
    %1062 = math.exp %1061 : vector<8x128xf32>
    %cst_233 = arith.constant 1.000000e+00 : f32
    %1063 = vector.broadcast %cst_233 : f32 to vector<8x128xf32>
    %1064 = arith.addf %1063, %1062 : vector<8x128xf32>
    %1065 = arith.divf %1063, %1064 : vector<8x128xf32>
    %1066 = arith.mulf %1057, %1006 : vector<8x128xf32>
    %1067 = arith.mulf %1051, %1059 : vector<8x128xf32>
    %1068 = arith.addf %1066, %1067 : vector<8x128xf32>
    %1069 = math.tanh %1068 : vector<8x128xf32>
    %1070 = arith.mulf %1065, %1069 : vector<8x128xf32>
    %1071 = arith.index_cast %c6_i32_223 : i32 to index
    %c0_234 = arith.constant 0 : index
    %c0_235 = arith.constant 0 : index
    %1072 = vector.load %arg22[%1071, %c0_234, %c0_235] : memref<8x8x128xf32, #tpu.memory_space<vmem>>, vector<1x8x128xf32>
    %1073 = vector.shape_cast %1072 : vector<1x8x128xf32> to vector<8x128xf32>
    %1074 = vector.shape_cast %1070 : vector<8x128xf32> to vector<1x8x128xf32>
    tpu.vector_store %arg22[%1071, %c0_234, %c0_235], %1074 {strides = array<i32>} : memref<8x8x128xf32, #tpu.memory_space<vmem>>, vector<1x8x128xf32>,
    %c7_i32_236 = arith.constant 7 : i32
    %1075 = arith.index_cast %c7_i32_236 : i32 to index
    %c0_237 = arith.constant 0 : index
    %c0_238 = arith.constant 0 : index
    %1076 = vector.load %arg21[%1075, %c0_237, %c0_238] : memref<8x8x512xf32, #tpu.memory_space<vmem>>, vector<1x8x512xf32>
    %1077 = vector.shape_cast %1076 : vector<1x8x512xf32> to vector<8x512xf32>
    %cst_239 = arith.constant dense<0.000000e+00> : vector<8x512xf32>
    %1078 = tpu.matmul %1042, %636, %cst_239 {dimension_numbers = #tpu.dot_dimension_numbers<[1], [0], [0], [1], [0, 0, 1, 1], [], []>} : vector<8x128xf32>, vector<128x512xf32>, vector<8x512xf32> -> vector<8x512xf32>
    %1079 = arith.addf %1077, %1078 : vector<8x512xf32>
    %1080 = vector.extract_strided_slice %1079 {offsets = [0, 0], sizes = [8, 128], strides = [1, 1]} : vector<8x512xf32> to vector<8x128xf32>
    %1081 = arith.negf %1080 : vector<8x128xf32>
    %1082 = math.exp %1081 : vector<8x128xf32>
    %cst_240 = arith.constant 1.000000e+00 : f32
    %1083 = vector.broadcast %cst_240 : f32 to vector<8x128xf32>
    %1084 = arith.addf %1083, %1082 : vector<8x128xf32>
    %1085 = arith.divf %1083, %1084 : vector<8x128xf32>
    %1086 = vector.extract_strided_slice %1079 {offsets = [0, 128], sizes = [8, 128], strides = [1, 1]} : vector<8x512xf32> to vector<8x128xf32>
    %1087 = arith.negf %1086 : vector<8x128xf32>
    %1088 = math.exp %1087 : vector<8x128xf32>
    %cst_241 = arith.constant 1.000000e+00 : f32
    %1089 = vector.broadcast %cst_241 : f32 to vector<8x128xf32>
    %1090 = arith.addf %1089, %1088 : vector<8x128xf32>
    %1091 = arith.divf %1089, %1090 : vector<8x128xf32>
    %1092 = vector.extract_strided_slice %1079 {offsets = [0, 256], sizes = [8, 128], strides = [1, 1]} : vector<8x512xf32> to vector<8x128xf32>
    %1093 = math.tanh %1092 : vector<8x128xf32>
    %1094 = vector.extract_strided_slice %1079 {offsets = [0, 384], sizes = [8, 128], strides = [1, 1]} : vector<8x512xf32> to vector<8x128xf32>
    %1095 = arith.negf %1094 : vector<8x128xf32>
    %1096 = math.exp %1095 : vector<8x128xf32>
    %cst_242 = arith.constant 1.000000e+00 : f32
    %1097 = vector.broadcast %cst_242 : f32 to vector<8x128xf32>
    %1098 = arith.addf %1097, %1096 : vector<8x128xf32>
    %1099 = arith.divf %1097, %1098 : vector<8x128xf32>
    %1100 = arith.mulf %1091, %1040 : vector<8x128xf32>
    %1101 = arith.mulf %1085, %1093 : vector<8x128xf32>
    %1102 = arith.addf %1100, %1101 : vector<8x128xf32>
    %1103 = math.tanh %1102 : vector<8x128xf32>
    %1104 = arith.mulf %1099, %1103 : vector<8x128xf32>
    %1105 = tpu.concatenate %1104, %1070 in 1 : vector<8x128xf32>, vector<8x128xf32> -> vector<8x256xf32>
    %cst_243 = arith.constant dense<0.000000e+00> : vector<8x512xf32>
    %1106 = tpu.matmul %1105, %637, %cst_243 {dimension_numbers = #tpu.dot_dimension_numbers<[1], [0], [0], [1], [0, 0, 1, 1], [], []>} : vector<8x256xf32>, vector<256x512xf32>, vector<8x512xf32> -> vector<8x512xf32>
    %1107 = arith.addf %1106, %640 : vector<8x512xf32>
    %1108 = vector.extract_strided_slice %1107 {offsets = [0, 0], sizes = [8, 128], strides = [1, 1]} : vector<8x512xf32> to vector<8x128xf32>
    %1109 = arith.negf %1108 : vector<8x128xf32>
    %1110 = math.exp %1109 : vector<8x128xf32>
    %cst_244 = arith.constant 1.000000e+00 : f32
    %1111 = vector.broadcast %cst_244 : f32 to vector<8x128xf32>
    %1112 = arith.addf %1111, %1110 : vector<8x128xf32>
    %1113 = arith.divf %1111, %1112 : vector<8x128xf32>
    %1114 = vector.extract_strided_slice %1107 {offsets = [0, 128], sizes = [8, 128], strides = [1, 1]} : vector<8x512xf32> to vector<8x128xf32>
    %1115 = arith.negf %1114 : vector<8x128xf32>
    %1116 = math.exp %1115 : vector<8x128xf32>
    %cst_245 = arith.constant 1.000000e+00 : f32
    %1117 = vector.broadcast %cst_245 : f32 to vector<8x128xf32>
    %1118 = arith.addf %1117, %1116 : vector<8x128xf32>
    %1119 = arith.divf %1117, %1118 : vector<8x128xf32>
    %1120 = vector.extract_strided_slice %1107 {offsets = [0, 256], sizes = [8, 128], strides = [1, 1]} : vector<8x512xf32> to vector<8x128xf32>
    %1121 = math.tanh %1120 : vector<8x128xf32>
    %1122 = vector.extract_strided_slice %1107 {offsets = [0, 384], sizes = [8, 128], strides = [1, 1]} : vector<8x512xf32> to vector<8x128xf32>
    %1123 = arith.negf %1122 : vector<8x128xf32>
    %1124 = math.exp %1123 : vector<8x128xf32>
    %cst_246 = arith.constant 1.000000e+00 : f32
    %1125 = vector.broadcast %cst_246 : f32 to vector<8x128xf32>
    %1126 = arith.addf %1125, %1124 : vector<8x128xf32>
    %1127 = arith.divf %1125, %1126 : vector<8x128xf32>
    %1128 = arith.mulf %1119, %1068 : vector<8x128xf32>
    %1129 = arith.mulf %1113, %1121 : vector<8x128xf32>
    %1130 = arith.addf %1128, %1129 : vector<8x128xf32>
    %1131 = math.tanh %1130 : vector<8x128xf32>
    %1132 = arith.mulf %1127, %1131 : vector<8x128xf32>
    %1133 = arith.index_cast %c7_i32_236 : i32 to index
    %c0_247 = arith.constant 0 : index
    %c0_248 = arith.constant 0 : index
    %1134 = vector.load %arg22[%1133, %c0_247, %c0_248] : memref<8x8x128xf32, #tpu.memory_space<vmem>>, vector<1x8x128xf32>
    %1135 = vector.shape_cast %1134 : vector<1x8x128xf32> to vector<8x128xf32>
    %1136 = vector.shape_cast %1132 : vector<8x128xf32> to vector<1x8x128xf32>
    tpu.vector_store %arg22[%1133, %c0_247, %c0_248], %1136 {strides = array<i32>} : memref<8x8x128xf32, #tpu.memory_space<vmem>>, vector<1x8x128xf32>,
    %c8_i32_249 = arith.constant 8 : i32
    %c0_250 = arith.constant 0 : index
    %c0_251 = arith.constant 0 : index
    %c0_252 = arith.constant 0 : index
    %1137 = vector.load %arg22[%c0_250, %c0_251, %c0_252] : memref<8x8x128xf32, #tpu.memory_space<vmem>>, vector<8x8x128xf32>
    %1138 = vector.shape_cast %1137 : vector<8x8x128xf32> to vector<64x128xf32>
    %c0_253 = arith.constant 0 : index
    %c0_254 = arith.constant 0 : index
    %1139 = vector.load %arg17[%c0_253, %c0_254] : memref<128x128xf32, #tpu.memory_space<vmem>>, vector<128x128xf32>
    %cst_255 = arith.constant dense<0.000000e+00> : vector<64x128xf32>
    %1140 = tpu.matmul %1138, %1139, %cst_255 {dimension_numbers = #tpu.dot_dimension_numbers<[1], [0], [0], [1], [0, 0, 1, 1], [], []>} : vector<64x128xf32>, vector<128x128xf32>, vector<64x128xf32> -> vector<64x128xf32>
    %c0_256 = arith.constant 0 : index
    %c0_257 = arith.constant 0 : index
    %1141 = vector.load %arg18[%c0_256, %c0_257] : memref<1x128xf32, #tpu.memory_space<vmem>>, vector<1x128xf32>
    %1142 = vector.broadcast %1141 : vector<1x128xf32> to vector<64x128xf32>
    %1143 = arith.addf %1140, %1142 : vector<64x128xf32>
    %1144 = vector.shape_cast %1143 : vector<64x128xf32> to vector<8x8x128xf32>
    %c0_258 = arith.constant 0 : index
    %c0_259 = arith.constant 0 : index
    %c0_260 = arith.constant 0 : index
    %1145 = vector.load %arg19[%c0_258, %c0_259, %c0_260] : memref<8x8x128xf32, #tpu.memory_space<vmem>>, vector<8x8x128xf32>
    tpu.vector_store %arg19[%c0_258, %c0_259, %c0_260], %1144 {strides = array<i32>} : memref<8x8x128xf32, #tpu.memory_space<vmem>>, vector<8x8x128xf32>,
    return
  }
  func.func @transform_0(%arg0: i32) -> (i32, i32, i32) {
    %c0_i32 = arith.constant 0 : i32
    %c0_i32_0 = arith.constant 0 : i32
    %c0_i32_1 = arith.constant 0 : i32
    return %c0_i32, %arg0, %c0_i32_0 : i32, i32, i32
  }
  func.func @transform_1(%arg0: i32) -> (i32, i32, i32) {
    %c0_i32 = arith.constant 0 : i32
    %c0_i32_0 = arith.constant 0 : i32
    %c0_i32_1 = arith.constant 0 : i32
    return %c0_i32, %arg0, %c0_i32_0 : i32, i32, i32
  }
  func.func @transform_2(%arg0: i32) -> (i32, i32, i32) {
    %c0_i32 = arith.constant 0 : i32
    %c0_i32_0 = arith.constant 0 : i32
    %c0_i32_1 = arith.constant 0 : i32
    return %c0_i32, %arg0, %c0_i32_0 : i32, i32, i32
  }
  func.func @transform_3(%arg0: i32) -> (i32, i32) {
    %c0_i32 = arith.constant 0 : i32
    %c0_i32_0 = arith.constant 0 : i32
    %c0_i32_1 = arith.constant 0 : i32
    return %c0_i32, %c0_i32_0 : i32, i32
  }
  func.func @transform_4(%arg0: i32) -> (i32, i32) {
    %c0_i32 = arith.constant 0 : i32
    %c0_i32_0 = arith.constant 0 : i32
    %c0_i32_1 = arith.constant 0 : i32
    return %c0_i32, %c0_i32_0 : i32, i32
  }
  func.func @transform_5(%arg0: i32) -> (i32, i32) {
    %c0_i32 = arith.constant 0 : i32
    %c0_i32_0 = arith.constant 0 : i32
    %c0_i32_1 = arith.constant 0 : i32
    return %c0_i32, %c0_i32_0 : i32, i32
  }
  func.func @transform_6(%arg0: i32) -> (i32, i32) {
    %c0_i32 = arith.constant 0 : i32
    %c0_i32_0 = arith.constant 0 : i32
    %c0_i32_1 = arith.constant 0 : i32
    return %c0_i32, %c0_i32_0 : i32, i32
  }
  func.func @transform_7(%arg0: i32) -> (i32, i32) {
    %c0_i32 = arith.constant 0 : i32
    %c0_i32_0 = arith.constant 0 : i32
    %c0_i32_1 = arith.constant 0 : i32
    return %c0_i32, %c0_i32_0 : i32, i32
  }
  func.func @transform_8(%arg0: i32) -> (i32, i32) {
    %c0_i32 = arith.constant 0 : i32
    %c0_i32_0 = arith.constant 0 : i32
    %c0_i32_1 = arith.constant 0 : i32
    return %c0_i32, %c0_i32_0 : i32, i32
  }
  func.func @transform_9(%arg0: i32) -> (i32, i32) {
    %c0_i32 = arith.constant 0 : i32
    %c0_i32_0 = arith.constant 0 : i32
    %c0_i32_1 = arith.constant 0 : i32
    return %c0_i32, %c0_i32_0 : i32, i32
  }
  func.func @transform_10(%arg0: i32) -> (i32, i32) {
    %c0_i32 = arith.constant 0 : i32
    %c0_i32_0 = arith.constant 0 : i32
    %c0_i32_1 = arith.constant 0 : i32
    return %c0_i32, %c0_i32_0 : i32, i32
  }
  func.func @transform_11(%arg0: i32) -> (i32, i32) {
    %c0_i32 = arith.constant 0 : i32
    %c0_i32_0 = arith.constant 0 : i32
    %c0_i32_1 = arith.constant 0 : i32
    return %c0_i32, %c0_i32_0 : i32, i32
  }
  func.func @transform_12(%arg0: i32) -> (i32, i32) {
    %c0_i32 = arith.constant 0 : i32
    %c0_i32_0 = arith.constant 0 : i32
    %c0_i32_1 = arith.constant 0 : i32
    return %c0_i32, %c0_i32_0 : i32, i32
  }
  func.func @transform_13(%arg0: i32) -> (i32, i32) {
    %c0_i32 = arith.constant 0 : i32
    %c0_i32_0 = arith.constant 0 : i32
    %c0_i32_1 = arith.constant 0 : i32
    return %c0_i32, %c0_i32_0 : i32, i32
  }
  func.func @transform_14(%arg0: i32) -> (i32, i32) {
    %c0_i32 = arith.constant 0 : i32
    %c0_i32_0 = arith.constant 0 : i32
    %c0_i32_1 = arith.constant 0 : i32
    return %c0_i32, %c0_i32_0 : i32, i32
  }
  func.func @transform_15(%arg0: i32) -> (i32, i32) {
    %c0_i32 = arith.constant 0 : i32
    %c0_i32_0 = arith.constant 0 : i32
    %c0_i32_1 = arith.constant 0 : i32
    return %c0_i32, %c0_i32_0 : i32, i32
  }
  func.func @transform_16(%arg0: i32) -> (i32, i32) {
    %c0_i32 = arith.constant 0 : i32
    %c0_i32_0 = arith.constant 0 : i32
    %c0_i32_1 = arith.constant 0 : i32
    return %c0_i32, %c0_i32_0 : i32, i32
  }
  func.func @transform_17(%arg0: i32) -> (i32, i32) {
    %c0_i32 = arith.constant 0 : i32
    %c0_i32_0 = arith.constant 0 : i32
    %c0_i32_1 = arith.constant 0 : i32
    return %c0_i32, %c0_i32_0 : i32, i32
  }
  func.func @transform_18(%arg0: i32) -> (i32, i32, i32) {
    %c0_i32 = arith.constant 0 : i32
    %c0_i32_0 = arith.constant 0 : i32
    %c0_i32_1 = arith.constant 0 : i32
    return %c0_i32, %arg0, %c0_i32_0 : i32, i32, i32
  }
}

</mosaic_0001>

<llo_original>
// kernel: seq2seq_forward.1
$region0: #{seq2seq_forward.1}
  #allocation0 [shape = 'u32[]', space=smem, size = 0x4, offset = 0x4, fixed_abs, tag = 'smem constant byte address 0x4 - core index']
  #allocation1 [shape = 'u32[144,128]{1,0:T(1,128)}', space=vmem, size = 0x12000, scoped, tag = 'internal scratch']
  #allocation2 [shape = 'f32[8,8,512]{2,1,0:T(8,128)}', space=vmem, size = 0x20000, scoped, tag = 'scratch operand']
  #allocation3 [shape = 'f32[8,8,512]{2,1,0:T(8,128)}', space=vmem, size = 0x20000, scoped, tag = 'scratch operand']
  #allocation4 [shape = 'f32[8,8,128]{2,1,0:T(8,128)}', space=vmem, size = 0x8000, scoped, tag = 'scratch operand']
  %s0 = inlined_call_operand.vmem [shape: f32[8,8,64], index: 0, kind: input, shape index: {}]
  %s1 = inlined_call_operand.vmem [shape: f32[8,8,1], index: 1, kind: input, shape index: {}]
  %s2 = inlined_call_operand.vmem [shape: s32[8,8,1], index: 2, kind: input, shape index: {}]
  %s3 = inlined_call_operand.vmem [shape: f32[64,26], index: 3, kind: input, shape index: {}]
  %s4 = inlined_call_operand.vmem [shape: f32[1,26], index: 4, kind: input, shape index: {}]
  %s5 = inlined_call_operand.vmem [shape: f32[26,512], index: 5, kind: input, shape index: {}]
  %s6 = inlined_call_operand.vmem [shape: f32[128,512], index: 6, kind: input, shape index: {}]
  %s7 = inlined_call_operand.vmem [shape: f32[1,512], index: 7, kind: input, shape index: {}]
  %s8 = inlined_call_operand.hbm [shape: f32[256,512], index: 8, kind: input, shape index: {}]
  %s9 = inlined_call_operand.hbm [shape: f32[1,512], index: 9, kind: input, shape index: {}]
  %s10 = inlined_call_operand.hbm [shape: f32[28,28], index: 10, kind: input, shape index: {}]
  %s11 = inlined_call_operand.vmem [shape: f32[28,512], index: 11, kind: input, shape index: {}]
  %s12 = inlined_call_operand.hbm [shape: f32[128,512], index: 12, kind: input, shape index: {}]
  %s13 = inlined_call_operand.vmem [shape: f32[1,512], index: 13, kind: input, shape index: {}]
  %s14 = inlined_call_operand.hbm [shape: f32[256,512], index: 14, kind: input, shape index: {}]
  %s15 = inlined_call_operand.vmem [shape: f32[1,512], index: 15, kind: input, shape index: {}]
  %s16 = inlined_call_operand.hbm [shape: f32[128,128], index: 16, kind: input, shape index: {}]
  %s17 = inlined_call_operand.hbm [shape: f32[1,128], index: 17, kind: input, shape index: {}]
  %s18 = inlined_call_operand.vmem [shape: f32[8,8,128], index: 18, kind: output, shape index: {}]
  %s19 = sld [smem:[#allocation0]]
  $region110: #{seq2seq_forward.1} parent=0
    _
  %s21 = ssub.s32 1, %s19
  %s22 = scalar_select 0, %s21, %s19
  $region1: #{seq2seq_forward.1} parent=0
    #allocation5 [shape = 'u8[524288]{0}', space=vmem, size = 0x80000, scoped, tag = 'input window, operand 8, single buffered']
    #allocation6 [shape = 's32[1]{0}', space=sflag, size = 0x4, scoped, tag = 'scoped memory for seq2seq_forward.1']
    #allocation7 [shape = 'u8[2048]{0}', space=vmem, size = 0x800, scoped, tag = 'input window, operand 9, single buffered']
    #allocation8 [shape = 's32[1]{0}', space=sflag, size = 0x4, scoped, tag = 'scoped memory for seq2seq_forward.1']
    #allocation9 [shape = 'u8[16384]{0}', space=vmem, size = 0x4000, scoped, tag = 'input window, operand 10, single buffered']
    #allocation10 [shape = 'u8[262144]{0}', space=vmem, size = 0x40000, scoped, tag = 'input window, operand 12, single buffered']
    #allocation11 [shape = 's32[1]{0}', space=sflag, size = 0x4, scoped, tag = 'scoped memory for seq2seq_forward.1']
    #allocation12 [shape = 'u8[524288]{0}', space=vmem, size = 0x80000, scoped, tag = 'input window, operand 14, single buffered']
    #allocation13 [shape = 'u8[65536]{0}', space=vmem, size = 0x10000, scoped, tag = 'input window, operand 16, single buffered']
    #allocation14 [shape = 's32[1]{0}', space=sflag, size = 0x4, scoped, tag = 'scoped memory for seq2seq_forward.1']
    #allocation15 [shape = 'u8[512]{0}', space=vmem, size = 0x400, scoped, tag = 'input window, operand 17, single buffered']
    %23 = vsyncpa [#allocation6], 0
    %24 = vsyncpa [#allocation8], 0
    %25 = vsyncpa [#allocation11], 0
    %26 = vsyncpa [#allocation14], 0
    // Predicated region
    $region2: #{seq2seq_forward.1} parent=1 // pred_check
      _
    $region3: #{seq2seq_forward.1} parent=1 // pred_check_branch
      %28 = sbr.rel (0) target = $region5
    $region4: #{seq2seq_forward.1} parent=1 // pred_region
      _
    $region5: #{seq2seq_forward.1} parent=1 // pred_fallthru
      _
    // Predicated region
    $region6: #{seq2seq_forward.1} parent=1 // pred_check
      _
    $region7: #{seq2seq_forward.1} parent=1 // pred_check_branch
      %30 = sbr.rel (0) target = $region9
    $region8: #{seq2seq_forward.1} parent=1 // pred_region
      _
    $region9: #{seq2seq_forward.1} parent=1 // pred_fallthru
      _
    // Predicated region
    $region10: #{seq2seq_forward.1} parent=1 // pred_check
      _
    $region11: #{seq2seq_forward.1} parent=1 // pred_check_branch
      %32 = sbr.rel (0) target = $region13
    $region12: #{seq2seq_forward.1} parent=1 // pred_region
      _
    $region13: #{seq2seq_forward.1} parent=1 // pred_fallthru
      _
    // Predicated region
    $region14: #{seq2seq_forward.1} parent=1 // pred_check
      _
    $region15: #{seq2seq_forward.1} parent=1 // pred_check_branch
      %34 = sbr.rel (0) target = $region17
    $region16: #{seq2seq_forward.1} parent=1 // pred_region
      _
    $region17: #{seq2seq_forward.1} parent=1 // pred_fallthru
      _
    // Predicated region
    $region18: #{seq2seq_forward.1} parent=1 // pred_check
      _
    $region19: #{seq2seq_forward.1} parent=1 // pred_check_branch
      %36 = sbr.rel (0) target = $region21
    $region20: #{seq2seq_forward.1} parent=1 // pred_region
      _
    $region21: #{seq2seq_forward.1} parent=1 // pred_fallthru
      _
    // Predicated region
    $region22: #{seq2seq_forward.1} parent=1 // pred_check
      _
    $region23: #{seq2seq_forward.1} parent=1 // pred_check_branch
      %38 = sbr.rel (0) target = $region25
    $region24: #{seq2seq_forward.1} parent=1 // pred_region
      _
    $region25: #{seq2seq_forward.1} parent=1 // pred_fallthru
      _
    // Predicated region
    $region26: #{seq2seq_forward.1} parent=1 // pred_check
      _
    $region27: #{seq2seq_forward.1} parent=1 // pred_check_branch
      %40 = sbr.rel (0) target = $region29
    $region28: #{seq2seq_forward.1} parent=1 // pred_region
      _
    $region29: #{seq2seq_forward.1} parent=1 // pred_fallthru
      _
    // Predicated region
    $region30: #{seq2seq_forward.1} parent=1 // pred_check
      _
    $region31: #{seq2seq_forward.1} parent=1 // pred_check_branch
      %42 = sbr.rel (0) target = $region33
    $region32: #{seq2seq_forward.1} parent=1 // pred_region
      _
    $region33: #{seq2seq_forward.1} parent=1 // pred_fallthru
      _
    // Predicated region
    $region34: #{seq2seq_forward.1} parent=1 // pred_check
      _
    $region35: #{seq2seq_forward.1} parent=1 // pred_check_branch
      %44 = sbr.rel (0) target = $region37
    $region36: #{seq2seq_forward.1} parent=1 // pred_region
      %s46 = ssub.s32 16384, 16384
      %47 = vsyncadd [#allocation6], %s46
      %s48 = sshll.u32 [#allocation5], 4
      %s49 = int_to_ptr.vmem [resolvable:$true] %s48
      %54 = dma.hbm_to_vmem [thread:$0]  %s8, 16384, %s49, [#allocation6], 512, 512, 32
    $region37: #{seq2seq_forward.1} parent=1 // pred_fallthru
      _
    // Predicated region
    $region38: #{seq2seq_forward.1} parent=1 // pred_check
      _
    $region39: #{seq2seq_forward.1} parent=1 // pred_check_branch
      %56 = sbr.rel (0) target = $region41
    $region40: #{seq2seq_forward.1} parent=1 // pred_region
      %s58 = ssub.s32 64, 64
      %59 = vsyncadd [#allocation8], %s58
      %s61 = sshll.u32 [#allocation7], 4
      %s62 = int_to_ptr.vmem [resolvable:$true] %s61
      %64 = dma.hbm_to_vmem [thread:$0]  %s9, 64, %s62, [#allocation8]
    $region41: #{seq2seq_forward.1} parent=1 // pred_fallthru
      _
    // Predicated region
    $region42: #{seq2seq_forward.1} parent=1 // pred_check
      _
    $region43: #{seq2seq_forward.1} parent=1 // pred_check_branch
      %66 = sbr.rel (0) target = $region45
    $region44: #{seq2seq_forward.1} parent=1 // pred_region
      %s68 = ssub.s32 512, 512
      %69 = vsyncadd [#allocation8], %s68
      %s70 = sshll.u32 [#allocation9], 4
      %s71 = int_to_ptr.vmem [resolvable:$true] %s70
      %76 = dma.hbm_to_vmem [thread:$0]  %s10, 512, %s71, [#allocation8], 128, 128, 8
    $region45: #{seq2seq_forward.1} parent=1 // pred_fallthru
      _
    // Predicated region
    $region46: #{seq2seq_forward.1} parent=1 // pred_check
      _
    $region47: #{seq2seq_forward.1} parent=1 // pred_check_branch
      %78 = sbr.rel (0) target = $region49
    $region48: #{seq2seq_forward.1} parent=1 // pred_region
      _
    $region49: #{seq2seq_forward.1} parent=1 // pred_fallthru
      _
    // Predicated region
    $region50: #{seq2seq_forward.1} parent=1 // pred_check
      _
    $region51: #{seq2seq_forward.1} parent=1 // pred_check_branch
      %80 = sbr.rel (0) target = $region53
    $region52: #{seq2seq_forward.1} parent=1 // pred_region
      %s82 = ssub.s32 8192, 8192
      %83 = vsyncadd [#allocation11], %s82
      %s84 = sshll.u32 [#allocation10], 4
      %s85 = int_to_ptr.vmem [resolvable:$true] %s84
      %90 = dma.hbm_to_vmem [thread:$0]  %s12, 8192, %s85, [#allocation11], 512, 512, 32
    $region53: #{seq2seq_forward.1} parent=1 // pred_fallthru
      _
    // Predicated region
    $region54: #{seq2seq_forward.1} parent=1 // pred_check
      _
    $region55: #{seq2seq_forward.1} parent=1 // pred_check_branch
      %92 = sbr.rel (0) target = $region57
    $region56: #{seq2seq_forward.1} parent=1 // pred_region
      _
    $region57: #{seq2seq_forward.1} parent=1 // pred_fallthru
      _
    // Predicated region
    $region58: #{seq2seq_forward.1} parent=1 // pred_check
      _
    $region59: #{seq2seq_forward.1} parent=1 // pred_check_branch
      %94 = sbr.rel (0) target = $region61
    $region60: #{seq2seq_forward.1} parent=1 // pred_region
      %s96 = ssub.s32 16384, 16384
      %97 = vsyncadd [#allocation11], %s96
      %s98 = sshll.u32 [#allocation12], 4
      %s99 = int_to_ptr.vmem [resolvable:$true] %s98
      %104 = dma.hbm_to_vmem [thread:$0]  %s14, 16384, %s99, [#allocation11], 512, 512, 32
    $region61: #{seq2seq_forward.1} parent=1 // pred_fallthru
      _
    // Predicated region
    $region62: #{seq2seq_forward.1} parent=1 // pred_check
      _
    $region63: #{seq2seq_forward.1} parent=1 // pred_check_branch
      %106 = sbr.rel (0) target = $region65
    $region64: #{seq2seq_forward.1} parent=1 // pred_region
      _
    $region65: #{seq2seq_forward.1} parent=1 // pred_fallthru
      _
    // Predicated region
    $region66: #{seq2seq_forward.1} parent=1 // pred_check
      _
    $region67: #{seq2seq_forward.1} parent=1 // pred_check_branch
      %108 = sbr.rel (0) target = $region69
    $region68: #{seq2seq_forward.1} parent=1 // pred_region
      %s110 = ssub.s32 2048, 2048
      %111 = vsyncadd [#allocation14], %s110
      %s112 = sshll.u32 [#allocation13], 4
      %s113 = int_to_ptr.vmem [resolvable:$true] %s112
      %118 = dma.hbm_to_vmem [thread:$0]  %s16, 2048, %s113, [#allocation14], 128, 128, 8
    $region69: #{seq2seq_forward.1} parent=1 // pred_fallthru
      _
    // Predicated region
    $region70: #{seq2seq_forward.1} parent=1 // pred_check
      _
    $region71: #{seq2seq_forward.1} parent=1 // pred_check_branch
      %120 = sbr.rel (0) target = $region73
    $region72: #{seq2seq_forward.1} parent=1 // pred_region
      %s122 = ssub.s32 16, 16
      %123 = vsyncadd [#allocation14], %s122
      %s125 = sshll.u32 [#allocation15], 4
      %s126 = int_to_ptr.vmem [resolvable:$true] %s125
      %128 = dma.hbm_to_vmem [thread:$0]  %s17, 16, %s126, [#allocation14]
    $region73: #{seq2seq_forward.1} parent=1 // pred_fallthru
      _
    // Predicated region
    $region74: #{seq2seq_forward.1} parent=1 // pred_check
      _
    $region75: #{seq2seq_forward.1} parent=1 // pred_check_branch
      %130 = sbr.rel (0) target = $region77
    $region76: #{seq2seq_forward.1} parent=1 // pred_region
      %131 = dma.done [#allocation6], 16384
    $region77: #{seq2seq_forward.1} parent=1 // pred_fallthru
      _
    // Predicated region
    $region78: #{seq2seq_forward.1} parent=1 // pred_check
      _
    $region79: #{seq2seq_forward.1} parent=1 // pred_check_branch
      %133 = sbr.rel (0) target = $region81
    $region80: #{seq2seq_forward.1} parent=1 // pred_region
      %134 = dma.done [#allocation8], 64
    $region81: #{seq2seq_forward.1} parent=1 // pred_fallthru
      _
    // Predicated region
    $region82: #{seq2seq_forward.1} parent=1 // pred_check
      _
    $region83: #{seq2seq_forward.1} parent=1 // pred_check_branch
      %136 = sbr.rel (0) target = $region85
    $region84: #{seq2seq_forward.1} parent=1 // pred_region
      %137 = dma.done [#allocation8], 512
    $region85: #{seq2seq_forward.1} parent=1 // pred_fallthru
      _
    // Predicated region
    $region86: #{seq2seq_forward.1} parent=1 // pred_check
      _
    $region87: #{seq2seq_forward.1} parent=1 // pred_check_branch
      %139 = sbr.rel (0) target = $region89
    $region88: #{seq2seq_forward.1} parent=1 // pred_region
      %140 = dma.done [#allocation11], 8192
    $region89: #{seq2seq_forward.1} parent=1 // pred_fallthru
      _
    // Predicated region
    $region90: #{seq2seq_forward.1} parent=1 // pred_check
      _
    $region91: #{seq2seq_forward.1} parent=1 // pred_check_branch
      %142 = sbr.rel (0) target = $region93
    $region92: #{seq2seq_forward.1} parent=1 // pred_region
      %143 = dma.done [#allocation11], 16384
    $region93: #{seq2seq_forward.1} parent=1 // pred_fallthru
      _
    // Predicated region
    $region94: #{seq2seq_forward.1} parent=1 // pred_check
      _
    $region95: #{seq2seq_forward.1} parent=1 // pred_check_branch
      %145 = sbr.rel (0) target = $region97
    $region96: #{seq2seq_forward.1} parent=1 // pred_region
      %146 = dma.done [#allocation14], 2048
    $region97: #{seq2seq_forward.1} parent=1 // pred_fallthru
      _
    // Predicated region
    $region98: #{seq2seq_forward.1} parent=1 // pred_check
      _
    $region99: #{seq2seq_forward.1} parent=1 // pred_check_branch
      %148 = sbr.rel (0) target = $region101
    $region100: #{seq2seq_forward.1} parent=1 // pred_region
      %149 = dma.done [#allocation14], 16
    $region101: #{seq2seq_forward.1} parent=1 // pred_fallthru
      _
    %v150 = vld [vmem:[%s0] sm:$0xff]
    %v151 = vld [vmem:[%s0 + $0x8] sm:$0xff]
    %v152 = vld [vmem:[%s0 + $0x10] sm:$0xff]
    %v153 = vld [vmem:[%s0 + $0x18] sm:$0xff]
    %v154 = vld [vmem:[%s0 + $0x20] sm:$0xff]
    %v155 = vld [vmem:[%s0 + $0x28] sm:$0xff]
    %v156 = vld [vmem:[%s0 + $0x30] sm:$0xff]
    %v157 = vld [vmem:[%s0 + $0x38] sm:$0xff]
    %v158 = vld [vmem:[%s3] sm:$0xff]
    %v159 = vld [vmem:[%s3 + $0x8] sm:$0xff]
    %v160 = vld [vmem:[%s3 + $0x10] sm:$0xff]
    %v161 = vld [vmem:[%s3 + $0x18] sm:$0xff]
    %v162 = vld [vmem:[%s3 + $0x20] sm:$0xff]
    %v163 = vld [vmem:[%s3 + $0x28] sm:$0xff]
    %v164 = vld [vmem:[%s3 + $0x30] sm:$0xff]
    %v165 = vld [vmem:[%s3 + $0x38] sm:$0xff]
    %v166 = vld [vmem:[%s4] sm:$0x1]
    %v168 = vlaneseq
    %v169 = vshrl.u32 %v168, 7
    %v170 = vsub.s32 0, %v169
    %v171 = vrot.slane %v166, %v170
    %vm173 = vcmask 523264
    %v175 = vsel %vm173, %v150, 0
    %v178 = vsel %vm173, %v151, 0
    %v181 = vsel %vm173, %v152, 0
    %v184 = vsel %vm173, %v153, 0
    %v187 = vsel %vm173, %v154, 0
    %v190 = vsel %vm173, %v155, 0
    %v193 = vsel %vm173, %v156, 0
    %v196 = vsel %vm173, %v157, 0
    %198 = vmatprep.subr.mxu0 0.0
    %199 = vmatpush1.msra.mxu0 %v158
    %200 = vmatprep.subr.mxu0 0.0
    %201 = vmatpush1.msra.mxu0 %v159
    %202 = vmatprep.subr.mxu0 0.0
    %203 = vmatpush1.msra.mxu0 %v160
    %204 = vmatprep.subr.mxu0 0.0
    %205 = vmatpush1.msra.mxu0 %v161
    %206 = vmatprep.subr.mxu0 0.0
    %207 = vmatpush1.msra.mxu0 %v162
    %208 = vmatprep.subr.mxu0 0.0
    %209 = vmatpush1.msra.mxu0 %v163
    %210 = vmatprep.subr.mxu0 0.0
    %211 = vmatpush1.msra.mxu0 %v164
    %212 = vmatprep.subr.mxu0 0.0
    %213 = vmatpush1.msra.mxu0 %v165
    %214 = vmatprep.subr.mxu0 0.0
    %215 = vmatpush1.msra.mxu0 0.0
    %216 = vmatprep.subr.mxu0 0.0
    %217 = vmatpush1.msra.mxu0 0.0
    %218 = vmatprep.subr.mxu0 0.0
    %219 = vmatpush1.msra.mxu0 0.0
    %220 = vmatprep.subr.mxu0 0.0
    %221 = vmatpush1.msra.mxu0 0.0
    %222 = vmatprep.subr.mxu0 0.0
    %223 = vmatpush1.msra.mxu0 0.0
    %224 = vmatprep.subr.mxu0 0.0
    %225 = vmatpush1.msra.mxu0 0.0
    %226 = vmatprep.subr.mxu0 0.0
    %227 = vmatpush1.msra.mxu0 0.0
    %228 = vmatprep.subr.mxu0 0.0
    %229 = vmatpush1.msra.mxu0 0.0
    %230 = vmatprep.subr.mxu0 0.0
    %231 = vmatpush1.msra.mxu0 0.0
    %232 = vmatprep.subr.mxu0 0.0
    %233 = vmatpush1.msra.mxu0 0.0
    %234 = vmatprep.subr.mxu0 0.0
    %235 = vmatpush1.msra.mxu0 0.0
    %236 = vmatprep.subr.mxu0 0.0
    %237 = vmatpush1.msra.mxu0 0.0
    %238 = vmatprep.subr.mxu0 0.0
    %239 = vmatpush1.msra.mxu0 0.0
    %240 = vmatprep.subr.mxu0 0.0
    %241 = vmatpush1.msra.mxu0 0.0
    %242 = vmatprep.subr.mxu0 0.0
    %243 = vmatpush1.msra.mxu0 0.0
    %244 = vmatprep.subr.mxu0 0.0
    %245 = vmatpush1.msra.mxu0 0.0
    %246 = vmatprep.subr.mxu0 0.0
    %247 = vmatpush1.msra.mxu0 0.0
    %248 = vmatprep.subr.mxu0 0.0
    %249 = vmatpush1.msra.mxu0 0.0
    %250 = vmatprep.subr.mxu0 0.0
    %251 = vmatpush1.msra.mxu0 0.0
    %252 = vmatprep.subr.mxu0 0.0
    %253 = vmatpush1.msra.mxu0 0.0
    %254 = vmatprep.subr.mxu0 0.0
    %255 = vmatpush1.msra.mxu0 0.0
    %256 = vmatprep.subr.mxu0 0.0
    %257 = vmatpush1.msra.mxu0 0.0
    %258 = vmatprep.subr.mxu0 0.0
    %259 = vmatpush1.msra.mxu0 0.0
    %260 = vmatprep.subr.mxu0 0.0
    %261 = vmatpush1.msra.mxu0 0.0
    %262 = vmatprep.mubr.f32.mxu0 0.0
    %263 = vmatmul.mubr.f32.gmra.mrb[0].mxu0 %v175
    %v264 = vpop.f32.mrb[0].mxu0
    %v265 = vadd.f32 %v171, %v264
    %v266 = vpop.f32.mrb[0].mxu0
    %267 = vmatprep.mubr.f32.mxu0 0.0
    %268 = vmatmul.mubr.f32.gmra.mrb[0].mxu0 %v178
    %v269 = vpop.f32.mrb[0].mxu0
    %v270 = vadd.f32 %v171, %v269
    %v271 = vpop.f32.mrb[0].mxu0
    %272 = vmatprep.mubr.f32.mxu0 0.0
    %273 = vmatmul.mubr.f32.gmra.mrb[0].mxu0 %v181
    %v274 = vpop.f32.mrb[0].mxu0
    %v275 = vadd.f32 %v171, %v274
    %v276 = vpop.f32.mrb[0].mxu0
    %277 = vmatprep.mubr.f32.mxu0 0.0
    %278 = vmatmul.mubr.f32.gmra.mrb[0].mxu0 %v184
    %v279 = vpop.f32.mrb[0].mxu0
    %v280 = vadd.f32 %v171, %v279
    %v281 = vpop.f32.mrb[0].mxu0
    %282 = vmatprep.mubr.f32.mxu0 0.0
    %283 = vmatmul.mubr.f32.gmra.mrb[0].mxu0 %v187
    %v284 = vpop.f32.mrb[0].mxu0
    %v285 = vadd.f32 %v171, %v284
    %v286 = vpop.f32.mrb[0].mxu0
    %287 = vmatprep.mubr.f32.mxu0 0.0
    %288 = vmatmul.mubr.f32.gmra.mrb[0].mxu0 %v190
    %v289 = vpop.f32.mrb[0].mxu0
    %v290 = vadd.f32 %v171, %v289
    %v291 = vpop.f32.mrb[0].mxu0
    %292 = vmatprep.mubr.f32.mxu0 0.0
    %293 = vmatmul.mubr.f32.gmra.mrb[0].mxu0 %v193
    %v294 = vpop.f32.mrb[0].mxu0
    %v295 = vadd.f32 %v171, %v294
    %v296 = vpop.f32.mrb[0].mxu0
    %297 = vmatprep.mubr.f32.mxu0 0.0
    %298 = vmatmul.mubr.f32.gmra.mrb[0].mxu0 %v196
    %v299 = vpop.f32.mrb[0].mxu0
    %v300 = vadd.f32 %v171, %v299
    %v301 = vpop.f32.mrb[0].mxu0
    %302 = vdwg.mxu0
    %v303 = vld [vmem:[%s5] sm:$0xff]
    %v304 = vld [vmem:[%s5 + $0x8] sm:$0xff]
    %v305 = vld [vmem:[%s5 + $0x10] sm:$0xff]
    %v306 = vld [vmem:[%s5 + $0x18] sm:$0xff]
    %v307 = vld [vmem:[%s5 + $0x20] sm:$0xff]
    %v308 = vld [vmem:[%s5 + $0x28] sm:$0xff]
    %v309 = vld [vmem:[%s5 + $0x30] sm:$0xff]
    %v310 = vld [vmem:[%s5 + $0x38] sm:$0xff]
    %v311 = vld [vmem:[%s5 + $0x40] sm:$0xff]
    %v312 = vld [vmem:[%s5 + $0x48] sm:$0xff]
    %v313 = vld [vmem:[%s5 + $0x50] sm:$0xff]
    %v314 = vld [vmem:[%s5 + $0x58] sm:$0xff]
    %v315 = vld [vmem:[%s5 + $0x60] sm:$0x3]
    %v316 = vld [vmem:[%s5 + $0x68] sm:$0x3]
    %v317 = vld [vmem:[%s5 + $0x70] sm:$0x3]
    %v318 = vld [vmem:[%s5 + $0x78] sm:$0x3]
    %v319 = vld [vmem:[%s7] sm:$0xf]
    %v321 = vlaneseq
    %v322 = vshrl.u32 %v321, 7
    %v323 = vsub.s32 0, %v322
    %v324 = vrot.slane %v319, %v323
    %v325 = vlaneseq
    %v326 = vshrl.u32 %v325, 7
    %v327 = vsub.s32 1, %v326
    %v328 = vrot.slane %v319, %v327
    %v329 = vlaneseq
    %v330 = vshrl.u32 %v329, 7
    %v331 = vsub.s32 2, %v330
    %v332 = vrot.slane %v319, %v331
    %v333 = vlaneseq
    %v334 = vshrl.u32 %v333, 7
    %v335 = vsub.s32 3, %v334
    %v336 = vrot.slane %v319, %v335
    %vm341 = vcmask 211968
    %v343 = vsel %vm341, %v265, 0
    %v346 = vsel %vm341, %v270, 0
    %v349 = vsel %vm341, %v275, 0
    %v352 = vsel %vm341, %v280, 0
    %v355 = vsel %vm341, %v285, 0
    %v358 = vsel %vm341, %v290, 0
    %v361 = vsel %vm341, %v295, 0
    %v364 = vsel %vm341, %v300, 0
    %vm366 = vcmask 1041408
    %v368 = vsel %vm366, %v315, 0
    %v371 = vsel %vm366, %v316, 0
    %v374 = vsel %vm366, %v317, 0
    %v377 = vsel %vm366, %v318, 0
    %379 = vmatprep.subr.mxu0 %v304
    %380 = vmatpush1.msra.mxu0 %v303
    %381 = vmatprep.subr.mxu0 %v308
    %382 = vmatpush1.msra.mxu0 %v307
    %383 = vmatprep.subr.mxu0 %v312
    %384 = vmatpush1.msra.mxu0 %v311
    %385 = vmatprep.subr.mxu0 %v371
    %386 = vmatpush1.msra.mxu0 %v368
    %387 = vmatprep.subr.mxu0 0.0
    %388 = vmatpush1.msra.mxu0 0.0
    %389 = vmatprep.subr.mxu0 0.0
    %390 = vmatpush1.msra.mxu0 0.0
    %391 = vmatprep.subr.mxu0 0.0
    %392 = vmatpush1.msra.mxu0 0.0
    %393 = vmatprep.subr.mxu0 0.0
    %394 = vmatpush1.msra.mxu0 0.0
    %395 = vmatprep.subr.mxu0 0.0
    %396 = vmatpush1.msra.mxu0 0.0
    %397 = vmatprep.subr.mxu0 0.0
    %398 = vmatpush1.msra.mxu0 0.0
    %399 = vmatprep.subr.mxu0 0.0
    %400 = vmatpush1.msra.mxu0 0.0
    %401 = vmatprep.subr.mxu0 0.0
    %402 = vmatpush1.msra.mxu0 0.0
    %403 = vmatprep.subr.mxu0 0.0
    %404 = vmatpush1.msra.mxu0 0.0
    %405 = vmatprep.subr.mxu0 0.0
    %406 = vmatpush1.msra.mxu0 0.0
    %407 = vmatprep.subr.mxu0 0.0
    %408 = vmatpush1.msra.mxu0 0.0
    %409 = vmatprep.subr.mxu0 0.0
    %410 = vmatpush1.msra.mxu0 0.0
    %411 = vmatprep.subr.mxu0 0.0
    %412 = vmatpush1.msra.mxu0 0.0
    %413 = vmatprep.subr.mxu0 0.0
    %414 = vmatpush1.msra.mxu0 0.0
    %415 = vmatprep.subr.mxu0 0.0
    %416 = vmatpush1.msra.mxu0 0.0
    %417 = vmatprep.subr.mxu0 0.0
    %418 = vmatpush1.msra.mxu0 0.0
    %419 = vmatprep.subr.mxu0 0.0
    %420 = vmatpush1.msra.mxu0 0.0
    %421 = vmatprep.subr.mxu0 0.0
    %422 = vmatpush1.msra.mxu0 0.0
    %423 = vmatprep.subr.mxu0 0.0
    %424 = vmatpush1.msra.mxu0 0.0
    %425 = vmatprep.subr.mxu0 0.0
    %426 = vmatpush1.msra.mxu0 0.0
    %427 = vmatprep.subr.mxu0 0.0
    %428 = vmatpush1.msra.mxu0 0.0
    %429 = vmatprep.subr.mxu0 0.0
    %430 = vmatpush1.msra.mxu0 0.0
    %431 = vmatprep.subr.mxu0 0.0
    %432 = vmatpush1.msra.mxu0 0.0
    %433 = vmatprep.subr.mxu0 0.0
    %434 = vmatpush1.msra.mxu0 0.0
    %435 = vmatprep.subr.mxu0 0.0
    %436 = vmatpush1.msra.mxu0 0.0
    %437 = vmatprep.subr.mxu0 0.0
    %438 = vmatpush1.msra.mxu0 0.0
    %439 = vmatprep.subr.mxu0 0.0
    %440 = vmatpush1.msra.mxu0 0.0
    %441 = vmatprep.subr.mxu0 0.0
    %442 = vmatpush1.msra.mxu0 0.0
    %443 = vmatprep.mubr.f32.mxu0 0.0
    %444 = vmatmul.mubr.f32.gmra.mrb[0].mxu0 %v343
    %v445 = vpop.f32.mrb[0].mxu0
    %v446 = vadd.f32 %v324, %v445
    %v447 = vpop.f32.mrb[0].mxu0
    %v448 = vadd.f32 %v328, %v447
    %449 = vmatprep.mubr.f32.mxu0 0.0
    %450 = vmatmul.mubr.f32.gmra.mrb[0].mxu0 %v346
    %v451 = vpop.f32.mrb[0].mxu0
    %v452 = vadd.f32 %v324, %v451
    %v453 = vpop.f32.mrb[0].mxu0
    %v454 = vadd.f32 %v328, %v453
    %455 = vmatprep.mubr.f32.mxu0 0.0
    %456 = vmatmul.mubr.f32.gmra.mrb[0].mxu0 %v349
    %v457 = vpop.f32.mrb[0].mxu0
    %v458 = vadd.f32 %v324, %v457
    %v459 = vpop.f32.mrb[0].mxu0
    %v460 = vadd.f32 %v328, %v459
    %461 = vmatprep.mubr.f32.mxu0 0.0
    %462 = vmatmul.mubr.f32.gmra.mrb[0].mxu0 %v352
    %v463 = vpop.f32.mrb[0].mxu0
    %v464 = vadd.f32 %v324, %v463
    %v465 = vpop.f32.mrb[0].mxu0
    %v466 = vadd.f32 %v328, %v465
    %467 = vmatprep.mubr.f32.mxu0 0.0
    %468 = vmatmul.mubr.f32.gmra.mrb[0].mxu0 %v355
    %v469 = vpop.f32.mrb[0].mxu0
    %v470 = vadd.f32 %v324, %v469
    %v471 = vpop.f32.mrb[0].mxu0
    %v472 = vadd.f32 %v328, %v471
    %473 = vmatprep.mubr.f32.mxu0 0.0
    %474 = vmatmul.mubr.f32.gmra.mrb[0].mxu0 %v358
    %v475 = vpop.f32.mrb[0].mxu0
    %v476 = vadd.f32 %v324, %v475
    %v477 = vpop.f32.mrb[0].mxu0
    %v478 = vadd.f32 %v328, %v477
    %479 = vmatprep.mubr.f32.mxu0 0.0
    %480 = vmatmul.mubr.f32.gmra.mrb[0].mxu0 %v361
    %v481 = vpop.f32.mrb[0].mxu0
    %v482 = vadd.f32 %v324, %v481
    %v483 = vpop.f32.mrb[0].mxu0
    %v484 = vadd.f32 %v328, %v483
    %485 = vmatprep.mubr.f32.mxu0 0.0
    %486 = vmatmul.mubr.f32.gmra.mrb[0].mxu0 %v364
    %v487 = vpop.f32.mrb[0].mxu0
    %v488 = vadd.f32 %v324, %v487
    %v489 = vpop.f32.mrb[0].mxu0
    %v490 = vadd.f32 %v328, %v489
    %491 = vdwg.mxu0
    %492 = vmatprep.subr.mxu0 %v306
    %493 = vmatpush1.msra.mxu0 %v305
    %494 = vmatprep.subr.mxu0 %v310
    %495 = vmatpush1.msra.mxu0 %v309
    %496 = vmatprep.subr.mxu0 %v314
    %497 = vmatpush1.msra.mxu0 %v313
    %498 = vmatprep.subr.mxu0 %v377
    %499 = vmatpush1.msra.mxu0 %v374
    %500 = vmatprep.subr.mxu0 0.0
    %501 = vmatpush1.msra.mxu0 0.0
    %502 = vmatprep.subr.mxu0 0.0
    %503 = vmatpush1.msra.mxu0 0.0
    %504 = vmatprep.subr.mxu0 0.0
    %505 = vmatpush1.msra.mxu0 0.0
    %506 = vmatprep.subr.mxu0 0.0
    %507 = vmatpush1.msra.mxu0 0.0
    %508 = vmatprep.subr.mxu0 0.0
    %509 = vmatpush1.msra.mxu0 0.0
    %510 = vmatprep.subr.mxu0 0.0
    %511 = vmatpush1.msra.mxu0 0.0
    %512 = vmatprep.subr.mxu0 0.0
    %513 = vmatpush1.msra.mxu0 0.0
    %514 = vmatprep.subr.mxu0 0.0
    %515 = vmatpush1.msra.mxu0 0.0
    %516 = vmatprep.subr.mxu0 0.0
    %517 = vmatpush1.msra.mxu0 0.0
    %518 = vmatprep.subr.mxu0 0.0
    %519 = vmatpush1.msra.mxu0 0.0
    %520 = vmatprep.subr.mxu0 0.0
    %521 = vmatpush1.msra.mxu0 0.0
    %522 = vmatprep.subr.mxu0 0.0
    %523 = vmatpush1.msra.mxu0 0.0
    %524 = vmatprep.subr.mxu0 0.0
    %525 = vmatpush1.msra.mxu0 0.0
    %526 = vmatprep.subr.mxu0 0.0
    %527 = vmatpush1.msra.mxu0 0.0
    %528 = vmatprep.subr.mxu0 0.0
    %529 = vmatpush1.msra.mxu0 0.0
    %530 = vmatprep.subr.mxu0 0.0
    %531 = vmatpush1.msra.mxu0 0.0
    %532 = vmatprep.subr.mxu0 0.0
    %533 = vmatpush1.msra.mxu0 0.0
    %534 = vmatprep.subr.mxu0 0.0
    %535 = vmatpush1.msra.mxu0 0.0
    %536 = vmatprep.subr.mxu0 0.0
    %537 = vmatpush1.msra.mxu0 0.0
    %538 = vmatprep.subr.mxu0 0.0
    %539 = vmatpush1.msra.mxu0 0.0
    %540 = vmatprep.subr.mxu0 0.0
    %541 = vmatpush1.msra.mxu0 0.0
    %542 = vmatprep.subr.mxu0 0.0
    %543 = vmatpush1.msra.mxu0 0.0
    %544 = vmatprep.subr.mxu0 0.0
    %545 = vmatpush1.msra.mxu0 0.0
    %546 = vmatprep.subr.mxu0 0.0
    %547 = vmatpush1.msra.mxu0 0.0
    %548 = vmatprep.subr.mxu0 0.0
    %549 = vmatpush1.msra.mxu0 0.0
    %550 = vmatprep.subr.mxu0 0.0
    %551 = vmatpush1.msra.mxu0 0.0
    %552 = vmatprep.subr.mxu0 0.0
    %553 = vmatpush1.msra.mxu0 0.0
    %554 = vmatprep.subr.mxu0 0.0
    %555 = vmatpush1.msra.mxu0 0.0
    %556 = vmatprep.mubr.f32.mxu0 0.0
    %557 = vmatmul.mubr.f32.gmra.mrb[0].mxu0 %v343
    %v558 = vpop.f32.mrb[0].mxu0
    %v559 = vadd.f32 %v332, %v558
    %v560 = vpop.f32.mrb[0].mxu0
    %v561 = vadd.f32 %v336, %v560
    %562 = vmatprep.mubr.f32.mxu0 0.0
    %563 = vmatmul.mubr.f32.gmra.mrb[0].mxu0 %v346
    %v564 = vpop.f32.mrb[0].mxu0
    %v565 = vadd.f32 %v332, %v564
    %v566 = vpop.f32.mrb[0].mxu0
    %v567 = vadd.f32 %v336, %v566
    %568 = vmatprep.mubr.f32.mxu0 0.0
    %569 = vmatmul.mubr.f32.gmra.mrb[0].mxu0 %v349
    %v570 = vpop.f32.mrb[0].mxu0
    %v571 = vadd.f32 %v332, %v570
    %v572 = vpop.f32.mrb[0].mxu0
    %v573 = vadd.f32 %v336, %v572
    %574 = vmatprep.mubr.f32.mxu0 0.0
    %575 = vmatmul.mubr.f32.gmra.mrb[0].mxu0 %v352
    %v576 = vpop.f32.mrb[0].mxu0
    %v577 = vadd.f32 %v332, %v576
    %v578 = vpop.f32.mrb[0].mxu0
    %v579 = vadd.f32 %v336, %v578
    %580 = vmatprep.mubr.f32.mxu0 0.0
    %581 = vmatmul.mubr.f32.gmra.mrb[0].mxu0 %v355
    %v582 = vpop.f32.mrb[0].mxu0
    %v583 = vadd.f32 %v332, %v582
    %v584 = vpop.f32.mrb[0].mxu0
    %v585 = vadd.f32 %v336, %v584
    %586 = vmatprep.mubr.f32.mxu0 0.0
    %587 = vmatmul.mubr.f32.gmra.mrb[0].mxu0 %v358
    %v588 = vpop.f32.mrb[0].mxu0
    %v589 = vadd.f32 %v332, %v588
    %v590 = vpop.f32.mrb[0].mxu0
    %v591 = vadd.f32 %v336, %v590
    %592 = vmatprep.mubr.f32.mxu0 0.0
    %593 = vmatmul.mubr.f32.gmra.mrb[0].mxu0 %v361
    %v594 = vpop.f32.mrb[0].mxu0
    %v595 = vadd.f32 %v332, %v594
    %v596 = vpop.f32.mrb[0].mxu0
    %v597 = vadd.f32 %v336, %v596
    %598 = vmatprep.mubr.f32.mxu0 0.0
    %599 = vmatmul.mubr.f32.gmra.mrb[0].mxu0 %v364
    %v600 = vpop.f32.mrb[0].mxu0
    %v601 = vadd.f32 %v332, %v600
    %v602 = vpop.f32.mrb[0].mxu0
    %v603 = vadd.f32 %v336, %v602
    %604 = vdwg.mxu0
    %605 = vst [vmem:[#allocation2] sm:$0xff] %v446
    %606 = vst [vmem:[#allocation2 + $0x8] sm:$0xff] %v448
    %607 = vst [vmem:[#allocation2 + $0x10] sm:$0xff] %v559
    %608 = vst [vmem:[#allocation2 + $0x18] sm:$0xff] %v561
    %609 = vst [vmem:[#allocation2 + $0x20] sm:$0xff] %v452
    %610 = vst [vmem:[#allocation2 + $0x28] sm:$0xff] %v454
    %611 = vst [vmem:[#allocation2 + $0x30] sm:$0xff] %v565
    %612 = vst [vmem:[#allocation2 + $0x38] sm:$0xff] %v567
    %613 = vst [vmem:[#allocation2 + $0x40] sm:$0xff] %v458
    %614 = vst [vmem:[#allocation2 + $0x48] sm:$0xff] %v460
    %615 = vst [vmem:[#allocation2 + $0x50] sm:$0xff] %v571
    %616 = vst [vmem:[#allocation2 + $0x58] sm:$0xff] %v573
    %617 = vst [vmem:[#allocation2 + $0x60] sm:$0xff] %v464
    %618 = vst [vmem:[#allocation2 + $0x68] sm:$0xff] %v466
    %619 = vst [vmem:[#allocation2 + $0x70] sm:$0xff] %v577
    %620 = vst [vmem:[#allocation2 + $0x78] sm:$0xff] %v579
    %621 = vst [vmem:[#allocation2 + $0x80] sm:$0xff] %v470
    %622 = vst [vmem:[#allocation2 + $0x88] sm:$0xff] %v472
    %623 = vst [vmem:[#allocation2 + $0x90] sm:$0xff] %v583
    %624 = vst [vmem:[#allocation2 + $0x98] sm:$0xff] %v585
    %625 = vst [vmem:[#allocation2 + $0xa0] sm:$0xff] %v476
    %626 = vst [vmem:[#allocation2 + $0xa8] sm:$0xff] %v478
    %627 = vst [vmem:[#allocation2 + $0xb0] sm:$0xff] %v589
    %628 = vst [vmem:[#allocation2 + $0xb8] sm:$0xff] %v591
    %629 = vst [vmem:[#allocation2 + $0xc0] sm:$0xff] %v482
    %630 = vst [vmem:[#allocation2 + $0xc8] sm:$0xff] %v484
    %631 = vst [vmem:[#allocation2 + $0xd0] sm:$0xff] %v595
    %632 = vst [vmem:[#allocation2 + $0xd8] sm:$0xff] %v597
    %633 = vst [vmem:[#allocation2 + $0xe0] sm:$0xff] %v488
    %634 = vst [vmem:[#allocation2 + $0xe8] sm:$0xff] %v490
    %635 = vst [vmem:[#allocation2 + $0xf0] sm:$0xff] %v601
    %636 = vst [vmem:[#allocation2 + $0xf8] sm:$0xff] %v603
    %v637 = vld [vmem:[%s6] sm:$0xff]
    %v638 = vld [vmem:[%s6 + $0x8] sm:$0xff]
    %v639 = vld [vmem:[%s6 + $0x10] sm:$0xff]
    %v640 = vld [vmem:[%s6 + $0x18] sm:$0xff]
    %v641 = vld [vmem:[%s6 + $0x20] sm:$0xff]
    %v642 = vld [vmem:[%s6 + $0x28] sm:$0xff]
    %v643 = vld [vmem:[%s6 + $0x30] sm:$0xff]
    %v644 = vld [vmem:[%s6 + $0x38] sm:$0xff]
    %v645 = vld [vmem:[%s6 + $0x40] sm:$0xff]
    %v646 = vld [vmem:[%s6 + $0x48] sm:$0xff]
    %v647 = vld [vmem:[%s6 + $0x50] sm:$0xff]
    %v648 = vld [vmem:[%s6 + $0x58] sm:$0xff]
    %v649 = vld [vmem:[%s6 + $0x60] sm:$0xff]
    %v650 = vld [vmem:[%s6 + $0x68] sm:$0xff]
    %v651 = vld [vmem:[%s6 + $0x70] sm:$0xff]
    %v652 = vld [vmem:[%s6 + $0x78] sm:$0xff]
    %v653 = vld [vmem:[%s6 + $0x80] sm:$0xff]
    %v654 = vld [vmem:[%s6 + $0x88] sm:$0xff]
    %v655 = vld [vmem:[%s6 + $0x90] sm:$0xff]
    %v656 = vld [vmem:[%s6 + $0x98] sm:$0xff]
    %v657 = vld [vmem:[%s6 + $0xa0] sm:$0xff]
    %v658 = vld [vmem:[%s6 + $0xa8] sm:$0xff]
    %v659 = vld [vmem:[%s6 + $0xb0] sm:$0xff]
    %v660 = vld [vmem:[%s6 + $0xb8] sm:$0xff]
    %v661 = vld [vmem:[%s6 + $0xc0] sm:$0xff]
    %v662 = vld [vmem:[%s6 + $0xc8] sm:$0xff]
    %v663 = vld [vmem:[%s6 + $0xd0] sm:$0xff]
    %v664 = vld [vmem:[%s6 + $0xd8] sm:$0xff]
    %v665 = vld [vmem:[%s6 + $0xe0] sm:$0xff]
    %v666 = vld [vmem:[%s6 + $0xe8] sm:$0xff]
    %v667 = vld [vmem:[%s6 + $0xf0] sm:$0xff]
    %v668 = vld [vmem:[%s6 + $0xf8] sm:$0xff]
    %v669 = vld [vmem:[%s6 + $0x100] sm:$0xff]
    %v670 = vld [vmem:[%s6 + $0x108] sm:$0xff]
    %v671 = vld [vmem:[%s6 + $0x110] sm:$0xff]
    %v672 = vld [vmem:[%s6 + $0x118] sm:$0xff]
    %v673 = vld [vmem:[%s6 + $0x120] sm:$0xff]
    %v674 = vld [vmem:[%s6 + $0x128] sm:$0xff]
    %v675 = vld [vmem:[%s6 + $0x130] sm:$0xff]
    %v676 = vld [vmem:[%s6 + $0x138] sm:$0xff]
    %v677 = vld [vmem:[%s6 + $0x140] sm:$0xff]
    %v678 = vld [vmem:[%s6 + $0x148] sm:$0xff]
    %v679 = vld [vmem:[%s6 + $0x150] sm:$0xff]
    %v680 = vld [vmem:[%s6 + $0x158] sm:$0xff]
    %v681 = vld [vmem:[%s6 + $0x160] sm:$0xff]
    %v682 = vld [vmem:[%s6 + $0x168] sm:$0xff]
    %v683 = vld [vmem:[%s6 + $0x170] sm:$0xff]
    %v684 = vld [vmem:[%s6 + $0x178] sm:$0xff]
    %v685 = vld [vmem:[%s6 + $0x180] sm:$0xff]
    %v686 = vld [vmem:[%s6 + $0x188] sm:$0xff]
    %v687 = vld [vmem:[%s6 + $0x190] sm:$0xff]
    %v688 = vld [vmem:[%s6 + $0x198] sm:$0xff]
    %v689 = vld [vmem:[%s6 + $0x1a0] sm:$0xff]
    %v690 = vld [vmem:[%s6 + $0x1a8] sm:$0xff]
    %v691 = vld [vmem:[%s6 + $0x1b0] sm:$0xff]
    %v692 = vld [vmem:[%s6 + $0x1b8] sm:$0xff]
    %v693 = vld [vmem:[%s6 + $0x1c0] sm:$0xff]
    %v694 = vld [vmem:[%s6 + $0x1c8] sm:$0xff]
    %v695 = vld [vmem:[%s6 + $0x1d0] sm:$0xff]
    %v696 = vld [vmem:[%s6 + $0x1d8] sm:$0xff]
    %v697 = vld [vmem:[%s6 + $0x1e0] sm:$0xff]
    %v698 = vld [vmem:[%s6 + $0x1e8] sm:$0xff]
    %v699 = vld [vmem:[%s6 + $0x1f0] sm:$0xff]
    %v700 = vld [vmem:[%s6 + $0x1f8] sm:$0xff]
    %v701 = vld [vmem:[#allocation5] sm:$0xff]
    %v702 = vld [vmem:[#allocation5 + $0x8] sm:$0xff]
    %v703 = vld [vmem:[#allocation5 + $0x10] sm:$0xff]
    %v704 = vld [vmem:[#allocation5 + $0x18] sm:$0xff]
    %v705 = vld [vmem:[#allocation5 + $0x20] sm:$0xff]
    %v706 = vld [vmem:[#allocation5 + $0x28] sm:$0xff]
    %v707 = vld [vmem:[#allocation5 + $0x30] sm:$0xff]
    %v708 = vld [vmem:[#allocation5 + $0x38] sm:$0xff]
    %v709 = vld [vmem:[#allocation5 + $0x40] sm:$0xff]
    %v710 = vld [vmem:[#allocation5 + $0x48] sm:$0xff]
    %v711 = vld [vmem:[#allocation5 + $0x50] sm:$0xff]
    %v712 = vld [vmem:[#allocation5 + $0x58] sm:$0xff]
    %v713 = vld [vmem:[#allocation5 + $0x60] sm:$0xff]
    %v714 = vld [vmem:[#allocation5 + $0x68] sm:$0xff]
    %v715 = vld [vmem:[#allocation5 + $0x70] sm:$0xff]
    %v716 = vld [vmem:[#allocation5 + $0x78] sm:$0xff]
    %v717 = vld [vmem:[#allocation5 + $0x80] sm:$0xff]
    %v718 = vld [vmem:[#allocation5 + $0x88] sm:$0xff]
    %v719 = vld [vmem:[#allocation5 + $0x90] sm:$0xff]
    %v720 = vld [vmem:[#allocation5 + $0x98] sm:$0xff]
    %v721 = vld [vmem:[#allocation5 + $0xa0] sm:$0xff]
    %v722 = vld [vmem:[#allocation5 + $0xa8] sm:$0xff]
    %v723 = vld [vmem:[#allocation5 + $0xb0] sm:$0xff]
    %v724 = vld [vmem:[#allocation5 + $0xb8] sm:$0xff]
    %v725 = vld [vmem:[#allocation5 + $0xc0] sm:$0xff]
    %v726 = vld [vmem:[#allocation5 + $0xc8] sm:$0xff]
    %v727 = vld [vmem:[#allocation5 + $0xd0] sm:$0xff]
    %v728 = vld [vmem:[#allocation5 + $0xd8] sm:$0xff]
    %v729 = vld [vmem:[#allocation5 + $0xe0] sm:$0xff]
    %v730 = vld [vmem:[#allocation5 + $0xe8] sm:$0xff]
    %v731 = vld [vmem:[#allocation5 + $0xf0] sm:$0xff]
    %v732 = vld [vmem:[#allocation5 + $0xf8] sm:$0xff]
    %v733 = vld [vmem:[#allocation5 + $0x100] sm:$0xff]
    %v734 = vld [vmem:[#allocation5 + $0x108] sm:$0xff]
    %v735 = vld [vmem:[#allocation5 + $0x110] sm:$0xff]
    %v736 = vld [vmem:[#allocation5 + $0x118] sm:$0xff]
    %v737 = vld [vmem:[#allocation5 + $0x120] sm:$0xff]
    %v738 = vld [vmem:[#allocation5 + $0x128] sm:$0xff]
    %v739 = vld [vmem:[#allocation5 + $0x130] sm:$0xff]
    %v740 = vld [vmem:[#allocation5 + $0x138] sm:$0xff]
    %v741 = vld [vmem:[#allocation5 + $0x140] sm:$0xff]
    %v742 = vld [vmem:[#allocation5 + $0x148] sm:$0xff]
    %v743 = vld [vmem:[#allocation5 + $0x150] sm:$0xff]
    %v744 = vld [vmem:[#allocation5 + $0x158] sm:$0xff]
    %v745 = vld [vmem:[#allocation5 + $0x160] sm:$0xff]
    %v746 = vld [vmem:[#allocation5 + $0x168] sm:$0xff]
    %v747 = vld [vmem:[#allocation5 + $0x170] sm:$0xff]
    %v748 = vld [vmem:[#allocation5 + $0x178] sm:$0xff]
    %v749 = vld [vmem:[#allocation5 + $0x180] sm:$0xff]
    %v750 = vld [vmem:[#allocation5 + $0x188] sm:$0xff]
    %v751 = vld [vmem:[#allocation5 + $0x190] sm:$0xff]
    %v752 = vld [vmem:[#allocation5 + $0x198] sm:$0xff]
    %v753 = vld [vmem:[#allocation5 + $0x1a0] sm:$0xff]
    %v754 = vld [vmem:[#allocation5 + $0x1a8] sm:$0xff]
    %v755 = vld [vmem:[#allocation5 + $0x1b0] sm:$0xff]
    %v756 = vld [vmem:[#allocation5 + $0x1b8] sm:$0xff]
    %v757 = vld [vmem:[#allocation5 + $0x1c0] sm:$0xff]
    %v758 = vld [vmem:[#allocation5 + $0x1c8] sm:$0xff]
    %v759 = vld [vmem:[#allocation5 + $0x1d0] sm:$0xff]
    %v760 = vld [vmem:[#allocation5 + $0x1d8] sm:$0xff]
    %v761 = vld [vmem:[#allocation5 + $0x1e0] sm:$0xff]
    %v762 = vld [vmem:[#allocation5 + $0x1e8] sm:$0xff]
    %v763 = vld [vmem:[#allocation5 + $0x1f0] sm:$0xff]
    %v764 = vld [vmem:[#allocation5 + $0x1f8] sm:$0xff]
    %v765 = vld [vmem:[#allocation5 + $0x200] sm:$0xff]
    %v766 = vld [vmem:[#allocation5 + $0x208] sm:$0xff]
    %v767 = vld [vmem:[#allocation5 + $0x210] sm:$0xff]
    %v768 = vld [vmem:[#allocation5 + $0x218] sm:$0xff]
    %v769 = vld [vmem:[#allocation5 + $0x220] sm:$0xff]
    %v770 = vld [vmem:[#allocation5 + $0x228] sm:$0xff]
    %v771 = vld [vmem:[#allocation5 + $0x230] sm:$0xff]
    %v772 = vld [vmem:[#allocation5 + $0x238] sm:$0xff]
    %v773 = vld [vmem:[#allocation5 + $0x240] sm:$0xff]
    %v774 = vld [vmem:[#allocation5 + $0x248] sm:$0xff]
    %v775 = vld [vmem:[#allocation5 + $0x250] sm:$0xff]
    %v776 = vld [vmem:[#allocation5 + $0x258] sm:$0xff]
    %v777 = vld [vmem:[#allocation5 + $0x260] sm:$0xff]
    %v778 = vld [vmem:[#allocation5 + $0x268] sm:$0xff]
    %v779 = vld [vmem:[#allocation5 + $0x270] sm:$0xff]
    %v780 = vld [vmem:[#allocation5 + $0x278] sm:$0xff]
    %v781 = vld [vmem:[#allocation5 + $0x280] sm:$0xff]
    %v782 = vld [vmem:[#allocation5 + $0x288] sm:$0xff]
    %v783 = vld [vmem:[#allocation5 + $0x290] sm:$0xff]
    %v784 = vld [vmem:[#allocation5 + $0x298] sm:$0xff]
    %v785 = vld [vmem:[#allocation5 + $0x2a0] sm:$0xff]
    %v786 = vld [vmem:[#allocation5 + $0x2a8] sm:$0xff]
    %v787 = vld [vmem:[#allocation5 + $0x2b0] sm:$0xff]
    %v788 = vld [vmem:[#allocation5 + $0x2b8] sm:$0xff]
    %v789 = vld [vmem:[#allocation5 + $0x2c0] sm:$0xff]
    %v790 = vld [vmem:[#allocation5 + $0x2c8] sm:$0xff]
    %v791 = vld [vmem:[#allocation5 + $0x2d0] sm:$0xff]
    %v792 = vld [vmem:[#allocation5 + $0x2d8] sm:$0xff]
    %v793 = vld [vmem:[#allocation5 + $0x2e0] sm:$0xff]
    %v794 = vld [vmem:[#allocation5 + $0x2e8] sm:$0xff]
    %v795 = vld [vmem:[#allocation5 + $0x2f0] sm:$0xff]
    %v796 = vld [vmem:[#allocation5 + $0x2f8] sm:$0xff]
    %v797 = vld [vmem:[#allocation5 + $0x300] sm:$0xff]
    %v798 = vld [vmem:[#allocation5 + $0x308] sm:$0xff]
    %v799 = vld [vmem:[#allocation5 + $0x310] sm:$0xff]
    %v800 = vld [vmem:[#allocation5 + $0x318] sm:$0xff]
    %v801 = vld [vmem:[#allocation5 + $0x320] sm:$0xff]
    %v802 = vld [vmem:[#allocation5 + $0x328] sm:$0xff]
    %v803 = vld [vmem:[#allocation5 + $0x330] sm:$0xff]
    %v804 = vld [vmem:[#allocation5 + $0x338] sm:$0xff]
    %v805 = vld [vmem:[#allocation5 + $0x340] sm:$0xff]
    %v806 = vld [vmem:[#allocation5 + $0x348] sm:$0xff]
    %v807 = vld [vmem:[#allocation5 + $0x350] sm:$0xff]
    %v808 = vld [vmem:[#allocation5 + $0x358] sm:$0xff]
    %v809 = vld [vmem:[#allocation5 + $0x360] sm:$0xff]
    %v810 = vld [vmem:[#allocation5 + $0x368] sm:$0xff]
    %v811 = vld [vmem:[#allocation5 + $0x370] sm:$0xff]
    %v812 = vld [vmem:[#allocation5 + $0x378] sm:$0xff]
    %v813 = vld [vmem:[#allocation5 + $0x380] sm:$0xff]
    %v814 = vld [vmem:[#allocation5 + $0x388] sm:$0xff]
    %v815 = vld [vmem:[#allocation5 + $0x390] sm:$0xff]
    %v816 = vld [vmem:[#allocation5 + $0x398] sm:$0xff]
    %v817 = vld [vmem:[#allocation5 + $0x3a0] sm:$0xff]
    %v818 = vld [vmem:[#allocation5 + $0x3a8] sm:$0xff]
    %v819 = vld [vmem:[#allocation5 + $0x3b0] sm:$0xff]
    %v820 = vld [vmem:[#allocation5 + $0x3b8] sm:$0xff]
    %v821 = vld [vmem:[#allocation5 + $0x3c0] sm:$0xff]
    %v822 = vld [vmem:[#allocation5 + $0x3c8] sm:$0xff]
    %v823 = vld [vmem:[#allocation5 + $0x3d0] sm:$0xff]
    %v824 = vld [vmem:[#allocation5 + $0x3d8] sm:$0xff]
    %v825 = vld [vmem:[#allocation5 + $0x3e0] sm:$0xff]
    %v826 = vld [vmem:[#allocation5 + $0x3e8] sm:$0xff]
    %v827 = vld [vmem:[#allocation5 + $0x3f0] sm:$0xff]
    %v828 = vld [vmem:[#allocation5 + $0x3f8] sm:$0xff]
    %v829 = vld [vmem:[#allocation7] sm:$0xf]
    %v831 = vlaneseq
    %v832 = vshrl.u32 %v831, 7
    %v833 = vsub.s32 0, %v832
    %v834 = vrot.slane %v829, %v833
    %v835 = vlaneseq
    %v836 = vshrl.u32 %v835, 7
    %v837 = vsub.s32 1, %v836
    %v838 = vrot.slane %v829, %v837
    %v839 = vlaneseq
    %v840 = vshrl.u32 %v839, 7
    %v841 = vsub.s32 2, %v840
    %v842 = vrot.slane %v829, %v841
    %v843 = vlaneseq
    %v844 = vshrl.u32 %v843, 7
    %v845 = vsub.s32 3, %v844
    %v846 = vrot.slane %v829, %v845
    %v851 = vld [vmem:[#allocation2] sm:$0xff]
    %v852 = vld [vmem:[#allocation2 + $0x8] sm:$0xff]
    %v853 = vld [vmem:[#allocation2 + $0x10] sm:$0xff]
    %v854 = vld [vmem:[#allocation2 + $0x18] sm:$0xff]
    %855 = vmatprep.subr.mxu0 %v638
    %856 = vmatpush1.msra.mxu0 %v637
    %857 = vmatprep.subr.mxu0 %v642
    %858 = vmatpush1.msra.mxu0 %v641
    %859 = vmatprep.subr.mxu0 %v646
    %860 = vmatpush1.msra.mxu0 %v645
    %861 = vmatprep.subr.mxu0 %v650
    %862 = vmatpush1.msra.mxu0 %v649
    %863 = vmatprep.subr.mxu0 %v654
    %864 = vmatpush1.msra.mxu0 %v653
    %865 = vmatprep.subr.mxu0 %v658
    %866 = vmatpush1.msra.mxu0 %v657
    %867 = vmatprep.subr.mxu0 %v662
    %868 = vmatpush1.msra.mxu0 %v661
    %869 = vmatprep.subr.mxu0 %v666
    %870 = vmatpush1.msra.mxu0 %v665
    %871 = vmatprep.subr.mxu0 %v670
    %872 = vmatpush1.msra.mxu0 %v669
    %873 = vmatprep.subr.mxu0 %v674
    %874 = vmatpush1.msra.mxu0 %v673
    %875 = vmatprep.subr.mxu0 %v678
    %876 = vmatpush1.msra.mxu0 %v677
    %877 = vmatprep.subr.mxu0 %v682
    %878 = vmatpush1.msra.mxu0 %v681
    %879 = vmatprep.subr.mxu0 %v686
    %880 = vmatpush1.msra.mxu0 %v685
    %881 = vmatprep.subr.mxu0 %v690
    %882 = vmatpush1.msra.mxu0 %v689
    %883 = vmatprep.subr.mxu0 %v694
    %884 = vmatpush1.msra.mxu0 %v693
    %885 = vmatprep.subr.mxu0 %v698
    %886 = vmatpush1.msra.mxu0 %v697
    %887 = vmatprep.subr.mxu0 0.0
    %888 = vmatpush1.msra.mxu0 0.0
    %889 = vmatprep.subr.mxu0 0.0
    %890 = vmatpush1.msra.mxu0 0.0
    %891 = vmatprep.subr.mxu0 0.0
    %892 = vmatpush1.msra.mxu0 0.0
    %893 = vmatprep.subr.mxu0 0.0
    %894 = vmatpush1.msra.mxu0 0.0
    %895 = vmatprep.subr.mxu0 0.0
    %896 = vmatpush1.msra.mxu0 0.0
    %897 = vmatprep.subr.mxu0 0.0
    %898 = vmatpush1.msra.mxu0 0.0
    %899 = vmatprep.subr.mxu0 0.0
    %900 = vmatpush1.msra.mxu0 0.0
    %901 = vmatprep.subr.mxu0 0.0
    %902 = vmatpush1.msra.mxu0 0.0
    %903 = vmatprep.subr.mxu0 0.0
    %904 = vmatpush1.msra.mxu0 0.0
    %905 = vmatprep.subr.mxu0 0.0
    %906 = vmatpush1.msra.mxu0 0.0
    %907 = vmatprep.subr.mxu0 0.0
    %908 = vmatpush1.msra.mxu0 0.0
    %909 = vmatprep.subr.mxu0 0.0
    %910 = vmatpush1.msra.mxu0 0.0
    %911 = vmatprep.subr.mxu0 0.0
    %912 = vmatpush1.msra.mxu0 0.0
    %913 = vmatprep.subr.mxu0 0.0
    %914 = vmatpush1.msra.mxu0 0.0
    %915 = vmatprep.subr.mxu0 0.0
    %916 = vmatpush1.msra.mxu0 0.0
    %917 = vmatprep.subr.mxu0 0.0
    %918 = vmatpush1.msra.mxu0 0.0
    %919 = vmatprep.mubr.f32.mxu0 0.0
    %920 = vmatmul.mubr.f32.gmra.mrb[0].mxu0 0.0
    %v921 = vpop.f32.mrb[0].mxu0
    %v922 = vadd.f32 0.0, %v921
    %v923 = vpop.f32.mrb[0].mxu0
    %v924 = vadd.f32 0.0, %v923
    %925 = vdwg.mxu0
    %926 = vmatprep.subr.mxu0 %v640
    %927 = vmatpush1.msra.mxu0 %v639
    %928 = vmatprep.subr.mxu0 %v644
    %929 = vmatpush1.msra.mxu0 %v643
    %930 = vmatprep.subr.mxu0 %v648
    %931 = vmatpush1.msra.mxu0 %v647
    %932 = vmatprep.subr.mxu0 %v652
    %933 = vmatpush1.msra.mxu0 %v651
    %934 = vmatprep.subr.mxu0 %v656
    %935 = vmatpush1.msra.mxu0 %v655
    %936 = vmatprep.subr.mxu0 %v660
    %937 = vmatpush1.msra.mxu0 %v659
    %938 = vmatprep.subr.mxu0 %v664
    %939 = vmatpush1.msra.mxu0 %v663
    %940 = vmatprep.subr.mxu0 %v668
    %941 = vmatpush1.msra.mxu0 %v667
    %942 = vmatprep.subr.mxu0 %v672
    %943 = vmatpush1.msra.mxu0 %v671
    %944 = vmatprep.subr.mxu0 %v676
    %945 = vmatpush1.msra.mxu0 %v675
    %946 = vmatprep.subr.mxu0 %v680
    %947 = vmatpush1.msra.mxu0 %v679
    %948 = vmatprep.subr.mxu0 %v684
    %949 = vmatpush1.msra.mxu0 %v683
    %950 = vmatprep.subr.mxu0 %v688
    %951 = vmatpush1.msra.mxu0 %v687
    %952 = vmatprep.subr.mxu0 %v692
    %953 = vmatpush1.msra.mxu0 %v691
    %954 = vmatprep.subr.mxu0 %v696
    %955 = vmatpush1.msra.mxu0 %v695
    %956 = vmatprep.subr.mxu0 %v700
    %957 = vmatpush1.msra.mxu0 %v699
    %958 = vmatprep.subr.mxu0 0.0
    %959 = vmatpush1.msra.mxu0 0.0
    %960 = vmatprep.subr.mxu0 0.0
    %961 = vmatpush1.msra.mxu0 0.0
    %962 = vmatprep.subr.mxu0 0.0
    %963 = vmatpush1.msra.mxu0 0.0
    %964 = vmatprep.subr.mxu0 0.0
    %965 = vmatpush1.msra.mxu0 0.0
    %966 = vmatprep.subr.mxu0 0.0
    %967 = vmatpush1.msra.mxu0 0.0
    %968 = vmatprep.subr.mxu0 0.0
    %969 = vmatpush1.msra.mxu0 0.0
    %970 = vmatprep.subr.mxu0 0.0
    %971 = vmatpush1.msra.mxu0 0.0
    %972 = vmatprep.subr.mxu0 0.0
    %973 = vmatpush1.msra.mxu0 0.0
    %974 = vmatprep.subr.mxu0 0.0
    %975 = vmatpush1.msra.mxu0 0.0
    %976 = vmatprep.subr.mxu0 0.0
    %977 = vmatpush1.msra.mxu0 0.0
    %978 = vmatprep.subr.mxu0 0.0
    %979 = vmatpush1.msra.mxu0 0.0
    %980 = vmatprep.subr.mxu0 0.0
    %981 = vmatpush1.msra.mxu0 0.0
    %982 = vmatprep.subr.mxu0 0.0
    %983 = vmatpush1.msra.mxu0 0.0
    %984 = vmatprep.subr.mxu0 0.0
    %985 = vmatpush1.msra.mxu0 0.0
    %986 = vmatprep.subr.mxu0 0.0
    %987 = vmatpush1.msra.mxu0 0.0
    %988 = vmatprep.subr.mxu0 0.0
    %989 = vmatpush1.msra.mxu0 0.0
    %990 = vmatprep.mubr.f32.mxu0 0.0
    %991 = vmatmul.mubr.f32.gmra.mrb[0].mxu0 0.0
    %v992 = vpop.f32.mrb[0].mxu0
    %v993 = vadd.f32 0.0, %v992
    %v994 = vpop.f32.mrb[0].mxu0
    %v995 = vadd.f32 0.0, %v994
    %996 = vdwg.mxu0
    %v997 = vadd.f32 %v851, %v922
    %v998 = vadd.f32 %v852, %v924
    %v999 = vadd.f32 %v853, %v993
    %v1000 = vadd.f32 %v854, %v995
    %v1001 = vxor.u32 %v997, 2147483648
    %v1002 = vmul.f32 %v1001, 1.442695
    %v1003 = vpow.pop %v1002
    %v1004 = vadd.f32 %v1003, 1.0
    %v1005 = vrcp.pop %v1004
    %v1006 = vmul.f32 1.0, %v1005
    %v1007 = vxor.u32 %v998, 2147483648
    %v1008 = vmul.f32 %v1007, 1.442695
    %v1009 = vpow.pop %v1008
    %v1010 = vadd.f32 %v1009, 1.0
    %v1011 = vrcp.pop %v1010
    %v1012 = vmul.f32 1.0, %v1011
    %v1013 = vtanh.pop %v999
    %v1014 = vxor.u32 %v1000, 2147483648
    %v1015 = vmul.f32 %v1014, 1.442695
    %v1016 = vpow.pop %v1015
    %v1017 = vadd.f32 %v1016, 1.0
    %v1018 = vrcp.pop %v1017
    %v1019 = vmul.f32 1.0, %v1018
    %v1020 = vmul.f32 %v1012, 0.0
    %v1021 = vmul.f32 %v1006, %v1013
    %v1022 = vadd.f32 %v1020, %v1021
    %v1023 = vtanh.pop %v1022
    %v1024 = vmul.f32 %v1019, %v1023
    %1025 = vmatprep.subr.mxu0 %v702
    %1026 = vmatpush1.msra.mxu0 %v701
    %1027 = vmatprep.subr.mxu0 %v706
    %1028 = vmatpush1.msra.mxu0 %v705
    %1029 = vmatprep.subr.mxu0 %v710
    %1030 = vmatpush1.msra.mxu0 %v709
    %1031 = vmatprep.subr.mxu0 %v714
    %1032 = vmatpush1.msra.mxu0 %v713
    %1033 = vmatprep.subr.mxu0 %v718
    %1034 = vmatpush1.msra.mxu0 %v717
    %1035 = vmatprep.subr.mxu0 %v722
    %1036 = vmatpush1.msra.mxu0 %v721
    %1037 = vmatprep.subr.mxu0 %v726
    %1038 = vmatpush1.msra.mxu0 %v725
    %1039 = vmatprep.subr.mxu0 %v730
    %1040 = vmatpush1.msra.mxu0 %v729
    %1041 = vmatprep.subr.mxu0 %v734
    %1042 = vmatpush1.msra.mxu0 %v733
    %1043 = vmatprep.subr.mxu0 %v738
    %1044 = vmatpush1.msra.mxu0 %v737
    %1045 = vmatprep.subr.mxu0 %v742
    %1046 = vmatpush1.msra.mxu0 %v741
    %1047 = vmatprep.subr.mxu0 %v746
    %1048 = vmatpush1.msra.mxu0 %v745
    %1049 = vmatprep.subr.mxu0 %v750
    %1050 = vmatpush1.msra.mxu0 %v749
    %1051 = vmatprep.subr.mxu0 %v754
    %1052 = vmatpush1.msra.mxu0 %v753
    %1053 = vmatprep.subr.mxu0 %v758
    %1054 = vmatpush1.msra.mxu0 %v757
    %1055 = vmatprep.subr.mxu0 %v762
    %1056 = vmatpush1.msra.mxu0 %v761
    %1057 = vmatprep.subr.mxu0 %v766
    %1058 = vmatpush1.msra.mxu0 %v765
    %1059 = vmatprep.subr.mxu0 %v770
    %1060 = vmatpush1.msra.mxu0 %v769
    %1061 = vmatprep.subr.mxu0 %v774
    %1062 = vmatpush1.msra.mxu0 %v773
    %1063 = vmatprep.subr.mxu0 %v778
    %1064 = vmatpush1.msra.mxu0 %v777
    %1065 = vmatprep.subr.mxu0 %v782
    %1066 = vmatpush1.msra.mxu0 %v781
    %1067 = vmatprep.subr.mxu0 %v786
    %1068 = vmatpush1.msra.mxu0 %v785
    %1069 = vmatprep.subr.mxu0 %v790
    %1070 = vmatpush1.msra.mxu0 %v789
    %1071 = vmatprep.subr.mxu0 %v794
    %1072 = vmatpush1.msra.mxu0 %v793
    %1073 = vmatprep.subr.mxu0 %v798
    %1074 = vmatpush1.msra.mxu0 %v797
    %1075 = vmatprep.subr.mxu0 %v802
    %1076 = vmatpush1.msra.mxu0 %v801
    %1077 = vmatprep.subr.mxu0 %v806
    %1078 = vmatpush1.msra.mxu0 %v805
    %1079 = vmatprep.subr.mxu0 %v810
    %1080 = vmatpush1.msra.mxu0 %v809
    %1081 = vmatprep.subr.mxu0 %v814
    %1082 = vmatpush1.msra.mxu0 %v813
    %1083 = vmatprep.subr.mxu0 %v818
    %1084 = vmatpush1.msra.mxu0 %v817
    %1085 = vmatprep.subr.mxu0 %v822
    %1086 = vmatpush1.msra.mxu0 %v821
    %1087 = vmatprep.subr.mxu0 %v826
    %1088 = vmatpush1.msra.mxu0 %v825
    %1089 = vmatprep.mubr.f32.mxu0 0.0
    %1090 = vmatmul.mubr.f32.gmra.mrb[0].mxu0 %v1024
    %v1091 = vpop.f32.mrb[0].mxu0
    %v1092 = vadd.f32 %v834, %v1091
    %v1093 = vpop.f32.mrb[0].mxu0
    %v1094 = vadd.f32 %v838, %v1093
    %1095 = vdwg.mxu0
    %1096 = vmatprep.subr.mxu0 %v704
    %1097 = vmatpush1.msra.mxu0 %v703
    %1098 = vmatprep.subr.mxu0 %v708
    %1099 = vmatpush1.msra.mxu0 %v707
    %1100 = vmatprep.subr.mxu0 %v712
    %1101 = vmatpush1.msra.mxu0 %v711
    %1102 = vmatprep.subr.mxu0 %v716
    %1103 = vmatpush1.msra.mxu0 %v715
    %1104 = vmatprep.subr.mxu0 %v720
    %1105 = vmatpush1.msra.mxu0 %v719
    %1106 = vmatprep.subr.mxu0 %v724
    %1107 = vmatpush1.msra.mxu0 %v723
    %1108 = vmatprep.subr.mxu0 %v728
    %1109 = vmatpush1.msra.mxu0 %v727
    %1110 = vmatprep.subr.mxu0 %v732
    %1111 = vmatpush1.msra.mxu0 %v731
    %1112 = vmatprep.subr.mxu0 %v736
    %1113 = vmatpush1.msra.mxu0 %v735
    %1114 = vmatprep.subr.mxu0 %v740
    %1115 = vmatpush1.msra.mxu0 %v739
    %1116 = vmatprep.subr.mxu0 %v744
    %1117 = vmatpush1.msra.mxu0 %v743
    %1118 = vmatprep.subr.mxu0 %v748
    %1119 = vmatpush1.msra.mxu0 %v747
    %1120 = vmatprep.subr.mxu0 %v752
    %1121 = vmatpush1.msra.mxu0 %v751
    %1122 = vmatprep.subr.mxu0 %v756
    %1123 = vmatpush1.msra.mxu0 %v755
    %1124 = vmatprep.subr.mxu0 %v760
    %1125 = vmatpush1.msra.mxu0 %v759
    %1126 = vmatprep.subr.mxu0 %v764
    %1127 = vmatpush1.msra.mxu0 %v763
    %1128 = vmatprep.subr.mxu0 %v768
    %1129 = vmatpush1.msra.mxu0 %v767
    %1130 = vmatprep.subr.mxu0 %v772
    %1131 = vmatpush1.msra.mxu0 %v771
    %1132 = vmatprep.subr.mxu0 %v776
    %1133 = vmatpush1.msra.mxu0 %v775
    %1134 = vmatprep.subr.mxu0 %v780
    %1135 = vmatpush1.msra.mxu0 %v779
    %1136 = vmatprep.subr.mxu0 %v784
    %1137 = vmatpush1.msra.mxu0 %v783
    %1138 = vmatprep.subr.mxu0 %v788
    %1139 = vmatpush1.msra.mxu0 %v787
    %1140 = vmatprep.subr.mxu0 %v792
    %1141 = vmatpush1.msra.mxu0 %v791
    %1142 = vmatprep.subr.mxu0 %v796
    %1143 = vmatpush1.msra.mxu0 %v795
    %1144 = vmatprep.subr.mxu0 %v800
    %1145 = vmatpush1.msra.mxu0 %v799
    %1146 = vmatprep.subr.mxu0 %v804
    %1147 = vmatpush1.msra.mxu0 %v803
    %1148 = vmatprep.subr.mxu0 %v808
    %1149 = vmatpush1.msra.mxu0 %v807
    %1150 = vmatprep.subr.mxu0 %v812
    %1151 = vmatpush1.msra.mxu0 %v811
    %1152 = vmatprep.subr.mxu0 %v816
    %1153 = vmatpush1.msra.mxu0 %v815
    %1154 = vmatprep.subr.mxu0 %v820
    %1155 = vmatpush1.msra.mxu0 %v819
    %1156 = vmatprep.subr.mxu0 %v824
    %1157 = vmatpush1.msra.mxu0 %v823
    %1158 = vmatprep.subr.mxu0 %v828
    %1159 = vmatpush1.msra.mxu0 %v827
    %1160 = vmatprep.mubr.f32.mxu0 0.0
    %1161 = vmatmul.mubr.f32.gmra.mrb[0].mxu0 %v1024
    %v1162 = vpop.f32.mrb[0].mxu0
    %v1163 = vadd.f32 %v842, %v1162
    %v1164 = vpop.f32.mrb[0].mxu0
    %v1165 = vadd.f32 %v846, %v1164
    %1166 = vdwg.mxu0
    %v1167 = vxor.u32 %v1092, 2147483648
    %v1168 = vmul.f32 %v1167, 1.442695
    %v1169 = vpow.pop %v1168
    %v1170 = vadd.f32 %v1169, 1.0
    %v1171 = vrcp.pop %v1170
    %v1172 = vmul.f32 1.0, %v1171
    %v1173 = vxor.u32 %v1094, 2147483648
    %v1174 = vmul.f32 %v1173, 1.442695
    %v1175 = vpow.pop %v1174
    %v1176 = vadd.f32 %v1175, 1.0
    %v1177 = vrcp.pop %v1176
    %v1178 = vmul.f32 1.0, %v1177
    %v1179 = vtanh.pop %v1163
    %v1180 = vxor.u32 %v1165, 2147483648
    %v1181 = vmul.f32 %v1180, 1.442695
    %v1182 = vpow.pop %v1181
    %v1183 = vadd.f32 %v1182, 1.0
    %v1184 = vrcp.pop %v1183
    %v1185 = vmul.f32 1.0, %v1184
    %v1186 = vmul.f32 %v1178, 0.0
    %v1187 = vmul.f32 %v1172, %v1179
    %v1188 = vadd.f32 %v1186, %v1187
    %v1189 = vtanh.pop %v1188
    %v1190 = vmul.f32 %v1185, %v1189
    %v1191 = vld [vmem:[%s1] sm:$0xff]
    %vm1192 = vcmp.gt.f32.partialorder %v1191, 0.0
    %v1193 = vsel %vm1192, 1, 0
    %1194 = vset.pattern.permute.xlu0 0
    %1195 = vperm.xlu0 %1194, %v1193
    %v1196 = vpop.permute.xlu0 %1195
    %vm1197 = vcmp.eq.s32.totalorder %v1196, 1
    %v1198 = vsel %vm1197, %v1024, 0.0
    %v1199 = vsel %vm1197, %v1022, 0.0
    %v1200 = vsel %vm1197, %v1190, 0.0
    %v1201 = vsel %vm1197, %v1188, 0.0
    %s1202 = scalar_lea.vmem [#allocation2], 32
    %v1203 = vld [vmem:[%s1202] sm:$0xff]
    %v1204 = vld [vmem:[%s1202 + $0x8] sm:$0xff]
    %v1205 = vld [vmem:[%s1202 + $0x10] sm:$0xff]
    %v1206 = vld [vmem:[%s1202 + $0x18] sm:$0xff]
    %1207 = vmatprep.subr.mxu0 %v638
    %1208 = vmatpush1.msra.mxu0 %v637
    %1209 = vmatprep.subr.mxu0 %v642
    %1210 = vmatpush1.msra.mxu0 %v641
    %1211 = vmatprep.subr.mxu0 %v646
    %1212 = vmatpush1.msra.mxu0 %v645
    %1213 = vmatprep.subr.mxu0 %v650
    %1214 = vmatpush1.msra.mxu0 %v649
    %1215 = vmatprep.subr.mxu0 %v654
    %1216 = vmatpush1.msra.mxu0 %v653
    %1217 = vmatprep.subr.mxu0 %v658
    %1218 = vmatpush1.msra.mxu0 %v657
    %1219 = vmatprep.subr.mxu0 %v662
    %1220 = vmatpush1.msra.mxu0 %v661
    %1221 = vmatprep.subr.mxu0 %v666
    %1222 = vmatpush1.msra.mxu0 %v665
    %1223 = vmatprep.subr.mxu0 %v670
    %1224 = vmatpush1.msra.mxu0 %v669
    %1225 = vmatprep.subr.mxu0 %v674
    %1226 = vmatpush1.msra.mxu0 %v673
    %1227 = vmatprep.subr.mxu0 %v678
    %1228 = vmatpush1.msra.mxu0 %v677
    %1229 = vmatprep.subr.mxu0 %v682
    %1230 = vmatpush1.msra.mxu0 %v681
    %1231 = vmatprep.subr.mxu0 %v686
    %1232 = vmatpush1.msra.mxu0 %v685
    %1233 = vmatprep.subr.mxu0 %v690
    %1234 = vmatpush1.msra.mxu0 %v689
    %1235 = vmatprep.subr.mxu0 %v694
    %1236 = vmatpush1.msra.mxu0 %v693
    %1237 = vmatprep.subr.mxu0 %v698
    %1238 = vmatpush1.msra.mxu0 %v697
    %1239 = vmatprep.subr.mxu0 0.0
    %1240 = vmatpush1.msra.mxu0 0.0
    %1241 = vmatprep.subr.mxu0 0.0
    %1242 = vmatpush1.msra.mxu0 0.0
    %1243 = vmatprep.subr.mxu0 0.0
    %1244 = vmatpush1.msra.mxu0 0.0
    %1245 = vmatprep.subr.mxu0 0.0
    %1246 = vmatpush1.msra.mxu0 0.0
    %1247 = vmatprep.subr.mxu0 0.0
    %1248 = vmatpush1.msra.mxu0 0.0
    %1249 = vmatprep.subr.mxu0 0.0
    %1250 = vmatpush1.msra.mxu0 0.0
    %1251 = vmatprep.subr.mxu0 0.0
    %1252 = vmatpush1.msra.mxu0 0.0
    %1253 = vmatprep.subr.mxu0 0.0
    %1254 = vmatpush1.msra.mxu0 0.0
    %1255 = vmatprep.subr.mxu0 0.0
    %1256 = vmatpush1.msra.mxu0 0.0
    %1257 = vmatprep.subr.mxu0 0.0
    %1258 = vmatpush1.msra.mxu0 0.0
    %1259 = vmatprep.subr.mxu0 0.0
    %1260 = vmatpush1.msra.mxu0 0.0
    %1261 = vmatprep.subr.mxu0 0.0
    %1262 = vmatpush1.msra.mxu0 0.0
    %1263 = vmatprep.subr.mxu0 0.0
    %1264 = vmatpush1.msra.mxu0 0.0
    %1265 = vmatprep.subr.mxu0 0.0
    %1266 = vmatpush1.msra.mxu0 0.0
    %1267 = vmatprep.subr.mxu0 0.0
    %1268 = vmatpush1.msra.mxu0 0.0
    %1269 = vmatprep.subr.mxu0 0.0
    %1270 = vmatpush1.msra.mxu0 0.0
    %1271 = vmatprep.mubr.f32.mxu0 0.0
    %1272 = vmatmul.mubr.f32.gmra.mrb[0].mxu0 %v1198
    %v1273 = vpop.f32.mrb[0].mxu0
    %v1274 = vadd.f32 0.0, %v1273
    %v1275 = vpop.f32.mrb[0].mxu0
    %v1276 = vadd.f32 0.0, %v1275
    %1277 = vdwg.mxu0
    %1278 = vmatprep.subr.mxu0 %v640
    %1279 = vmatpush1.msra.mxu0 %v639
    %1280 = vmatprep.subr.mxu0 %v644
    %1281 = vmatpush1.msra.mxu0 %v643
    %1282 = vmatprep.subr.mxu0 %v648
    %1283 = vmatpush1.msra.mxu0 %v647
    %1284 = vmatprep.subr.mxu0 %v652
    %1285 = vmatpush1.msra.mxu0 %v651
    %1286 = vmatprep.subr.mxu0 %v656
    %1287 = vmatpush1.msra.mxu0 %v655
    %1288 = vmatprep.subr.mxu0 %v660
    %1289 = vmatpush1.msra.mxu0 %v659
    %1290 = vmatprep.subr.mxu0 %v664
    %1291 = vmatpush1.msra.mxu0 %v663
    %1292 = vmatprep.subr.mxu0 %v668
    %1293 = vmatpush1.msra.mxu0 %v667
    %1294 = vmatprep.subr.mxu0 %v672
    %1295 = vmatpush1.msra.mxu0 %v671
    %1296 = vmatprep.subr.mxu0 %v676
    %1297 = vmatpush1.msra.mxu0 %v675
    %1298 = vmatprep.subr.mxu0 %v680
    %1299 = vmatpush1.msra.mxu0 %v679
    %1300 = vmatprep.subr.mxu0 %v684
    %1301 = vmatpush1.msra.mxu0 %v683
    %1302 = vmatprep.subr.mxu0 %v688
    %1303 = vmatpush1.msra.mxu0 %v687
    %1304 = vmatprep.subr.mxu0 %v692
    %1305 = vmatpush1.msra.mxu0 %v691
    %1306 = vmatprep.subr.mxu0 %v696
    %1307 = vmatpush1.msra.mxu0 %v695
    %1308 = vmatprep.subr.mxu0 %v700
    %1309 = vmatpush1.msra.mxu0 %v699
    %1310 = vmatprep.subr.mxu0 0.0
    %1311 = vmatpush1.msra.mxu0 0.0
    %1312 = vmatprep.subr.mxu0 0.0
    %1313 = vmatpush1.msra.mxu0 0.0
    %1314 = vmatprep.subr.mxu0 0.0
    %1315 = vmatpush1.msra.mxu0 0.0
    %1316 = vmatprep.subr.mxu0 0.0
    %1317 = vmatpush1.msra.mxu0 0.0
    %1318 = vmatprep.subr.mxu0 0.0
    %1319 = vmatpush1.msra.mxu0 0.0
    %1320 = vmatprep.subr.mxu0 0.0
    %1321 = vmatpush1.msra.mxu0 0.0
    %1322 = vmatprep.subr.mxu0 0.0
    %1323 = vmatpush1.msra.mxu0 0.0
    %1324 = vmatprep.subr.mxu0 0.0
    %1325 = vmatpush1.msra.mxu0 0.0
    %1326 = vmatprep.subr.mxu0 0.0
    %1327 = vmatpush1.msra.mxu0 0.0
    %1328 = vmatprep.subr.mxu0 0.0
    %1329 = vmatpush1.msra.mxu0 0.0
    %1330 = vmatprep.subr.mxu0 0.0
    %1331 = vmatpush1.msra.mxu0 0.0
    %1332 = vmatprep.subr.mxu0 0.0
    %1333 = vmatpush1.msra.mxu0 0.0
    %1334 = vmatprep.subr.mxu0 0.0
    %1335 = vmatpush1.msra.mxu0 0.0
    %1336 = vmatprep.subr.mxu0 0.0
    %1337 = vmatpush1.msra.mxu0 0.0
    %1338 = vmatprep.subr.mxu0 0.0
    %1339 = vmatpush1.msra.mxu0 0.0
    %1340 = vmatprep.subr.mxu0 0.0
    %1341 = vmatpush1.msra.mxu0 0.0
    %1342 = vmatprep.mubr.f32.mxu0 0.0
    %1343 = vmatmul.mubr.f32.gmra.mrb[0].mxu0 %v1198
    %v1344 = vpop.f32.mrb[0].mxu0
    %v1345 = vadd.f32 0.0, %v1344
    %v1346 = vpop.f32.mrb[0].mxu0
    %v1347 = vadd.f32 0.0, %v1346
    %1348 = vdwg.mxu0
    %v1349 = vadd.f32 %v1203, %v1274
    %v1350 = vadd.f32 %v1204, %v1276
    %v1351 = vadd.f32 %v1205, %v1345
    %v1352 = vadd.f32 %v1206, %v1347
    %v1353 = vxor.u32 %v1349, 2147483648
    %v1354 = vmul.f32 %v1353, 1.442695
    %v1355 = vpow.pop %v1354
    %v1356 = vadd.f32 %v1355, 1.0
    %v1357 = vrcp.pop %v1356
    %v1358 = vmul.f32 1.0, %v1357
    %v1359 = vxor.u32 %v1350, 2147483648
    %v1360 = vmul.f32 %v1359, 1.442695
    %v1361 = vpow.pop %v1360
    %v1362 = vadd.f32 %v1361, 1.0
    %v1363 = vrcp.pop %v1362
    %v1364 = vmul.f32 1.0, %v1363
    %v1365 = vtanh.pop %v1351
    %v1366 = vxor.u32 %v1352, 2147483648
    %v1367 = vmul.f32 %v1366, 1.442695
    %v1368 = vpow.pop %v1367
    %v1369 = vadd.f32 %v1368, 1.0
    %v1370 = vrcp.pop %v1369
    %v1371 = vmul.f32 1.0, %v1370
    %v1372 = vmul.f32 %v1364, %v1199
    %v1373 = vmul.f32 %v1358, %v1365
    %v1374 = vadd.f32 %v1372, %v1373
    %v1375 = vtanh.pop %v1374
    %v1376 = vmul.f32 %v1371, %v1375
    %1377 = vmatprep.subr.mxu0 %v702
    %1378 = vmatpush1.msra.mxu0 %v701
    %1379 = vmatprep.subr.mxu0 %v706
    %1380 = vmatpush1.msra.mxu0 %v705
    %1381 = vmatprep.subr.mxu0 %v710
    %1382 = vmatpush1.msra.mxu0 %v709
    %1383 = vmatprep.subr.mxu0 %v714
    %1384 = vmatpush1.msra.mxu0 %v713
    %1385 = vmatprep.subr.mxu0 %v718
    %1386 = vmatpush1.msra.mxu0 %v717
    %1387 = vmatprep.subr.mxu0 %v722
    %1388 = vmatpush1.msra.mxu0 %v721
    %1389 = vmatprep.subr.mxu0 %v726
    %1390 = vmatpush1.msra.mxu0 %v725
    %1391 = vmatprep.subr.mxu0 %v730
    %1392 = vmatpush1.msra.mxu0 %v729
    %1393 = vmatprep.subr.mxu0 %v734
    %1394 = vmatpush1.msra.mxu0 %v733
    %1395 = vmatprep.subr.mxu0 %v738
    %1396 = vmatpush1.msra.mxu0 %v737
    %1397 = vmatprep.subr.mxu0 %v742
    %1398 = vmatpush1.msra.mxu0 %v741
    %1399 = vmatprep.subr.mxu0 %v746
    %1400 = vmatpush1.msra.mxu0 %v745
    %1401 = vmatprep.subr.mxu0 %v750
    %1402 = vmatpush1.msra.mxu0 %v749
    %1403 = vmatprep.subr.mxu0 %v754
    %1404 = vmatpush1.msra.mxu0 %v753
    %1405 = vmatprep.subr.mxu0 %v758
    %1406 = vmatpush1.msra.mxu0 %v757
    %1407 = vmatprep.subr.mxu0 %v762
    %1408 = vmatpush1.msra.mxu0 %v761
    %1409 = vmatprep.subr.mxu0 %v766
    %1410 = vmatpush1.msra.mxu0 %v765
    %1411 = vmatprep.subr.mxu0 %v770
    %1412 = vmatpush1.msra.mxu0 %v769
    %1413 = vmatprep.subr.mxu0 %v774
    %1414 = vmatpush1.msra.mxu0 %v773
    %1415 = vmatprep.subr.mxu0 %v778
    %1416 = vmatpush1.msra.mxu0 %v777
    %1417 = vmatprep.subr.mxu0 %v782
    %1418 = vmatpush1.msra.mxu0 %v781
    %1419 = vmatprep.subr.mxu0 %v786
    %1420 = vmatpush1.msra.mxu0 %v785
    %1421 = vmatprep.subr.mxu0 %v790
    %1422 = vmatpush1.msra.mxu0 %v789
    %1423 = vmatprep.subr.mxu0 %v794
    %1424 = vmatpush1.msra.mxu0 %v793
    %1425 = vmatprep.subr.mxu0 %v798
    %1426 = vmatpush1.msra.mxu0 %v797
    %1427 = vmatprep.subr.mxu0 %v802
    %1428 = vmatpush1.msra.mxu0 %v801
    %1429 = vmatprep.subr.mxu0 %v806
    %1430 = vmatpush1.msra.mxu0 %v805
    %1431 = vmatprep.subr.mxu0 %v810
    %1432 = vmatpush1.msra.mxu0 %v809
    %1433 = vmatprep.subr.mxu0 %v814
    %1434 = vmatpush1.msra.mxu0 %v813
    %1435 = vmatprep.subr.mxu0 %v818
    %1436 = vmatpush1.msra.mxu0 %v817
    %1437 = vmatprep.subr.mxu0 %v822
    %1438 = vmatpush1.msra.mxu0 %v821
    %1439 = vmatprep.subr.mxu0 %v826
    %1440 = vmatpush1.msra.mxu0 %v825
    %1441 = vmatprep.mubr.f32.mxu0 %v1200
    %1442 = vmatmul.mubr.f32.gmra.mrb[0].mxu0 %v1376
    %v1443 = vpop.f32.mrb[0].mxu0
    %v1444 = vadd.f32 %v834, %v1443
    %v1445 = vpop.f32.mrb[0].mxu0
    %v1446 = vadd.f32 %v838, %v1445
    %1447 = vdwg.mxu0
    %1448 = vmatprep.subr.mxu0 %v704
    %1449 = vmatpush1.msra.mxu0 %v703
    %1450 = vmatprep.subr.mxu0 %v708
    %1451 = vmatpush1.msra.mxu0 %v707
    %1452 = vmatprep.subr.mxu0 %v712
    %1453 = vmatpush1.msra.mxu0 %v711
    %1454 = vmatprep.subr.mxu0 %v716
    %1455 = vmatpush1.msra.mxu0 %v715
    %1456 = vmatprep.subr.mxu0 %v720
    %1457 = vmatpush1.msra.mxu0 %v719
    %1458 = vmatprep.subr.mxu0 %v724
    %1459 = vmatpush1.msra.mxu0 %v723
    %1460 = vmatprep.subr.mxu0 %v728
    %1461 = vmatpush1.msra.mxu0 %v727
    %1462 = vmatprep.subr.mxu0 %v732
    %1463 = vmatpush1.msra.mxu0 %v731
    %1464 = vmatprep.subr.mxu0 %v736
    %1465 = vmatpush1.msra.mxu0 %v735
    %1466 = vmatprep.subr.mxu0 %v740
    %1467 = vmatpush1.msra.mxu0 %v739
    %1468 = vmatprep.subr.mxu0 %v744
    %1469 = vmatpush1.msra.mxu0 %v743
    %1470 = vmatprep.subr.mxu0 %v748
    %1471 = vmatpush1.msra.mxu0 %v747
    %1472 = vmatprep.subr.mxu0 %v752
    %1473 = vmatpush1.msra.mxu0 %v751
    %1474 = vmatprep.subr.mxu0 %v756
    %1475 = vmatpush1.msra.mxu0 %v755
    %1476 = vmatprep.subr.mxu0 %v760
    %1477 = vmatpush1.msra.mxu0 %v759
    %1478 = vmatprep.subr.mxu0 %v764
    %1479 = vmatpush1.msra.mxu0 %v763
    %1480 = vmatprep.subr.mxu0 %v768
    %1481 = vmatpush1.msra.mxu0 %v767
    %1482 = vmatprep.subr.mxu0 %v772
    %1483 = vmatpush1.msra.mxu0 %v771
    %1484 = vmatprep.subr.mxu0 %v776
    %1485 = vmatpush1.msra.mxu0 %v775
    %1486 = vmatprep.subr.mxu0 %v780
    %1487 = vmatpush1.msra.mxu0 %v779
    %1488 = vmatprep.subr.mxu0 %v784
    %1489 = vmatpush1.msra.mxu0 %v783
    %1490 = vmatprep.subr.mxu0 %v788
    %1491 = vmatpush1.msra.mxu0 %v787
    %1492 = vmatprep.subr.mxu0 %v792
    %1493 = vmatpush1.msra.mxu0 %v791
    %1494 = vmatprep.subr.mxu0 %v796
    %1495 = vmatpush1.msra.mxu0 %v795
    %1496 = vmatprep.subr.mxu0 %v800
    %1497 = vmatpush1.msra.mxu0 %v799
    %1498 = vmatprep.subr.mxu0 %v804
    %1499 = vmatpush1.msra.mxu0 %v803
    %1500 = vmatprep.subr.mxu0 %v808
    %1501 = vmatpush1.msra.mxu0 %v807
    %1502 = vmatprep.subr.mxu0 %v812
    %1503 = vmatpush1.msra.mxu0 %v811
    %1504 = vmatprep.subr.mxu0 %v816
    %1505 = vmatpush1.msra.mxu0 %v815
    %1506 = vmatprep.subr.mxu0 %v820
    %1507 = vmatpush1.msra.mxu0 %v819
    %1508 = vmatprep.subr.mxu0 %v824
    %1509 = vmatpush1.msra.mxu0 %v823
    %1510 = vmatprep.subr.mxu0 %v828
    %1511 = vmatpush1.msra.mxu0 %v827
    %1512 = vmatprep.mubr.f32.mxu0 %v1200
    %1513 = vmatmul.mubr.f32.gmra.mrb[0].mxu0 %v1376
    %v1514 = vpop.f32.mrb[0].mxu0
    %v1515 = vadd.f32 %v842, %v1514
    %v1516 = vpop.f32.mrb[0].mxu0
    %v1517 = vadd.f32 %v846, %v1516
    %1518 = vdwg.mxu0
    %v1519 = vxor.u32 %v1444, 2147483648
    %v1520 = vmul.f32 %v1519, 1.442695
    %v1521 = vpow.pop %v1520
    %v1522 = vadd.f32 %v1521, 1.0
    %v1523 = vrcp.pop %v1522
    %v1524 = vmul.f32 1.0, %v1523
    %v1525 = vxor.u32 %v1446, 2147483648
    %v1526 = vmul.f32 %v1525, 1.442695
    %v1527 = vpow.pop %v1526
    %v1528 = vadd.f32 %v1527, 1.0
    %v1529 = vrcp.pop %v1528
    %v1530 = vmul.f32 1.0, %v1529
    %v1531 = vtanh.pop %v1515
    %v1532 = vxor.u32 %v1517, 2147483648
    %v1533 = vmul.f32 %v1532, 1.442695
    %v1534 = vpow.pop %v1533
    %v1535 = vadd.f32 %v1534, 1.0
    %v1536 = vrcp.pop %v1535
    %v1537 = vmul.f32 1.0, %v1536
    %v1538 = vmul.f32 %v1530, %v1201
    %v1539 = vmul.f32 %v1524, %v1531
    %v1540 = vadd.f32 %v1538, %v1539
    %v1541 = vtanh.pop %v1540
    %v1542 = vmul.f32 %v1537, %v1541
    %s1543 = scalar_lea.vmem %s1, 8
    %v1544 = vld [vmem:[%s1543] sm:$0xff]
    %vm1545 = vcmp.gt.f32.partialorder %v1544, 0.0
    %v1546 = vsel %vm1545, 1, 0
    %1547 = vset.pattern.permute.xlu0 0
    %1548 = vperm.xlu0 %1547, %v1546
    %v1549 = vpop.permute.xlu0 %1548
    %vm1550 = vcmp.eq.s32.totalorder %v1549, 1
    %v1551 = vsel %vm1550, %v1376, %v1198
    %v1552 = vsel %vm1550, %v1374, %v1199
    %v1553 = vsel %vm1550, %v1542, %v1200
    %v1554 = vsel %vm1550, %v1540, %v1201
    %s1555 = scalar_lea.vmem [#allocation2], 64
    %v1556 = vld [vmem:[%s1555] sm:$0xff]
    %v1557 = vld [vmem:[%s1555 + $0x8] sm:$0xff]
    %v1558 = vld [vmem:[%s1555 + $0x10] sm:$0xff]
    %v1559 = vld [vmem:[%s1555 + $0x18] sm:$0xff]
    %1560 = vmatprep.subr.mxu0 %v638
    %1561 = vmatpush1.msra.mxu0 %v637
    %1562 = vmatprep.subr.mxu0 %v642
    %1563 = vmatpush1.msra.mxu0 %v641
    %1564 = vmatprep.subr.mxu0 %v646
    %1565 = vmatpush1.msra.mxu0 %v645
    %1566 = vmatprep.subr.mxu0 %v650
    %1567 = vmatpush1.msra.mxu0 %v649
    %1568 = vmatprep.subr.mxu0 %v654
    %1569 = vmatpush1.msra.mxu0 %v653
    %1570 = vmatprep.subr.mxu0 %v658
    %1571 = vmatpush1.msra.mxu0 %v657
    %1572 = vmatprep.subr.mxu0 %v662
    %1573 = vmatpush1.msra.mxu0 %v661
    %1574 = vmatprep.subr.mxu0 %v666
    %1575 = vmatpush1.msra.mxu0 %v665
    %1576 = vmatprep.subr.mxu0 %v670
    %1577 = vmatpush1.msra.mxu0 %v669
    %1578 = vmatprep.subr.mxu0 %v674
    %1579 = vmatpush1.msra.mxu0 %v673
    %1580 = vmatprep.subr.mxu0 %v678
    %1581 = vmatpush1.msra.mxu0 %v677
    %1582 = vmatprep.subr.mxu0 %v682
    %1583 = vmatpush1.msra.mxu0 %v681
    %1584 = vmatprep.subr.mxu0 %v686
    %1585 = vmatpush1.msra.mxu0 %v685
    %1586 = vmatprep.subr.mxu0 %v690
    %1587 = vmatpush1.msra.mxu0 %v689
    %1588 = vmatprep.subr.mxu0 %v694
    %1589 = vmatpush1.msra.mxu0 %v693
    %1590 = vmatprep.subr.mxu0 %v698
    %1591 = vmatpush1.msra.mxu0 %v697
    %1592 = vmatprep.subr.mxu0 0.0
    %1593 = vmatpush1.msra.mxu0 0.0
    %1594 = vmatprep.subr.mxu0 0.0
    %1595 = vmatpush1.msra.mxu0 0.0
    %1596 = vmatprep.subr.mxu0 0.0
    %1597 = vmatpush1.msra.mxu0 0.0
    %1598 = vmatprep.subr.mxu0 0.0
    %1599 = vmatpush1.msra.mxu0 0.0
    %1600 = vmatprep.subr.mxu0 0.0
    %1601 = vmatpush1.msra.mxu0 0.0
    %1602 = vmatprep.subr.mxu0 0.0
    %1603 = vmatpush1.msra.mxu0 0.0
    %1604 = vmatprep.subr.mxu0 0.0
    %1605 = vmatpush1.msra.mxu0 0.0
    %1606 = vmatprep.subr.mxu0 0.0
    %1607 = vmatpush1.msra.mxu0 0.0
    %1608 = vmatprep.subr.mxu0 0.0
    %1609 = vmatpush1.msra.mxu0 0.0
    %1610 = vmatprep.subr.mxu0 0.0
    %1611 = vmatpush1.msra.mxu0 0.0
    %1612 = vmatprep.subr.mxu0 0.0
    %1613 = vmatpush1.msra.mxu0 0.0
    %1614 = vmatprep.subr.mxu0 0.0
    %1615 = vmatpush1.msra.mxu0 0.0
    %1616 = vmatprep.subr.mxu0 0.0
    %1617 = vmatpush1.msra.mxu0 0.0
    %1618 = vmatprep.subr.mxu0 0.0
    %1619 = vmatpush1.msra.mxu0 0.0
    %1620 = vmatprep.subr.mxu0 0.0
    %1621 = vmatpush1.msra.mxu0 0.0
    %1622 = vmatprep.subr.mxu0 0.0
    %1623 = vmatpush1.msra.mxu0 0.0
    %1624 = vmatprep.mubr.f32.mxu0 0.0
    %1625 = vmatmul.mubr.f32.gmra.mrb[0].mxu0 %v1551
    %v1626 = vpop.f32.mrb[0].mxu0
    %v1627 = vadd.f32 0.0, %v1626
    %v1628 = vpop.f32.mrb[0].mxu0
    %v1629 = vadd.f32 0.0, %v1628
    %1630 = vdwg.mxu0
    %1631 = vmatprep.subr.mxu0 %v640
    %1632 = vmatpush1.msra.mxu0 %v639
    %1633 = vmatprep.subr.mxu0 %v644
    %1634 = vmatpush1.msra.mxu0 %v643
    %1635 = vmatprep.subr.mxu0 %v648
    %1636 = vmatpush1.msra.mxu0 %v647
    %1637 = vmatprep.subr.mxu0 %v652
    %1638 = vmatpush1.msra.mxu0 %v651
    %1639 = vmatprep.subr.mxu0 %v656
    %1640 = vmatpush1.msra.mxu0 %v655
    %1641 = vmatprep.subr.mxu0 %v660
    %1642 = vmatpush1.msra.mxu0 %v659
    %1643 = vmatprep.subr.mxu0 %v664
    %1644 = vmatpush1.msra.mxu0 %v663
    %1645 = vmatprep.subr.mxu0 %v668
    %1646 = vmatpush1.msra.mxu0 %v667
    %1647 = vmatprep.subr.mxu0 %v672
    %1648 = vmatpush1.msra.mxu0 %v671
    %1649 = vmatprep.subr.mxu0 %v676
    %1650 = vmatpush1.msra.mxu0 %v675
    %1651 = vmatprep.subr.mxu0 %v680
    %1652 = vmatpush1.msra.mxu0 %v679
    %1653 = vmatprep.subr.mxu0 %v684
    %1654 = vmatpush1.msra.mxu0 %v683
    %1655 = vmatprep.subr.mxu0 %v688
    %1656 = vmatpush1.msra.mxu0 %v687
    %1657 = vmatprep.subr.mxu0 %v692
    %1658 = vmatpush1.msra.mxu0 %v691
    %1659 = vmatprep.subr.mxu0 %v696
    %1660 = vmatpush1.msra.mxu0 %v695
    %1661 = vmatprep.subr.mxu0 %v700
    %1662 = vmatpush1.msra.mxu0 %v699
    %1663 = vmatprep.subr.mxu0 0.0
    %1664 = vmatpush1.msra.mxu0 0.0
    %1665 = vmatprep.subr.mxu0 0.0
    %1666 = vmatpush1.msra.mxu0 0.0
    %1667 = vmatprep.subr.mxu0 0.0
    %1668 = vmatpush1.msra.mxu0 0.0
    %1669 = vmatprep.subr.mxu0 0.0
    %1670 = vmatpush1.msra.mxu0 0.0
    %1671 = vmatprep.subr.mxu0 0.0
    %1672 = vmatpush1.msra.mxu0 0.0
    %1673 = vmatprep.subr.mxu0 0.0
    %1674 = vmatpush1.msra.mxu0 0.0
    %1675 = vmatprep.subr.mxu0 0.0
    %1676 = vmatpush1.msra.mxu0 0.0
    %1677 = vmatprep.subr.mxu0 0.0
    %1678 = vmatpush1.msra.mxu0 0.0
    %1679 = vmatprep.subr.mxu0 0.0
    %1680 = vmatpush1.msra.mxu0 0.0
    %1681 = vmatprep.subr.mxu0 0.0
    %1682 = vmatpush1.msra.mxu0 0.0
    %1683 = vmatprep.subr.mxu0 0.0
    %1684 = vmatpush1.msra.mxu0 0.0
    %1685 = vmatprep.subr.mxu0 0.0
    %1686 = vmatpush1.msra.mxu0 0.0
    %1687 = vmatprep.subr.mxu0 0.0
    %1688 = vmatpush1.msra.mxu0 0.0
    %1689 = vmatprep.subr.mxu0 0.0
    %1690 = vmatpush1.msra.mxu0 0.0
    %1691 = vmatprep.subr.mxu0 0.0
    %1692 = vmatpush1.msra.mxu0 0.0
    %1693 = vmatprep.subr.mxu0 0.0
    %1694 = vmatpush1.msra.mxu0 0.0
    %1695 = vmatprep.mubr.f32.mxu0 0.0
    %1696 = vmatmul.mubr.f32.gmra.mrb[0].mxu0 %v1551
    %v1697 = vpop.f32.mrb[0].mxu0
    %v1698 = vadd.f32 0.0, %v1697
    %v1699 = vpop.f32.mrb[0].mxu0
    %v1700 = vadd.f32 0.0, %v1699
    %1701 = vdwg.mxu0
    %v1702 = vadd.f32 %v1556, %v1627
    %v1703 = vadd.f32 %v1557, %v1629
    %v1704 = vadd.f32 %v1558, %v1698
    %v1705 = vadd.f32 %v1559, %v1700
    %v1706 = vxor.u32 %v1702, 2147483648
    %v1707 = vmul.f32 %v1706, 1.442695
    %v1708 = vpow.pop %v1707
    %v1709 = vadd.f32 %v1708, 1.0
    %v1710 = vrcp.pop %v1709
    %v1711 = vmul.f32 1.0, %v1710
    %v1712 = vxor.u32 %v1703, 2147483648
    %v1713 = vmul.f32 %v1712, 1.442695
    %v1714 = vpow.pop %v1713
    %v1715 = vadd.f32 %v1714, 1.0
    %v1716 = vrcp.pop %v1715
    %v1717 = vmul.f32 1.0, %v1716
    %v1718 = vtanh.pop %v1704
    %v1719 = vxor.u32 %v1705, 2147483648
    %v1720 = vmul.f32 %v1719, 1.442695
    %v1721 = vpow.pop %v1720
    %v1722 = vadd.f32 %v1721, 1.0
    %v1723 = vrcp.pop %v1722
    %v1724 = vmul.f32 1.0, %v1723
    %v1725 = vmul.f32 %v1717, %v1552
    %v1726 = vmul.f32 %v1711, %v1718
    %v1727 = vadd.f32 %v1725, %v1726
    %v1728 = vtanh.pop %v1727
    %v1729 = vmul.f32 %v1724, %v1728
    %1730 = vmatprep.subr.mxu0 %v702
    %1731 = vmatpush1.msra.mxu0 %v701
    %1732 = vmatprep.subr.mxu0 %v706
    %1733 = vmatpush1.msra.mxu0 %v705
    %1734 = vmatprep.subr.mxu0 %v710
    %1735 = vmatpush1.msra.mxu0 %v709
    %1736 = vmatprep.subr.mxu0 %v714
    %1737 = vmatpush1.msra.mxu0 %v713
    %1738 = vmatprep.subr.mxu0 %v718
    %1739 = vmatpush1.msra.mxu0 %v717
    %1740 = vmatprep.subr.mxu0 %v722
    %1741 = vmatpush1.msra.mxu0 %v721
    %1742 = vmatprep.subr.mxu0 %v726
    %1743 = vmatpush1.msra.mxu0 %v725
    %1744 = vmatprep.subr.mxu0 %v730
    %1745 = vmatpush1.msra.mxu0 %v729
    %1746 = vmatprep.subr.mxu0 %v734
    %1747 = vmatpush1.msra.mxu0 %v733
    %1748 = vmatprep.subr.mxu0 %v738
    %1749 = vmatpush1.msra.mxu0 %v737
    %1750 = vmatprep.subr.mxu0 %v742
    %1751 = vmatpush1.msra.mxu0 %v741
    %1752 = vmatprep.subr.mxu0 %v746
    %1753 = vmatpush1.msra.mxu0 %v745
    %1754 = vmatprep.subr.mxu0 %v750
    %1755 = vmatpush1.msra.mxu0 %v749
    %1756 = vmatprep.subr.mxu0 %v754
    %1757 = vmatpush1.msra.mxu0 %v753
    %1758 = vmatprep.subr.mxu0 %v758
    %1759 = vmatpush1.msra.mxu0 %v757
    %1760 = vmatprep.subr.mxu0 %v762
    %1761 = vmatpush1.msra.mxu0 %v761
    %1762 = vmatprep.subr.mxu0 %v766
    %1763 = vmatpush1.msra.mxu0 %v765
    %1764 = vmatprep.subr.mxu0 %v770
    %1765 = vmatpush1.msra.mxu0 %v769
    %1766 = vmatprep.subr.mxu0 %v774
    %1767 = vmatpush1.msra.mxu0 %v773
    %1768 = vmatprep.subr.mxu0 %v778
    %1769 = vmatpush1.msra.mxu0 %v777
    %1770 = vmatprep.subr.mxu0 %v782
    %1771 = vmatpush1.msra.mxu0 %v781
    %1772 = vmatprep.subr.mxu0 %v786
    %1773 = vmatpush1.msra.mxu0 %v785
    %1774 = vmatprep.subr.mxu0 %v790
    %1775 = vmatpush1.msra.mxu0 %v789
    %1776 = vmatprep.subr.mxu0 %v794
    %1777 = vmatpush1.msra.mxu0 %v793
    %1778 = vmatprep.subr.mxu0 %v798
    %1779 = vmatpush1.msra.mxu0 %v797
    %1780 = vmatprep.subr.mxu0 %v802
    %1781 = vmatpush1.msra.mxu0 %v801
    %1782 = vmatprep.subr.mxu0 %v806
    %1783 = vmatpush1.msra.mxu0 %v805
    %1784 = vmatprep.subr.mxu0 %v810
    %1785 = vmatpush1.msra.mxu0 %v809
    %1786 = vmatprep.subr.mxu0 %v814
    %1787 = vmatpush1.msra.mxu0 %v813
    %1788 = vmatprep.subr.mxu0 %v818
    %1789 = vmatpush1.msra.mxu0 %v817
    %1790 = vmatprep.subr.mxu0 %v822
    %1791 = vmatpush1.msra.mxu0 %v821
    %1792 = vmatprep.subr.mxu0 %v826
    %1793 = vmatpush1.msra.mxu0 %v825
    %1794 = vmatprep.mubr.f32.mxu0 %v1553
    %1795 = vmatmul.mubr.f32.gmra.mrb[0].mxu0 %v1729
    %v1796 = vpop.f32.mrb[0].mxu0
    %v1797 = vadd.f32 %v834, %v1796
    %v1798 = vpop.f32.mrb[0].mxu0
    %v1799 = vadd.f32 %v838, %v1798
    %1800 = vdwg.mxu0
    %1801 = vmatprep.subr.mxu0 %v704
    %1802 = vmatpush1.msra.mxu0 %v703
    %1803 = vmatprep.subr.mxu0 %v708
    %1804 = vmatpush1.msra.mxu0 %v707
    %1805 = vmatprep.subr.mxu0 %v712
    %1806 = vmatpush1.msra.mxu0 %v711
    %1807 = vmatprep.subr.mxu0 %v716
    %1808 = vmatpush1.msra.mxu0 %v715
    %1809 = vmatprep.subr.mxu0 %v720
    %1810 = vmatpush1.msra.mxu0 %v719
    %1811 = vmatprep.subr.mxu0 %v724
    %1812 = vmatpush1.msra.mxu0 %v723
    %1813 = vmatprep.subr.mxu0 %v728
    %1814 = vmatpush1.msra.mxu0 %v727
    %1815 = vmatprep.subr.mxu0 %v732
    %1816 = vmatpush1.msra.mxu0 %v731
    %1817 = vmatprep.subr.mxu0 %v736
    %1818 = vmatpush1.msra.mxu0 %v735
    %1819 = vmatprep.subr.mxu0 %v740
    %1820 = vmatpush1.msra.mxu0 %v739
    %1821 = vmatprep.subr.mxu0 %v744
    %1822 = vmatpush1.msra.mxu0 %v743
    %1823 = vmatprep.subr.mxu0 %v748
    %1824 = vmatpush1.msra.mxu0 %v747
    %1825 = vmatprep.subr.mxu0 %v752
    %1826 = vmatpush1.msra.mxu0 %v751
    %1827 = vmatprep.subr.mxu0 %v756
    %1828 = vmatpush1.msra.mxu0 %v755
    %1829 = vmatprep.subr.mxu0 %v760
    %1830 = vmatpush1.msra.mxu0 %v759
    %1831 = vmatprep.subr.mxu0 %v764
    %1832 = vmatpush1.msra.mxu0 %v763
    %1833 = vmatprep.subr.mxu0 %v768
    %1834 = vmatpush1.msra.mxu0 %v767
    %1835 = vmatprep.subr.mxu0 %v772
    %1836 = vmatpush1.msra.mxu0 %v771
    %1837 = vmatprep.subr.mxu0 %v776
    %1838 = vmatpush1.msra.mxu0 %v775
    %1839 = vmatprep.subr.mxu0 %v780
    %1840 = vmatpush1.msra.mxu0 %v779
    %1841 = vmatprep.subr.mxu0 %v784
    %1842 = vmatpush1.msra.mxu0 %v783
    %1843 = vmatprep.subr.mxu0 %v788
    %1844 = vmatpush1.msra.mxu0 %v787
    %1845 = vmatprep.subr.mxu0 %v792
    %1846 = vmatpush1.msra.mxu0 %v791
    %1847 = vmatprep.subr.mxu0 %v796
    %1848 = vmatpush1.msra.mxu0 %v795
    %1849 = vmatprep.subr.mxu0 %v800
    %1850 = vmatpush1.msra.mxu0 %v799
    %1851 = vmatprep.subr.mxu0 %v804
    %1852 = vmatpush1.msra.mxu0 %v803
    %1853 = vmatprep.subr.mxu0 %v808
    %1854 = vmatpush1.msra.mxu0 %v807
    %1855 = vmatprep.subr.mxu0 %v812
    %1856 = vmatpush1.msra.mxu0 %v811
    %1857 = vmatprep.subr.mxu0 %v816
    %1858 = vmatpush1.msra.mxu0 %v815
    %1859 = vmatprep.subr.mxu0 %v820
    %1860 = vmatpush1.msra.mxu0 %v819
    %1861 = vmatprep.subr.mxu0 %v824
    %1862 = vmatpush1.msra.mxu0 %v823
    %1863 = vmatprep.subr.mxu0 %v828
    %1864 = vmatpush1.msra.mxu0 %v827
    %1865 = vmatprep.mubr.f32.mxu0 %v1553
    %1866 = vmatmul.mubr.f32.gmra.mrb[0].mxu0 %v1729
    %v1867 = vpop.f32.mrb[0].mxu0
    %v1868 = vadd.f32 %v842, %v1867
    %v1869 = vpop.f32.mrb[0].mxu0
    %v1870 = vadd.f32 %v846, %v1869
    %1871 = vdwg.mxu0
    %v1872 = vxor.u32 %v1797, 2147483648
    %v1873 = vmul.f32 %v1872, 1.442695
    %v1874 = vpow.pop %v1873
    %v1875 = vadd.f32 %v1874, 1.0
    %v1876 = vrcp.pop %v1875
    %v1877 = vmul.f32 1.0, %v1876
    %v1878 = vxor.u32 %v1799, 2147483648
    %v1879 = vmul.f32 %v1878, 1.442695
    %v1880 = vpow.pop %v1879
    %v1881 = vadd.f32 %v1880, 1.0
    %v1882 = vrcp.pop %v1881
    %v1883 = vmul.f32 1.0, %v1882
    %v1884 = vtanh.pop %v1868
    %v1885 = vxor.u32 %v1870, 2147483648
    %v1886 = vmul.f32 %v1885, 1.442695
    %v1887 = vpow.pop %v1886
    %v1888 = vadd.f32 %v1887, 1.0
    %v1889 = vrcp.pop %v1888
    %v1890 = vmul.f32 1.0, %v1889
    %v1891 = vmul.f32 %v1883, %v1554
    %v1892 = vmul.f32 %v1877, %v1884
    %v1893 = vadd.f32 %v1891, %v1892
    %v1894 = vtanh.pop %v1893
    %v1895 = vmul.f32 %v1890, %v1894
    %s1896 = scalar_lea.vmem %s1, 16
    %v1897 = vld [vmem:[%s1896] sm:$0xff]
    %vm1898 = vcmp.gt.f32.partialorder %v1897, 0.0
    %v1899 = vsel %vm1898, 1, 0
    %1900 = vset.pattern.permute.xlu0 0
    %1901 = vperm.xlu0 %1900, %v1899
    %v1902 = vpop.permute.xlu0 %1901
    %vm1903 = vcmp.eq.s32.totalorder %v1902, 1
    %v1904 = vsel %vm1903, %v1729, %v1551
    %v1905 = vsel %vm1903, %v1727, %v1552
    %v1906 = vsel %vm1903, %v1895, %v1553
    %v1907 = vsel %vm1903, %v1893, %v1554
    %s1908 = scalar_lea.vmem [#allocation2], 96
    %v1909 = vld [vmem:[%s1908] sm:$0xff]
    %v1910 = vld [vmem:[%s1908 + $0x8] sm:$0xff]
    %v1911 = vld [vmem:[%s1908 + $0x10] sm:$0xff]
    %v1912 = vld [vmem:[%s1908 + $0x18] sm:$0xff]
    %1913 = vmatprep.subr.mxu0 %v638
    %1914 = vmatpush1.msra.mxu0 %v637
    %1915 = vmatprep.subr.mxu0 %v642
    %1916 = vmatpush1.msra.mxu0 %v641
    %1917 = vmatprep.subr.mxu0 %v646
    %1918 = vmatpush1.msra.mxu0 %v645
    %1919 = vmatprep.subr.mxu0 %v650
    %1920 = vmatpush1.msra.mxu0 %v649
    %1921 = vmatprep.subr.mxu0 %v654
    %1922 = vmatpush1.msra.mxu0 %v653
    %1923 = vmatprep.subr.mxu0 %v658
    %1924 = vmatpush1.msra.mxu0 %v657
    %1925 = vmatprep.subr.mxu0 %v662
    %1926 = vmatpush1.msra.mxu0 %v661
    %1927 = vmatprep.subr.mxu0 %v666
    %1928 = vmatpush1.msra.mxu0 %v665
    %1929 = vmatprep.subr.mxu0 %v670
    %1930 = vmatpush1.msra.mxu0 %v669
    %1931 = vmatprep.subr.mxu0 %v674
    %1932 = vmatpush1.msra.mxu0 %v673
    %1933 = vmatprep.subr.mxu0 %v678
    %1934 = vmatpush1.msra.mxu0 %v677
    %1935 = vmatprep.subr.mxu0 %v682
    %1936 = vmatpush1.msra.mxu0 %v681
    %1937 = vmatprep.subr.mxu0 %v686
    %1938 = vmatpush1.msra.mxu0 %v685
    %1939 = vmatprep.subr.mxu0 %v690
    %1940 = vmatpush1.msra.mxu0 %v689
    %1941 = vmatprep.subr.mxu0 %v694
    %1942 = vmatpush1.msra.mxu0 %v693
    %1943 = vmatprep.subr.mxu0 %v698
    %1944 = vmatpush1.msra.mxu0 %v697
    %1945 = vmatprep.subr.mxu0 0.0
    %1946 = vmatpush1.msra.mxu0 0.0
    %1947 = vmatprep.subr.mxu0 0.0
    %1948 = vmatpush1.msra.mxu0 0.0
    %1949 = vmatprep.subr.mxu0 0.0
    %1950 = vmatpush1.msra.mxu0 0.0
    %1951 = vmatprep.subr.mxu0 0.0
    %1952 = vmatpush1.msra.mxu0 0.0
    %1953 = vmatprep.subr.mxu0 0.0
    %1954 = vmatpush1.msra.mxu0 0.0
    %1955 = vmatprep.subr.mxu0 0.0
    %1956 = vmatpush1.msra.mxu0 0.0
    %1957 = vmatprep.subr.mxu0 0.0
    %1958 = vmatpush1.msra.mxu0 0.0
    %1959 = vmatprep.subr.mxu0 0.0
    %1960 = vmatpush1.msra.mxu0 0.0
    %1961 = vmatprep.subr.mxu0 0.0
    %1962 = vmatpush1.msra.mxu0 0.0
    %1963 = vmatprep.subr.mxu0 0.0
    %1964 = vmatpush1.msra.mxu0 0.0
    %1965 = vmatprep.subr.mxu0 0.0
    %1966 = vmatpush1.msra.mxu0 0.0
    %1967 = vmatprep.subr.mxu0 0.0
    %1968 = vmatpush1.msra.mxu0 0.0
    %1969 = vmatprep.subr.mxu0 0.0
    %1970 = vmatpush1.msra.mxu0 0.0
    %1971 = vmatprep.subr.mxu0 0.0
    %1972 = vmatpush1.msra.mxu0 0.0
    %1973 = vmatprep.subr.mxu0 0.0
    %1974 = vmatpush1.msra.mxu0 0.0
    %1975 = vmatprep.subr.mxu0 0.0
    %1976 = vmatpush1.msra.mxu0 0.0
    %1977 = vmatprep.mubr.f32.mxu0 0.0
    %1978 = vmatmul.mubr.f32.gmra.mrb[0].mxu0 %v1904
    %v1979 = vpop.f32.mrb[0].mxu0
    %v1980 = vadd.f32 0.0, %v1979
    %v1981 = vpop.f32.mrb[0].mxu0
    %v1982 = vadd.f32 0.0, %v1981
    %1983 = vdwg.mxu0
    %1984 = vmatprep.subr.mxu0 %v640
    %1985 = vmatpush1.msra.mxu0 %v639
    %1986 = vmatprep.subr.mxu0 %v644
    %1987 = vmatpush1.msra.mxu0 %v643
    %1988 = vmatprep.subr.mxu0 %v648
    %1989 = vmatpush1.msra.mxu0 %v647
    %1990 = vmatprep.subr.mxu0 %v652
    %1991 = vmatpush1.msra.mxu0 %v651
    %1992 = vmatprep.subr.mxu0 %v656
    %1993 = vmatpush1.msra.mxu0 %v655
    %1994 = vmatprep.subr.mxu0 %v660
    %1995 = vmatpush1.msra.mxu0 %v659
    %1996 = vmatprep.subr.mxu0 %v664
    %1997 = vmatpush1.msra.mxu0 %v663
    %1998 = vmatprep.subr.mxu0 %v668
    %1999 = vmatpush1.msra.mxu0 %v667
    %2000 = vmatprep.subr.mxu0 %v672
    %2001 = vmatpush1.msra.mxu0 %v671
    %2002 = vmatprep.subr.mxu0 %v676
    %2003 = vmatpush1.msra.mxu0 %v675
    %2004 = vmatprep.subr.mxu0 %v680
    %2005 = vmatpush1.msra.mxu0 %v679
    %2006 = vmatprep.subr.mxu0 %v684
    %2007 = vmatpush1.msra.mxu0 %v683
    %2008 = vmatprep.subr.mxu0 %v688
    %2009 = vmatpush1.msra.mxu0 %v687
    %2010 = vmatprep.subr.mxu0 %v692
    %2011 = vmatpush1.msra.mxu0 %v691
    %2012 = vmatprep.subr.mxu0 %v696
    %2013 = vmatpush1.msra.mxu0 %v695
    %2014 = vmatprep.subr.mxu0 %v700
    %2015 = vmatpush1.msra.mxu0 %v699
    %2016 = vmatprep.subr.mxu0 0.0
    %2017 = vmatpush1.msra.mxu0 0.0
    %2018 = vmatprep.subr.mxu0 0.0
    %2019 = vmatpush1.msra.mxu0 0.0
    %2020 = vmatprep.subr.mxu0 0.0
    %2021 = vmatpush1.msra.mxu0 0.0
    %2022 = vmatprep.subr.mxu0 0.0
    %2023 = vmatpush1.msra.mxu0 0.0
    %2024 = vmatprep.subr.mxu0 0.0
    %2025 = vmatpush1.msra.mxu0 0.0
    %2026 = vmatprep.subr.mxu0 0.0
    %2027 = vmatpush1.msra.mxu0 0.0
    %2028 = vmatprep.subr.mxu0 0.0
    %2029 = vmatpush1.msra.mxu0 0.0
    %2030 = vmatprep.subr.mxu0 0.0
    %2031 = vmatpush1.msra.mxu0 0.0
    %2032 = vmatprep.subr.mxu0 0.0
    %2033 = vmatpush1.msra.mxu0 0.0
    %2034 = vmatprep.subr.mxu0 0.0
    %2035 = vmatpush1.msra.mxu0 0.0
    %2036 = vmatprep.subr.mxu0 0.0
    %2037 = vmatpush1.msra.mxu0 0.0
    %2038 = vmatprep.subr.mxu0 0.0
    %2039 = vmatpush1.msra.mxu0 0.0
    %2040 = vmatprep.subr.mxu0 0.0
    %2041 = vmatpush1.msra.mxu0 0.0
    %2042 = vmatprep.subr.mxu0 0.0
    %2043 = vmatpush1.msra.mxu0 0.0
    %2044 = vmatprep.subr.mxu0 0.0
    %2045 = vmatpush1.msra.mxu0 0.0
    %2046 = vmatprep.subr.mxu0 0.0
    %2047 = vmatpush1.msra.mxu0 0.0
    %2048 = vmatprep.mubr.f32.mxu0 0.0
    %2049 = vmatmul.mubr.f32.gmra.mrb[0].mxu0 %v1904
    %v2050 = vpop.f32.mrb[0].mxu0
    %v2051 = vadd.f32 0.0, %v2050
    %v2052 = vpop.f32.mrb[0].mxu0
    %v2053 = vadd.f32 0.0, %v2052
    %2054 = vdwg.mxu0
    %v2055 = vadd.f32 %v1909, %v1980
    %v2056 = vadd.f32 %v1910, %v1982
    %v2057 = vadd.f32 %v1911, %v2051
    %v2058 = vadd.f32 %v1912, %v2053
    %v2059 = vxor.u32 %v2055, 2147483648
    %v2060 = vmul.f32 %v2059, 1.442695
    %v2061 = vpow.pop %v2060
    %v2062 = vadd.f32 %v2061, 1.0
    %v2063 = vrcp.pop %v2062
    %v2064 = vmul.f32 1.0, %v2063
    %v2065 = vxor.u32 %v2056, 2147483648
    %v2066 = vmul.f32 %v2065, 1.442695
    %v2067 = vpow.pop %v2066
    %v2068 = vadd.f32 %v2067, 1.0
    %v2069 = vrcp.pop %v2068
    %v2070 = vmul.f32 1.0, %v2069
    %v2071 = vtanh.pop %v2057
    %v2072 = vxor.u32 %v2058, 2147483648
    %v2073 = vmul.f32 %v2072, 1.442695
    %v2074 = vpow.pop %v2073
    %v2075 = vadd.f32 %v2074, 1.0
    %v2076 = vrcp.pop %v2075
    %v2077 = vmul.f32 1.0, %v2076
    %v2078 = vmul.f32 %v2070, %v1905
    %v2079 = vmul.f32 %v2064, %v2071
    %v2080 = vadd.f32 %v2078, %v2079
    %v2081 = vtanh.pop %v2080
    %v2082 = vmul.f32 %v2077, %v2081
    %2083 = vmatprep.subr.mxu0 %v702
    %2084 = vmatpush1.msra.mxu0 %v701
    %2085 = vmatprep.subr.mxu0 %v706
    %2086 = vmatpush1.msra.mxu0 %v705
    %2087 = vmatprep.subr.mxu0 %v710
    %2088 = vmatpush1.msra.mxu0 %v709
    %2089 = vmatprep.subr.mxu0 %v714
    %2090 = vmatpush1.msra.mxu0 %v713
    %2091 = vmatprep.subr.mxu0 %v718
    %2092 = vmatpush1.msra.mxu0 %v717
    %2093 = vmatprep.subr.mxu0 %v722
    %2094 = vmatpush1.msra.mxu0 %v721
    %2095 = vmatprep.subr.mxu0 %v726
    %2096 = vmatpush1.msra.mxu0 %v725
    %2097 = vmatprep.subr.mxu0 %v730
    %2098 = vmatpush1.msra.mxu0 %v729
    %2099 = vmatprep.subr.mxu0 %v734
    %2100 = vmatpush1.msra.mxu0 %v733
    %2101 = vmatprep.subr.mxu0 %v738
    %2102 = vmatpush1.msra.mxu0 %v737
    %2103 = vmatprep.subr.mxu0 %v742
    %2104 = vmatpush1.msra.mxu0 %v741
    %2105 = vmatprep.subr.mxu0 %v746
    %2106 = vmatpush1.msra.mxu0 %v745
    %2107 = vmatprep.subr.mxu0 %v750
    %2108 = vmatpush1.msra.mxu0 %v749
    %2109 = vmatprep.subr.mxu0 %v754
    %2110 = vmatpush1.msra.mxu0 %v753
    %2111 = vmatprep.subr.mxu0 %v758
    %2112 = vmatpush1.msra.mxu0 %v757
    %2113 = vmatprep.subr.mxu0 %v762
    %2114 = vmatpush1.msra.mxu0 %v761
    %2115 = vmatprep.subr.mxu0 %v766
    %2116 = vmatpush1.msra.mxu0 %v765
    %2117 = vmatprep.subr.mxu0 %v770
    %2118 = vmatpush1.msra.mxu0 %v769
    %2119 = vmatprep.subr.mxu0 %v774
    %2120 = vmatpush1.msra.mxu0 %v773
    %2121 = vmatprep.subr.mxu0 %v778
    %2122 = vmatpush1.msra.mxu0 %v777
    %2123 = vmatprep.subr.mxu0 %v782
    %2124 = vmatpush1.msra.mxu0 %v781
    %2125 = vmatprep.subr.mxu0 %v786
    %2126 = vmatpush1.msra.mxu0 %v785
    %2127 = vmatprep.subr.mxu0 %v790
    %2128 = vmatpush1.msra.mxu0 %v789
    %2129 = vmatprep.subr.mxu0 %v794
    %2130 = vmatpush1.msra.mxu0 %v793
    %2131 = vmatprep.subr.mxu0 %v798
    %2132 = vmatpush1.msra.mxu0 %v797
    %2133 = vmatprep.subr.mxu0 %v802
    %2134 = vmatpush1.msra.mxu0 %v801
    %2135 = vmatprep.subr.mxu0 %v806
    %2136 = vmatpush1.msra.mxu0 %v805
    %2137 = vmatprep.subr.mxu0 %v810
    %2138 = vmatpush1.msra.mxu0 %v809
    %2139 = vmatprep.subr.mxu0 %v814
    %2140 = vmatpush1.msra.mxu0 %v813
    %2141 = vmatprep.subr.mxu0 %v818
    %2142 = vmatpush1.msra.mxu0 %v817
    %2143 = vmatprep.subr.mxu0 %v822
    %2144 = vmatpush1.msra.mxu0 %v821
    %2145 = vmatprep.subr.mxu0 %v826
    %2146 = vmatpush1.msra.mxu0 %v825
    %2147 = vmatprep.mubr.f32.mxu0 %v1906
    %2148 = vmatmul.mubr.f32.gmra.mrb[0].mxu0 %v2082
    %v2149 = vpop.f32.mrb[0].mxu0
    %v2150 = vadd.f32 %v834, %v2149
    %v2151 = vpop.f32.mrb[0].mxu0
    %v2152 = vadd.f32 %v838, %v2151
    %2153 = vdwg.mxu0
    %2154 = vmatprep.subr.mxu0 %v704
    %2155 = vmatpush1.msra.mxu0 %v703
    %2156 = vmatprep.subr.mxu0 %v708
    %2157 = vmatpush1.msra.mxu0 %v707
    %2158 = vmatprep.subr.mxu0 %v712
    %2159 = vmatpush1.msra.mxu0 %v711
    %2160 = vmatprep.subr.mxu0 %v716
    %2161 = vmatpush1.msra.mxu0 %v715
    %2162 = vmatprep.subr.mxu0 %v720
    %2163 = vmatpush1.msra.mxu0 %v719
    %2164 = vmatprep.subr.mxu0 %v724
    %2165 = vmatpush1.msra.mxu0 %v723
    %2166 = vmatprep.subr.mxu0 %v728
    %2167 = vmatpush1.msra.mxu0 %v727
    %2168 = vmatprep.subr.mxu0 %v732
    %2169 = vmatpush1.msra.mxu0 %v731
    %2170 = vmatprep.subr.mxu0 %v736
    %2171 = vmatpush1.msra.mxu0 %v735
    %2172 = vmatprep.subr.mxu0 %v740
    %2173 = vmatpush1.msra.mxu0 %v739
    %2174 = vmatprep.subr.mxu0 %v744
    %2175 = vmatpush1.msra.mxu0 %v743
    %2176 = vmatprep.subr.mxu0 %v748
    %2177 = vmatpush1.msra.mxu0 %v747
    %2178 = vmatprep.subr.mxu0 %v752
    %2179 = vmatpush1.msra.mxu0 %v751
    %2180 = vmatprep.subr.mxu0 %v756
    %2181 = vmatpush1.msra.mxu0 %v755
    %2182 = vmatprep.subr.mxu0 %v760
    %2183 = vmatpush1.msra.mxu0 %v759
    %2184 = vmatprep.subr.mxu0 %v764
    %2185 = vmatpush1.msra.mxu0 %v763
    %2186 = vmatprep.subr.mxu0 %v768
    %2187 = vmatpush1.msra.mxu0 %v767
    %2188 = vmatprep.subr.mxu0 %v772
    %2189 = vmatpush1.msra.mxu0 %v771
    %2190 = vmatprep.subr.mxu0 %v776
    %2191 = vmatpush1.msra.mxu0 %v775
    %2192 = vmatprep.subr.mxu0 %v780
    %2193 = vmatpush1.msra.mxu0 %v779
    %2194 = vmatprep.subr.mxu0 %v784
    %2195 = vmatpush1.msra.mxu0 %v783
    %2196 = vmatprep.subr.mxu0 %v788
    %2197 = vmatpush1.msra.mxu0 %v787
    %2198 = vmatprep.subr.mxu0 %v792
    %2199 = vmatpush1.msra.mxu0 %v791
    %2200 = vmatprep.subr.mxu0 %v796
    %2201 = vmatpush1.msra.mxu0 %v795
    %2202 = vmatprep.subr.mxu0 %v800
    %2203 = vmatpush1.msra.mxu0 %v799
    %2204 = vmatprep.subr.mxu0 %v804
    %2205 = vmatpush1.msra.mxu0 %v803
    %2206 = vmatprep.subr.mxu0 %v808
    %2207 = vmatpush1.msra.mxu0 %v807
    %2208 = vmatprep.subr.mxu0 %v812
    %2209 = vmatpush1.msra.mxu0 %v811
    %2210 = vmatprep.subr.mxu0 %v816
    %2211 = vmatpush1.msra.mxu0 %v815
    %2212 = vmatprep.subr.mxu0 %v820
    %2213 = vmatpush1.msra.mxu0 %v819
    %2214 = vmatprep.subr.mxu0 %v824
    %2215 = vmatpush1.msra.mxu0 %v823
    %2216 = vmatprep.subr.mxu0 %v828
    %2217 = vmatpush1.msra.mxu0 %v827
    %2218 = vmatprep.mubr.f32.mxu0 %v1906
    %2219 = vmatmul.mubr.f32.gmra.mrb[0].mxu0 %v2082
    %v2220 = vpop.f32.mrb[0].mxu0
    %v2221 = vadd.f32 %v842, %v2220
    %v2222 = vpop.f32.mrb[0].mxu0
    %v2223 = vadd.f32 %v846, %v2222
    %2224 = vdwg.mxu0
    %v2225 = vxor.u32 %v2150, 2147483648
    %v2226 = vmul.f32 %v2225, 1.442695
    %v2227 = vpow.pop %v2226
    %v2228 = vadd.f32 %v2227, 1.0
    %v2229 = vrcp.pop %v2228
    %v2230 = vmul.f32 1.0, %v2229
    %v2231 = vxor.u32 %v2152, 2147483648
    %v2232 = vmul.f32 %v2231, 1.442695
    %v2233 = vpow.pop %v2232
    %v2234 = vadd.f32 %v2233, 1.0
    %v2235 = vrcp.pop %v2234
    %v2236 = vmul.f32 1.0, %v2235
    %v2237 = vtanh.pop %v2221
    %v2238 = vxor.u32 %v2223, 2147483648
    %v2239 = vmul.f32 %v2238, 1.442695
    %v2240 = vpow.pop %v2239
    %v2241 = vadd.f32 %v2240, 1.0
    %v2242 = vrcp.pop %v2241
    %v2243 = vmul.f32 1.0, %v2242
    %v2244 = vmul.f32 %v2236, %v1907
    %v2245 = vmul.f32 %v2230, %v2237
    %v2246 = vadd.f32 %v2244, %v2245
    %v2247 = vtanh.pop %v2246
    %v2248 = vmul.f32 %v2243, %v2247
    %s2249 = scalar_lea.vmem %s1, 24
    %v2250 = vld [vmem:[%s2249] sm:$0xff]
    %vm2251 = vcmp.gt.f32.partialorder %v2250, 0.0
    %v2252 = vsel %vm2251, 1, 0
    %2253 = vset.pattern.permute.xlu0 0
    %2254 = vperm.xlu0 %2253, %v2252
    %v2255 = vpop.permute.xlu0 %2254
    %vm2256 = vcmp.eq.s32.totalorder %v2255, 1
    %v2257 = vsel %vm2256, %v2082, %v1904
    %v2258 = vsel %vm2256, %v2080, %v1905
    %v2259 = vsel %vm2256, %v2248, %v1906
    %v2260 = vsel %vm2256, %v2246, %v1907
    %s2261 = scalar_lea.vmem [#allocation2], 128
    %v2262 = vld [vmem:[%s2261] sm:$0xff]
    %v2263 = vld [vmem:[%s2261 + $0x8] sm:$0xff]
    %v2264 = vld [vmem:[%s2261 + $0x10] sm:$0xff]
    %v2265 = vld [vmem:[%s2261 + $0x18] sm:$0xff]
    %2266 = vmatprep.subr.mxu0 %v638
    %2267 = vmatpush1.msra.mxu0 %v637
    %2268 = vmatprep.subr.mxu0 %v642
    %2269 = vmatpush1.msra.mxu0 %v641
    %2270 = vmatprep.subr.mxu0 %v646
    %2271 = vmatpush1.msra.mxu0 %v645
    %2272 = vmatprep.subr.mxu0 %v650
    %2273 = vmatpush1.msra.mxu0 %v649
    %2274 = vmatprep.subr.mxu0 %v654
    %2275 = vmatpush1.msra.mxu0 %v653
    %2276 = vmatprep.subr.mxu0 %v658
    %2277 = vmatpush1.msra.mxu0 %v657
    %2278 = vmatprep.subr.mxu0 %v662
    %2279 = vmatpush1.msra.mxu0 %v661
    %2280 = vmatprep.subr.mxu0 %v666
    %2281 = vmatpush1.msra.mxu0 %v665
    %2282 = vmatprep.subr.mxu0 %v670
    %2283 = vmatpush1.msra.mxu0 %v669
    %2284 = vmatprep.subr.mxu0 %v674
    %2285 = vmatpush1.msra.mxu0 %v673
    %2286 = vmatprep.subr.mxu0 %v678
    %2287 = vmatpush1.msra.mxu0 %v677
    %2288 = vmatprep.subr.mxu0 %v682
    %2289 = vmatpush1.msra.mxu0 %v681
    %2290 = vmatprep.subr.mxu0 %v686
    %2291 = vmatpush1.msra.mxu0 %v685
    %2292 = vmatprep.subr.mxu0 %v690
    %2293 = vmatpush1.msra.mxu0 %v689
    %2294 = vmatprep.subr.mxu0 %v694
    %2295 = vmatpush1.msra.mxu0 %v693
    %2296 = vmatprep.subr.mxu0 %v698
    %2297 = vmatpush1.msra.mxu0 %v697
    %2298 = vmatprep.subr.mxu0 0.0
    %2299 = vmatpush1.msra.mxu0 0.0
    %2300 = vmatprep.subr.mxu0 0.0
    %2301 = vmatpush1.msra.mxu0 0.0
    %2302 = vmatprep.subr.mxu0 0.0
    %2303 = vmatpush1.msra.mxu0 0.0
    %2304 = vmatprep.subr.mxu0 0.0
    %2305 = vmatpush1.msra.mxu0 0.0
    %2306 = vmatprep.subr.mxu0 0.0
    %2307 = vmatpush1.msra.mxu0 0.0
    %2308 = vmatprep.subr.mxu0 0.0
    %2309 = vmatpush1.msra.mxu0 0.0
    %2310 = vmatprep.subr.mxu0 0.0
    %2311 = vmatpush1.msra.mxu0 0.0
    %2312 = vmatprep.subr.mxu0 0.0
    %2313 = vmatpush1.msra.mxu0 0.0
    %2314 = vmatprep.subr.mxu0 0.0
    %2315 = vmatpush1.msra.mxu0 0.0
    %2316 = vmatprep.subr.mxu0 0.0
    %2317 = vmatpush1.msra.mxu0 0.0
    %2318 = vmatprep.subr.mxu0 0.0
    %2319 = vmatpush1.msra.mxu0 0.0
    %2320 = vmatprep.subr.mxu0 0.0
    %2321 = vmatpush1.msra.mxu0 0.0
    %2322 = vmatprep.subr.mxu0 0.0
    %2323 = vmatpush1.msra.mxu0 0.0
    %2324 = vmatprep.subr.mxu0 0.0
    %2325 = vmatpush1.msra.mxu0 0.0
    %2326 = vmatprep.subr.mxu0 0.0
    %2327 = vmatpush1.msra.mxu0 0.0
    %2328 = vmatprep.subr.mxu0 0.0
    %2329 = vmatpush1.msra.mxu0 0.0
    %2330 = vmatprep.mubr.f32.mxu0 0.0
    %2331 = vmatmul.mubr.f32.gmra.mrb[0].mxu0 %v2257
    %v2332 = vpop.f32.mrb[0].mxu0
    %v2333 = vadd.f32 0.0, %v2332
    %v2334 = vpop.f32.mrb[0].mxu0
    %v2335 = vadd.f32 0.0, %v2334
    %2336 = vdwg.mxu0
    %2337 = vmatprep.subr.mxu0 %v640
    %2338 = vmatpush1.msra.mxu0 %v639
    %2339 = vmatprep.subr.mxu0 %v644
    %2340 = vmatpush1.msra.mxu0 %v643
    %2341 = vmatprep.subr.mxu0 %v648
    %2342 = vmatpush1.msra.mxu0 %v647
    %2343 = vmatprep.subr.mxu0 %v652
    %2344 = vmatpush1.msra.mxu0 %v651
    %2345 = vmatprep.subr.mxu0 %v656
    %2346 = vmatpush1.msra.mxu0 %v655
    %2347 = vmatprep.subr.mxu0 %v660
    %2348 = vmatpush1.msra.mxu0 %v659
    %2349 = vmatprep.subr.mxu0 %v664
    %2350 = vmatpush1.msra.mxu0 %v663
    %2351 = vmatprep.subr.mxu0 %v668
    %2352 = vmatpush1.msra.mxu0 %v667
    %2353 = vmatprep.subr.mxu0 %v672
    %2354 = vmatpush1.msra.mxu0 %v671
    %2355 = vmatprep.subr.mxu0 %v676
    %2356 = vmatpush1.msra.mxu0 %v675
    %2357 = vmatprep.subr.mxu0 %v680
    %2358 = vmatpush1.msra.mxu0 %v679
    %2359 = vmatprep.subr.mxu0 %v684
    %2360 = vmatpush1.msra.mxu0 %v683
    %2361 = vmatprep.subr.mxu0 %v688
    %2362 = vmatpush1.msra.mxu0 %v687
    %2363 = vmatprep.subr.mxu0 %v692
    %2364 = vmatpush1.msra.mxu0 %v691
    %2365 = vmatprep.subr.mxu0 %v696
    %2366 = vmatpush1.msra.mxu0 %v695
    %2367 = vmatprep.subr.mxu0 %v700
    %2368 = vmatpush1.msra.mxu0 %v699
    %2369 = vmatprep.subr.mxu0 0.0
    %2370 = vmatpush1.msra.mxu0 0.0
    %2371 = vmatprep.subr.mxu0 0.0
    %2372 = vmatpush1.msra.mxu0 0.0
    %2373 = vmatprep.subr.mxu0 0.0
    %2374 = vmatpush1.msra.mxu0 0.0
    %2375 = vmatprep.subr.mxu0 0.0
    %2376 = vmatpush1.msra.mxu0 0.0
    %2377 = vmatprep.subr.mxu0 0.0
    %2378 = vmatpush1.msra.mxu0 0.0
    %2379 = vmatprep.subr.mxu0 0.0
    %2380 = vmatpush1.msra.mxu0 0.0
    %2381 = vmatprep.subr.mxu0 0.0
    %2382 = vmatpush1.msra.mxu0 0.0
    %2383 = vmatprep.subr.mxu0 0.0
    %2384 = vmatpush1.msra.mxu0 0.0
    %2385 = vmatprep.subr.mxu0 0.0
    %2386 = vmatpush1.msra.mxu0 0.0
    %2387 = vmatprep.subr.mxu0 0.0
    %2388 = vmatpush1.msra.mxu0 0.0
    %2389 = vmatprep.subr.mxu0 0.0
    %2390 = vmatpush1.msra.mxu0 0.0
    %2391 = vmatprep.subr.mxu0 0.0
    %2392 = vmatpush1.msra.mxu0 0.0
    %2393 = vmatprep.subr.mxu0 0.0
    %2394 = vmatpush1.msra.mxu0 0.0
    %2395 = vmatprep.subr.mxu0 0.0
    %2396 = vmatpush1.msra.mxu0 0.0
    %2397 = vmatprep.subr.mxu0 0.0
    %2398 = vmatpush1.msra.mxu0 0.0
    %2399 = vmatprep.subr.mxu0 0.0
    %2400 = vmatpush1.msra.mxu0 0.0
    %2401 = vmatprep.mubr.f32.mxu0 0.0
    %2402 = vmatmul.mubr.f32.gmra.mrb[0].mxu0 %v2257
    %v2403 = vpop.f32.mrb[0].mxu0
    %v2404 = vadd.f32 0.0, %v2403
    %v2405 = vpop.f32.mrb[0].mxu0
    %v2406 = vadd.f32 0.0, %v2405
    %2407 = vdwg.mxu0
    %v2408 = vadd.f32 %v2262, %v2333
    %v2409 = vadd.f32 %v2263, %v2335
    %v2410 = vadd.f32 %v2264, %v2404
    %v2411 = vadd.f32 %v2265, %v2406
    %v2412 = vxor.u32 %v2408, 2147483648
    %v2413 = vmul.f32 %v2412, 1.442695
    %v2414 = vpow.pop %v2413
    %v2415 = vadd.f32 %v2414, 1.0
    %v2416 = vrcp.pop %v2415
    %v2417 = vmul.f32 1.0, %v2416
    %v2418 = vxor.u32 %v2409, 2147483648
    %v2419 = vmul.f32 %v2418, 1.442695
    %v2420 = vpow.pop %v2419
    %v2421 = vadd.f32 %v2420, 1.0
    %v2422 = vrcp.pop %v2421
    %v2423 = vmul.f32 1.0, %v2422
    %v2424 = vtanh.pop %v2410
    %v2425 = vxor.u32 %v2411, 2147483648
    %v2426 = vmul.f32 %v2425, 1.442695
    %v2427 = vpow.pop %v2426
    %v2428 = vadd.f32 %v2427, 1.0
    %v2429 = vrcp.pop %v2428
    %v2430 = vmul.f32 1.0, %v2429
    %v2431 = vmul.f32 %v2423, %v2258
    %v2432 = vmul.f32 %v2417, %v2424
    %v2433 = vadd.f32 %v2431, %v2432
    %v2434 = vtanh.pop %v2433
    %v2435 = vmul.f32 %v2430, %v2434
    %2436 = vmatprep.subr.mxu0 %v702
    %2437 = vmatpush1.msra.mxu0 %v701
    %2438 = vmatprep.subr.mxu0 %v706
    %2439 = vmatpush1.msra.mxu0 %v705
    %2440 = vmatprep.subr.mxu0 %v710
    %2441 = vmatpush1.msra.mxu0 %v709
    %2442 = vmatprep.subr.mxu0 %v714
    %2443 = vmatpush1.msra.mxu0 %v713
    %2444 = vmatprep.subr.mxu0 %v718
    %2445 = vmatpush1.msra.mxu0 %v717
    %2446 = vmatprep.subr.mxu0 %v722
    %2447 = vmatpush1.msra.mxu0 %v721
    %2448 = vmatprep.subr.mxu0 %v726
    %2449 = vmatpush1.msra.mxu0 %v725
    %2450 = vmatprep.subr.mxu0 %v730
    %2451 = vmatpush1.msra.mxu0 %v729
    %2452 = vmatprep.subr.mxu0 %v734
    %2453 = vmatpush1.msra.mxu0 %v733
    %2454 = vmatprep.subr.mxu0 %v738
    %2455 = vmatpush1.msra.mxu0 %v737
    %2456 = vmatprep.subr.mxu0 %v742
    %2457 = vmatpush1.msra.mxu0 %v741
    %2458 = vmatprep.subr.mxu0 %v746
    %2459 = vmatpush1.msra.mxu0 %v745
    %2460 = vmatprep.subr.mxu0 %v750
    %2461 = vmatpush1.msra.mxu0 %v749
    %2462 = vmatprep.subr.mxu0 %v754
    %2463 = vmatpush1.msra.mxu0 %v753
    %2464 = vmatprep.subr.mxu0 %v758
    %2465 = vmatpush1.msra.mxu0 %v757
    %2466 = vmatprep.subr.mxu0 %v762
    %2467 = vmatpush1.msra.mxu0 %v761
    %2468 = vmatprep.subr.mxu0 %v766
    %2469 = vmatpush1.msra.mxu0 %v765
    %2470 = vmatprep.subr.mxu0 %v770
    %2471 = vmatpush1.msra.mxu0 %v769
    %2472 = vmatprep.subr.mxu0 %v774
    %2473 = vmatpush1.msra.mxu0 %v773
    %2474 = vmatprep.subr.mxu0 %v778
    %2475 = vmatpush1.msra.mxu0 %v777
    %2476 = vmatprep.subr.mxu0 %v782
    %2477 = vmatpush1.msra.mxu0 %v781
    %2478 = vmatprep.subr.mxu0 %v786
    %2479 = vmatpush1.msra.mxu0 %v785
    %2480 = vmatprep.subr.mxu0 %v790
    %2481 = vmatpush1.msra.mxu0 %v789
    %2482 = vmatprep.subr.mxu0 %v794
    %2483 = vmatpush1.msra.mxu0 %v793
    %2484 = vmatprep.subr.mxu0 %v798
    %2485 = vmatpush1.msra.mxu0 %v797
    %2486 = vmatprep.subr.mxu0 %v802
    %2487 = vmatpush1.msra.mxu0 %v801
    %2488 = vmatprep.subr.mxu0 %v806
    %2489 = vmatpush1.msra.mxu0 %v805
    %2490 = vmatprep.subr.mxu0 %v810
    %2491 = vmatpush1.msra.mxu0 %v809
    %2492 = vmatprep.subr.mxu0 %v814
    %2493 = vmatpush1.msra.mxu0 %v813
    %2494 = vmatprep.subr.mxu0 %v818
    %2495 = vmatpush1.msra.mxu0 %v817
    %2496 = vmatprep.subr.mxu0 %v822
    %2497 = vmatpush1.msra.mxu0 %v821
    %2498 = vmatprep.subr.mxu0 %v826
    %2499 = vmatpush1.msra.mxu0 %v825
    %2500 = vmatprep.mubr.f32.mxu0 %v2259
    %2501 = vmatmul.mubr.f32.gmra.mrb[0].mxu0 %v2435
    %v2502 = vpop.f32.mrb[0].mxu0
    %v2503 = vadd.f32 %v834, %v2502
    %v2504 = vpop.f32.mrb[0].mxu0
    %v2505 = vadd.f32 %v838, %v2504
    %2506 = vdwg.mxu0
    %2507 = vmatprep.subr.mxu0 %v704
    %2508 = vmatpush1.msra.mxu0 %v703
    %2509 = vmatprep.subr.mxu0 %v708
    %2510 = vmatpush1.msra.mxu0 %v707
    %2511 = vmatprep.subr.mxu0 %v712
    %2512 = vmatpush1.msra.mxu0 %v711
    %2513 = vmatprep.subr.mxu0 %v716
    %2514 = vmatpush1.msra.mxu0 %v715
    %2515 = vmatprep.subr.mxu0 %v720
    %2516 = vmatpush1.msra.mxu0 %v719
    %2517 = vmatprep.subr.mxu0 %v724
    %2518 = vmatpush1.msra.mxu0 %v723
    %2519 = vmatprep.subr.mxu0 %v728
    %2520 = vmatpush1.msra.mxu0 %v727
    %2521 = vmatprep.subr.mxu0 %v732
    %2522 = vmatpush1.msra.mxu0 %v731
    %2523 = vmatprep.subr.mxu0 %v736
    %2524 = vmatpush1.msra.mxu0 %v735
    %2525 = vmatprep.subr.mxu0 %v740
    %2526 = vmatpush1.msra.mxu0 %v739
    %2527 = vmatprep.subr.mxu0 %v744
    %2528 = vmatpush1.msra.mxu0 %v743
    %2529 = vmatprep.subr.mxu0 %v748
    %2530 = vmatpush1.msra.mxu0 %v747
    %2531 = vmatprep.subr.mxu0 %v752
    %2532 = vmatpush1.msra.mxu0 %v751
    %2533 = vmatprep.subr.mxu0 %v756
    %2534 = vmatpush1.msra.mxu0 %v755
    %2535 = vmatprep.subr.mxu0 %v760
    %2536 = vmatpush1.msra.mxu0 %v759
    %2537 = vmatprep.subr.mxu0 %v764
    %2538 = vmatpush1.msra.mxu0 %v763
    %2539 = vmatprep.subr.mxu0 %v768
    %2540 = vmatpush1.msra.mxu0 %v767
    %2541 = vmatprep.subr.mxu0 %v772
    %2542 = vmatpush1.msra.mxu0 %v771
    %2543 = vmatprep.subr.mxu0 %v776
    %2544 = vmatpush1.msra.mxu0 %v775
    %2545 = vmatprep.subr.mxu0 %v780
    %2546 = vmatpush1.msra.mxu0 %v779
    %2547 = vmatprep.subr.mxu0 %v784
    %2548 = vmatpush1.msra.mxu0 %v783
    %2549 = vmatprep.subr.mxu0 %v788
    %2550 = vmatpush1.msra.mxu0 %v787
    %2551 = vmatprep.subr.mxu0 %v792
    %2552 = vmatpush1.msra.mxu0 %v791
    %2553 = vmatprep.subr.mxu0 %v796
    %2554 = vmatpush1.msra.mxu0 %v795
    %2555 = vmatprep.subr.mxu0 %v800
    %2556 = vmatpush1.msra.mxu0 %v799
    %2557 = vmatprep.subr.mxu0 %v804
    %2558 = vmatpush1.msra.mxu0 %v803
    %2559 = vmatprep.subr.mxu0 %v808
    %2560 = vmatpush1.msra.mxu0 %v807
    %2561 = vmatprep.subr.mxu0 %v812
    %2562 = vmatpush1.msra.mxu0 %v811
    %2563 = vmatprep.subr.mxu0 %v816
    %2564 = vmatpush1.msra.mxu0 %v815
    %2565 = vmatprep.subr.mxu0 %v820
    %2566 = vmatpush1.msra.mxu0 %v819
    %2567 = vmatprep.subr.mxu0 %v824
    %2568 = vmatpush1.msra.mxu0 %v823
    %2569 = vmatprep.subr.mxu0 %v828
    %2570 = vmatpush1.msra.mxu0 %v827
    %2571 = vmatprep.mubr.f32.mxu0 %v2259
    %2572 = vmatmul.mubr.f32.gmra.mrb[0].mxu0 %v2435
    %v2573 = vpop.f32.mrb[0].mxu0
    %v2574 = vadd.f32 %v842, %v2573
    %v2575 = vpop.f32.mrb[0].mxu0
    %v2576 = vadd.f32 %v846, %v2575
    %2577 = vdwg.mxu0
    %v2578 = vxor.u32 %v2503, 2147483648
    %v2579 = vmul.f32 %v2578, 1.442695
    %v2580 = vpow.pop %v2579
    %v2581 = vadd.f32 %v2580, 1.0
    %v2582 = vrcp.pop %v2581
    %v2583 = vmul.f32 1.0, %v2582
    %v2584 = vxor.u32 %v2505, 2147483648
    %v2585 = vmul.f32 %v2584, 1.442695
    %v2586 = vpow.pop %v2585
    %v2587 = vadd.f32 %v2586, 1.0
    %v2588 = vrcp.pop %v2587
    %v2589 = vmul.f32 1.0, %v2588
    %v2590 = vtanh.pop %v2574
    %v2591 = vxor.u32 %v2576, 2147483648
    %v2592 = vmul.f32 %v2591, 1.442695
    %v2593 = vpow.pop %v2592
    %v2594 = vadd.f32 %v2593, 1.0
    %v2595 = vrcp.pop %v2594
    %v2596 = vmul.f32 1.0, %v2595
    %v2597 = vmul.f32 %v2589, %v2260
    %v2598 = vmul.f32 %v2583, %v2590
    %v2599 = vadd.f32 %v2597, %v2598
    %v2600 = vtanh.pop %v2599
    %v2601 = vmul.f32 %v2596, %v2600
    %s2602 = scalar_lea.vmem %s1, 32
    %v2603 = vld [vmem:[%s2602] sm:$0xff]
    %vm2604 = vcmp.gt.f32.partialorder %v2603, 0.0
    %v2605 = vsel %vm2604, 1, 0
    %2606 = vset.pattern.permute.xlu0 0
    %2607 = vperm.xlu0 %2606, %v2605
    %v2608 = vpop.permute.xlu0 %2607
    %vm2609 = vcmp.eq.s32.totalorder %v2608, 1
    %v2610 = vsel %vm2609, %v2435, %v2257
    %v2611 = vsel %vm2609, %v2433, %v2258
    %v2612 = vsel %vm2609, %v2601, %v2259
    %v2613 = vsel %vm2609, %v2599, %v2260
    %s2614 = scalar_lea.vmem [#allocation2], 160
    %v2615 = vld [vmem:[%s2614] sm:$0xff]
    %v2616 = vld [vmem:[%s2614 + $0x8] sm:$0xff]
    %v2617 = vld [vmem:[%s2614 + $0x10] sm:$0xff]
    %v2618 = vld [vmem:[%s2614 + $0x18] sm:$0xff]
    %2619 = vmatprep.subr.mxu0 %v638
    %2620 = vmatpush1.msra.mxu0 %v637
    %2621 = vmatprep.subr.mxu0 %v642
    %2622 = vmatpush1.msra.mxu0 %v641
    %2623 = vmatprep.subr.mxu0 %v646
    %2624 = vmatpush1.msra.mxu0 %v645
    %2625 = vmatprep.subr.mxu0 %v650
    %2626 = vmatpush1.msra.mxu0 %v649
    %2627 = vmatprep.subr.mxu0 %v654
    %2628 = vmatpush1.msra.mxu0 %v653
    %2629 = vmatprep.subr.mxu0 %v658
    %2630 = vmatpush1.msra.mxu0 %v657
    %2631 = vmatprep.subr.mxu0 %v662
    %2632 = vmatpush1.msra.mxu0 %v661
    %2633 = vmatprep.subr.mxu0 %v666
    %2634 = vmatpush1.msra.mxu0 %v665
    %2635 = vmatprep.subr.mxu0 %v670
    %2636 = vmatpush1.msra.mxu0 %v669
    %2637 = vmatprep.subr.mxu0 %v674
    %2638 = vmatpush1.msra.mxu0 %v673
    %2639 = vmatprep.subr.mxu0 %v678
    %2640 = vmatpush1.msra.mxu0 %v677
    %2641 = vmatprep.subr.mxu0 %v682
    %2642 = vmatpush1.msra.mxu0 %v681
    %2643 = vmatprep.subr.mxu0 %v686
    %2644 = vmatpush1.msra.mxu0 %v685
    %2645 = vmatprep.subr.mxu0 %v690
    %2646 = vmatpush1.msra.mxu0 %v689
    %2647 = vmatprep.subr.mxu0 %v694
    %2648 = vmatpush1.msra.mxu0 %v693
    %2649 = vmatprep.subr.mxu0 %v698
    %2650 = vmatpush1.msra.mxu0 %v697
    %2651 = vmatprep.subr.mxu0 0.0
    %2652 = vmatpush1.msra.mxu0 0.0
    %2653 = vmatprep.subr.mxu0 0.0
    %2654 = vmatpush1.msra.mxu0 0.0
    %2655 = vmatprep.subr.mxu0 0.0
    %2656 = vmatpush1.msra.mxu0 0.0
    %2657 = vmatprep.subr.mxu0 0.0
    %2658 = vmatpush1.msra.mxu0 0.0
    %2659 = vmatprep.subr.mxu0 0.0
    %2660 = vmatpush1.msra.mxu0 0.0
    %2661 = vmatprep.subr.mxu0 0.0
    %2662 = vmatpush1.msra.mxu0 0.0
    %2663 = vmatprep.subr.mxu0 0.0
    %2664 = vmatpush1.msra.mxu0 0.0
    %2665 = vmatprep.subr.mxu0 0.0
    %2666 = vmatpush1.msra.mxu0 0.0
    %2667 = vmatprep.subr.mxu0 0.0
    %2668 = vmatpush1.msra.mxu0 0.0
    %2669 = vmatprep.subr.mxu0 0.0
    %2670 = vmatpush1.msra.mxu0 0.0
    %2671 = vmatprep.subr.mxu0 0.0
    %2672 = vmatpush1.msra.mxu0 0.0
    %2673 = vmatprep.subr.mxu0 0.0
    %2674 = vmatpush1.msra.mxu0 0.0
    %2675 = vmatprep.subr.mxu0 0.0
    %2676 = vmatpush1.msra.mxu0 0.0
    %2677 = vmatprep.subr.mxu0 0.0
    %2678 = vmatpush1.msra.mxu0 0.0
    %2679 = vmatprep.subr.mxu0 0.0
    %2680 = vmatpush1.msra.mxu0 0.0
    %2681 = vmatprep.subr.mxu0 0.0
    %2682 = vmatpush1.msra.mxu0 0.0
    %2683 = vmatprep.mubr.f32.mxu0 0.0
    %2684 = vmatmul.mubr.f32.gmra.mrb[0].mxu0 %v2610
    %v2685 = vpop.f32.mrb[0].mxu0
    %v2686 = vadd.f32 0.0, %v2685
    %v2687 = vpop.f32.mrb[0].mxu0
    %v2688 = vadd.f32 0.0, %v2687
    %2689 = vdwg.mxu0
    %2690 = vmatprep.subr.mxu0 %v640
    %2691 = vmatpush1.msra.mxu0 %v639
    %2692 = vmatprep.subr.mxu0 %v644
    %2693 = vmatpush1.msra.mxu0 %v643
    %2694 = vmatprep.subr.mxu0 %v648
    %2695 = vmatpush1.msra.mxu0 %v647
    %2696 = vmatprep.subr.mxu0 %v652
    %2697 = vmatpush1.msra.mxu0 %v651
    %2698 = vmatprep.subr.mxu0 %v656
    %2699 = vmatpush1.msra.mxu0 %v655
    %2700 = vmatprep.subr.mxu0 %v660
    %2701 = vmatpush1.msra.mxu0 %v659
    %2702 = vmatprep.subr.mxu0 %v664
    %2703 = vmatpush1.msra.mxu0 %v663
    %2704 = vmatprep.subr.mxu0 %v668
    %2705 = vmatpush1.msra.mxu0 %v667
    %2706 = vmatprep.subr.mxu0 %v672
    %2707 = vmatpush1.msra.mxu0 %v671
    %2708 = vmatprep.subr.mxu0 %v676
    %2709 = vmatpush1.msra.mxu0 %v675
    %2710 = vmatprep.subr.mxu0 %v680
    %2711 = vmatpush1.msra.mxu0 %v679
    %2712 = vmatprep.subr.mxu0 %v684
    %2713 = vmatpush1.msra.mxu0 %v683
    %2714 = vmatprep.subr.mxu0 %v688
    %2715 = vmatpush1.msra.mxu0 %v687
    %2716 = vmatprep.subr.mxu0 %v692
    %2717 = vmatpush1.msra.mxu0 %v691
    %2718 = vmatprep.subr.mxu0 %v696
    %2719 = vmatpush1.msra.mxu0 %v695
    %2720 = vmatprep.subr.mxu0 %v700
    %2721 = vmatpush1.msra.mxu0 %v699
    %2722 = vmatprep.subr.mxu0 0.0
    %2723 = vmatpush1.msra.mxu0 0.0
    %2724 = vmatprep.subr.mxu0 0.0
    %2725 = vmatpush1.msra.mxu0 0.0
    %2726 = vmatprep.subr.mxu0 0.0
    %2727 = vmatpush1.msra.mxu0 0.0
    %2728 = vmatprep.subr.mxu0 0.0
    %2729 = vmatpush1.msra.mxu0 0.0
    %2730 = vmatprep.subr.mxu0 0.0
    %2731 = vmatpush1.msra.mxu0 0.0
    %2732 = vmatprep.subr.mxu0 0.0
    %2733 = vmatpush1.msra.mxu0 0.0
    %2734 = vmatprep.subr.mxu0 0.0
    %2735 = vmatpush1.msra.mxu0 0.0
    %2736 = vmatprep.subr.mxu0 0.0
    %2737 = vmatpush1.msra.mxu0 0.0
    %2738 = vmatprep.subr.mxu0 0.0
    %2739 = vmatpush1.msra.mxu0 0.0
    %2740 = vmatprep.subr.mxu0 0.0
    %2741 = vmatpush1.msra.mxu0 0.0
    %2742 = vmatprep.subr.mxu0 0.0
    %2743 = vmatpush1.msra.mxu0 0.0
    %2744 = vmatprep.subr.mxu0 0.0
    %2745 = vmatpush1.msra.mxu0 0.0
    %2746 = vmatprep.subr.mxu0 0.0
    %2747 = vmatpush1.msra.mxu0 0.0
    %2748 = vmatprep.subr.mxu0 0.0
    %2749 = vmatpush1.msra.mxu0 0.0
    %2750 = vmatprep.subr.mxu0 0.0
    %2751 = vmatpush1.msra.mxu0 0.0
    %2752 = vmatprep.subr.mxu0 0.0
    %2753 = vmatpush1.msra.mxu0 0.0
    %2754 = vmatprep.mubr.f32.mxu0 0.0
    %2755 = vmatmul.mubr.f32.gmra.mrb[0].mxu0 %v2610
    %v2756 = vpop.f32.mrb[0].mxu0
    %v2757 = vadd.f32 0.0, %v2756
    %v2758 = vpop.f32.mrb[0].mxu0
    %v2759 = vadd.f32 0.0, %v2758
    %2760 = vdwg.mxu0
    %v2761 = vadd.f32 %v2615, %v2686
    %v2762 = vadd.f32 %v2616, %v2688
    %v2763 = vadd.f32 %v2617, %v2757
    %v2764 = vadd.f32 %v2618, %v2759
    %v2765 = vxor.u32 %v2761, 2147483648
    %v2766 = vmul.f32 %v2765, 1.442695
    %v2767 = vpow.pop %v2766
    %v2768 = vadd.f32 %v2767, 1.0
    %v2769 = vrcp.pop %v2768
    %v2770 = vmul.f32 1.0, %v2769
    %v2771 = vxor.u32 %v2762, 2147483648
    %v2772 = vmul.f32 %v2771, 1.442695
    %v2773 = vpow.pop %v2772
    %v2774 = vadd.f32 %v2773, 1.0
    %v2775 = vrcp.pop %v2774
    %v2776 = vmul.f32 1.0, %v2775
    %v2777 = vtanh.pop %v2763
    %v2778 = vxor.u32 %v2764, 2147483648
    %v2779 = vmul.f32 %v2778, 1.442695
    %v2780 = vpow.pop %v2779
    %v2781 = vadd.f32 %v2780, 1.0
    %v2782 = vrcp.pop %v2781
    %v2783 = vmul.f32 1.0, %v2782
    %v2784 = vmul.f32 %v2776, %v2611
    %v2785 = vmul.f32 %v2770, %v2777
    %v2786 = vadd.f32 %v2784, %v2785
    %v2787 = vtanh.pop %v2786
    %v2788 = vmul.f32 %v2783, %v2787
    %2789 = vmatprep.subr.mxu0 %v702
    %2790 = vmatpush1.msra.mxu0 %v701
    %2791 = vmatprep.subr.mxu0 %v706
    %2792 = vmatpush1.msra.mxu0 %v705
    %2793 = vmatprep.subr.mxu0 %v710
    %2794 = vmatpush1.msra.mxu0 %v709
    %2795 = vmatprep.subr.mxu0 %v714
    %2796 = vmatpush1.msra.mxu0 %v713
    %2797 = vmatprep.subr.mxu0 %v718
    %2798 = vmatpush1.msra.mxu0 %v717
    %2799 = vmatprep.subr.mxu0 %v722
    %2800 = vmatpush1.msra.mxu0 %v721
    %2801 = vmatprep.subr.mxu0 %v726
    %2802 = vmatpush1.msra.mxu0 %v725
    %2803 = vmatprep.subr.mxu0 %v730
    %2804 = vmatpush1.msra.mxu0 %v729
    %2805 = vmatprep.subr.mxu0 %v734
    %2806 = vmatpush1.msra.mxu0 %v733
    %2807 = vmatprep.subr.mxu0 %v738
    %2808 = vmatpush1.msra.mxu0 %v737
    %2809 = vmatprep.subr.mxu0 %v742
    %2810 = vmatpush1.msra.mxu0 %v741
    %2811 = vmatprep.subr.mxu0 %v746
    %2812 = vmatpush1.msra.mxu0 %v745
    %2813 = vmatprep.subr.mxu0 %v750
    %2814 = vmatpush1.msra.mxu0 %v749
    %2815 = vmatprep.subr.mxu0 %v754
    %2816 = vmatpush1.msra.mxu0 %v753
    %2817 = vmatprep.subr.mxu0 %v758
    %2818 = vmatpush1.msra.mxu0 %v757
    %2819 = vmatprep.subr.mxu0 %v762
    %2820 = vmatpush1.msra.mxu0 %v761
    %2821 = vmatprep.subr.mxu0 %v766
    %2822 = vmatpush1.msra.mxu0 %v765
    %2823 = vmatprep.subr.mxu0 %v770
    %2824 = vmatpush1.msra.mxu0 %v769
    %2825 = vmatprep.subr.mxu0 %v774
    %2826 = vmatpush1.msra.mxu0 %v773
    %2827 = vmatprep.subr.mxu0 %v778
    %2828 = vmatpush1.msra.mxu0 %v777
    %2829 = vmatprep.subr.mxu0 %v782
    %2830 = vmatpush1.msra.mxu0 %v781
    %2831 = vmatprep.subr.mxu0 %v786
    %2832 = vmatpush1.msra.mxu0 %v785
    %2833 = vmatprep.subr.mxu0 %v790
    %2834 = vmatpush1.msra.mxu0 %v789
    %2835 = vmatprep.subr.mxu0 %v794
    %2836 = vmatpush1.msra.mxu0 %v793
    %2837 = vmatprep.subr.mxu0 %v798
    %2838 = vmatpush1.msra.mxu0 %v797
    %2839 = vmatprep.subr.mxu0 %v802
    %2840 = vmatpush1.msra.mxu0 %v801
    %2841 = vmatprep.subr.mxu0 %v806
    %2842 = vmatpush1.msra.mxu0 %v805
    %2843 = vmatprep.subr.mxu0 %v810
    %2844 = vmatpush1.msra.mxu0 %v809
    %2845 = vmatprep.subr.mxu0 %v814
    %2846 = vmatpush1.msra.mxu0 %v813
    %2847 = vmatprep.subr.mxu0 %v818
    %2848 = vmatpush1.msra.mxu0 %v817
    %2849 = vmatprep.subr.mxu0 %v822
    %2850 = vmatpush1.msra.mxu0 %v821
    %2851 = vmatprep.subr.mxu0 %v826
    %2852 = vmatpush1.msra.mxu0 %v825
    %2853 = vmatprep.mubr.f32.mxu0 %v2612
    %2854 = vmatmul.mubr.f32.gmra.mrb[0].mxu0 %v2788
    %v2855 = vpop.f32.mrb[0].mxu0
    %v2856 = vadd.f32 %v834, %v2855
    %v2857 = vpop.f32.mrb[0].mxu0
    %v2858 = vadd.f32 %v838, %v2857
    %2859 = vdwg.mxu0
    %2860 = vmatprep.subr.mxu0 %v704
    %2861 = vmatpush1.msra.mxu0 %v703
    %2862 = vmatprep.subr.mxu0 %v708
    %2863 = vmatpush1.msra.mxu0 %v707
    %2864 = vmatprep.subr.mxu0 %v712
    %2865 = vmatpush1.msra.mxu0 %v711
    %2866 = vmatprep.subr.mxu0 %v716
    %2867 = vmatpush1.msra.mxu0 %v715
    %2868 = vmatprep.subr.mxu0 %v720
    %2869 = vmatpush1.msra.mxu0 %v719
    %2870 = vmatprep.subr.mxu0 %v724
    %2871 = vmatpush1.msra.mxu0 %v723
    %2872 = vmatprep.subr.mxu0 %v728
    %2873 = vmatpush1.msra.mxu0 %v727
    %2874 = vmatprep.subr.mxu0 %v732
    %2875 = vmatpush1.msra.mxu0 %v731
    %2876 = vmatprep.subr.mxu0 %v736
    %2877 = vmatpush1.msra.mxu0 %v735
    %2878 = vmatprep.subr.mxu0 %v740
    %2879 = vmatpush1.msra.mxu0 %v739
    %2880 = vmatprep.subr.mxu0 %v744
    %2881 = vmatpush1.msra.mxu0 %v743
    %2882 = vmatprep.subr.mxu0 %v748
    %2883 = vmatpush1.msra.mxu0 %v747
    %2884 = vmatprep.subr.mxu0 %v752
    %2885 = vmatpush1.msra.mxu0 %v751
    %2886 = vmatprep.subr.mxu0 %v756
    %2887 = vmatpush1.msra.mxu0 %v755
    %2888 = vmatprep.subr.mxu0 %v760
    %2889 = vmatpush1.msra.mxu0 %v759
    %2890 = vmatprep.subr.mxu0 %v764
    %2891 = vmatpush1.msra.mxu0 %v763
    %2892 = vmatprep.subr.mxu0 %v768
    %2893 = vmatpush1.msra.mxu0 %v767
    %2894 = vmatprep.subr.mxu0 %v772
    %2895 = vmatpush1.msra.mxu0 %v771
    %2896 = vmatprep.subr.mxu0 %v776
    %2897 = vmatpush1.msra.mxu0 %v775
    %2898 = vmatprep.subr.mxu0 %v780
    %2899 = vmatpush1.msra.mxu0 %v779
    %2900 = vmatprep.subr.mxu0 %v784
    %2901 = vmatpush1.msra.mxu0 %v783
    %2902 = vmatprep.subr.mxu0 %v788
    %2903 = vmatpush1.msra.mxu0 %v787
    %2904 = vmatprep.subr.mxu0 %v792
    %2905 = vmatpush1.msra.mxu0 %v791
    %2906 = vmatprep.subr.mxu0 %v796
    %2907 = vmatpush1.msra.mxu0 %v795
    %2908 = vmatprep.subr.mxu0 %v800
    %2909 = vmatpush1.msra.mxu0 %v799
    %2910 = vmatprep.subr.mxu0 %v804
    %2911 = vmatpush1.msra.mxu0 %v803
    %2912 = vmatprep.subr.mxu0 %v808
    %2913 = vmatpush1.msra.mxu0 %v807
    %2914 = vmatprep.subr.mxu0 %v812
    %2915 = vmatpush1.msra.mxu0 %v811
    %2916 = vmatprep.subr.mxu0 %v816
    %2917 = vmatpush1.msra.mxu0 %v815
    %2918 = vmatprep.subr.mxu0 %v820
    %2919 = vmatpush1.msra.mxu0 %v819
    %2920 = vmatprep.subr.mxu0 %v824
    %2921 = vmatpush1.msra.mxu0 %v823
    %2922 = vmatprep.subr.mxu0 %v828
    %2923 = vmatpush1.msra.mxu0 %v827
    %2924 = vmatprep.mubr.f32.mxu0 %v2612
    %2925 = vmatmul.mubr.f32.gmra.mrb[0].mxu0 %v2788
    %v2926 = vpop.f32.mrb[0].mxu0
    %v2927 = vadd.f32 %v842, %v2926
    %v2928 = vpop.f32.mrb[0].mxu0
    %v2929 = vadd.f32 %v846, %v2928
    %2930 = vdwg.mxu0
    %v2931 = vxor.u32 %v2856, 2147483648
    %v2932 = vmul.f32 %v2931, 1.442695
    %v2933 = vpow.pop %v2932
    %v2934 = vadd.f32 %v2933, 1.0
    %v2935 = vrcp.pop %v2934
    %v2936 = vmul.f32 1.0, %v2935
    %v2937 = vxor.u32 %v2858, 2147483648
    %v2938 = vmul.f32 %v2937, 1.442695
    %v2939 = vpow.pop %v2938
    %v2940 = vadd.f32 %v2939, 1.0
    %v2941 = vrcp.pop %v2940
    %v2942 = vmul.f32 1.0, %v2941
    %v2943 = vtanh.pop %v2927
    %v2944 = vxor.u32 %v2929, 2147483648
    %v2945 = vmul.f32 %v2944, 1.442695
    %v2946 = vpow.pop %v2945
    %v2947 = vadd.f32 %v2946, 1.0
    %v2948 = vrcp.pop %v2947
    %v2949 = vmul.f32 1.0, %v2948
    %v2950 = vmul.f32 %v2942, %v2613
    %v2951 = vmul.f32 %v2936, %v2943
    %v2952 = vadd.f32 %v2950, %v2951
    %v2953 = vtanh.pop %v2952
    %v2954 = vmul.f32 %v2949, %v2953
    %s2955 = scalar_lea.vmem %s1, 40
    %v2956 = vld [vmem:[%s2955] sm:$0xff]
    %vm2957 = vcmp.gt.f32.partialorder %v2956, 0.0
    %v2958 = vsel %vm2957, 1, 0
    %2959 = vset.pattern.permute.xlu0 0
    %2960 = vperm.xlu0 %2959, %v2958
    %v2961 = vpop.permute.xlu0 %2960
    %vm2962 = vcmp.eq.s32.totalorder %v2961, 1
    %v2963 = vsel %vm2962, %v2788, %v2610
    %v2964 = vsel %vm2962, %v2786, %v2611
    %v2965 = vsel %vm2962, %v2954, %v2612
    %v2966 = vsel %vm2962, %v2952, %v2613
    %s2967 = scalar_lea.vmem [#allocation2], 192
    %v2968 = vld [vmem:[%s2967] sm:$0xff]
    %v2969 = vld [vmem:[%s2967 + $0x8] sm:$0xff]
    %v2970 = vld [vmem:[%s2967 + $0x10] sm:$0xff]
    %v2971 = vld [vmem:[%s2967 + $0x18] sm:$0xff]
    %2972 = vmatprep.subr.mxu0 %v638
    %2973 = vmatpush1.msra.mxu0 %v637
    %2974 = vmatprep.subr.mxu0 %v642
    %2975 = vmatpush1.msra.mxu0 %v641
    %2976 = vmatprep.subr.mxu0 %v646
    %2977 = vmatpush1.msra.mxu0 %v645
    %2978 = vmatprep.subr.mxu0 %v650
    %2979 = vmatpush1.msra.mxu0 %v649
    %2980 = vmatprep.subr.mxu0 %v654
    %2981 = vmatpush1.msra.mxu0 %v653
    %2982 = vmatprep.subr.mxu0 %v658
    %2983 = vmatpush1.msra.mxu0 %v657
    %2984 = vmatprep.subr.mxu0 %v662
    %2985 = vmatpush1.msra.mxu0 %v661
    %2986 = vmatprep.subr.mxu0 %v666
    %2987 = vmatpush1.msra.mxu0 %v665
    %2988 = vmatprep.subr.mxu0 %v670
    %2989 = vmatpush1.msra.mxu0 %v669
    %2990 = vmatprep.subr.mxu0 %v674
    %2991 = vmatpush1.msra.mxu0 %v673
    %2992 = vmatprep.subr.mxu0 %v678
    %2993 = vmatpush1.msra.mxu0 %v677
    %2994 = vmatprep.subr.mxu0 %v682
    %2995 = vmatpush1.msra.mxu0 %v681
    %2996 = vmatprep.subr.mxu0 %v686
    %2997 = vmatpush1.msra.mxu0 %v685
    %2998 = vmatprep.subr.mxu0 %v690
    %2999 = vmatpush1.msra.mxu0 %v689
    %3000 = vmatprep.subr.mxu0 %v694
    %3001 = vmatpush1.msra.mxu0 %v693
    %3002 = vmatprep.subr.mxu0 %v698
    %3003 = vmatpush1.msra.mxu0 %v697
    %3004 = vmatprep.subr.mxu0 0.0
    %3005 = vmatpush1.msra.mxu0 0.0
    %3006 = vmatprep.subr.mxu0 0.0
    %3007 = vmatpush1.msra.mxu0 0.0
    %3008 = vmatprep.subr.mxu0 0.0
    %3009 = vmatpush1.msra.mxu0 0.0
    %3010 = vmatprep.subr.mxu0 0.0
    %3011 = vmatpush1.msra.mxu0 0.0
    %3012 = vmatprep.subr.mxu0 0.0
    %3013 = vmatpush1.msra.mxu0 0.0
    %3014 = vmatprep.subr.mxu0 0.0
    %3015 = vmatpush1.msra.mxu0 0.0
    %3016 = vmatprep.subr.mxu0 0.0
    %3017 = vmatpush1.msra.mxu0 0.0
    %3018 = vmatprep.subr.mxu0 0.0
    %3019 = vmatpush1.msra.mxu0 0.0
    %3020 = vmatprep.subr.mxu0 0.0
    %3021 = vmatpush1.msra.mxu0 0.0
    %3022 = vmatprep.subr.mxu0 0.0
    %3023 = vmatpush1.msra.mxu0 0.0
    %3024 = vmatprep.subr.mxu0 0.0
    %3025 = vmatpush1.msra.mxu0 0.0
    %3026 = vmatprep.subr.mxu0 0.0
    %3027 = vmatpush1.msra.mxu0 0.0
    %3028 = vmatprep.subr.mxu0 0.0
    %3029 = vmatpush1.msra.mxu0 0.0
    %3030 = vmatprep.subr.mxu0 0.0
    %3031 = vmatpush1.msra.mxu0 0.0
    %3032 = vmatprep.subr.mxu0 0.0
    %3033 = vmatpush1.msra.mxu0 0.0
    %3034 = vmatprep.subr.mxu0 0.0
    %3035 = vmatpush1.msra.mxu0 0.0
    %3036 = vmatprep.mubr.f32.mxu0 0.0
    %3037 = vmatmul.mubr.f32.gmra.mrb[0].mxu0 %v2963
    %v3038 = vpop.f32.mrb[0].mxu0
    %v3039 = vadd.f32 0.0, %v3038
    %v3040 = vpop.f32.mrb[0].mxu0
    %v3041 = vadd.f32 0.0, %v3040
    %3042 = vdwg.mxu0
    %3043 = vmatprep.subr.mxu0 %v640
    %3044 = vmatpush1.msra.mxu0 %v639
    %3045 = vmatprep.subr.mxu0 %v644
    %3046 = vmatpush1.msra.mxu0 %v643
    %3047 = vmatprep.subr.mxu0 %v648
    %3048 = vmatpush1.msra.mxu0 %v647
    %3049 = vmatprep.subr.mxu0 %v652
    %3050 = vmatpush1.msra.mxu0 %v651
    %3051 = vmatprep.subr.mxu0 %v656
    %3052 = vmatpush1.msra.mxu0 %v655
    %3053 = vmatprep.subr.mxu0 %v660
    %3054 = vmatpush1.msra.mxu0 %v659
    %3055 = vmatprep.subr.mxu0 %v664
    %3056 = vmatpush1.msra.mxu0 %v663
    %3057 = vmatprep.subr.mxu0 %v668
    %3058 = vmatpush1.msra.mxu0 %v667
    %3059 = vmatprep.subr.mxu0 %v672
    %3060 = vmatpush1.msra.mxu0 %v671
    %3061 = vmatprep.subr.mxu0 %v676
    %3062 = vmatpush1.msra.mxu0 %v675
    %3063 = vmatprep.subr.mxu0 %v680
    %3064 = vmatpush1.msra.mxu0 %v679
    %3065 = vmatprep.subr.mxu0 %v684
    %3066 = vmatpush1.msra.mxu0 %v683
    %3067 = vmatprep.subr.mxu0 %v688
    %3068 = vmatpush1.msra.mxu0 %v687
    %3069 = vmatprep.subr.mxu0 %v692
    %3070 = vmatpush1.msra.mxu0 %v691
    %3071 = vmatprep.subr.mxu0 %v696
    %3072 = vmatpush1.msra.mxu0 %v695
    %3073 = vmatprep.subr.mxu0 %v700
    %3074 = vmatpush1.msra.mxu0 %v699
    %3075 = vmatprep.subr.mxu0 0.0
    %3076 = vmatpush1.msra.mxu0 0.0
    %3077 = vmatprep.subr.mxu0 0.0
    %3078 = vmatpush1.msra.mxu0 0.0
    %3079 = vmatprep.subr.mxu0 0.0
    %3080 = vmatpush1.msra.mxu0 0.0
    %3081 = vmatprep.subr.mxu0 0.0
    %3082 = vmatpush1.msra.mxu0 0.0
    %3083 = vmatprep.subr.mxu0 0.0
    %3084 = vmatpush1.msra.mxu0 0.0
    %3085 = vmatprep.subr.mxu0 0.0
    %3086 = vmatpush1.msra.mxu0 0.0
    %3087 = vmatprep.subr.mxu0 0.0
    %3088 = vmatpush1.msra.mxu0 0.0
    %3089 = vmatprep.subr.mxu0 0.0
    %3090 = vmatpush1.msra.mxu0 0.0
    %3091 = vmatprep.subr.mxu0 0.0
    %3092 = vmatpush1.msra.mxu0 0.0
    %3093 = vmatprep.subr.mxu0 0.0
    %3094 = vmatpush1.msra.mxu0 0.0
    %3095 = vmatprep.subr.mxu0 0.0
    %3096 = vmatpush1.msra.mxu0 0.0
    %3097 = vmatprep.subr.mxu0 0.0
    %3098 = vmatpush1.msra.mxu0 0.0
    %3099 = vmatprep.subr.mxu0 0.0
    %3100 = vmatpush1.msra.mxu0 0.0
    %3101 = vmatprep.subr.mxu0 0.0
    %3102 = vmatpush1.msra.mxu0 0.0
    %3103 = vmatprep.subr.mxu0 0.0
    %3104 = vmatpush1.msra.mxu0 0.0
    %3105 = vmatprep.subr.mxu0 0.0
    %3106 = vmatpush1.msra.mxu0 0.0
    %3107 = vmatprep.mubr.f32.mxu0 0.0
    %3108 = vmatmul.mubr.f32.gmra.mrb[0].mxu0 %v2963
    %v3109 = vpop.f32.mrb[0].mxu0
    %v3110 = vadd.f32 0.0, %v3109
    %v3111 = vpop.f32.mrb[0].mxu0
    %v3112 = vadd.f32 0.0, %v3111
    %3113 = vdwg.mxu0
    %v3114 = vadd.f32 %v2968, %v3039
    %v3115 = vadd.f32 %v2969, %v3041
    %v3116 = vadd.f32 %v2970, %v3110
    %v3117 = vadd.f32 %v2971, %v3112
    %v3118 = vxor.u32 %v3114, 2147483648
    %v3119 = vmul.f32 %v3118, 1.442695
    %v3120 = vpow.pop %v3119
    %v3121 = vadd.f32 %v3120, 1.0
    %v3122 = vrcp.pop %v3121
    %v3123 = vmul.f32 1.0, %v3122
    %v3124 = vxor.u32 %v3115, 2147483648
    %v3125 = vmul.f32 %v3124, 1.442695
    %v3126 = vpow.pop %v3125
    %v3127 = vadd.f32 %v3126, 1.0
    %v3128 = vrcp.pop %v3127
    %v3129 = vmul.f32 1.0, %v3128
    %v3130 = vtanh.pop %v3116
    %v3131 = vxor.u32 %v3117, 2147483648
    %v3132 = vmul.f32 %v3131, 1.442695
    %v3133 = vpow.pop %v3132
    %v3134 = vadd.f32 %v3133, 1.0
    %v3135 = vrcp.pop %v3134
    %v3136 = vmul.f32 1.0, %v3135
    %v3137 = vmul.f32 %v3129, %v2964
    %v3138 = vmul.f32 %v3123, %v3130
    %v3139 = vadd.f32 %v3137, %v3138
    %v3140 = vtanh.pop %v3139
    %v3141 = vmul.f32 %v3136, %v3140
    %3142 = vmatprep.subr.mxu0 %v702
    %3143 = vmatpush1.msra.mxu0 %v701
    %3144 = vmatprep.subr.mxu0 %v706
    %3145 = vmatpush1.msra.mxu0 %v705
    %3146 = vmatprep.subr.mxu0 %v710
    %3147 = vmatpush1.msra.mxu0 %v709
    %3148 = vmatprep.subr.mxu0 %v714
    %3149 = vmatpush1.msra.mxu0 %v713
    %3150 = vmatprep.subr.mxu0 %v718
    %3151 = vmatpush1.msra.mxu0 %v717
    %3152 = vmatprep.subr.mxu0 %v722
    %3153 = vmatpush1.msra.mxu0 %v721
    %3154 = vmatprep.subr.mxu0 %v726
    %3155 = vmatpush1.msra.mxu0 %v725
    %3156 = vmatprep.subr.mxu0 %v730
    %3157 = vmatpush1.msra.mxu0 %v729
    %3158 = vmatprep.subr.mxu0 %v734
    %3159 = vmatpush1.msra.mxu0 %v733
    %3160 = vmatprep.subr.mxu0 %v738
    %3161 = vmatpush1.msra.mxu0 %v737
    %3162 = vmatprep.subr.mxu0 %v742
    %3163 = vmatpush1.msra.mxu0 %v741
    %3164 = vmatprep.subr.mxu0 %v746
    %3165 = vmatpush1.msra.mxu0 %v745
    %3166 = vmatprep.subr.mxu0 %v750
    %3167 = vmatpush1.msra.mxu0 %v749
    %3168 = vmatprep.subr.mxu0 %v754
    %3169 = vmatpush1.msra.mxu0 %v753
    %3170 = vmatprep.subr.mxu0 %v758
    %3171 = vmatpush1.msra.mxu0 %v757
    %3172 = vmatprep.subr.mxu0 %v762
    %3173 = vmatpush1.msra.mxu0 %v761
    %3174 = vmatprep.subr.mxu0 %v766
    %3175 = vmatpush1.msra.mxu0 %v765
    %3176 = vmatprep.subr.mxu0 %v770
    %3177 = vmatpush1.msra.mxu0 %v769
    %3178 = vmatprep.subr.mxu0 %v774
    %3179 = vmatpush1.msra.mxu0 %v773
    %3180 = vmatprep.subr.mxu0 %v778
    %3181 = vmatpush1.msra.mxu0 %v777
    %3182 = vmatprep.subr.mxu0 %v782
    %3183 = vmatpush1.msra.mxu0 %v781
    %3184 = vmatprep.subr.mxu0 %v786
    %3185 = vmatpush1.msra.mxu0 %v785
    %3186 = vmatprep.subr.mxu0 %v790
    %3187 = vmatpush1.msra.mxu0 %v789
    %3188 = vmatprep.subr.mxu0 %v794
    %3189 = vmatpush1.msra.mxu0 %v793
    %3190 = vmatprep.subr.mxu0 %v798
    %3191 = vmatpush1.msra.mxu0 %v797
    %3192 = vmatprep.subr.mxu0 %v802
    %3193 = vmatpush1.msra.mxu0 %v801
    %3194 = vmatprep.subr.mxu0 %v806
    %3195 = vmatpush1.msra.mxu0 %v805
    %3196 = vmatprep.subr.mxu0 %v810
    %3197 = vmatpush1.msra.mxu0 %v809
    %3198 = vmatprep.subr.mxu0 %v814
    %3199 = vmatpush1.msra.mxu0 %v813
    %3200 = vmatprep.subr.mxu0 %v818
    %3201 = vmatpush1.msra.mxu0 %v817
    %3202 = vmatprep.subr.mxu0 %v822
    %3203 = vmatpush1.msra.mxu0 %v821
    %3204 = vmatprep.subr.mxu0 %v826
    %3205 = vmatpush1.msra.mxu0 %v825
    %3206 = vmatprep.mubr.f32.mxu0 %v2965
    %3207 = vmatmul.mubr.f32.gmra.mrb[0].mxu0 %v3141
    %v3208 = vpop.f32.mrb[0].mxu0
    %v3209 = vadd.f32 %v834, %v3208
    %v3210 = vpop.f32.mrb[0].mxu0
    %v3211 = vadd.f32 %v838, %v3210
    %3212 = vdwg.mxu0
    %3213 = vmatprep.subr.mxu0 %v704
    %3214 = vmatpush1.msra.mxu0 %v703
    %3215 = vmatprep.subr.mxu0 %v708
    %3216 = vmatpush1.msra.mxu0 %v707
    %3217 = vmatprep.subr.mxu0 %v712
    %3218 = vmatpush1.msra.mxu0 %v711
    %3219 = vmatprep.subr.mxu0 %v716
    %3220 = vmatpush1.msra.mxu0 %v715
    %3221 = vmatprep.subr.mxu0 %v720
    %3222 = vmatpush1.msra.mxu0 %v719
    %3223 = vmatprep.subr.mxu0 %v724
    %3224 = vmatpush1.msra.mxu0 %v723
    %3225 = vmatprep.subr.mxu0 %v728
    %3226 = vmatpush1.msra.mxu0 %v727
    %3227 = vmatprep.subr.mxu0 %v732
    %3228 = vmatpush1.msra.mxu0 %v731
    %3229 = vmatprep.subr.mxu0 %v736
    %3230 = vmatpush1.msra.mxu0 %v735
    %3231 = vmatprep.subr.mxu0 %v740
    %3232 = vmatpush1.msra.mxu0 %v739
    %3233 = vmatprep.subr.mxu0 %v744
    %3234 = vmatpush1.msra.mxu0 %v743
    %3235 = vmatprep.subr.mxu0 %v748
    %3236 = vmatpush1.msra.mxu0 %v747
    %3237 = vmatprep.subr.mxu0 %v752
    %3238 = vmatpush1.msra.mxu0 %v751
    %3239 = vmatprep.subr.mxu0 %v756
    %3240 = vmatpush1.msra.mxu0 %v755
    %3241 = vmatprep.subr.mxu0 %v760
    %3242 = vmatpush1.msra.mxu0 %v759
    %3243 = vmatprep.subr.mxu0 %v764
    %3244 = vmatpush1.msra.mxu0 %v763
    %3245 = vmatprep.subr.mxu0 %v768
    %3246 = vmatpush1.msra.mxu0 %v767
    %3247 = vmatprep.subr.mxu0 %v772
    %3248 = vmatpush1.msra.mxu0 %v771
    %3249 = vmatprep.subr.mxu0 %v776
    %3250 = vmatpush1.msra.mxu0 %v775
    %3251 = vmatprep.subr.mxu0 %v780
    %3252 = vmatpush1.msra.mxu0 %v779
    %3253 = vmatprep.subr.mxu0 %v784
    %3254 = vmatpush1.msra.mxu0 %v783
    %3255 = vmatprep.subr.mxu0 %v788
    %3256 = vmatpush1.msra.mxu0 %v787
    %3257 = vmatprep.subr.mxu0 %v792
    %3258 = vmatpush1.msra.mxu0 %v791
    %3259 = vmatprep.subr.mxu0 %v796
    %3260 = vmatpush1.msra.mxu0 %v795
    %3261 = vmatprep.subr.mxu0 %v800
    %3262 = vmatpush1.msra.mxu0 %v799
    %3263 = vmatprep.subr.mxu0 %v804
    %3264 = vmatpush1.msra.mxu0 %v803
    %3265 = vmatprep.subr.mxu0 %v808
    %3266 = vmatpush1.msra.mxu0 %v807
    %3267 = vmatprep.subr.mxu0 %v812
    %3268 = vmatpush1.msra.mxu0 %v811
    %3269 = vmatprep.subr.mxu0 %v816
    %3270 = vmatpush1.msra.mxu0 %v815
    %3271 = vmatprep.subr.mxu0 %v820
    %3272 = vmatpush1.msra.mxu0 %v819
    %3273 = vmatprep.subr.mxu0 %v824
    %3274 = vmatpush1.msra.mxu0 %v823
    %3275 = vmatprep.subr.mxu0 %v828
    %3276 = vmatpush1.msra.mxu0 %v827
    %3277 = vmatprep.mubr.f32.mxu0 %v2965
    %3278 = vmatmul.mubr.f32.gmra.mrb[0].mxu0 %v3141
    %v3279 = vpop.f32.mrb[0].mxu0
    %v3280 = vadd.f32 %v842, %v3279
    %v3281 = vpop.f32.mrb[0].mxu0
    %v3282 = vadd.f32 %v846, %v3281
    %3283 = vdwg.mxu0
    %v3284 = vxor.u32 %v3209, 2147483648
    %v3285 = vmul.f32 %v3284, 1.442695
    %v3286 = vpow.pop %v3285
    %v3287 = vadd.f32 %v3286, 1.0
    %v3288 = vrcp.pop %v3287
    %v3289 = vmul.f32 1.0, %v3288
    %v3290 = vxor.u32 %v3211, 2147483648
    %v3291 = vmul.f32 %v3290, 1.442695
    %v3292 = vpow.pop %v3291
    %v3293 = vadd.f32 %v3292, 1.0
    %v3294 = vrcp.pop %v3293
    %v3295 = vmul.f32 1.0, %v3294
    %v3296 = vtanh.pop %v3280
    %v3297 = vxor.u32 %v3282, 2147483648
    %v3298 = vmul.f32 %v3297, 1.442695
    %v3299 = vpow.pop %v3298
    %v3300 = vadd.f32 %v3299, 1.0
    %v3301 = vrcp.pop %v3300
    %v3302 = vmul.f32 1.0, %v3301
    %v3303 = vmul.f32 %v3295, %v2966
    %v3304 = vmul.f32 %v3289, %v3296
    %v3305 = vadd.f32 %v3303, %v3304
    %v3306 = vtanh.pop %v3305
    %v3307 = vmul.f32 %v3302, %v3306
    %s3308 = scalar_lea.vmem %s1, 48
    %v3309 = vld [vmem:[%s3308] sm:$0xff]
    %vm3310 = vcmp.gt.f32.partialorder %v3309, 0.0
    %v3311 = vsel %vm3310, 1, 0
    %3312 = vset.pattern.permute.xlu0 0
    %3313 = vperm.xlu0 %3312, %v3311
    %v3314 = vpop.permute.xlu0 %3313
    %vm3315 = vcmp.eq.s32.totalorder %v3314, 1
    %v3316 = vsel %vm3315, %v3141, %v2963
    %v3317 = vsel %vm3315, %v3139, %v2964
    %v3318 = vsel %vm3315, %v3307, %v2965
    %v3319 = vsel %vm3315, %v3305, %v2966
    %s3320 = scalar_lea.vmem [#allocation2], 224
    %v3321 = vld [vmem:[%s3320] sm:$0xff]
    %v3322 = vld [vmem:[%s3320 + $0x8] sm:$0xff]
    %v3323 = vld [vmem:[%s3320 + $0x10] sm:$0xff]
    %v3324 = vld [vmem:[%s3320 + $0x18] sm:$0xff]
    %3325 = vmatprep.subr.mxu0 %v638
    %3326 = vmatpush1.msra.mxu0 %v637
    %3327 = vmatprep.subr.mxu0 %v642
    %3328 = vmatpush1.msra.mxu0 %v641
    %3329 = vmatprep.subr.mxu0 %v646
    %3330 = vmatpush1.msra.mxu0 %v645
    %3331 = vmatprep.subr.mxu0 %v650
    %3332 = vmatpush1.msra.mxu0 %v649
    %3333 = vmatprep.subr.mxu0 %v654
    %3334 = vmatpush1.msra.mxu0 %v653
    %3335 = vmatprep.subr.mxu0 %v658
    %3336 = vmatpush1.msra.mxu0 %v657
    %3337 = vmatprep.subr.mxu0 %v662
    %3338 = vmatpush1.msra.mxu0 %v661
    %3339 = vmatprep.subr.mxu0 %v666
    %3340 = vmatpush1.msra.mxu0 %v665
    %3341 = vmatprep.subr.mxu0 %v670
    %3342 = vmatpush1.msra.mxu0 %v669
    %3343 = vmatprep.subr.mxu0 %v674
    %3344 = vmatpush1.msra.mxu0 %v673
    %3345 = vmatprep.subr.mxu0 %v678
    %3346 = vmatpush1.msra.mxu0 %v677
    %3347 = vmatprep.subr.mxu0 %v682
    %3348 = vmatpush1.msra.mxu0 %v681
    %3349 = vmatprep.subr.mxu0 %v686
    %3350 = vmatpush1.msra.mxu0 %v685
    %3351 = vmatprep.subr.mxu0 %v690
    %3352 = vmatpush1.msra.mxu0 %v689
    %3353 = vmatprep.subr.mxu0 %v694
    %3354 = vmatpush1.msra.mxu0 %v693
    %3355 = vmatprep.subr.mxu0 %v698
    %3356 = vmatpush1.msra.mxu0 %v697
    %3357 = vmatprep.subr.mxu0 0.0
    %3358 = vmatpush1.msra.mxu0 0.0
    %3359 = vmatprep.subr.mxu0 0.0
    %3360 = vmatpush1.msra.mxu0 0.0
    %3361 = vmatprep.subr.mxu0 0.0
    %3362 = vmatpush1.msra.mxu0 0.0
    %3363 = vmatprep.subr.mxu0 0.0
    %3364 = vmatpush1.msra.mxu0 0.0
    %3365 = vmatprep.subr.mxu0 0.0
    %3366 = vmatpush1.msra.mxu0 0.0
    %3367 = vmatprep.subr.mxu0 0.0
    %3368 = vmatpush1.msra.mxu0 0.0
    %3369 = vmatprep.subr.mxu0 0.0
    %3370 = vmatpush1.msra.mxu0 0.0
    %3371 = vmatprep.subr.mxu0 0.0
    %3372 = vmatpush1.msra.mxu0 0.0
    %3373 = vmatprep.subr.mxu0 0.0
    %3374 = vmatpush1.msra.mxu0 0.0
    %3375 = vmatprep.subr.mxu0 0.0
    %3376 = vmatpush1.msra.mxu0 0.0
    %3377 = vmatprep.subr.mxu0 0.0
    %3378 = vmatpush1.msra.mxu0 0.0
    %3379 = vmatprep.subr.mxu0 0.0
    %3380 = vmatpush1.msra.mxu0 0.0
    %3381 = vmatprep.subr.mxu0 0.0
    %3382 = vmatpush1.msra.mxu0 0.0
    %3383 = vmatprep.subr.mxu0 0.0
    %3384 = vmatpush1.msra.mxu0 0.0
    %3385 = vmatprep.subr.mxu0 0.0
    %3386 = vmatpush1.msra.mxu0 0.0
    %3387 = vmatprep.subr.mxu0 0.0
    %3388 = vmatpush1.msra.mxu0 0.0
    %3389 = vmatprep.mubr.f32.mxu0 0.0
    %3390 = vmatmul.mubr.f32.gmra.mrb[0].mxu0 %v3316
    %v3391 = vpop.f32.mrb[0].mxu0
    %v3392 = vadd.f32 0.0, %v3391
    %v3393 = vpop.f32.mrb[0].mxu0
    %v3394 = vadd.f32 0.0, %v3393
    %3395 = vdwg.mxu0
    %3396 = vmatprep.subr.mxu0 %v640
    %3397 = vmatpush1.msra.mxu0 %v639
    %3398 = vmatprep.subr.mxu0 %v644
    %3399 = vmatpush1.msra.mxu0 %v643
    %3400 = vmatprep.subr.mxu0 %v648
    %3401 = vmatpush1.msra.mxu0 %v647
    %3402 = vmatprep.subr.mxu0 %v652
    %3403 = vmatpush1.msra.mxu0 %v651
    %3404 = vmatprep.subr.mxu0 %v656
    %3405 = vmatpush1.msra.mxu0 %v655
    %3406 = vmatprep.subr.mxu0 %v660
    %3407 = vmatpush1.msra.mxu0 %v659
    %3408 = vmatprep.subr.mxu0 %v664
    %3409 = vmatpush1.msra.mxu0 %v663
    %3410 = vmatprep.subr.mxu0 %v668
    %3411 = vmatpush1.msra.mxu0 %v667
    %3412 = vmatprep.subr.mxu0 %v672
    %3413 = vmatpush1.msra.mxu0 %v671
    %3414 = vmatprep.subr.mxu0 %v676
    %3415 = vmatpush1.msra.mxu0 %v675
    %3416 = vmatprep.subr.mxu0 %v680
    %3417 = vmatpush1.msra.mxu0 %v679
    %3418 = vmatprep.subr.mxu0 %v684
    %3419 = vmatpush1.msra.mxu0 %v683
    %3420 = vmatprep.subr.mxu0 %v688
    %3421 = vmatpush1.msra.mxu0 %v687
    %3422 = vmatprep.subr.mxu0 %v692
    %3423 = vmatpush1.msra.mxu0 %v691
    %3424 = vmatprep.subr.mxu0 %v696
    %3425 = vmatpush1.msra.mxu0 %v695
    %3426 = vmatprep.subr.mxu0 %v700
    %3427 = vmatpush1.msra.mxu0 %v699
    %3428 = vmatprep.subr.mxu0 0.0
    %3429 = vmatpush1.msra.mxu0 0.0
    %3430 = vmatprep.subr.mxu0 0.0
    %3431 = vmatpush1.msra.mxu0 0.0
    %3432 = vmatprep.subr.mxu0 0.0
    %3433 = vmatpush1.msra.mxu0 0.0
    %3434 = vmatprep.subr.mxu0 0.0
    %3435 = vmatpush1.msra.mxu0 0.0
    %3436 = vmatprep.subr.mxu0 0.0
    %3437 = vmatpush1.msra.mxu0 0.0
    %3438 = vmatprep.subr.mxu0 0.0
    %3439 = vmatpush1.msra.mxu0 0.0
    %3440 = vmatprep.subr.mxu0 0.0
    %3441 = vmatpush1.msra.mxu0 0.0
    %3442 = vmatprep.subr.mxu0 0.0
    %3443 = vmatpush1.msra.mxu0 0.0
    %3444 = vmatprep.subr.mxu0 0.0
    %3445 = vmatpush1.msra.mxu0 0.0
    %3446 = vmatprep.subr.mxu0 0.0
    %3447 = vmatpush1.msra.mxu0 0.0
    %3448 = vmatprep.subr.mxu0 0.0
    %3449 = vmatpush1.msra.mxu0 0.0
    %3450 = vmatprep.subr.mxu0 0.0
    %3451 = vmatpush1.msra.mxu0 0.0
    %3452 = vmatprep.subr.mxu0 0.0
    %3453 = vmatpush1.msra.mxu0 0.0
    %3454 = vmatprep.subr.mxu0 0.0
    %3455 = vmatpush1.msra.mxu0 0.0
    %3456 = vmatprep.subr.mxu0 0.0
    %3457 = vmatpush1.msra.mxu0 0.0
    %3458 = vmatprep.subr.mxu0 0.0
    %3459 = vmatpush1.msra.mxu0 0.0
    %3460 = vmatprep.mubr.f32.mxu0 0.0
    %3461 = vmatmul.mubr.f32.gmra.mrb[0].mxu0 %v3316
    %v3462 = vpop.f32.mrb[0].mxu0
    %v3463 = vadd.f32 0.0, %v3462
    %v3464 = vpop.f32.mrb[0].mxu0
    %v3465 = vadd.f32 0.0, %v3464
    %3466 = vdwg.mxu0
    %v3467 = vadd.f32 %v3321, %v3392
    %v3468 = vadd.f32 %v3322, %v3394
    %v3469 = vadd.f32 %v3323, %v3463
    %v3470 = vadd.f32 %v3324, %v3465
    %v3471 = vxor.u32 %v3467, 2147483648
    %v3472 = vmul.f32 %v3471, 1.442695
    %v3473 = vpow.pop %v3472
    %v3474 = vadd.f32 %v3473, 1.0
    %v3475 = vrcp.pop %v3474
    %v3476 = vmul.f32 1.0, %v3475
    %v3477 = vxor.u32 %v3468, 2147483648
    %v3478 = vmul.f32 %v3477, 1.442695
    %v3479 = vpow.pop %v3478
    %v3480 = vadd.f32 %v3479, 1.0
    %v3481 = vrcp.pop %v3480
    %v3482 = vmul.f32 1.0, %v3481
    %v3483 = vtanh.pop %v3469
    %v3484 = vxor.u32 %v3470, 2147483648
    %v3485 = vmul.f32 %v3484, 1.442695
    %v3486 = vpow.pop %v3485
    %v3487 = vadd.f32 %v3486, 1.0
    %v3488 = vrcp.pop %v3487
    %v3489 = vmul.f32 1.0, %v3488
    %v3490 = vmul.f32 %v3482, %v3317
    %v3491 = vmul.f32 %v3476, %v3483
    %v3492 = vadd.f32 %v3490, %v3491
    %v3493 = vtanh.pop %v3492
    %v3494 = vmul.f32 %v3489, %v3493
    %3495 = vmatprep.subr.mxu0 %v702
    %3496 = vmatpush1.msra.mxu0 %v701
    %3497 = vmatprep.subr.mxu0 %v706
    %3498 = vmatpush1.msra.mxu0 %v705
    %3499 = vmatprep.subr.mxu0 %v710
    %3500 = vmatpush1.msra.mxu0 %v709
    %3501 = vmatprep.subr.mxu0 %v714
    %3502 = vmatpush1.msra.mxu0 %v713
    %3503 = vmatprep.subr.mxu0 %v718
    %3504 = vmatpush1.msra.mxu0 %v717
    %3505 = vmatprep.subr.mxu0 %v722
    %3506 = vmatpush1.msra.mxu0 %v721
    %3507 = vmatprep.subr.mxu0 %v726
    %3508 = vmatpush1.msra.mxu0 %v725
    %3509 = vmatprep.subr.mxu0 %v730
    %3510 = vmatpush1.msra.mxu0 %v729
    %3511 = vmatprep.subr.mxu0 %v734
    %3512 = vmatpush1.msra.mxu0 %v733
    %3513 = vmatprep.subr.mxu0 %v738
    %3514 = vmatpush1.msra.mxu0 %v737
    %3515 = vmatprep.subr.mxu0 %v742
    %3516 = vmatpush1.msra.mxu0 %v741
    %3517 = vmatprep.subr.mxu0 %v746
    %3518 = vmatpush1.msra.mxu0 %v745
    %3519 = vmatprep.subr.mxu0 %v750
    %3520 = vmatpush1.msra.mxu0 %v749
    %3521 = vmatprep.subr.mxu0 %v754
    %3522 = vmatpush1.msra.mxu0 %v753
    %3523 = vmatprep.subr.mxu0 %v758
    %3524 = vmatpush1.msra.mxu0 %v757
    %3525 = vmatprep.subr.mxu0 %v762
    %3526 = vmatpush1.msra.mxu0 %v761
    %3527 = vmatprep.subr.mxu0 %v766
    %3528 = vmatpush1.msra.mxu0 %v765
    %3529 = vmatprep.subr.mxu0 %v770
    %3530 = vmatpush1.msra.mxu0 %v769
    %3531 = vmatprep.subr.mxu0 %v774
    %3532 = vmatpush1.msra.mxu0 %v773
    %3533 = vmatprep.subr.mxu0 %v778
    %3534 = vmatpush1.msra.mxu0 %v777
    %3535 = vmatprep.subr.mxu0 %v782
    %3536 = vmatpush1.msra.mxu0 %v781
    %3537 = vmatprep.subr.mxu0 %v786
    %3538 = vmatpush1.msra.mxu0 %v785
    %3539 = vmatprep.subr.mxu0 %v790
    %3540 = vmatpush1.msra.mxu0 %v789
    %3541 = vmatprep.subr.mxu0 %v794
    %3542 = vmatpush1.msra.mxu0 %v793
    %3543 = vmatprep.subr.mxu0 %v798
    %3544 = vmatpush1.msra.mxu0 %v797
    %3545 = vmatprep.subr.mxu0 %v802
    %3546 = vmatpush1.msra.mxu0 %v801
    %3547 = vmatprep.subr.mxu0 %v806
    %3548 = vmatpush1.msra.mxu0 %v805
    %3549 = vmatprep.subr.mxu0 %v810
    %3550 = vmatpush1.msra.mxu0 %v809
    %3551 = vmatprep.subr.mxu0 %v814
    %3552 = vmatpush1.msra.mxu0 %v813
    %3553 = vmatprep.subr.mxu0 %v818
    %3554 = vmatpush1.msra.mxu0 %v817
    %3555 = vmatprep.subr.mxu0 %v822
    %3556 = vmatpush1.msra.mxu0 %v821
    %3557 = vmatprep.subr.mxu0 %v826
    %3558 = vmatpush1.msra.mxu0 %v825
    %3559 = vmatprep.mubr.f32.mxu0 %v3318
    %3560 = vmatmul.mubr.f32.gmra.mrb[0].mxu0 %v3494
    %v3561 = vpop.f32.mrb[0].mxu0
    %v3562 = vadd.f32 %v834, %v3561
    %v3563 = vpop.f32.mrb[0].mxu0
    %v3564 = vadd.f32 %v838, %v3563
    %3565 = vdwg.mxu0
    %3566 = vmatprep.subr.mxu0 %v704
    %3567 = vmatpush1.msra.mxu0 %v703
    %3568 = vmatprep.subr.mxu0 %v708
    %3569 = vmatpush1.msra.mxu0 %v707
    %3570 = vmatprep.subr.mxu0 %v712
    %3571 = vmatpush1.msra.mxu0 %v711
    %3572 = vmatprep.subr.mxu0 %v716
    %3573 = vmatpush1.msra.mxu0 %v715
    %3574 = vmatprep.subr.mxu0 %v720
    %3575 = vmatpush1.msra.mxu0 %v719
    %3576 = vmatprep.subr.mxu0 %v724
    %3577 = vmatpush1.msra.mxu0 %v723
    %3578 = vmatprep.subr.mxu0 %v728
    %3579 = vmatpush1.msra.mxu0 %v727
    %3580 = vmatprep.subr.mxu0 %v732
    %3581 = vmatpush1.msra.mxu0 %v731
    %3582 = vmatprep.subr.mxu0 %v736
    %3583 = vmatpush1.msra.mxu0 %v735
    %3584 = vmatprep.subr.mxu0 %v740
    %3585 = vmatpush1.msra.mxu0 %v739
    %3586 = vmatprep.subr.mxu0 %v744
    %3587 = vmatpush1.msra.mxu0 %v743
    %3588 = vmatprep.subr.mxu0 %v748
    %3589 = vmatpush1.msra.mxu0 %v747
    %3590 = vmatprep.subr.mxu0 %v752
    %3591 = vmatpush1.msra.mxu0 %v751
    %3592 = vmatprep.subr.mxu0 %v756
    %3593 = vmatpush1.msra.mxu0 %v755
    %3594 = vmatprep.subr.mxu0 %v760
    %3595 = vmatpush1.msra.mxu0 %v759
    %3596 = vmatprep.subr.mxu0 %v764
    %3597 = vmatpush1.msra.mxu0 %v763
    %3598 = vmatprep.subr.mxu0 %v768
    %3599 = vmatpush1.msra.mxu0 %v767
    %3600 = vmatprep.subr.mxu0 %v772
    %3601 = vmatpush1.msra.mxu0 %v771
    %3602 = vmatprep.subr.mxu0 %v776
    %3603 = vmatpush1.msra.mxu0 %v775
    %3604 = vmatprep.subr.mxu0 %v780
    %3605 = vmatpush1.msra.mxu0 %v779
    %3606 = vmatprep.subr.mxu0 %v784
    %3607 = vmatpush1.msra.mxu0 %v783
    %3608 = vmatprep.subr.mxu0 %v788
    %3609 = vmatpush1.msra.mxu0 %v787
    %3610 = vmatprep.subr.mxu0 %v792
    %3611 = vmatpush1.msra.mxu0 %v791
    %3612 = vmatprep.subr.mxu0 %v796
    %3613 = vmatpush1.msra.mxu0 %v795
    %3614 = vmatprep.subr.mxu0 %v800
    %3615 = vmatpush1.msra.mxu0 %v799
    %3616 = vmatprep.subr.mxu0 %v804
    %3617 = vmatpush1.msra.mxu0 %v803
    %3618 = vmatprep.subr.mxu0 %v808
    %3619 = vmatpush1.msra.mxu0 %v807
    %3620 = vmatprep.subr.mxu0 %v812
    %3621 = vmatpush1.msra.mxu0 %v811
    %3622 = vmatprep.subr.mxu0 %v816
    %3623 = vmatpush1.msra.mxu0 %v815
    %3624 = vmatprep.subr.mxu0 %v820
    %3625 = vmatpush1.msra.mxu0 %v819
    %3626 = vmatprep.subr.mxu0 %v824
    %3627 = vmatpush1.msra.mxu0 %v823
    %3628 = vmatprep.subr.mxu0 %v828
    %3629 = vmatpush1.msra.mxu0 %v827
    %3630 = vmatprep.mubr.f32.mxu0 %v3318
    %3631 = vmatmul.mubr.f32.gmra.mrb[0].mxu0 %v3494
    %v3632 = vpop.f32.mrb[0].mxu0
    %v3633 = vadd.f32 %v842, %v3632
    %v3634 = vpop.f32.mrb[0].mxu0
    %v3635 = vadd.f32 %v846, %v3634
    %3636 = vdwg.mxu0
    %v3637 = vxor.u32 %v3562, 2147483648
    %v3638 = vmul.f32 %v3637, 1.442695
    %v3639 = vpow.pop %v3638
    %v3640 = vadd.f32 %v3639, 1.0
    %v3641 = vrcp.pop %v3640
    %v3642 = vmul.f32 1.0, %v3641
    %v3643 = vxor.u32 %v3564, 2147483648
    %v3644 = vmul.f32 %v3643, 1.442695
    %v3645 = vpow.pop %v3644
    %v3646 = vadd.f32 %v3645, 1.0
    %v3647 = vrcp.pop %v3646
    %v3648 = vmul.f32 1.0, %v3647
    %v3649 = vtanh.pop %v3633
    %v3650 = vxor.u32 %v3635, 2147483648
    %v3651 = vmul.f32 %v3650, 1.442695
    %v3652 = vpow.pop %v3651
    %v3653 = vadd.f32 %v3652, 1.0
    %v3654 = vrcp.pop %v3653
    %v3655 = vmul.f32 1.0, %v3654
    %v3656 = vmul.f32 %v3648, %v3319
    %v3657 = vmul.f32 %v3642, %v3649
    %v3658 = vadd.f32 %v3656, %v3657
    %v3659 = vtanh.pop %v3658
    %v3660 = vmul.f32 %v3655, %v3659
    %s3661 = scalar_lea.vmem %s1, 56
    %v3662 = vld [vmem:[%s3661] sm:$0xff]
    %vm3663 = vcmp.gt.f32.partialorder %v3662, 0.0
    %v3664 = vsel %vm3663, 1, 0
    %3665 = vset.pattern.permute.xlu0 0
    %3666 = vperm.xlu0 %3665, %v3664
    %v3667 = vpop.permute.xlu0 %3666
    %vm3668 = vcmp.eq.s32.totalorder %v3667, 1
    %v3669 = vsel %vm3668, %v3494, %v3316
    %v3670 = vsel %vm3668, %v3492, %v3317
    %v3671 = vsel %vm3668, %v3660, %v3318
    %v3672 = vsel %vm3668, %v3658, %v3319
    %v3673 = vld [vmem:[#allocation9] sm:$0xff]
    %v3674 = vld [vmem:[#allocation9 + $0x8] sm:$0xff]
    %v3675 = vld [vmem:[#allocation9 + $0x10] sm:$0xff]
    %v3676 = vld [vmem:[#allocation9 + $0x18] sm:$0xf]
    %v3677 = vld [vmem:[%s11] sm:$0xff]
    %v3678 = vld [vmem:[%s11 + $0x8] sm:$0xff]
    %v3679 = vld [vmem:[%s11 + $0x10] sm:$0xff]
    %v3680 = vld [vmem:[%s11 + $0x18] sm:$0xff]
    %v3681 = vld [vmem:[%s11 + $0x20] sm:$0xff]
    %v3682 = vld [vmem:[%s11 + $0x28] sm:$0xff]
    %v3683 = vld [vmem:[%s11 + $0x30] sm:$0xff]
    %v3684 = vld [vmem:[%s11 + $0x38] sm:$0xff]
    %v3685 = vld [vmem:[%s11 + $0x40] sm:$0xff]
    %v3686 = vld [vmem:[%s11 + $0x48] sm:$0xff]
    %v3687 = vld [vmem:[%s11 + $0x50] sm:$0xff]
    %v3688 = vld [vmem:[%s11 + $0x58] sm:$0xff]
    %v3689 = vld [vmem:[%s11 + $0x60] sm:$0xf]
    %v3690 = vld [vmem:[%s11 + $0x68] sm:$0xf]
    %v3691 = vld [vmem:[%s11 + $0x70] sm:$0xf]
    %v3692 = vld [vmem:[%s11 + $0x78] sm:$0xf]
    %vm3693 = vcmask 228352
    %v3695 = vsel %vm3693, %v3673, 0
    %v3698 = vsel %vm3693, %v3674, 0
    %v3701 = vsel %vm3693, %v3675, 0
    %v3704 = vsel %vm3693, %v3676, 0
    %vm3706 = vcmask 1043456
    %v3708 = vsel %vm3706, %v3689, 0
    %v3711 = vsel %vm3706, %v3690, 0
    %v3714 = vsel %vm3706, %v3691, 0
    %v3717 = vsel %vm3706, %v3692, 0
    %3719 = vmatprep.subr.mxu0 %v3678
    %3720 = vmatpush1.msra.mxu0 %v3677
    %3721 = vmatprep.subr.mxu0 %v3682
    %3722 = vmatpush1.msra.mxu0 %v3681
    %3723 = vmatprep.subr.mxu0 %v3686
    %3724 = vmatpush1.msra.mxu0 %v3685
    %3725 = vmatprep.subr.mxu0 %v3711
    %3726 = vmatpush1.msra.mxu0 %v3708
    %3727 = vmatprep.subr.mxu0 0.0
    %3728 = vmatpush1.msra.mxu0 0.0
    %3729 = vmatprep.subr.mxu0 0.0
    %3730 = vmatpush1.msra.mxu0 0.0
    %3731 = vmatprep.subr.mxu0 0.0
    %3732 = vmatpush1.msra.mxu0 0.0
    %3733 = vmatprep.subr.mxu0 0.0
    %3734 = vmatpush1.msra.mxu0 0.0
    %3735 = vmatprep.subr.mxu0 0.0
    %3736 = vmatpush1.msra.mxu0 0.0
    %3737 = vmatprep.subr.mxu0 0.0
    %3738 = vmatpush1.msra.mxu0 0.0
    %3739 = vmatprep.subr.mxu0 0.0
    %3740 = vmatpush1.msra.mxu0 0.0
    %3741 = vmatprep.subr.mxu0 0.0
    %3742 = vmatpush1.msra.mxu0 0.0
    %3743 = vmatprep.subr.mxu0 0.0
    %3744 = vmatpush1.msra.mxu0 0.0
    %3745 = vmatprep.subr.mxu0 0.0
    %3746 = vmatpush1.msra.mxu0 0.0
    %3747 = vmatprep.subr.mxu0 0.0
    %3748 = vmatpush1.msra.mxu0 0.0
    %3749 = vmatprep.subr.mxu0 0.0
    %3750 = vmatpush1.msra.mxu0 0.0
    %3751 = vmatprep.subr.mxu0 0.0
    %3752 = vmatpush1.msra.mxu0 0.0
    %3753 = vmatprep.subr.mxu0 0.0
    %3754 = vmatpush1.msra.mxu0 0.0
    %3755 = vmatprep.subr.mxu0 0.0
    %3756 = vmatpush1.msra.mxu0 0.0
    %3757 = vmatprep.subr.mxu0 0.0
    %3758 = vmatpush1.msra.mxu0 0.0
    %3759 = vmatprep.subr.mxu0 0.0
    %3760 = vmatpush1.msra.mxu0 0.0
    %3761 = vmatprep.subr.mxu0 0.0
    %3762 = vmatpush1.msra.mxu0 0.0
    %3763 = vmatprep.subr.mxu0 0.0
    %3764 = vmatpush1.msra.mxu0 0.0
    %3765 = vmatprep.subr.mxu0 0.0
    %3766 = vmatpush1.msra.mxu0 0.0
    %3767 = vmatprep.subr.mxu0 0.0
    %3768 = vmatpush1.msra.mxu0 0.0
    %3769 = vmatprep.subr.mxu0 0.0
    %3770 = vmatpush1.msra.mxu0 0.0
    %3771 = vmatprep.subr.mxu0 0.0
    %3772 = vmatpush1.msra.mxu0 0.0
    %3773 = vmatprep.subr.mxu0 0.0
    %3774 = vmatpush1.msra.mxu0 0.0
    %3775 = vmatprep.subr.mxu0 0.0
    %3776 = vmatpush1.msra.mxu0 0.0
    %3777 = vmatprep.subr.mxu0 0.0
    %3778 = vmatpush1.msra.mxu0 0.0
    %3779 = vmatprep.subr.mxu0 0.0
    %3780 = vmatpush1.msra.mxu0 0.0
    %3781 = vmatprep.subr.mxu0 0.0
    %3782 = vmatpush1.msra.mxu0 0.0
    %3783 = vmatprep.mubr.f32.mxu0 0.0
    %3784 = vmatmul.mubr.f32.gmra.mrb[0].mxu0 %v3695
    %v3785 = vpop.f32.mrb[0].mxu0
    %v3786 = vadd.f32 0.0, %v3785
    %v3787 = vpop.f32.mrb[0].mxu0
    %v3788 = vadd.f32 0.0, %v3787
    %3789 = vmatprep.mubr.f32.mxu0 0.0
    %3790 = vmatmul.mubr.f32.gmra.mrb[0].mxu0 %v3698
    %v3791 = vpop.f32.mrb[0].mxu0
    %v3792 = vadd.f32 0.0, %v3791
    %v3793 = vpop.f32.mrb[0].mxu0
    %v3794 = vadd.f32 0.0, %v3793
    %3795 = vmatprep.mubr.f32.mxu0 0.0
    %3796 = vmatmul.mubr.f32.gmra.mrb[0].mxu0 %v3701
    %v3797 = vpop.f32.mrb[0].mxu0
    %v3798 = vadd.f32 0.0, %v3797
    %v3799 = vpop.f32.mrb[0].mxu0
    %v3800 = vadd.f32 0.0, %v3799
    %3801 = vmatprep.mubr.f32.mxu0 0.0
    %3802 = vmatmul.mubr.f32.gmra.mrb[0].mxu0 %v3704
    %v3803 = vpop.f32.mrb[0].mxu0
    %v3804 = vadd.f32 0.0, %v3803
    %v3805 = vpop.f32.mrb[0].mxu0
    %v3806 = vadd.f32 0.0, %v3805
    %3807 = vdwg.mxu0
    %3808 = vmatprep.subr.mxu0 %v3680
    %3809 = vmatpush1.msra.mxu0 %v3679
    %3810 = vmatprep.subr.mxu0 %v3684
    %3811 = vmatpush1.msra.mxu0 %v3683
    %3812 = vmatprep.subr.mxu0 %v3688
    %3813 = vmatpush1.msra.mxu0 %v3687
    %3814 = vmatprep.subr.mxu0 %v3717
    %3815 = vmatpush1.msra.mxu0 %v3714
    %3816 = vmatprep.subr.mxu0 0.0
    %3817 = vmatpush1.msra.mxu0 0.0
    %3818 = vmatprep.subr.mxu0 0.0
    %3819 = vmatpush1.msra.mxu0 0.0
    %3820 = vmatprep.subr.mxu0 0.0
    %3821 = vmatpush1.msra.mxu0 0.0
    %3822 = vmatprep.subr.mxu0 0.0
    %3823 = vmatpush1.msra.mxu0 0.0
    %3824 = vmatprep.subr.mxu0 0.0
    %3825 = vmatpush1.msra.mxu0 0.0
    %3826 = vmatprep.subr.mxu0 0.0
    %3827 = vmatpush1.msra.mxu0 0.0
    %3828 = vmatprep.subr.mxu0 0.0
    %3829 = vmatpush1.msra.mxu0 0.0
    %3830 = vmatprep.subr.mxu0 0.0
    %3831 = vmatpush1.msra.mxu0 0.0
    %3832 = vmatprep.subr.mxu0 0.0
    %3833 = vmatpush1.msra.mxu0 0.0
    %3834 = vmatprep.subr.mxu0 0.0
    %3835 = vmatpush1.msra.mxu0 0.0
    %3836 = vmatprep.subr.mxu0 0.0
    %3837 = vmatpush1.msra.mxu0 0.0
    %3838 = vmatprep.subr.mxu0 0.0
    %3839 = vmatpush1.msra.mxu0 0.0
    %3840 = vmatprep.subr.mxu0 0.0
    %3841 = vmatpush1.msra.mxu0 0.0
    %3842 = vmatprep.subr.mxu0 0.0
    %3843 = vmatpush1.msra.mxu0 0.0
    %3844 = vmatprep.subr.mxu0 0.0
    %3845 = vmatpush1.msra.mxu0 0.0
    %3846 = vmatprep.subr.mxu0 0.0
    %3847 = vmatpush1.msra.mxu0 0.0
    %3848 = vmatprep.subr.mxu0 0.0
    %3849 = vmatpush1.msra.mxu0 0.0
    %3850 = vmatprep.subr.mxu0 0.0
    %3851 = vmatpush1.msra.mxu0 0.0
    %3852 = vmatprep.subr.mxu0 0.0
    %3853 = vmatpush1.msra.mxu0 0.0
    %3854 = vmatprep.subr.mxu0 0.0
    %3855 = vmatpush1.msra.mxu0 0.0
    %3856 = vmatprep.subr.mxu0 0.0
    %3857 = vmatpush1.msra.mxu0 0.0
    %3858 = vmatprep.subr.mxu0 0.0
    %3859 = vmatpush1.msra.mxu0 0.0
    %3860 = vmatprep.subr.mxu0 0.0
    %3861 = vmatpush1.msra.mxu0 0.0
    %3862 = vmatprep.subr.mxu0 0.0
    %3863 = vmatpush1.msra.mxu0 0.0
    %3864 = vmatprep.subr.mxu0 0.0
    %3865 = vmatpush1.msra.mxu0 0.0
    %3866 = vmatprep.subr.mxu0 0.0
    %3867 = vmatpush1.msra.mxu0 0.0
    %3868 = vmatprep.subr.mxu0 0.0
    %3869 = vmatpush1.msra.mxu0 0.0
    %3870 = vmatprep.subr.mxu0 0.0
    %3871 = vmatpush1.msra.mxu0 0.0
    %3872 = vmatprep.mubr.f32.mxu0 0.0
    %3873 = vmatmul.mubr.f32.gmra.mrb[0].mxu0 %v3695
    %v3874 = vpop.f32.mrb[0].mxu0
    %v3875 = vadd.f32 0.0, %v3874
    %v3876 = vpop.f32.mrb[0].mxu0
    %v3877 = vadd.f32 0.0, %v3876
    %3878 = vmatprep.mubr.f32.mxu0 0.0
    %3879 = vmatmul.mubr.f32.gmra.mrb[0].mxu0 %v3698
    %v3880 = vpop.f32.mrb[0].mxu0
    %v3881 = vadd.f32 0.0, %v3880
    %v3882 = vpop.f32.mrb[0].mxu0
    %v3883 = vadd.f32 0.0, %v3882
    %3884 = vmatprep.mubr.f32.mxu0 0.0
    %3885 = vmatmul.mubr.f32.gmra.mrb[0].mxu0 %v3701
    %v3886 = vpop.f32.mrb[0].mxu0
    %v3887 = vadd.f32 0.0, %v3886
    %v3888 = vpop.f32.mrb[0].mxu0
    %v3889 = vadd.f32 0.0, %v3888
    %3890 = vmatprep.mubr.f32.mxu0 0.0
    %3891 = vmatmul.mubr.f32.gmra.mrb[0].mxu0 %v3704
    %v3892 = vpop.f32.mrb[0].mxu0
    %v3893 = vadd.f32 0.0, %v3892
    %v3894 = vpop.f32.mrb[0].mxu0
    %v3895 = vadd.f32 0.0, %v3894
    %3896 = vdwg.mxu0
    %v3897 = vlaneseq
    %v3898 = vand.u32 %v3897, 127
    %v3899 = vld [vmem:[%s2] sm:$0xff]
    %v3900 = vld [vmem:[%s2 + $0x8] sm:$0xff]
    %v3901 = vld [vmem:[%s2 + $0x10] sm:$0xff]
    %v3902 = vld [vmem:[%s2 + $0x18] sm:$0xff]
    %v3903 = vld [vmem:[%s2 + $0x20] sm:$0xff]
    %v3904 = vld [vmem:[%s2 + $0x28] sm:$0xff]
    %v3905 = vld [vmem:[%s2 + $0x30] sm:$0xff]
    %v3906 = vld [vmem:[%s2 + $0x38] sm:$0xff]
    %3907 = vset.pattern.permute.xlu0 0
    %3908 = vperm.xlu0 %3907, %v3899
    %v3909 = vpop.permute.xlu0 %3908
    %3910 = vset.pattern.permute.xlu0 0
    %3911 = vperm.xlu0 %3910, %v3900
    %v3912 = vpop.permute.xlu0 %3911
    %3913 = vset.pattern.permute.xlu0 0
    %3914 = vperm.xlu0 %3913, %v3901
    %v3915 = vpop.permute.xlu0 %3914
    %3916 = vset.pattern.permute.xlu0 0
    %3917 = vperm.xlu0 %3916, %v3902
    %v3918 = vpop.permute.xlu0 %3917
    %3919 = vset.pattern.permute.xlu0 0
    %3920 = vperm.xlu0 %3919, %v3903
    %v3921 = vpop.permute.xlu0 %3920
    %3922 = vset.pattern.permute.xlu0 0
    %3923 = vperm.xlu0 %3922, %v3904
    %v3924 = vpop.permute.xlu0 %3923
    %3925 = vset.pattern.permute.xlu0 0
    %3926 = vperm.xlu0 %3925, %v3905
    %v3927 = vpop.permute.xlu0 %3926
    %3928 = vset.pattern.permute.xlu0 0
    %3929 = vperm.xlu0 %3928, %v3906
    %v3930 = vpop.permute.xlu0 %3929
    %vm3931 = vcmp.eq.s32.totalorder %v3898, %v3909
    %vm3932 = vcmp.eq.s32.totalorder %v3898, %v3912
    %vm3933 = vcmp.eq.s32.totalorder %v3898, %v3915
    %vm3934 = vcmp.eq.s32.totalorder %v3898, %v3918
    %vm3935 = vcmp.eq.s32.totalorder %v3898, %v3921
    %vm3936 = vcmp.eq.s32.totalorder %v3898, %v3924
    %vm3937 = vcmp.eq.s32.totalorder %v3898, %v3927
    %vm3938 = vcmp.eq.s32.totalorder %v3898, %v3930
    %v3939 = vsel %vm3931, 1, 0
    %v3940 = vsel %vm3932, 1, 0
    %v3941 = vsel %vm3933, 1, 0
    %v3942 = vsel %vm3934, 1, 0
    %v3943 = vsel %vm3935, 1, 0
    %v3944 = vsel %vm3936, 1, 0
    %v3945 = vsel %vm3937, 1, 0
    %v3946 = vsel %vm3938, 1, 0
    %v3947 = vcvt.s32.f32 %v3939
    %v3948 = vcvt.s32.f32 %v3940
    %v3949 = vcvt.s32.f32 %v3941
    %v3950 = vcvt.s32.f32 %v3942
    %v3951 = vcvt.s32.f32 %v3943
    %v3952 = vcvt.s32.f32 %v3944
    %v3953 = vcvt.s32.f32 %v3945
    %v3954 = vcvt.s32.f32 %v3946
    %v3955 = vld [vmem:[%s13] sm:$0xf]
    %v3957 = vlaneseq
    %v3958 = vshrl.u32 %v3957, 7
    %v3959 = vsub.s32 0, %v3958
    %v3960 = vrot.slane %v3955, %v3959
    %v3961 = vlaneseq
    %v3962 = vshrl.u32 %v3961, 7
    %v3963 = vsub.s32 1, %v3962
    %v3964 = vrot.slane %v3955, %v3963
    %v3965 = vlaneseq
    %v3966 = vshrl.u32 %v3965, 7
    %v3967 = vsub.s32 2, %v3966
    %v3968 = vrot.slane %v3955, %v3967
    %v3969 = vlaneseq
    %v3970 = vshrl.u32 %v3969, 7
    %v3971 = vsub.s32 3, %v3970
    %v3972 = vrot.slane %v3955, %v3971
    %v3978 = vsel %vm3693, %v3947, 0
    %v3981 = vsel %vm3693, %v3948, 0
    %v3984 = vsel %vm3693, %v3949, 0
    %v3987 = vsel %vm3693, %v3950, 0
    %v3990 = vsel %vm3693, %v3951, 0
    %v3993 = vsel %vm3693, %v3952, 0
    %v3996 = vsel %vm3693, %v3953, 0
    %v3999 = vsel %vm3693, %v3954, 0
    %v4002 = vsel %vm3706, %v3804, 0
    %v4005 = vsel %vm3706, %v3806, 0
    %v4008 = vsel %vm3706, %v3893, 0
    %v4011 = vsel %vm3706, %v3895, 0
    %4013 = vmatprep.subr.mxu0 %v3788
    %4014 = vmatpush1.msra.mxu0 %v3786
    %4015 = vmatprep.subr.mxu0 %v3794
    %4016 = vmatpush1.msra.mxu0 %v3792
    %4017 = vmatprep.subr.mxu0 %v3800
    %4018 = vmatpush1.msra.mxu0 %v3798
    %4019 = vmatprep.subr.mxu0 %v4005
    %4020 = vmatpush1.msra.mxu0 %v4002
    %4021 = vmatprep.subr.mxu0 0.0
    %4022 = vmatpush1.msra.mxu0 0.0
    %4023 = vmatprep.subr.mxu0 0.0
    %4024 = vmatpush1.msra.mxu0 0.0
    %4025 = vmatprep.subr.mxu0 0.0
    %4026 = vmatpush1.msra.mxu0 0.0
    %4027 = vmatprep.subr.mxu0 0.0
    %4028 = vmatpush1.msra.mxu0 0.0
    %4029 = vmatprep.subr.mxu0 0.0
    %4030 = vmatpush1.msra.mxu0 0.0
    %4031 = vmatprep.subr.mxu0 0.0
    %4032 = vmatpush1.msra.mxu0 0.0
    %4033 = vmatprep.subr.mxu0 0.0
    %4034 = vmatpush1.msra.mxu0 0.0
    %4035 = vmatprep.subr.mxu0 0.0
    %4036 = vmatpush1.msra.mxu0 0.0
    %4037 = vmatprep.subr.mxu0 0.0
    %4038 = vmatpush1.msra.mxu0 0.0
    %4039 = vmatprep.subr.mxu0 0.0
    %4040 = vmatpush1.msra.mxu0 0.0
    %4041 = vmatprep.subr.mxu0 0.0
    %4042 = vmatpush1.msra.mxu0 0.0
    %4043 = vmatprep.subr.mxu0 0.0
    %4044 = vmatpush1.msra.mxu0 0.0
    %4045 = vmatprep.subr.mxu0 0.0
    %4046 = vmatpush1.msra.mxu0 0.0
    %4047 = vmatprep.subr.mxu0 0.0
    %4048 = vmatpush1.msra.mxu0 0.0
    %4049 = vmatprep.subr.mxu0 0.0
    %4050 = vmatpush1.msra.mxu0 0.0
    %4051 = vmatprep.subr.mxu0 0.0
    %4052 = vmatpush1.msra.mxu0 0.0
    %4053 = vmatprep.subr.mxu0 0.0
    %4054 = vmatpush1.msra.mxu0 0.0
    %4055 = vmatprep.subr.mxu0 0.0
    %4056 = vmatpush1.msra.mxu0 0.0
    %4057 = vmatprep.subr.mxu0 0.0
    %4058 = vmatpush1.msra.mxu0 0.0
    %4059 = vmatprep.subr.mxu0 0.0
    %4060 = vmatpush1.msra.mxu0 0.0
    %4061 = vmatprep.subr.mxu0 0.0
    %4062 = vmatpush1.msra.mxu0 0.0
    %4063 = vmatprep.subr.mxu0 0.0
    %4064 = vmatpush1.msra.mxu0 0.0
    %4065 = vmatprep.subr.mxu0 0.0
    %4066 = vmatpush1.msra.mxu0 0.0
    %4067 = vmatprep.subr.mxu0 0.0
    %4068 = vmatpush1.msra.mxu0 0.0
    %4069 = vmatprep.subr.mxu0 0.0
    %4070 = vmatpush1.msra.mxu0 0.0
    %4071 = vmatprep.subr.mxu0 0.0
    %4072 = vmatpush1.msra.mxu0 0.0
    %4073 = vmatprep.subr.mxu0 0.0
    %4074 = vmatpush1.msra.mxu0 0.0
    %4075 = vmatprep.subr.mxu0 0.0
    %4076 = vmatpush1.msra.mxu0 0.0
    %4077 = vmatprep.mubr.f32.mxu0 0.0
    %4078 = vmatmul.mubr.f32.gmra.mrb[0].mxu0 %v3978
    %v4079 = vpop.f32.mrb[0].mxu0
    %v4080 = vadd.f32 %v3960, %v4079
    %v4081 = vpop.f32.mrb[0].mxu0
    %v4082 = vadd.f32 %v3964, %v4081
    %4083 = vmatprep.mubr.f32.mxu0 0.0
    %4084 = vmatmul.mubr.f32.gmra.mrb[0].mxu0 %v3981
    %v4085 = vpop.f32.mrb[0].mxu0
    %v4086 = vadd.f32 %v3960, %v4085
    %v4087 = vpop.f32.mrb[0].mxu0
    %v4088 = vadd.f32 %v3964, %v4087
    %4089 = vmatprep.mubr.f32.mxu0 0.0
    %4090 = vmatmul.mubr.f32.gmra.mrb[0].mxu0 %v3984
    %v4091 = vpop.f32.mrb[0].mxu0
    %v4092 = vadd.f32 %v3960, %v4091
    %v4093 = vpop.f32.mrb[0].mxu0
    %v4094 = vadd.f32 %v3964, %v4093
    %4095 = vmatprep.mubr.f32.mxu0 0.0
    %4096 = vmatmul.mubr.f32.gmra.mrb[0].mxu0 %v3987
    %v4097 = vpop.f32.mrb[0].mxu0
    %v4098 = vadd.f32 %v3960, %v4097
    %v4099 = vpop.f32.mrb[0].mxu0
    %v4100 = vadd.f32 %v3964, %v4099
    %4101 = vmatprep.mubr.f32.mxu0 0.0
    %4102 = vmatmul.mubr.f32.gmra.mrb[0].mxu0 %v3990
    %v4103 = vpop.f32.mrb[0].mxu0
    %v4104 = vadd.f32 %v3960, %v4103
    %v4105 = vpop.f32.mrb[0].mxu0
    %v4106 = vadd.f32 %v3964, %v4105
    %4107 = vmatprep.mubr.f32.mxu0 0.0
    %4108 = vmatmul.mubr.f32.gmra.mrb[0].mxu0 %v3993
    %v4109 = vpop.f32.mrb[0].mxu0
    %v4110 = vadd.f32 %v3960, %v4109
    %v4111 = vpop.f32.mrb[0].mxu0
    %v4112 = vadd.f32 %v3964, %v4111
    %4113 = vmatprep.mubr.f32.mxu0 0.0
    %4114 = vmatmul.mubr.f32.gmra.mrb[0].mxu0 %v3996
    %v4115 = vpop.f32.mrb[0].mxu0
    %v4116 = vadd.f32 %v3960, %v4115
    %v4117 = vpop.f32.mrb[0].mxu0
    %v4118 = vadd.f32 %v3964, %v4117
    %4119 = vmatprep.mubr.f32.mxu0 0.0
    %4120 = vmatmul.mubr.f32.gmra.mrb[0].mxu0 %v3999
    %v4121 = vpop.f32.mrb[0].mxu0
    %v4122 = vadd.f32 %v3960, %v4121
    %v4123 = vpop.f32.mrb[0].mxu0
    %v4124 = vadd.f32 %v3964, %v4123
    %4125 = vdwg.mxu0
    %4126 = vmatprep.subr.mxu0 %v3877
    %4127 = vmatpush1.msra.mxu0 %v3875
    %4128 = vmatprep.subr.mxu0 %v3883
    %4129 = vmatpush1.msra.mxu0 %v3881
    %4130 = vmatprep.subr.mxu0 %v3889
    %4131 = vmatpush1.msra.mxu0 %v3887
    %4132 = vmatprep.subr.mxu0 %v4011
    %4133 = vmatpush1.msra.mxu0 %v4008
    %4134 = vmatprep.subr.mxu0 0.0
    %4135 = vmatpush1.msra.mxu0 0.0
    %4136 = vmatprep.subr.mxu0 0.0
    %4137 = vmatpush1.msra.mxu0 0.0
    %4138 = vmatprep.subr.mxu0 0.0
    %4139 = vmatpush1.msra.mxu0 0.0
    %4140 = vmatprep.subr.mxu0 0.0
    %4141 = vmatpush1.msra.mxu0 0.0
    %4142 = vmatprep.subr.mxu0 0.0
    %4143 = vmatpush1.msra.mxu0 0.0
    %4144 = vmatprep.subr.mxu0 0.0
    %4145 = vmatpush1.msra.mxu0 0.0
    %4146 = vmatprep.subr.mxu0 0.0
    %4147 = vmatpush1.msra.mxu0 0.0
    %4148 = vmatprep.subr.mxu0 0.0
    %4149 = vmatpush1.msra.mxu0 0.0
    %4150 = vmatprep.subr.mxu0 0.0
    %4151 = vmatpush1.msra.mxu0 0.0
    %4152 = vmatprep.subr.mxu0 0.0
    %4153 = vmatpush1.msra.mxu0 0.0
    %4154 = vmatprep.subr.mxu0 0.0
    %4155 = vmatpush1.msra.mxu0 0.0
    %4156 = vmatprep.subr.mxu0 0.0
    %4157 = vmatpush1.msra.mxu0 0.0
    %4158 = vmatprep.subr.mxu0 0.0
    %4159 = vmatpush1.msra.mxu0 0.0
    %4160 = vmatprep.subr.mxu0 0.0
    %4161 = vmatpush1.msra.mxu0 0.0
    %4162 = vmatprep.subr.mxu0 0.0
    %4163 = vmatpush1.msra.mxu0 0.0
    %4164 = vmatprep.subr.mxu0 0.0
    %4165 = vmatpush1.msra.mxu0 0.0
    %4166 = vmatprep.subr.mxu0 0.0
    %4167 = vmatpush1.msra.mxu0 0.0
    %4168 = vmatprep.subr.mxu0 0.0
    %4169 = vmatpush1.msra.mxu0 0.0
    %4170 = vmatprep.subr.mxu0 0.0
    %4171 = vmatpush1.msra.mxu0 0.0
    %4172 = vmatprep.subr.mxu0 0.0
    %4173 = vmatpush1.msra.mxu0 0.0
    %4174 = vmatprep.subr.mxu0 0.0
    %4175 = vmatpush1.msra.mxu0 0.0
    %4176 = vmatprep.subr.mxu0 0.0
    %4177 = vmatpush1.msra.mxu0 0.0
    %4178 = vmatprep.subr.mxu0 0.0
    %4179 = vmatpush1.msra.mxu0 0.0
    %4180 = vmatprep.subr.mxu0 0.0
    %4181 = vmatpush1.msra.mxu0 0.0
    %4182 = vmatprep.subr.mxu0 0.0
    %4183 = vmatpush1.msra.mxu0 0.0
    %4184 = vmatprep.subr.mxu0 0.0
    %4185 = vmatpush1.msra.mxu0 0.0
    %4186 = vmatprep.subr.mxu0 0.0
    %4187 = vmatpush1.msra.mxu0 0.0
    %4188 = vmatprep.subr.mxu0 0.0
    %4189 = vmatpush1.msra.mxu0 0.0
    %4190 = vmatprep.mubr.f32.mxu0 0.0
    %4191 = vmatmul.mubr.f32.gmra.mrb[0].mxu0 %v3978
    %v4192 = vpop.f32.mrb[0].mxu0
    %v4193 = vadd.f32 %v3968, %v4192
    %v4194 = vpop.f32.mrb[0].mxu0
    %v4195 = vadd.f32 %v3972, %v4194
    %4196 = vmatprep.mubr.f32.mxu0 0.0
    %4197 = vmatmul.mubr.f32.gmra.mrb[0].mxu0 %v3981
    %v4198 = vpop.f32.mrb[0].mxu0
    %v4199 = vadd.f32 %v3968, %v4198
    %v4200 = vpop.f32.mrb[0].mxu0
    %v4201 = vadd.f32 %v3972, %v4200
    %4202 = vmatprep.mubr.f32.mxu0 0.0
    %4203 = vmatmul.mubr.f32.gmra.mrb[0].mxu0 %v3984
    %v4204 = vpop.f32.mrb[0].mxu0
    %v4205 = vadd.f32 %v3968, %v4204
    %v4206 = vpop.f32.mrb[0].mxu0
    %v4207 = vadd.f32 %v3972, %v4206
    %4208 = vmatprep.mubr.f32.mxu0 0.0
    %4209 = vmatmul.mubr.f32.gmra.mrb[0].mxu0 %v3987
    %v4210 = vpop.f32.mrb[0].mxu0
    %v4211 = vadd.f32 %v3968, %v4210
    %v4212 = vpop.f32.mrb[0].mxu0
    %v4213 = vadd.f32 %v3972, %v4212
    %4214 = vmatprep.mubr.f32.mxu0 0.0
    %4215 = vmatmul.mubr.f32.gmra.mrb[0].mxu0 %v3990
    %v4216 = vpop.f32.mrb[0].mxu0
    %v4217 = vadd.f32 %v3968, %v4216
    %v4218 = vpop.f32.mrb[0].mxu0
    %v4219 = vadd.f32 %v3972, %v4218
    %4220 = vmatprep.mubr.f32.mxu0 0.0
    %4221 = vmatmul.mubr.f32.gmra.mrb[0].mxu0 %v3993
    %v4222 = vpop.f32.mrb[0].mxu0
    %v4223 = vadd.f32 %v3968, %v4222
    %v4224 = vpop.f32.mrb[0].mxu0
    %v4225 = vadd.f32 %v3972, %v4224
    %4226 = vmatprep.mubr.f32.mxu0 0.0
    %4227 = vmatmul.mubr.f32.gmra.mrb[0].mxu0 %v3996
    %v4228 = vpop.f32.mrb[0].mxu0
    %v4229 = vadd.f32 %v3968, %v4228
    %v4230 = vpop.f32.mrb[0].mxu0
    %v4231 = vadd.f32 %v3972, %v4230
    %4232 = vmatprep.mubr.f32.mxu0 0.0
    %4233 = vmatmul.mubr.f32.gmra.mrb[0].mxu0 %v3999
    %v4234 = vpop.f32.mrb[0].mxu0
    %v4235 = vadd.f32 %v3968, %v4234
    %v4236 = vpop.f32.mrb[0].mxu0
    %v4237 = vadd.f32 %v3972, %v4236
    %4238 = vdwg.mxu0
    %4239 = vst [vmem:[#allocation3] sm:$0xff] %v4080
    %4240 = vst [vmem:[#allocation3 + $0x8] sm:$0xff] %v4082
    %4241 = vst [vmem:[#allocation3 + $0x10] sm:$0xff] %v4193
    %4242 = vst [vmem:[#allocation3 + $0x18] sm:$0xff] %v4195
    %4243 = vst [vmem:[#allocation3 + $0x20] sm:$0xff] %v4086
    %4244 = vst [vmem:[#allocation3 + $0x28] sm:$0xff] %v4088
    %4245 = vst [vmem:[#allocation3 + $0x30] sm:$0xff] %v4199
    %4246 = vst [vmem:[#allocation3 + $0x38] sm:$0xff] %v4201
    %4247 = vst [vmem:[#allocation3 + $0x40] sm:$0xff] %v4092
    %4248 = vst [vmem:[#allocation3 + $0x48] sm:$0xff] %v4094
    %4249 = vst [vmem:[#allocation3 + $0x50] sm:$0xff] %v4205
    %4250 = vst [vmem:[#allocation3 + $0x58] sm:$0xff] %v4207
    %4251 = vst [vmem:[#allocation3 + $0x60] sm:$0xff] %v4098
    %4252 = vst [vmem:[#allocation3 + $0x68] sm:$0xff] %v4100
    %4253 = vst [vmem:[#allocation3 + $0x70] sm:$0xff] %v4211
    %4254 = vst [vmem:[#allocation3 + $0x78] sm:$0xff] %v4213
    %4255 = vst [vmem:[#allocation3 + $0x80] sm:$0xff] %v4104
    %4256 = vst [vmem:[#allocation3 + $0x88] sm:$0xff] %v4106
    %4257 = vst [vmem:[#allocation3 + $0x90] sm:$0xff] %v4217
    %4258 = vst [vmem:[#allocation3 + $0x98] sm:$0xff] %v4219
    %4259 = vst [vmem:[#allocation3 + $0xa0] sm:$0xff] %v4110
    %4260 = vst [vmem:[#allocation3 + $0xa8] sm:$0xff] %v4112
    %4261 = vst [vmem:[#allocation3 + $0xb0] sm:$0xff] %v4223
    %4262 = vst [vmem:[#allocation3 + $0xb8] sm:$0xff] %v4225
    %4263 = vst [vmem:[#allocation3 + $0xc0] sm:$0xff] %v4116
    %4264 = vst [vmem:[#allocation3 + $0xc8] sm:$0xff] %v4118
    %4265 = vst [vmem:[#allocation3 + $0xd0] sm:$0xff] %v4229
    %4266 = vst [vmem:[#allocation3 + $0xd8] sm:$0xff] %v4231
    %4267 = vst [vmem:[#allocation3 + $0xe0] sm:$0xff] %v4122
    %4268 = vst [vmem:[#allocation3 + $0xe8] sm:$0xff] %v4124
    %4269 = vst [vmem:[#allocation3 + $0xf0] sm:$0xff] %v4235
    %4270 = vst [vmem:[#allocation3 + $0xf8] sm:$0xff] %v4237
    %v4271 = vld [vmem:[#allocation10] sm:$0xff]
    %v4272 = vld [vmem:[#allocation10 + $0x8] sm:$0xff]
    %v4273 = vld [vmem:[#allocation10 + $0x10] sm:$0xff]
    %v4274 = vld [vmem:[#allocation10 + $0x18] sm:$0xff]
    %v4275 = vld [vmem:[#allocation10 + $0x20] sm:$0xff]
    %v4276 = vld [vmem:[#allocation10 + $0x28] sm:$0xff]
    %v4277 = vld [vmem:[#allocation10 + $0x30] sm:$0xff]
    %v4278 = vld [vmem:[#allocation10 + $0x38] sm:$0xff]
    %v4279 = vld [vmem:[#allocation10 + $0x40] sm:$0xff]
    %v4280 = vld [vmem:[#allocation10 + $0x48] sm:$0xff]
    %v4281 = vld [vmem:[#allocation10 + $0x50] sm:$0xff]
    %v4282 = vld [vmem:[#allocation10 + $0x58] sm:$0xff]
    %v4283 = vld [vmem:[#allocation10 + $0x60] sm:$0xff]
    %v4284 = vld [vmem:[#allocation10 + $0x68] sm:$0xff]
    %v4285 = vld [vmem:[#allocation10 + $0x70] sm:$0xff]
    %v4286 = vld [vmem:[#allocation10 + $0x78] sm:$0xff]
    %v4287 = vld [vmem:[#allocation10 + $0x80] sm:$0xff]
    %v4288 = vld [vmem:[#allocation10 + $0x88] sm:$0xff]
    %v4289 = vld [vmem:[#allocation10 + $0x90] sm:$0xff]
    %v4290 = vld [vmem:[#allocation10 + $0x98] sm:$0xff]
    %v4291 = vld [vmem:[#allocation10 + $0xa0] sm:$0xff]
    %v4292 = vld [vmem:[#allocation10 + $0xa8] sm:$0xff]
    %v4293 = vld [vmem:[#allocation10 + $0xb0] sm:$0xff]
    %v4294 = vld [vmem:[#allocation10 + $0xb8] sm:$0xff]
    %v4295 = vld [vmem:[#allocation10 + $0xc0] sm:$0xff]
    %v4296 = vld [vmem:[#allocation10 + $0xc8] sm:$0xff]
    %v4297 = vld [vmem:[#allocation10 + $0xd0] sm:$0xff]
    %v4298 = vld [vmem:[#allocation10 + $0xd8] sm:$0xff]
    %v4299 = vld [vmem:[#allocation10 + $0xe0] sm:$0xff]
    %v4300 = vld [vmem:[#allocation10 + $0xe8] sm:$0xff]
    %v4301 = vld [vmem:[#allocation10 + $0xf0] sm:$0xff]
    %v4302 = vld [vmem:[#allocation10 + $0xf8] sm:$0xff]
    %v4303 = vld [vmem:[#allocation10 + $0x100] sm:$0xff]
    %v4304 = vld [vmem:[#allocation10 + $0x108] sm:$0xff]
    %v4305 = vld [vmem:[#allocation10 + $0x110] sm:$0xff]
    %v4306 = vld [vmem:[#allocation10 + $0x118] sm:$0xff]
    %v4307 = vld [vmem:[#allocation10 + $0x120] sm:$0xff]
    %v4308 = vld [vmem:[#allocation10 + $0x128] sm:$0xff]
    %v4309 = vld [vmem:[#allocation10 + $0x130] sm:$0xff]
    %v4310 = vld [vmem:[#allocation10 + $0x138] sm:$0xff]
    %v4311 = vld [vmem:[#allocation10 + $0x140] sm:$0xff]
    %v4312 = vld [vmem:[#allocation10 + $0x148] sm:$0xff]
    %v4313 = vld [vmem:[#allocation10 + $0x150] sm:$0xff]
    %v4314 = vld [vmem:[#allocation10 + $0x158] sm:$0xff]
    %v4315 = vld [vmem:[#allocation10 + $0x160] sm:$0xff]
    %v4316 = vld [vmem:[#allocation10 + $0x168] sm:$0xff]
    %v4317 = vld [vmem:[#allocation10 + $0x170] sm:$0xff]
    %v4318 = vld [vmem:[#allocation10 + $0x178] sm:$0xff]
    %v4319 = vld [vmem:[#allocation10 + $0x180] sm:$0xff]
    %v4320 = vld [vmem:[#allocation10 + $0x188] sm:$0xff]
    %v4321 = vld [vmem:[#allocation10 + $0x190] sm:$0xff]
    %v4322 = vld [vmem:[#allocation10 + $0x198] sm:$0xff]
    %v4323 = vld [vmem:[#allocation10 + $0x1a0] sm:$0xff]
    %v4324 = vld [vmem:[#allocation10 + $0x1a8] sm:$0xff]
    %v4325 = vld [vmem:[#allocation10 + $0x1b0] sm:$0xff]
    %v4326 = vld [vmem:[#allocation10 + $0x1b8] sm:$0xff]
    %v4327 = vld [vmem:[#allocation10 + $0x1c0] sm:$0xff]
    %v4328 = vld [vmem:[#allocation10 + $0x1c8] sm:$0xff]
    %v4329 = vld [vmem:[#allocation10 + $0x1d0] sm:$0xff]
    %v4330 = vld [vmem:[#allocation10 + $0x1d8] sm:$0xff]
    %v4331 = vld [vmem:[#allocation10 + $0x1e0] sm:$0xff]
    %v4332 = vld [vmem:[#allocation10 + $0x1e8] sm:$0xff]
    %v4333 = vld [vmem:[#allocation10 + $0x1f0] sm:$0xff]
    %v4334 = vld [vmem:[#allocation10 + $0x1f8] sm:$0xff]
    %v4335 = vld [vmem:[#allocation12] sm:$0xff]
    %v4336 = vld [vmem:[#allocation12 + $0x8] sm:$0xff]
    %v4337 = vld [vmem:[#allocation12 + $0x10] sm:$0xff]
    %v4338 = vld [vmem:[#allocation12 + $0x18] sm:$0xff]
    %v4339 = vld [vmem:[#allocation12 + $0x20] sm:$0xff]
    %v4340 = vld [vmem:[#allocation12 + $0x28] sm:$0xff]
    %v4341 = vld [vmem:[#allocation12 + $0x30] sm:$0xff]
    %v4342 = vld [vmem:[#allocation12 + $0x38] sm:$0xff]
    %v4343 = vld [vmem:[#allocation12 + $0x40] sm:$0xff]
    %v4344 = vld [vmem:[#allocation12 + $0x48] sm:$0xff]
    %v4345 = vld [vmem:[#allocation12 + $0x50] sm:$0xff]
    %v4346 = vld [vmem:[#allocation12 + $0x58] sm:$0xff]
    %v4347 = vld [vmem:[#allocation12 + $0x60] sm:$0xff]
    %v4348 = vld [vmem:[#allocation12 + $0x68] sm:$0xff]
    %v4349 = vld [vmem:[#allocation12 + $0x70] sm:$0xff]
    %v4350 = vld [vmem:[#allocation12 + $0x78] sm:$0xff]
    %v4351 = vld [vmem:[#allocation12 + $0x80] sm:$0xff]
    %v4352 = vld [vmem:[#allocation12 + $0x88] sm:$0xff]
    %v4353 = vld [vmem:[#allocation12 + $0x90] sm:$0xff]
    %v4354 = vld [vmem:[#allocation12 + $0x98] sm:$0xff]
    %v4355 = vld [vmem:[#allocation12 + $0xa0] sm:$0xff]
    %v4356 = vld [vmem:[#allocation12 + $0xa8] sm:$0xff]
    %v4357 = vld [vmem:[#allocation12 + $0xb0] sm:$0xff]
    %v4358 = vld [vmem:[#allocation12 + $0xb8] sm:$0xff]
    %v4359 = vld [vmem:[#allocation12 + $0xc0] sm:$0xff]
    %v4360 = vld [vmem:[#allocation12 + $0xc8] sm:$0xff]
    %v4361 = vld [vmem:[#allocation12 + $0xd0] sm:$0xff]
    %v4362 = vld [vmem:[#allocation12 + $0xd8] sm:$0xff]
    %v4363 = vld [vmem:[#allocation12 + $0xe0] sm:$0xff]
    %v4364 = vld [vmem:[#allocation12 + $0xe8] sm:$0xff]
    %v4365 = vld [vmem:[#allocation12 + $0xf0] sm:$0xff]
    %v4366 = vld [vmem:[#allocation12 + $0xf8] sm:$0xff]
    %v4367 = vld [vmem:[#allocation12 + $0x100] sm:$0xff]
    %v4368 = vld [vmem:[#allocation12 + $0x108] sm:$0xff]
    %v4369 = vld [vmem:[#allocation12 + $0x110] sm:$0xff]
    %v4370 = vld [vmem:[#allocation12 + $0x118] sm:$0xff]
    %v4371 = vld [vmem:[#allocation12 + $0x120] sm:$0xff]
    %v4372 = vld [vmem:[#allocation12 + $0x128] sm:$0xff]
    %v4373 = vld [vmem:[#allocation12 + $0x130] sm:$0xff]
    %v4374 = vld [vmem:[#allocation12 + $0x138] sm:$0xff]
    %v4375 = vld [vmem:[#allocation12 + $0x140] sm:$0xff]
    %v4376 = vld [vmem:[#allocation12 + $0x148] sm:$0xff]
    %v4377 = vld [vmem:[#allocation12 + $0x150] sm:$0xff]
    %v4378 = vld [vmem:[#allocation12 + $0x158] sm:$0xff]
    %v4379 = vld [vmem:[#allocation12 + $0x160] sm:$0xff]
    %v4380 = vld [vmem:[#allocation12 + $0x168] sm:$0xff]
    %v4381 = vld [vmem:[#allocation12 + $0x170] sm:$0xff]
    %v4382 = vld [vmem:[#allocation12 + $0x178] sm:$0xff]
    %v4383 = vld [vmem:[#allocation12 + $0x180] sm:$0xff]
    %v4384 = vld [vmem:[#allocation12 + $0x188] sm:$0xff]
    %v4385 = vld [vmem:[#allocation12 + $0x190] sm:$0xff]
    %v4386 = vld [vmem:[#allocation12 + $0x198] sm:$0xff]
    %v4387 = vld [vmem:[#allocation12 + $0x1a0] sm:$0xff]
    %v4388 = vld [vmem:[#allocation12 + $0x1a8] sm:$0xff]
    %v4389 = vld [vmem:[#allocation12 + $0x1b0] sm:$0xff]
    %v4390 = vld [vmem:[#allocation12 + $0x1b8] sm:$0xff]
    %v4391 = vld [vmem:[#allocation12 + $0x1c0] sm:$0xff]
    %v4392 = vld [vmem:[#allocation12 + $0x1c8] sm:$0xff]
    %v4393 = vld [vmem:[#allocation12 + $0x1d0] sm:$0xff]
    %v4394 = vld [vmem:[#allocation12 + $0x1d8] sm:$0xff]
    %v4395 = vld [vmem:[#allocation12 + $0x1e0] sm:$0xff]
    %v4396 = vld [vmem:[#allocation12 + $0x1e8] sm:$0xff]
    %v4397 = vld [vmem:[#allocation12 + $0x1f0] sm:$0xff]
    %v4398 = vld [vmem:[#allocation12 + $0x1f8] sm:$0xff]
    %v4399 = vld [vmem:[#allocation12 + $0x200] sm:$0xff]
    %v4400 = vld [vmem:[#allocation12 + $0x208] sm:$0xff]
    %v4401 = vld [vmem:[#allocation12 + $0x210] sm:$0xff]
    %v4402 = vld [vmem:[#allocation12 + $0x218] sm:$0xff]
    %v4403 = vld [vmem:[#allocation12 + $0x220] sm:$0xff]
    %v4404 = vld [vmem:[#allocation12 + $0x228] sm:$0xff]
    %v4405 = vld [vmem:[#allocation12 + $0x230] sm:$0xff]
    %v4406 = vld [vmem:[#allocation12 + $0x238] sm:$0xff]
    %v4407 = vld [vmem:[#allocation12 + $0x240] sm:$0xff]
    %v4408 = vld [vmem:[#allocation12 + $0x248] sm:$0xff]
    %v4409 = vld [vmem:[#allocation12 + $0x250] sm:$0xff]
    %v4410 = vld [vmem:[#allocation12 + $0x258] sm:$0xff]
    %v4411 = vld [vmem:[#allocation12 + $0x260] sm:$0xff]
    %v4412 = vld [vmem:[#allocation12 + $0x268] sm:$0xff]
    %v4413 = vld [vmem:[#allocation12 + $0x270] sm:$0xff]
    %v4414 = vld [vmem:[#allocation12 + $0x278] sm:$0xff]
    %v4415 = vld [vmem:[#allocation12 + $0x280] sm:$0xff]
    %v4416 = vld [vmem:[#allocation12 + $0x288] sm:$0xff]
    %v4417 = vld [vmem:[#allocation12 + $0x290] sm:$0xff]
    %v4418 = vld [vmem:[#allocation12 + $0x298] sm:$0xff]
    %v4419 = vld [vmem:[#allocation12 + $0x2a0] sm:$0xff]
    %v4420 = vld [vmem:[#allocation12 + $0x2a8] sm:$0xff]
    %v4421 = vld [vmem:[#allocation12 + $0x2b0] sm:$0xff]
    %v4422 = vld [vmem:[#allocation12 + $0x2b8] sm:$0xff]
    %v4423 = vld [vmem:[#allocation12 + $0x2c0] sm:$0xff]
    %v4424 = vld [vmem:[#allocation12 + $0x2c8] sm:$0xff]
    %v4425 = vld [vmem:[#allocation12 + $0x2d0] sm:$0xff]
    %v4426 = vld [vmem:[#allocation12 + $0x2d8] sm:$0xff]
    %v4427 = vld [vmem:[#allocation12 + $0x2e0] sm:$0xff]
    %v4428 = vld [vmem:[#allocation12 + $0x2e8] sm:$0xff]
    %v4429 = vld [vmem:[#allocation12 + $0x2f0] sm:$0xff]
    %v4430 = vld [vmem:[#allocation12 + $0x2f8] sm:$0xff]
    %v4431 = vld [vmem:[#allocation12 + $0x300] sm:$0xff]
    %v4432 = vld [vmem:[#allocation12 + $0x308] sm:$0xff]
    %v4433 = vld [vmem:[#allocation12 + $0x310] sm:$0xff]
    %v4434 = vld [vmem:[#allocation12 + $0x318] sm:$0xff]
    %v4435 = vld [vmem:[#allocation12 + $0x320] sm:$0xff]
    %v4436 = vld [vmem:[#allocation12 + $0x328] sm:$0xff]
    %v4437 = vld [vmem:[#allocation12 + $0x330] sm:$0xff]
    %v4438 = vld [vmem:[#allocation12 + $0x338] sm:$0xff]
    %v4439 = vld [vmem:[#allocation12 + $0x340] sm:$0xff]
    %v4440 = vld [vmem:[#allocation12 + $0x348] sm:$0xff]
    %v4441 = vld [vmem:[#allocation12 + $0x350] sm:$0xff]
    %v4442 = vld [vmem:[#allocation12 + $0x358] sm:$0xff]
    %v4443 = vld [vmem:[#allocation12 + $0x360] sm:$0xff]
    %v4444 = vld [vmem:[#allocation12 + $0x368] sm:$0xff]
    %v4445 = vld [vmem:[#allocation12 + $0x370] sm:$0xff]
    %v4446 = vld [vmem:[#allocation12 + $0x378] sm:$0xff]
    %v4447 = vld [vmem:[#allocation12 + $0x380] sm:$0xff]
    %v4448 = vld [vmem:[#allocation12 + $0x388] sm:$0xff]
    %v4449 = vld [vmem:[#allocation12 + $0x390] sm:$0xff]
    %v4450 = vld [vmem:[#allocation12 + $0x398] sm:$0xff]
    %v4451 = vld [vmem:[#allocation12 + $0x3a0] sm:$0xff]
    %v4452 = vld [vmem:[#allocation12 + $0x3a8] sm:$0xff]
    %v4453 = vld [vmem:[#allocation12 + $0x3b0] sm:$0xff]
    %v4454 = vld [vmem:[#allocation12 + $0x3b8] sm:$0xff]
    %v4455 = vld [vmem:[#allocation12 + $0x3c0] sm:$0xff]
    %v4456 = vld [vmem:[#allocation12 + $0x3c8] sm:$0xff]
    %v4457 = vld [vmem:[#allocation12 + $0x3d0] sm:$0xff]
    %v4458 = vld [vmem:[#allocation12 + $0x3d8] sm:$0xff]
    %v4459 = vld [vmem:[#allocation12 + $0x3e0] sm:$0xff]
    %v4460 = vld [vmem:[#allocation12 + $0x3e8] sm:$0xff]
    %v4461 = vld [vmem:[#allocation12 + $0x3f0] sm:$0xff]
    %v4462 = vld [vmem:[#allocation12 + $0x3f8] sm:$0xff]
    %v4463 = vld [vmem:[%s15] sm:$0xf]
    %v4465 = vlaneseq
    %v4466 = vshrl.u32 %v4465, 7
    %v4467 = vsub.s32 0, %v4466
    %v4468 = vrot.slane %v4463, %v4467
    %v4469 = vlaneseq
    %v4470 = vshrl.u32 %v4469, 7
    %v4471 = vsub.s32 1, %v4470
    %v4472 = vrot.slane %v4463, %v4471
    %v4473 = vlaneseq
    %v4474 = vshrl.u32 %v4473, 7
    %v4475 = vsub.s32 2, %v4474
    %v4476 = vrot.slane %v4463, %v4475
    %v4477 = vlaneseq
    %v4478 = vshrl.u32 %v4477, 7
    %v4479 = vsub.s32 3, %v4478
    %v4480 = vrot.slane %v4463, %v4479
    %v4485 = vld [vmem:[#allocation3] sm:$0xff]
    %v4486 = vld [vmem:[#allocation3 + $0x8] sm:$0xff]
    %v4487 = vld [vmem:[#allocation3 + $0x10] sm:$0xff]
    %v4488 = vld [vmem:[#allocation3 + $0x18] sm:$0xff]
    %4489 = vmatprep.subr.mxu0 %v4272
    %4490 = vmatpush1.msra.mxu0 %v4271
    %4491 = vmatprep.subr.mxu0 %v4276
    %4492 = vmatpush1.msra.mxu0 %v4275
    %4493 = vmatprep.subr.mxu0 %v4280
    %4494 = vmatpush1.msra.mxu0 %v4279
    %4495 = vmatprep.subr.mxu0 %v4284
    %4496 = vmatpush1.msra.mxu0 %v4283
    %4497 = vmatprep.subr.mxu0 %v4288
    %4498 = vmatpush1.msra.mxu0 %v4287
    %4499 = vmatprep.subr.mxu0 %v4292
    %4500 = vmatpush1.msra.mxu0 %v4291
    %4501 = vmatprep.subr.mxu0 %v4296
    %4502 = vmatpush1.msra.mxu0 %v4295
    %4503 = vmatprep.subr.mxu0 %v4300
    %4504 = vmatpush1.msra.mxu0 %v4299
    %4505 = vmatprep.subr.mxu0 %v4304
    %4506 = vmatpush1.msra.mxu0 %v4303
    %4507 = vmatprep.subr.mxu0 %v4308
    %4508 = vmatpush1.msra.mxu0 %v4307
    %4509 = vmatprep.subr.mxu0 %v4312
    %4510 = vmatpush1.msra.mxu0 %v4311
    %4511 = vmatprep.subr.mxu0 %v4316
    %4512 = vmatpush1.msra.mxu0 %v4315
    %4513 = vmatprep.subr.mxu0 %v4320
    %4514 = vmatpush1.msra.mxu0 %v4319
    %4515 = vmatprep.subr.mxu0 %v4324
    %4516 = vmatpush1.msra.mxu0 %v4323
    %4517 = vmatprep.subr.mxu0 %v4328
    %4518 = vmatpush1.msra.mxu0 %v4327
    %4519 = vmatprep.subr.mxu0 %v4332
    %4520 = vmatpush1.msra.mxu0 %v4331
    %4521 = vmatprep.subr.mxu0 0.0
    %4522 = vmatpush1.msra.mxu0 0.0
    %4523 = vmatprep.subr.mxu0 0.0
    %4524 = vmatpush1.msra.mxu0 0.0
    %4525 = vmatprep.subr.mxu0 0.0
    %4526 = vmatpush1.msra.mxu0 0.0
    %4527 = vmatprep.subr.mxu0 0.0
    %4528 = vmatpush1.msra.mxu0 0.0
    %4529 = vmatprep.subr.mxu0 0.0
    %4530 = vmatpush1.msra.mxu0 0.0
    %4531 = vmatprep.subr.mxu0 0.0
    %4532 = vmatpush1.msra.mxu0 0.0
    %4533 = vmatprep.subr.mxu0 0.0
    %4534 = vmatpush1.msra.mxu0 0.0
    %4535 = vmatprep.subr.mxu0 0.0
    %4536 = vmatpush1.msra.mxu0 0.0
    %4537 = vmatprep.subr.mxu0 0.0
    %4538 = vmatpush1.msra.mxu0 0.0
    %4539 = vmatprep.subr.mxu0 0.0
    %4540 = vmatpush1.msra.mxu0 0.0
    %4541 = vmatprep.subr.mxu0 0.0
    %4542 = vmatpush1.msra.mxu0 0.0
    %4543 = vmatprep.subr.mxu0 0.0
    %4544 = vmatpush1.msra.mxu0 0.0
    %4545 = vmatprep.subr.mxu0 0.0
    %4546 = vmatpush1.msra.mxu0 0.0
    %4547 = vmatprep.subr.mxu0 0.0
    %4548 = vmatpush1.msra.mxu0 0.0
    %4549 = vmatprep.subr.mxu0 0.0
    %4550 = vmatpush1.msra.mxu0 0.0
    %4551 = vmatprep.subr.mxu0 0.0
    %4552 = vmatpush1.msra.mxu0 0.0
    %4553 = vmatprep.mubr.f32.mxu0 0.0
    %4554 = vmatmul.mubr.f32.gmra.mrb[0].mxu0 %v3669
    %v4555 = vpop.f32.mrb[0].mxu0
    %v4556 = vadd.f32 0.0, %v4555
    %v4557 = vpop.f32.mrb[0].mxu0
    %v4558 = vadd.f32 0.0, %v4557
    %4559 = vdwg.mxu0
    %4560 = vmatprep.subr.mxu0 %v4274
    %4561 = vmatpush1.msra.mxu0 %v4273
    %4562 = vmatprep.subr.mxu0 %v4278
    %4563 = vmatpush1.msra.mxu0 %v4277
    %4564 = vmatprep.subr.mxu0 %v4282
    %4565 = vmatpush1.msra.mxu0 %v4281
    %4566 = vmatprep.subr.mxu0 %v4286
    %4567 = vmatpush1.msra.mxu0 %v4285
    %4568 = vmatprep.subr.mxu0 %v4290
    %4569 = vmatpush1.msra.mxu0 %v4289
    %4570 = vmatprep.subr.mxu0 %v4294
    %4571 = vmatpush1.msra.mxu0 %v4293
    %4572 = vmatprep.subr.mxu0 %v4298
    %4573 = vmatpush1.msra.mxu0 %v4297
    %4574 = vmatprep.subr.mxu0 %v4302
    %4575 = vmatpush1.msra.mxu0 %v4301
    %4576 = vmatprep.subr.mxu0 %v4306
    %4577 = vmatpush1.msra.mxu0 %v4305
    %4578 = vmatprep.subr.mxu0 %v4310
    %4579 = vmatpush1.msra.mxu0 %v4309
    %4580 = vmatprep.subr.mxu0 %v4314
    %4581 = vmatpush1.msra.mxu0 %v4313
    %4582 = vmatprep.subr.mxu0 %v4318
    %4583 = vmatpush1.msra.mxu0 %v4317
    %4584 = vmatprep.subr.mxu0 %v4322
    %4585 = vmatpush1.msra.mxu0 %v4321
    %4586 = vmatprep.subr.mxu0 %v4326
    %4587 = vmatpush1.msra.mxu0 %v4325
    %4588 = vmatprep.subr.mxu0 %v4330
    %4589 = vmatpush1.msra.mxu0 %v4329
    %4590 = vmatprep.subr.mxu0 %v4334
    %4591 = vmatpush1.msra.mxu0 %v4333
    %4592 = vmatprep.subr.mxu0 0.0
    %4593 = vmatpush1.msra.mxu0 0.0
    %4594 = vmatprep.subr.mxu0 0.0
    %4595 = vmatpush1.msra.mxu0 0.0
    %4596 = vmatprep.subr.mxu0 0.0
    %4597 = vmatpush1.msra.mxu0 0.0
    %4598 = vmatprep.subr.mxu0 0.0
    %4599 = vmatpush1.msra.mxu0 0.0
    %4600 = vmatprep.subr.mxu0 0.0
    %4601 = vmatpush1.msra.mxu0 0.0
    %4602 = vmatprep.subr.mxu0 0.0
    %4603 = vmatpush1.msra.mxu0 0.0
    %4604 = vmatprep.subr.mxu0 0.0
    %4605 = vmatpush1.msra.mxu0 0.0
    %4606 = vmatprep.subr.mxu0 0.0
    %4607 = vmatpush1.msra.mxu0 0.0
    %4608 = vmatprep.subr.mxu0 0.0
    %4609 = vmatpush1.msra.mxu0 0.0
    %4610 = vmatprep.subr.mxu0 0.0
    %4611 = vmatpush1.msra.mxu0 0.0
    %4612 = vmatprep.subr.mxu0 0.0
    %4613 = vmatpush1.msra.mxu0 0.0
    %4614 = vmatprep.subr.mxu0 0.0
    %4615 = vmatpush1.msra.mxu0 0.0
    %4616 = vmatprep.subr.mxu0 0.0
    %4617 = vmatpush1.msra.mxu0 0.0
    %4618 = vmatprep.subr.mxu0 0.0
    %4619 = vmatpush1.msra.mxu0 0.0
    %4620 = vmatprep.subr.mxu0 0.0
    %4621 = vmatpush1.msra.mxu0 0.0
    %4622 = vmatprep.subr.mxu0 0.0
    %4623 = vmatpush1.msra.mxu0 0.0
    %4624 = vmatprep.mubr.f32.mxu0 0.0
    %4625 = vmatmul.mubr.f32.gmra.mrb[0].mxu0 %v3669
    %v4626 = vpop.f32.mrb[0].mxu0
    %v4627 = vadd.f32 0.0, %v4626
    %v4628 = vpop.f32.mrb[0].mxu0
    %v4629 = vadd.f32 0.0, %v4628
    %4630 = vdwg.mxu0
    %v4631 = vadd.f32 %v4485, %v4556
    %v4632 = vadd.f32 %v4486, %v4558
    %v4633 = vadd.f32 %v4487, %v4627
    %v4634 = vadd.f32 %v4488, %v4629
    %v4635 = vxor.u32 %v4631, 2147483648
    %v4636 = vmul.f32 %v4635, 1.442695
    %v4637 = vpow.pop %v4636
    %v4638 = vadd.f32 %v4637, 1.0
    %v4639 = vrcp.pop %v4638
    %v4640 = vmul.f32 1.0, %v4639
    %v4641 = vxor.u32 %v4632, 2147483648
    %v4642 = vmul.f32 %v4641, 1.442695
    %v4643 = vpow.pop %v4642
    %v4644 = vadd.f32 %v4643, 1.0
    %v4645 = vrcp.pop %v4644
    %v4646 = vmul.f32 1.0, %v4645
    %v4647 = vtanh.pop %v4633
    %v4648 = vxor.u32 %v4634, 2147483648
    %v4649 = vmul.f32 %v4648, 1.442695
    %v4650 = vpow.pop %v4649
    %v4651 = vadd.f32 %v4650, 1.0
    %v4652 = vrcp.pop %v4651
    %v4653 = vmul.f32 1.0, %v4652
    %v4654 = vmul.f32 %v4646, %v3670
    %v4655 = vmul.f32 %v4640, %v4647
    %v4656 = vadd.f32 %v4654, %v4655
    %v4657 = vtanh.pop %v4656
    %v4658 = vmul.f32 %v4653, %v4657
    %4659 = vmatprep.subr.mxu0 %v4336
    %4660 = vmatpush1.msra.mxu0 %v4335
    %4661 = vmatprep.subr.mxu0 %v4340
    %4662 = vmatpush1.msra.mxu0 %v4339
    %4663 = vmatprep.subr.mxu0 %v4344
    %4664 = vmatpush1.msra.mxu0 %v4343
    %4665 = vmatprep.subr.mxu0 %v4348
    %4666 = vmatpush1.msra.mxu0 %v4347
    %4667 = vmatprep.subr.mxu0 %v4352
    %4668 = vmatpush1.msra.mxu0 %v4351
    %4669 = vmatprep.subr.mxu0 %v4356
    %4670 = vmatpush1.msra.mxu0 %v4355
    %4671 = vmatprep.subr.mxu0 %v4360
    %4672 = vmatpush1.msra.mxu0 %v4359
    %4673 = vmatprep.subr.mxu0 %v4364
    %4674 = vmatpush1.msra.mxu0 %v4363
    %4675 = vmatprep.subr.mxu0 %v4368
    %4676 = vmatpush1.msra.mxu0 %v4367
    %4677 = vmatprep.subr.mxu0 %v4372
    %4678 = vmatpush1.msra.mxu0 %v4371
    %4679 = vmatprep.subr.mxu0 %v4376
    %4680 = vmatpush1.msra.mxu0 %v4375
    %4681 = vmatprep.subr.mxu0 %v4380
    %4682 = vmatpush1.msra.mxu0 %v4379
    %4683 = vmatprep.subr.mxu0 %v4384
    %4684 = vmatpush1.msra.mxu0 %v4383
    %4685 = vmatprep.subr.mxu0 %v4388
    %4686 = vmatpush1.msra.mxu0 %v4387
    %4687 = vmatprep.subr.mxu0 %v4392
    %4688 = vmatpush1.msra.mxu0 %v4391
    %4689 = vmatprep.subr.mxu0 %v4396
    %4690 = vmatpush1.msra.mxu0 %v4395
    %4691 = vmatprep.subr.mxu0 %v4400
    %4692 = vmatpush1.msra.mxu0 %v4399
    %4693 = vmatprep.subr.mxu0 %v4404
    %4694 = vmatpush1.msra.mxu0 %v4403
    %4695 = vmatprep.subr.mxu0 %v4408
    %4696 = vmatpush1.msra.mxu0 %v4407
    %4697 = vmatprep.subr.mxu0 %v4412
    %4698 = vmatpush1.msra.mxu0 %v4411
    %4699 = vmatprep.subr.mxu0 %v4416
    %4700 = vmatpush1.msra.mxu0 %v4415
    %4701 = vmatprep.subr.mxu0 %v4420
    %4702 = vmatpush1.msra.mxu0 %v4419
    %4703 = vmatprep.subr.mxu0 %v4424
    %4704 = vmatpush1.msra.mxu0 %v4423
    %4705 = vmatprep.subr.mxu0 %v4428
    %4706 = vmatpush1.msra.mxu0 %v4427
    %4707 = vmatprep.subr.mxu0 %v4432
    %4708 = vmatpush1.msra.mxu0 %v4431
    %4709 = vmatprep.subr.mxu0 %v4436
    %4710 = vmatpush1.msra.mxu0 %v4435
    %4711 = vmatprep.subr.mxu0 %v4440
    %4712 = vmatpush1.msra.mxu0 %v4439
    %4713 = vmatprep.subr.mxu0 %v4444
    %4714 = vmatpush1.msra.mxu0 %v4443
    %4715 = vmatprep.subr.mxu0 %v4448
    %4716 = vmatpush1.msra.mxu0 %v4447
    %4717 = vmatprep.subr.mxu0 %v4452
    %4718 = vmatpush1.msra.mxu0 %v4451
    %4719 = vmatprep.subr.mxu0 %v4456
    %4720 = vmatpush1.msra.mxu0 %v4455
    %4721 = vmatprep.subr.mxu0 %v4460
    %4722 = vmatpush1.msra.mxu0 %v4459
    %4723 = vmatprep.mubr.f32.mxu0 %v3671
    %4724 = vmatmul.mubr.f32.gmra.mrb[0].mxu0 %v4658
    %v4725 = vpop.f32.mrb[0].mxu0
    %v4726 = vadd.f32 %v4468, %v4725
    %v4727 = vpop.f32.mrb[0].mxu0
    %v4728 = vadd.f32 %v4472, %v4727
    %4729 = vdwg.mxu0
    %4730 = vmatprep.subr.mxu0 %v4338
    %4731 = vmatpush1.msra.mxu0 %v4337
    %4732 = vmatprep.subr.mxu0 %v4342
    %4733 = vmatpush1.msra.mxu0 %v4341
    %4734 = vmatprep.subr.mxu0 %v4346
    %4735 = vmatpush1.msra.mxu0 %v4345
    %4736 = vmatprep.subr.mxu0 %v4350
    %4737 = vmatpush1.msra.mxu0 %v4349
    %4738 = vmatprep.subr.mxu0 %v4354
    %4739 = vmatpush1.msra.mxu0 %v4353
    %4740 = vmatprep.subr.mxu0 %v4358
    %4741 = vmatpush1.msra.mxu0 %v4357
    %4742 = vmatprep.subr.mxu0 %v4362
    %4743 = vmatpush1.msra.mxu0 %v4361
    %4744 = vmatprep.subr.mxu0 %v4366
    %4745 = vmatpush1.msra.mxu0 %v4365
    %4746 = vmatprep.subr.mxu0 %v4370
    %4747 = vmatpush1.msra.mxu0 %v4369
    %4748 = vmatprep.subr.mxu0 %v4374
    %4749 = vmatpush1.msra.mxu0 %v4373
    %4750 = vmatprep.subr.mxu0 %v4378
    %4751 = vmatpush1.msra.mxu0 %v4377
    %4752 = vmatprep.subr.mxu0 %v4382
    %4753 = vmatpush1.msra.mxu0 %v4381
    %4754 = vmatprep.subr.mxu0 %v4386
    %4755 = vmatpush1.msra.mxu0 %v4385
    %4756 = vmatprep.subr.mxu0 %v4390
    %4757 = vmatpush1.msra.mxu0 %v4389
    %4758 = vmatprep.subr.mxu0 %v4394
    %4759 = vmatpush1.msra.mxu0 %v4393
    %4760 = vmatprep.subr.mxu0 %v4398
    %4761 = vmatpush1.msra.mxu0 %v4397
    %4762 = vmatprep.subr.mxu0 %v4402
    %4763 = vmatpush1.msra.mxu0 %v4401
    %4764 = vmatprep.subr.mxu0 %v4406
    %4765 = vmatpush1.msra.mxu0 %v4405
    %4766 = vmatprep.subr.mxu0 %v4410
    %4767 = vmatpush1.msra.mxu0 %v4409
    %4768 = vmatprep.subr.mxu0 %v4414
    %4769 = vmatpush1.msra.mxu0 %v4413
    %4770 = vmatprep.subr.mxu0 %v4418
    %4771 = vmatpush1.msra.mxu0 %v4417
    %4772 = vmatprep.subr.mxu0 %v4422
    %4773 = vmatpush1.msra.mxu0 %v4421
    %4774 = vmatprep.subr.mxu0 %v4426
    %4775 = vmatpush1.msra.mxu0 %v4425
    %4776 = vmatprep.subr.mxu0 %v4430
    %4777 = vmatpush1.msra.mxu0 %v4429
    %4778 = vmatprep.subr.mxu0 %v4434
    %4779 = vmatpush1.msra.mxu0 %v4433
    %4780 = vmatprep.subr.mxu0 %v4438
    %4781 = vmatpush1.msra.mxu0 %v4437
    %4782 = vmatprep.subr.mxu0 %v4442
    %4783 = vmatpush1.msra.mxu0 %v4441
    %4784 = vmatprep.subr.mxu0 %v4446
    %4785 = vmatpush1.msra.mxu0 %v4445
    %4786 = vmatprep.subr.mxu0 %v4450
    %4787 = vmatpush1.msra.mxu0 %v4449
    %4788 = vmatprep.subr.mxu0 %v4454
    %4789 = vmatpush1.msra.mxu0 %v4453
    %4790 = vmatprep.subr.mxu0 %v4458
    %4791 = vmatpush1.msra.mxu0 %v4457
    %4792 = vmatprep.subr.mxu0 %v4462
    %4793 = vmatpush1.msra.mxu0 %v4461
    %4794 = vmatprep.mubr.f32.mxu0 %v3671
    %4795 = vmatmul.mubr.f32.gmra.mrb[0].mxu0 %v4658
    %v4796 = vpop.f32.mrb[0].mxu0
    %v4797 = vadd.f32 %v4476, %v4796
    %v4798 = vpop.f32.mrb[0].mxu0
    %v4799 = vadd.f32 %v4480, %v4798
    %4800 = vdwg.mxu0
    %v4801 = vxor.u32 %v4726, 2147483648
    %v4802 = vmul.f32 %v4801, 1.442695
    %v4803 = vpow.pop %v4802
    %v4804 = vadd.f32 %v4803, 1.0
    %v4805 = vrcp.pop %v4804
    %v4806 = vmul.f32 1.0, %v4805
    %v4807 = vxor.u32 %v4728, 2147483648
    %v4808 = vmul.f32 %v4807, 1.442695
    %v4809 = vpow.pop %v4808
    %v4810 = vadd.f32 %v4809, 1.0
    %v4811 = vrcp.pop %v4810
    %v4812 = vmul.f32 1.0, %v4811
    %v4813 = vtanh.pop %v4797
    %v4814 = vxor.u32 %v4799, 2147483648
    %v4815 = vmul.f32 %v4814, 1.442695
    %v4816 = vpow.pop %v4815
    %v4817 = vadd.f32 %v4816, 1.0
    %v4818 = vrcp.pop %v4817
    %v4819 = vmul.f32 1.0, %v4818
    %v4820 = vmul.f32 %v4812, %v3672
    %v4821 = vmul.f32 %v4806, %v4813
    %v4822 = vadd.f32 %v4820, %v4821
    %v4823 = vtanh.pop %v4822
    %v4824 = vmul.f32 %v4819, %v4823
    %4825 = vst [vmem:[#allocation4] sm:$0xff] %v4824
    %s4826 = scalar_lea.vmem [#allocation3], 32
    %v4827 = vld [vmem:[%s4826] sm:$0xff]
    %v4828 = vld [vmem:[%s4826 + $0x8] sm:$0xff]
    %v4829 = vld [vmem:[%s4826 + $0x10] sm:$0xff]
    %v4830 = vld [vmem:[%s4826 + $0x18] sm:$0xff]
    %4831 = vmatprep.subr.mxu0 %v4272
    %4832 = vmatpush1.msra.mxu0 %v4271
    %4833 = vmatprep.subr.mxu0 %v4276
    %4834 = vmatpush1.msra.mxu0 %v4275
    %4835 = vmatprep.subr.mxu0 %v4280
    %4836 = vmatpush1.msra.mxu0 %v4279
    %4837 = vmatprep.subr.mxu0 %v4284
    %4838 = vmatpush1.msra.mxu0 %v4283
    %4839 = vmatprep.subr.mxu0 %v4288
    %4840 = vmatpush1.msra.mxu0 %v4287
    %4841 = vmatprep.subr.mxu0 %v4292
    %4842 = vmatpush1.msra.mxu0 %v4291
    %4843 = vmatprep.subr.mxu0 %v4296
    %4844 = vmatpush1.msra.mxu0 %v4295
    %4845 = vmatprep.subr.mxu0 %v4300
    %4846 = vmatpush1.msra.mxu0 %v4299
    %4847 = vmatprep.subr.mxu0 %v4304
    %4848 = vmatpush1.msra.mxu0 %v4303
    %4849 = vmatprep.subr.mxu0 %v4308
    %4850 = vmatpush1.msra.mxu0 %v4307
    %4851 = vmatprep.subr.mxu0 %v4312
    %4852 = vmatpush1.msra.mxu0 %v4311
    %4853 = vmatprep.subr.mxu0 %v4316
    %4854 = vmatpush1.msra.mxu0 %v4315
    %4855 = vmatprep.subr.mxu0 %v4320
    %4856 = vmatpush1.msra.mxu0 %v4319
    %4857 = vmatprep.subr.mxu0 %v4324
    %4858 = vmatpush1.msra.mxu0 %v4323
    %4859 = vmatprep.subr.mxu0 %v4328
    %4860 = vmatpush1.msra.mxu0 %v4327
    %4861 = vmatprep.subr.mxu0 %v4332
    %4862 = vmatpush1.msra.mxu0 %v4331
    %4863 = vmatprep.subr.mxu0 0.0
    %4864 = vmatpush1.msra.mxu0 0.0
    %4865 = vmatprep.subr.mxu0 0.0
    %4866 = vmatpush1.msra.mxu0 0.0
    %4867 = vmatprep.subr.mxu0 0.0
    %4868 = vmatpush1.msra.mxu0 0.0
    %4869 = vmatprep.subr.mxu0 0.0
    %4870 = vmatpush1.msra.mxu0 0.0
    %4871 = vmatprep.subr.mxu0 0.0
    %4872 = vmatpush1.msra.mxu0 0.0
    %4873 = vmatprep.subr.mxu0 0.0
    %4874 = vmatpush1.msra.mxu0 0.0
    %4875 = vmatprep.subr.mxu0 0.0
    %4876 = vmatpush1.msra.mxu0 0.0
    %4877 = vmatprep.subr.mxu0 0.0
    %4878 = vmatpush1.msra.mxu0 0.0
    %4879 = vmatprep.subr.mxu0 0.0
    %4880 = vmatpush1.msra.mxu0 0.0
    %4881 = vmatprep.subr.mxu0 0.0
    %4882 = vmatpush1.msra.mxu0 0.0
    %4883 = vmatprep.subr.mxu0 0.0
    %4884 = vmatpush1.msra.mxu0 0.0
    %4885 = vmatprep.subr.mxu0 0.0
    %4886 = vmatpush1.msra.mxu0 0.0
    %4887 = vmatprep.subr.mxu0 0.0
    %4888 = vmatpush1.msra.mxu0 0.0
    %4889 = vmatprep.subr.mxu0 0.0
    %4890 = vmatpush1.msra.mxu0 0.0
    %4891 = vmatprep.subr.mxu0 0.0
    %4892 = vmatpush1.msra.mxu0 0.0
    %4893 = vmatprep.subr.mxu0 0.0
    %4894 = vmatpush1.msra.mxu0 0.0
    %4895 = vmatprep.mubr.f32.mxu0 0.0
    %4896 = vmatmul.mubr.f32.gmra.mrb[0].mxu0 %v4658
    %v4897 = vpop.f32.mrb[0].mxu0
    %v4898 = vadd.f32 0.0, %v4897
    %v4899 = vpop.f32.mrb[0].mxu0
    %v4900 = vadd.f32 0.0, %v4899
    %4901 = vdwg.mxu0
    %4902 = vmatprep.subr.mxu0 %v4274
    %4903 = vmatpush1.msra.mxu0 %v4273
    %4904 = vmatprep.subr.mxu0 %v4278
    %4905 = vmatpush1.msra.mxu0 %v4277
    %4906 = vmatprep.subr.mxu0 %v4282
    %4907 = vmatpush1.msra.mxu0 %v4281
    %4908 = vmatprep.subr.mxu0 %v4286
    %4909 = vmatpush1.msra.mxu0 %v4285
    %4910 = vmatprep.subr.mxu0 %v4290
    %4911 = vmatpush1.msra.mxu0 %v4289
    %4912 = vmatprep.subr.mxu0 %v4294
    %4913 = vmatpush1.msra.mxu0 %v4293
    %4914 = vmatprep.subr.mxu0 %v4298
    %4915 = vmatpush1.msra.mxu0 %v4297
    %4916 = vmatprep.subr.mxu0 %v4302
    %4917 = vmatpush1.msra.mxu0 %v4301
    %4918 = vmatprep.subr.mxu0 %v4306
    %4919 = vmatpush1.msra.mxu0 %v4305
    %4920 = vmatprep.subr.mxu0 %v4310
    %4921 = vmatpush1.msra.mxu0 %v4309
    %4922 = vmatprep.subr.mxu0 %v4314
    %4923 = vmatpush1.msra.mxu0 %v4313
    %4924 = vmatprep.subr.mxu0 %v4318
    %4925 = vmatpush1.msra.mxu0 %v4317
    %4926 = vmatprep.subr.mxu0 %v4322
    %4927 = vmatpush1.msra.mxu0 %v4321
    %4928 = vmatprep.subr.mxu0 %v4326
    %4929 = vmatpush1.msra.mxu0 %v4325
    %4930 = vmatprep.subr.mxu0 %v4330
    %4931 = vmatpush1.msra.mxu0 %v4329
    %4932 = vmatprep.subr.mxu0 %v4334
    %4933 = vmatpush1.msra.mxu0 %v4333
    %4934 = vmatprep.subr.mxu0 0.0
    %4935 = vmatpush1.msra.mxu0 0.0
    %4936 = vmatprep.subr.mxu0 0.0
    %4937 = vmatpush1.msra.mxu0 0.0
    %4938 = vmatprep.subr.mxu0 0.0
    %4939 = vmatpush1.msra.mxu0 0.0
    %4940 = vmatprep.subr.mxu0 0.0
    %4941 = vmatpush1.msra.mxu0 0.0
    %4942 = vmatprep.subr.mxu0 0.0
    %4943 = vmatpush1.msra.mxu0 0.0
    %4944 = vmatprep.subr.mxu0 0.0
    %4945 = vmatpush1.msra.mxu0 0.0
    %4946 = vmatprep.subr.mxu0 0.0
    %4947 = vmatpush1.msra.mxu0 0.0
    %4948 = vmatprep.subr.mxu0 0.0
    %4949 = vmatpush1.msra.mxu0 0.0
    %4950 = vmatprep.subr.mxu0 0.0
    %4951 = vmatpush1.msra.mxu0 0.0
    %4952 = vmatprep.subr.mxu0 0.0
    %4953 = vmatpush1.msra.mxu0 0.0
    %4954 = vmatprep.subr.mxu0 0.0
    %4955 = vmatpush1.msra.mxu0 0.0
    %4956 = vmatprep.subr.mxu0 0.0
    %4957 = vmatpush1.msra.mxu0 0.0
    %4958 = vmatprep.subr.mxu0 0.0
    %4959 = vmatpush1.msra.mxu0 0.0
    %4960 = vmatprep.subr.mxu0 0.0
    %4961 = vmatpush1.msra.mxu0 0.0
    %4962 = vmatprep.subr.mxu0 0.0
    %4963 = vmatpush1.msra.mxu0 0.0
    %4964 = vmatprep.subr.mxu0 0.0
    %4965 = vmatpush1.msra.mxu0 0.0
    %4966 = vmatprep.mubr.f32.mxu0 0.0
    %4967 = vmatmul.mubr.f32.gmra.mrb[0].mxu0 %v4658
    %v4968 = vpop.f32.mrb[0].mxu0
    %v4969 = vadd.f32 0.0, %v4968
    %v4970 = vpop.f32.mrb[0].mxu0
    %v4971 = vadd.f32 0.0, %v4970
    %4972 = vdwg.mxu0
    %v4973 = vadd.f32 %v4827, %v4898
    %v4974 = vadd.f32 %v4828, %v4900
    %v4975 = vadd.f32 %v4829, %v4969
    %v4976 = vadd.f32 %v4830, %v4971
    %v4977 = vxor.u32 %v4973, 2147483648
    %v4978 = vmul.f32 %v4977, 1.442695
    %v4979 = vpow.pop %v4978
    %v4980 = vadd.f32 %v4979, 1.0
    %v4981 = vrcp.pop %v4980
    %v4982 = vmul.f32 1.0, %v4981
    %v4983 = vxor.u32 %v4974, 2147483648
    %v4984 = vmul.f32 %v4983, 1.442695
    %v4985 = vpow.pop %v4984
    %v4986 = vadd.f32 %v4985, 1.0
    %v4987 = vrcp.pop %v4986
    %v4988 = vmul.f32 1.0, %v4987
    %v4989 = vtanh.pop %v4975
    %v4990 = vxor.u32 %v4976, 2147483648
    %v4991 = vmul.f32 %v4990, 1.442695
    %v4992 = vpow.pop %v4991
    %v4993 = vadd.f32 %v4992, 1.0
    %v4994 = vrcp.pop %v4993
    %v4995 = vmul.f32 1.0, %v4994
    %v4996 = vmul.f32 %v4988, %v4656
    %v4997 = vmul.f32 %v4982, %v4989
    %v4998 = vadd.f32 %v4996, %v4997
    %v4999 = vtanh.pop %v4998
    %v5000 = vmul.f32 %v4995, %v4999
    %5001 = vmatprep.subr.mxu0 %v4336
    %5002 = vmatpush1.msra.mxu0 %v4335
    %5003 = vmatprep.subr.mxu0 %v4340
    %5004 = vmatpush1.msra.mxu0 %v4339
    %5005 = vmatprep.subr.mxu0 %v4344
    %5006 = vmatpush1.msra.mxu0 %v4343
    %5007 = vmatprep.subr.mxu0 %v4348
    %5008 = vmatpush1.msra.mxu0 %v4347
    %5009 = vmatprep.subr.mxu0 %v4352
    %5010 = vmatpush1.msra.mxu0 %v4351
    %5011 = vmatprep.subr.mxu0 %v4356
    %5012 = vmatpush1.msra.mxu0 %v4355
    %5013 = vmatprep.subr.mxu0 %v4360
    %5014 = vmatpush1.msra.mxu0 %v4359
    %5015 = vmatprep.subr.mxu0 %v4364
    %5016 = vmatpush1.msra.mxu0 %v4363
    %5017 = vmatprep.subr.mxu0 %v4368
    %5018 = vmatpush1.msra.mxu0 %v4367
    %5019 = vmatprep.subr.mxu0 %v4372
    %5020 = vmatpush1.msra.mxu0 %v4371
    %5021 = vmatprep.subr.mxu0 %v4376
    %5022 = vmatpush1.msra.mxu0 %v4375
    %5023 = vmatprep.subr.mxu0 %v4380
    %5024 = vmatpush1.msra.mxu0 %v4379
    %5025 = vmatprep.subr.mxu0 %v4384
    %5026 = vmatpush1.msra.mxu0 %v4383
    %5027 = vmatprep.subr.mxu0 %v4388
    %5028 = vmatpush1.msra.mxu0 %v4387
    %5029 = vmatprep.subr.mxu0 %v4392
    %5030 = vmatpush1.msra.mxu0 %v4391
    %5031 = vmatprep.subr.mxu0 %v4396
    %5032 = vmatpush1.msra.mxu0 %v4395
    %5033 = vmatprep.subr.mxu0 %v4400
    %5034 = vmatpush1.msra.mxu0 %v4399
    %5035 = vmatprep.subr.mxu0 %v4404
    %5036 = vmatpush1.msra.mxu0 %v4403
    %5037 = vmatprep.subr.mxu0 %v4408
    %5038 = vmatpush1.msra.mxu0 %v4407
    %5039 = vmatprep.subr.mxu0 %v4412
    %5040 = vmatpush1.msra.mxu0 %v4411
    %5041 = vmatprep.subr.mxu0 %v4416
    %5042 = vmatpush1.msra.mxu0 %v4415
    %5043 = vmatprep.subr.mxu0 %v4420
    %5044 = vmatpush1.msra.mxu0 %v4419
    %5045 = vmatprep.subr.mxu0 %v4424
    %5046 = vmatpush1.msra.mxu0 %v4423
    %5047 = vmatprep.subr.mxu0 %v4428
    %5048 = vmatpush1.msra.mxu0 %v4427
    %5049 = vmatprep.subr.mxu0 %v4432
    %5050 = vmatpush1.msra.mxu0 %v4431
    %5051 = vmatprep.subr.mxu0 %v4436
    %5052 = vmatpush1.msra.mxu0 %v4435
    %5053 = vmatprep.subr.mxu0 %v4440
    %5054 = vmatpush1.msra.mxu0 %v4439
    %5055 = vmatprep.subr.mxu0 %v4444
    %5056 = vmatpush1.msra.mxu0 %v4443
    %5057 = vmatprep.subr.mxu0 %v4448
    %5058 = vmatpush1.msra.mxu0 %v4447
    %5059 = vmatprep.subr.mxu0 %v4452
    %5060 = vmatpush1.msra.mxu0 %v4451
    %5061 = vmatprep.subr.mxu0 %v4456
    %5062 = vmatpush1.msra.mxu0 %v4455
    %5063 = vmatprep.subr.mxu0 %v4460
    %5064 = vmatpush1.msra.mxu0 %v4459
    %5065 = vmatprep.mubr.f32.mxu0 %v4824
    %5066 = vmatmul.mubr.f32.gmra.mrb[0].mxu0 %v5000
    %v5067 = vpop.f32.mrb[0].mxu0
    %v5068 = vadd.f32 %v4468, %v5067
    %v5069 = vpop.f32.mrb[0].mxu0
    %v5070 = vadd.f32 %v4472, %v5069
    %5071 = vdwg.mxu0
    %5072 = vmatprep.subr.mxu0 %v4338
    %5073 = vmatpush1.msra.mxu0 %v4337
    %5074 = vmatprep.subr.mxu0 %v4342
    %5075 = vmatpush1.msra.mxu0 %v4341
    %5076 = vmatprep.subr.mxu0 %v4346
    %5077 = vmatpush1.msra.mxu0 %v4345
    %5078 = vmatprep.subr.mxu0 %v4350
    %5079 = vmatpush1.msra.mxu0 %v4349
    %5080 = vmatprep.subr.mxu0 %v4354
    %5081 = vmatpush1.msra.mxu0 %v4353
    %5082 = vmatprep.subr.mxu0 %v4358
    %5083 = vmatpush1.msra.mxu0 %v4357
    %5084 = vmatprep.subr.mxu0 %v4362
    %5085 = vmatpush1.msra.mxu0 %v4361
    %5086 = vmatprep.subr.mxu0 %v4366
    %5087 = vmatpush1.msra.mxu0 %v4365
    %5088 = vmatprep.subr.mxu0 %v4370
    %5089 = vmatpush1.msra.mxu0 %v4369
    %5090 = vmatprep.subr.mxu0 %v4374
    %5091 = vmatpush1.msra.mxu0 %v4373
    %5092 = vmatprep.subr.mxu0 %v4378
    %5093 = vmatpush1.msra.mxu0 %v4377
    %5094 = vmatprep.subr.mxu0 %v4382
    %5095 = vmatpush1.msra.mxu0 %v4381
    %5096 = vmatprep.subr.mxu0 %v4386
    %5097 = vmatpush1.msra.mxu0 %v4385
    %5098 = vmatprep.subr.mxu0 %v4390
    %5099 = vmatpush1.msra.mxu0 %v4389
    %5100 = vmatprep.subr.mxu0 %v4394
    %5101 = vmatpush1.msra.mxu0 %v4393
    %5102 = vmatprep.subr.mxu0 %v4398
    %5103 = vmatpush1.msra.mxu0 %v4397
    %5104 = vmatprep.subr.mxu0 %v4402
    %5105 = vmatpush1.msra.mxu0 %v4401
    %5106 = vmatprep.subr.mxu0 %v4406
    %5107 = vmatpush1.msra.mxu0 %v4405
    %5108 = vmatprep.subr.mxu0 %v4410
    %5109 = vmatpush1.msra.mxu0 %v4409
    %5110 = vmatprep.subr.mxu0 %v4414
    %5111 = vmatpush1.msra.mxu0 %v4413
    %5112 = vmatprep.subr.mxu0 %v4418
    %5113 = vmatpush1.msra.mxu0 %v4417
    %5114 = vmatprep.subr.mxu0 %v4422
    %5115 = vmatpush1.msra.mxu0 %v4421
    %5116 = vmatprep.subr.mxu0 %v4426
    %5117 = vmatpush1.msra.mxu0 %v4425
    %5118 = vmatprep.subr.mxu0 %v4430
    %5119 = vmatpush1.msra.mxu0 %v4429
    %5120 = vmatprep.subr.mxu0 %v4434
    %5121 = vmatpush1.msra.mxu0 %v4433
    %5122 = vmatprep.subr.mxu0 %v4438
    %5123 = vmatpush1.msra.mxu0 %v4437
    %5124 = vmatprep.subr.mxu0 %v4442
    %5125 = vmatpush1.msra.mxu0 %v4441
    %5126 = vmatprep.subr.mxu0 %v4446
    %5127 = vmatpush1.msra.mxu0 %v4445
    %5128 = vmatprep.subr.mxu0 %v4450
    %5129 = vmatpush1.msra.mxu0 %v4449
    %5130 = vmatprep.subr.mxu0 %v4454
    %5131 = vmatpush1.msra.mxu0 %v4453
    %5132 = vmatprep.subr.mxu0 %v4458
    %5133 = vmatpush1.msra.mxu0 %v4457
    %5134 = vmatprep.subr.mxu0 %v4462
    %5135 = vmatpush1.msra.mxu0 %v4461
    %5136 = vmatprep.mubr.f32.mxu0 %v4824
    %5137 = vmatmul.mubr.f32.gmra.mrb[0].mxu0 %v5000
    %v5138 = vpop.f32.mrb[0].mxu0
    %v5139 = vadd.f32 %v4476, %v5138
    %v5140 = vpop.f32.mrb[0].mxu0
    %v5141 = vadd.f32 %v4480, %v5140
    %5142 = vdwg.mxu0
    %v5143 = vxor.u32 %v5068, 2147483648
    %v5144 = vmul.f32 %v5143, 1.442695
    %v5145 = vpow.pop %v5144
    %v5146 = vadd.f32 %v5145, 1.0
    %v5147 = vrcp.pop %v5146
    %v5148 = vmul.f32 1.0, %v5147
    %v5149 = vxor.u32 %v5070, 2147483648
    %v5150 = vmul.f32 %v5149, 1.442695
    %v5151 = vpow.pop %v5150
    %v5152 = vadd.f32 %v5151, 1.0
    %v5153 = vrcp.pop %v5152
    %v5154 = vmul.f32 1.0, %v5153
    %v5155 = vtanh.pop %v5139
    %v5156 = vxor.u32 %v5141, 2147483648
    %v5157 = vmul.f32 %v5156, 1.442695
    %v5158 = vpow.pop %v5157
    %v5159 = vadd.f32 %v5158, 1.0
    %v5160 = vrcp.pop %v5159
    %v5161 = vmul.f32 1.0, %v5160
    %v5162 = vmul.f32 %v5154, %v4822
    %v5163 = vmul.f32 %v5148, %v5155
    %v5164 = vadd.f32 %v5162, %v5163
    %v5165 = vtanh.pop %v5164
    %v5166 = vmul.f32 %v5161, %v5165
    %s5167 = scalar_lea.vmem [#allocation4], 8
    %5168 = vst [vmem:[%s5167] sm:$0xff] %v5166
    %s5169 = scalar_lea.vmem [#allocation3], 64
    %v5170 = vld [vmem:[%s5169] sm:$0xff]
    %v5171 = vld [vmem:[%s5169 + $0x8] sm:$0xff]
    %v5172 = vld [vmem:[%s5169 + $0x10] sm:$0xff]
    %v5173 = vld [vmem:[%s5169 + $0x18] sm:$0xff]
    %5174 = vmatprep.subr.mxu0 %v4272
    %5175 = vmatpush1.msra.mxu0 %v4271
    %5176 = vmatprep.subr.mxu0 %v4276
    %5177 = vmatpush1.msra.mxu0 %v4275
    %5178 = vmatprep.subr.mxu0 %v4280
    %5179 = vmatpush1.msra.mxu0 %v4279
    %5180 = vmatprep.subr.mxu0 %v4284
    %5181 = vmatpush1.msra.mxu0 %v4283
    %5182 = vmatprep.subr.mxu0 %v4288
    %5183 = vmatpush1.msra.mxu0 %v4287
    %5184 = vmatprep.subr.mxu0 %v4292
    %5185 = vmatpush1.msra.mxu0 %v4291
    %5186 = vmatprep.subr.mxu0 %v4296
    %5187 = vmatpush1.msra.mxu0 %v4295
    %5188 = vmatprep.subr.mxu0 %v4300
    %5189 = vmatpush1.msra.mxu0 %v4299
    %5190 = vmatprep.subr.mxu0 %v4304
    %5191 = vmatpush1.msra.mxu0 %v4303
    %5192 = vmatprep.subr.mxu0 %v4308
    %5193 = vmatpush1.msra.mxu0 %v4307
    %5194 = vmatprep.subr.mxu0 %v4312
    %5195 = vmatpush1.msra.mxu0 %v4311
    %5196 = vmatprep.subr.mxu0 %v4316
    %5197 = vmatpush1.msra.mxu0 %v4315
    %5198 = vmatprep.subr.mxu0 %v4320
    %5199 = vmatpush1.msra.mxu0 %v4319
    %5200 = vmatprep.subr.mxu0 %v4324
    %5201 = vmatpush1.msra.mxu0 %v4323
    %5202 = vmatprep.subr.mxu0 %v4328
    %5203 = vmatpush1.msra.mxu0 %v4327
    %5204 = vmatprep.subr.mxu0 %v4332
    %5205 = vmatpush1.msra.mxu0 %v4331
    %5206 = vmatprep.subr.mxu0 0.0
    %5207 = vmatpush1.msra.mxu0 0.0
    %5208 = vmatprep.subr.mxu0 0.0
    %5209 = vmatpush1.msra.mxu0 0.0
    %5210 = vmatprep.subr.mxu0 0.0
    %5211 = vmatpush1.msra.mxu0 0.0
    %5212 = vmatprep.subr.mxu0 0.0
    %5213 = vmatpush1.msra.mxu0 0.0
    %5214 = vmatprep.subr.mxu0 0.0
    %5215 = vmatpush1.msra.mxu0 0.0
    %5216 = vmatprep.subr.mxu0 0.0
    %5217 = vmatpush1.msra.mxu0 0.0
    %5218 = vmatprep.subr.mxu0 0.0
    %5219 = vmatpush1.msra.mxu0 0.0
    %5220 = vmatprep.subr.mxu0 0.0
    %5221 = vmatpush1.msra.mxu0 0.0
    %5222 = vmatprep.subr.mxu0 0.0
    %5223 = vmatpush1.msra.mxu0 0.0
    %5224 = vmatprep.subr.mxu0 0.0
    %5225 = vmatpush1.msra.mxu0 0.0
    %5226 = vmatprep.subr.mxu0 0.0
    %5227 = vmatpush1.msra.mxu0 0.0
    %5228 = vmatprep.subr.mxu0 0.0
    %5229 = vmatpush1.msra.mxu0 0.0
    %5230 = vmatprep.subr.mxu0 0.0
    %5231 = vmatpush1.msra.mxu0 0.0
    %5232 = vmatprep.subr.mxu0 0.0
    %5233 = vmatpush1.msra.mxu0 0.0
    %5234 = vmatprep.subr.mxu0 0.0
    %5235 = vmatpush1.msra.mxu0 0.0
    %5236 = vmatprep.subr.mxu0 0.0
    %5237 = vmatpush1.msra.mxu0 0.0
    %5238 = vmatprep.mubr.f32.mxu0 0.0
    %5239 = vmatmul.mubr.f32.gmra.mrb[0].mxu0 %v5000
    %v5240 = vpop.f32.mrb[0].mxu0
    %v5241 = vadd.f32 0.0, %v5240
    %v5242 = vpop.f32.mrb[0].mxu0
    %v5243 = vadd.f32 0.0, %v5242
    %5244 = vdwg.mxu0
    %5245 = vmatprep.subr.mxu0 %v4274
    %5246 = vmatpush1.msra.mxu0 %v4273
    %5247 = vmatprep.subr.mxu0 %v4278
    %5248 = vmatpush1.msra.mxu0 %v4277
    %5249 = vmatprep.subr.mxu0 %v4282
    %5250 = vmatpush1.msra.mxu0 %v4281
    %5251 = vmatprep.subr.mxu0 %v4286
    %5252 = vmatpush1.msra.mxu0 %v4285
    %5253 = vmatprep.subr.mxu0 %v4290
    %5254 = vmatpush1.msra.mxu0 %v4289
    %5255 = vmatprep.subr.mxu0 %v4294
    %5256 = vmatpush1.msra.mxu0 %v4293
    %5257 = vmatprep.subr.mxu0 %v4298
    %5258 = vmatpush1.msra.mxu0 %v4297
    %5259 = vmatprep.subr.mxu0 %v4302
    %5260 = vmatpush1.msra.mxu0 %v4301
    %5261 = vmatprep.subr.mxu0 %v4306
    %5262 = vmatpush1.msra.mxu0 %v4305
    %5263 = vmatprep.subr.mxu0 %v4310
    %5264 = vmatpush1.msra.mxu0 %v4309
    %5265 = vmatprep.subr.mxu0 %v4314
    %5266 = vmatpush1.msra.mxu0 %v4313
    %5267 = vmatprep.subr.mxu0 %v4318
    %5268 = vmatpush1.msra.mxu0 %v4317
    %5269 = vmatprep.subr.mxu0 %v4322
    %5270 = vmatpush1.msra.mxu0 %v4321
    %5271 = vmatprep.subr.mxu0 %v4326
    %5272 = vmatpush1.msra.mxu0 %v4325
    %5273 = vmatprep.subr.mxu0 %v4330
    %5274 = vmatpush1.msra.mxu0 %v4329
    %5275 = vmatprep.subr.mxu0 %v4334
    %5276 = vmatpush1.msra.mxu0 %v4333
    %5277 = vmatprep.subr.mxu0 0.0
    %5278 = vmatpush1.msra.mxu0 0.0
    %5279 = vmatprep.subr.mxu0 0.0
    %5280 = vmatpush1.msra.mxu0 0.0
    %5281 = vmatprep.subr.mxu0 0.0
    %5282 = vmatpush1.msra.mxu0 0.0
    %5283 = vmatprep.subr.mxu0 0.0
    %5284 = vmatpush1.msra.mxu0 0.0
    %5285 = vmatprep.subr.mxu0 0.0
    %5286 = vmatpush1.msra.mxu0 0.0
    %5287 = vmatprep.subr.mxu0 0.0
    %5288 = vmatpush1.msra.mxu0 0.0
    %5289 = vmatprep.subr.mxu0 0.0
    %5290 = vmatpush1.msra.mxu0 0.0
    %5291 = vmatprep.subr.mxu0 0.0
    %5292 = vmatpush1.msra.mxu0 0.0
    %5293 = vmatprep.subr.mxu0 0.0
    %5294 = vmatpush1.msra.mxu0 0.0
    %5295 = vmatprep.subr.mxu0 0.0
    %5296 = vmatpush1.msra.mxu0 0.0
    %5297 = vmatprep.subr.mxu0 0.0
    %5298 = vmatpush1.msra.mxu0 0.0
    %5299 = vmatprep.subr.mxu0 0.0
    %5300 = vmatpush1.msra.mxu0 0.0
    %5301 = vmatprep.subr.mxu0 0.0
    %5302 = vmatpush1.msra.mxu0 0.0
    %5303 = vmatprep.subr.mxu0 0.0
    %5304 = vmatpush1.msra.mxu0 0.0
    %5305 = vmatprep.subr.mxu0 0.0
    %5306 = vmatpush1.msra.mxu0 0.0
    %5307 = vmatprep.subr.mxu0 0.0
    %5308 = vmatpush1.msra.mxu0 0.0
    %5309 = vmatprep.mubr.f32.mxu0 0.0
    %5310 = vmatmul.mubr.f32.gmra.mrb[0].mxu0 %v5000
    %v5311 = vpop.f32.mrb[0].mxu0
    %v5312 = vadd.f32 0.0, %v5311
    %v5313 = vpop.f32.mrb[0].mxu0
    %v5314 = vadd.f32 0.0, %v5313
    %5315 = vdwg.mxu0
    %v5316 = vadd.f32 %v5170, %v5241
    %v5317 = vadd.f32 %v5171, %v5243
    %v5318 = vadd.f32 %v5172, %v5312
    %v5319 = vadd.f32 %v5173, %v5314
    %v5320 = vxor.u32 %v5316, 2147483648
    %v5321 = vmul.f32 %v5320, 1.442695
    %v5322 = vpow.pop %v5321
    %v5323 = vadd.f32 %v5322, 1.0
    %v5324 = vrcp.pop %v5323
    %v5325 = vmul.f32 1.0, %v5324
    %v5326 = vxor.u32 %v5317, 2147483648
    %v5327 = vmul.f32 %v5326, 1.442695
    %v5328 = vpow.pop %v5327
    %v5329 = vadd.f32 %v5328, 1.0
    %v5330 = vrcp.pop %v5329
    %v5331 = vmul.f32 1.0, %v5330
    %v5332 = vtanh.pop %v5318
    %v5333 = vxor.u32 %v5319, 2147483648
    %v5334 = vmul.f32 %v5333, 1.442695
    %v5335 = vpow.pop %v5334
    %v5336 = vadd.f32 %v5335, 1.0
    %v5337 = vrcp.pop %v5336
    %v5338 = vmul.f32 1.0, %v5337
    %v5339 = vmul.f32 %v5331, %v4998
    %v5340 = vmul.f32 %v5325, %v5332
    %v5341 = vadd.f32 %v5339, %v5340
    %v5342 = vtanh.pop %v5341
    %v5343 = vmul.f32 %v5338, %v5342
    %5344 = vmatprep.subr.mxu0 %v4336
    %5345 = vmatpush1.msra.mxu0 %v4335
    %5346 = vmatprep.subr.mxu0 %v4340
    %5347 = vmatpush1.msra.mxu0 %v4339
    %5348 = vmatprep.subr.mxu0 %v4344
    %5349 = vmatpush1.msra.mxu0 %v4343
    %5350 = vmatprep.subr.mxu0 %v4348
    %5351 = vmatpush1.msra.mxu0 %v4347
    %5352 = vmatprep.subr.mxu0 %v4352
    %5353 = vmatpush1.msra.mxu0 %v4351
    %5354 = vmatprep.subr.mxu0 %v4356
    %5355 = vmatpush1.msra.mxu0 %v4355
    %5356 = vmatprep.subr.mxu0 %v4360
    %5357 = vmatpush1.msra.mxu0 %v4359
    %5358 = vmatprep.subr.mxu0 %v4364
    %5359 = vmatpush1.msra.mxu0 %v4363
    %5360 = vmatprep.subr.mxu0 %v4368
    %5361 = vmatpush1.msra.mxu0 %v4367
    %5362 = vmatprep.subr.mxu0 %v4372
    %5363 = vmatpush1.msra.mxu0 %v4371
    %5364 = vmatprep.subr.mxu0 %v4376
    %5365 = vmatpush1.msra.mxu0 %v4375
    %5366 = vmatprep.subr.mxu0 %v4380
    %5367 = vmatpush1.msra.mxu0 %v4379
    %5368 = vmatprep.subr.mxu0 %v4384
    %5369 = vmatpush1.msra.mxu0 %v4383
    %5370 = vmatprep.subr.mxu0 %v4388
    %5371 = vmatpush1.msra.mxu0 %v4387
    %5372 = vmatprep.subr.mxu0 %v4392
    %5373 = vmatpush1.msra.mxu0 %v4391
    %5374 = vmatprep.subr.mxu0 %v4396
    %5375 = vmatpush1.msra.mxu0 %v4395
    %5376 = vmatprep.subr.mxu0 %v4400
    %5377 = vmatpush1.msra.mxu0 %v4399
    %5378 = vmatprep.subr.mxu0 %v4404
    %5379 = vmatpush1.msra.mxu0 %v4403
    %5380 = vmatprep.subr.mxu0 %v4408
    %5381 = vmatpush1.msra.mxu0 %v4407
    %5382 = vmatprep.subr.mxu0 %v4412
    %5383 = vmatpush1.msra.mxu0 %v4411
    %5384 = vmatprep.subr.mxu0 %v4416
    %5385 = vmatpush1.msra.mxu0 %v4415
    %5386 = vmatprep.subr.mxu0 %v4420
    %5387 = vmatpush1.msra.mxu0 %v4419
    %5388 = vmatprep.subr.mxu0 %v4424
    %5389 = vmatpush1.msra.mxu0 %v4423
    %5390 = vmatprep.subr.mxu0 %v4428
    %5391 = vmatpush1.msra.mxu0 %v4427
    %5392 = vmatprep.subr.mxu0 %v4432
    %5393 = vmatpush1.msra.mxu0 %v4431
    %5394 = vmatprep.subr.mxu0 %v4436
    %5395 = vmatpush1.msra.mxu0 %v4435
    %5396 = vmatprep.subr.mxu0 %v4440
    %5397 = vmatpush1.msra.mxu0 %v4439
    %5398 = vmatprep.subr.mxu0 %v4444
    %5399 = vmatpush1.msra.mxu0 %v4443
    %5400 = vmatprep.subr.mxu0 %v4448
    %5401 = vmatpush1.msra.mxu0 %v4447
    %5402 = vmatprep.subr.mxu0 %v4452
    %5403 = vmatpush1.msra.mxu0 %v4451
    %5404 = vmatprep.subr.mxu0 %v4456
    %5405 = vmatpush1.msra.mxu0 %v4455
    %5406 = vmatprep.subr.mxu0 %v4460
    %5407 = vmatpush1.msra.mxu0 %v4459
    %5408 = vmatprep.mubr.f32.mxu0 %v5166
    %5409 = vmatmul.mubr.f32.gmra.mrb[0].mxu0 %v5343
    %v5410 = vpop.f32.mrb[0].mxu0
    %v5411 = vadd.f32 %v4468, %v5410
    %v5412 = vpop.f32.mrb[0].mxu0
    %v5413 = vadd.f32 %v4472, %v5412
    %5414 = vdwg.mxu0
    %5415 = vmatprep.subr.mxu0 %v4338
    %5416 = vmatpush1.msra.mxu0 %v4337
    %5417 = vmatprep.subr.mxu0 %v4342
    %5418 = vmatpush1.msra.mxu0 %v4341
    %5419 = vmatprep.subr.mxu0 %v4346
    %5420 = vmatpush1.msra.mxu0 %v4345
    %5421 = vmatprep.subr.mxu0 %v4350
    %5422 = vmatpush1.msra.mxu0 %v4349
    %5423 = vmatprep.subr.mxu0 %v4354
    %5424 = vmatpush1.msra.mxu0 %v4353
    %5425 = vmatprep.subr.mxu0 %v4358
    %5426 = vmatpush1.msra.mxu0 %v4357
    %5427 = vmatprep.subr.mxu0 %v4362
    %5428 = vmatpush1.msra.mxu0 %v4361
    %5429 = vmatprep.subr.mxu0 %v4366
    %5430 = vmatpush1.msra.mxu0 %v4365
    %5431 = vmatprep.subr.mxu0 %v4370
    %5432 = vmatpush1.msra.mxu0 %v4369
    %5433 = vmatprep.subr.mxu0 %v4374
    %5434 = vmatpush1.msra.mxu0 %v4373
    %5435 = vmatprep.subr.mxu0 %v4378
    %5436 = vmatpush1.msra.mxu0 %v4377
    %5437 = vmatprep.subr.mxu0 %v4382
    %5438 = vmatpush1.msra.mxu0 %v4381
    %5439 = vmatprep.subr.mxu0 %v4386
    %5440 = vmatpush1.msra.mxu0 %v4385
    %5441 = vmatprep.subr.mxu0 %v4390
    %5442 = vmatpush1.msra.mxu0 %v4389
    %5443 = vmatprep.subr.mxu0 %v4394
    %5444 = vmatpush1.msra.mxu0 %v4393
    %5445 = vmatprep.subr.mxu0 %v4398
    %5446 = vmatpush1.msra.mxu0 %v4397
    %5447 = vmatprep.subr.mxu0 %v4402
    %5448 = vmatpush1.msra.mxu0 %v4401
    %5449 = vmatprep.subr.mxu0 %v4406
    %5450 = vmatpush1.msra.mxu0 %v4405
    %5451 = vmatprep.subr.mxu0 %v4410
    %5452 = vmatpush1.msra.mxu0 %v4409
    %5453 = vmatprep.subr.mxu0 %v4414
    %5454 = vmatpush1.msra.mxu0 %v4413
    %5455 = vmatprep.subr.mxu0 %v4418
    %5456 = vmatpush1.msra.mxu0 %v4417
    %5457 = vmatprep.subr.mxu0 %v4422
    %5458 = vmatpush1.msra.mxu0 %v4421
    %5459 = vmatprep.subr.mxu0 %v4426
    %5460 = vmatpush1.msra.mxu0 %v4425
    %5461 = vmatprep.subr.mxu0 %v4430
    %5462 = vmatpush1.msra.mxu0 %v4429
    %5463 = vmatprep.subr.mxu0 %v4434
    %5464 = vmatpush1.msra.mxu0 %v4433
    %5465 = vmatprep.subr.mxu0 %v4438
    %5466 = vmatpush1.msra.mxu0 %v4437
    %5467 = vmatprep.subr.mxu0 %v4442
    %5468 = vmatpush1.msra.mxu0 %v4441
    %5469 = vmatprep.subr.mxu0 %v4446
    %5470 = vmatpush1.msra.mxu0 %v4445
    %5471 = vmatprep.subr.mxu0 %v4450
    %5472 = vmatpush1.msra.mxu0 %v4449
    %5473 = vmatprep.subr.mxu0 %v4454
    %5474 = vmatpush1.msra.mxu0 %v4453
    %5475 = vmatprep.subr.mxu0 %v4458
    %5476 = vmatpush1.msra.mxu0 %v4457
    %5477 = vmatprep.subr.mxu0 %v4462
    %5478 = vmatpush1.msra.mxu0 %v4461
    %5479 = vmatprep.mubr.f32.mxu0 %v5166
    %5480 = vmatmul.mubr.f32.gmra.mrb[0].mxu0 %v5343
    %v5481 = vpop.f32.mrb[0].mxu0
    %v5482 = vadd.f32 %v4476, %v5481
    %v5483 = vpop.f32.mrb[0].mxu0
    %v5484 = vadd.f32 %v4480, %v5483
    %5485 = vdwg.mxu0
    %v5486 = vxor.u32 %v5411, 2147483648
    %v5487 = vmul.f32 %v5486, 1.442695
    %v5488 = vpow.pop %v5487
    %v5489 = vadd.f32 %v5488, 1.0
    %v5490 = vrcp.pop %v5489
    %v5491 = vmul.f32 1.0, %v5490
    %v5492 = vxor.u32 %v5413, 2147483648
    %v5493 = vmul.f32 %v5492, 1.442695
    %v5494 = vpow.pop %v5493
    %v5495 = vadd.f32 %v5494, 1.0
    %v5496 = vrcp.pop %v5495
    %v5497 = vmul.f32 1.0, %v5496
    %v5498 = vtanh.pop %v5482
    %v5499 = vxor.u32 %v5484, 2147483648
    %v5500 = vmul.f32 %v5499, 1.442695
    %v5501 = vpow.pop %v5500
    %v5502 = vadd.f32 %v5501, 1.0
    %v5503 = vrcp.pop %v5502
    %v5504 = vmul.f32 1.0, %v5503
    %v5505 = vmul.f32 %v5497, %v5164
    %v5506 = vmul.f32 %v5491, %v5498
    %v5507 = vadd.f32 %v5505, %v5506
    %v5508 = vtanh.pop %v5507
    %v5509 = vmul.f32 %v5504, %v5508
    %s5510 = scalar_lea.vmem [#allocation4], 16
    %5511 = vst [vmem:[%s5510] sm:$0xff] %v5509
    %s5512 = scalar_lea.vmem [#allocation3], 96
    %v5513 = vld [vmem:[%s5512] sm:$0xff]
    %v5514 = vld [vmem:[%s5512 + $0x8] sm:$0xff]
    %v5515 = vld [vmem:[%s5512 + $0x10] sm:$0xff]
    %v5516 = vld [vmem:[%s5512 + $0x18] sm:$0xff]
    %5517 = vmatprep.subr.mxu0 %v4272
    %5518 = vmatpush1.msra.mxu0 %v4271
    %5519 = vmatprep.subr.mxu0 %v4276
    %5520 = vmatpush1.msra.mxu0 %v4275
    %5521 = vmatprep.subr.mxu0 %v4280
    %5522 = vmatpush1.msra.mxu0 %v4279
    %5523 = vmatprep.subr.mxu0 %v4284
    %5524 = vmatpush1.msra.mxu0 %v4283
    %5525 = vmatprep.subr.mxu0 %v4288
    %5526 = vmatpush1.msra.mxu0 %v4287
    %5527 = vmatprep.subr.mxu0 %v4292
    %5528 = vmatpush1.msra.mxu0 %v4291
    %5529 = vmatprep.subr.mxu0 %v4296
    %5530 = vmatpush1.msra.mxu0 %v4295
    %5531 = vmatprep.subr.mxu0 %v4300
    %5532 = vmatpush1.msra.mxu0 %v4299
    %5533 = vmatprep.subr.mxu0 %v4304
    %5534 = vmatpush1.msra.mxu0 %v4303
    %5535 = vmatprep.subr.mxu0 %v4308
    %5536 = vmatpush1.msra.mxu0 %v4307
    %5537 = vmatprep.subr.mxu0 %v4312
    %5538 = vmatpush1.msra.mxu0 %v4311
    %5539 = vmatprep.subr.mxu0 %v4316
    %5540 = vmatpush1.msra.mxu0 %v4315
    %5541 = vmatprep.subr.mxu0 %v4320
    %5542 = vmatpush1.msra.mxu0 %v4319
    %5543 = vmatprep.subr.mxu0 %v4324
    %5544 = vmatpush1.msra.mxu0 %v4323
    %5545 = vmatprep.subr.mxu0 %v4328
    %5546 = vmatpush1.msra.mxu0 %v4327
    %5547 = vmatprep.subr.mxu0 %v4332
    %5548 = vmatpush1.msra.mxu0 %v4331
    %5549 = vmatprep.subr.mxu0 0.0
    %5550 = vmatpush1.msra.mxu0 0.0
    %5551 = vmatprep.subr.mxu0 0.0
    %5552 = vmatpush1.msra.mxu0 0.0
    %5553 = vmatprep.subr.mxu0 0.0
    %5554 = vmatpush1.msra.mxu0 0.0
    %5555 = vmatprep.subr.mxu0 0.0
    %5556 = vmatpush1.msra.mxu0 0.0
    %5557 = vmatprep.subr.mxu0 0.0
    %5558 = vmatpush1.msra.mxu0 0.0
    %5559 = vmatprep.subr.mxu0 0.0
    %5560 = vmatpush1.msra.mxu0 0.0
    %5561 = vmatprep.subr.mxu0 0.0
    %5562 = vmatpush1.msra.mxu0 0.0
    %5563 = vmatprep.subr.mxu0 0.0
    %5564 = vmatpush1.msra.mxu0 0.0
    %5565 = vmatprep.subr.mxu0 0.0
    %5566 = vmatpush1.msra.mxu0 0.0
    %5567 = vmatprep.subr.mxu0 0.0
    %5568 = vmatpush1.msra.mxu0 0.0
    %5569 = vmatprep.subr.mxu0 0.0
    %5570 = vmatpush1.msra.mxu0 0.0
    %5571 = vmatprep.subr.mxu0 0.0
    %5572 = vmatpush1.msra.mxu0 0.0
    %5573 = vmatprep.subr.mxu0 0.0
    %5574 = vmatpush1.msra.mxu0 0.0
    %5575 = vmatprep.subr.mxu0 0.0
    %5576 = vmatpush1.msra.mxu0 0.0
    %5577 = vmatprep.subr.mxu0 0.0
    %5578 = vmatpush1.msra.mxu0 0.0
    %5579 = vmatprep.subr.mxu0 0.0
    %5580 = vmatpush1.msra.mxu0 0.0
    %5581 = vmatprep.mubr.f32.mxu0 0.0
    %5582 = vmatmul.mubr.f32.gmra.mrb[0].mxu0 %v5343
    %v5583 = vpop.f32.mrb[0].mxu0
    %v5584 = vadd.f32 0.0, %v5583
    %v5585 = vpop.f32.mrb[0].mxu0
    %v5586 = vadd.f32 0.0, %v5585
    %5587 = vdwg.mxu0
    %5588 = vmatprep.subr.mxu0 %v4274
    %5589 = vmatpush1.msra.mxu0 %v4273
    %5590 = vmatprep.subr.mxu0 %v4278
    %5591 = vmatpush1.msra.mxu0 %v4277
    %5592 = vmatprep.subr.mxu0 %v4282
    %5593 = vmatpush1.msra.mxu0 %v4281
    %5594 = vmatprep.subr.mxu0 %v4286
    %5595 = vmatpush1.msra.mxu0 %v4285
    %5596 = vmatprep.subr.mxu0 %v4290
    %5597 = vmatpush1.msra.mxu0 %v4289
    %5598 = vmatprep.subr.mxu0 %v4294
    %5599 = vmatpush1.msra.mxu0 %v4293
    %5600 = vmatprep.subr.mxu0 %v4298
    %5601 = vmatpush1.msra.mxu0 %v4297
    %5602 = vmatprep.subr.mxu0 %v4302
    %5603 = vmatpush1.msra.mxu0 %v4301
    %5604 = vmatprep.subr.mxu0 %v4306
    %5605 = vmatpush1.msra.mxu0 %v4305
    %5606 = vmatprep.subr.mxu0 %v4310
    %5607 = vmatpush1.msra.mxu0 %v4309
    %5608 = vmatprep.subr.mxu0 %v4314
    %5609 = vmatpush1.msra.mxu0 %v4313
    %5610 = vmatprep.subr.mxu0 %v4318
    %5611 = vmatpush1.msra.mxu0 %v4317
    %5612 = vmatprep.subr.mxu0 %v4322
    %5613 = vmatpush1.msra.mxu0 %v4321
    %5614 = vmatprep.subr.mxu0 %v4326
    %5615 = vmatpush1.msra.mxu0 %v4325
    %5616 = vmatprep.subr.mxu0 %v4330
    %5617 = vmatpush1.msra.mxu0 %v4329
    %5618 = vmatprep.subr.mxu0 %v4334
    %5619 = vmatpush1.msra.mxu0 %v4333
    %5620 = vmatprep.subr.mxu0 0.0
    %5621 = vmatpush1.msra.mxu0 0.0
    %5622 = vmatprep.subr.mxu0 0.0
    %5623 = vmatpush1.msra.mxu0 0.0
    %5624 = vmatprep.subr.mxu0 0.0
    %5625 = vmatpush1.msra.mxu0 0.0
    %5626 = vmatprep.subr.mxu0 0.0
    %5627 = vmatpush1.msra.mxu0 0.0
    %5628 = vmatprep.subr.mxu0 0.0
    %5629 = vmatpush1.msra.mxu0 0.0
    %5630 = vmatprep.subr.mxu0 0.0
    %5631 = vmatpush1.msra.mxu0 0.0
    %5632 = vmatprep.subr.mxu0 0.0
    %5633 = vmatpush1.msra.mxu0 0.0
    %5634 = vmatprep.subr.mxu0 0.0
    %5635 = vmatpush1.msra.mxu0 0.0
    %5636 = vmatprep.subr.mxu0 0.0
    %5637 = vmatpush1.msra.mxu0 0.0
    %5638 = vmatprep.subr.mxu0 0.0
    %5639 = vmatpush1.msra.mxu0 0.0
    %5640 = vmatprep.subr.mxu0 0.0
    %5641 = vmatpush1.msra.mxu0 0.0
    %5642 = vmatprep.subr.mxu0 0.0
    %5643 = vmatpush1.msra.mxu0 0.0
    %5644 = vmatprep.subr.mxu0 0.0
    %5645 = vmatpush1.msra.mxu0 0.0
    %5646 = vmatprep.subr.mxu0 0.0
    %5647 = vmatpush1.msra.mxu0 0.0
    %5648 = vmatprep.subr.mxu0 0.0
    %5649 = vmatpush1.msra.mxu0 0.0
    %5650 = vmatprep.subr.mxu0 0.0
    %5651 = vmatpush1.msra.mxu0 0.0
    %5652 = vmatprep.mubr.f32.mxu0 0.0
    %5653 = vmatmul.mubr.f32.gmra.mrb[0].mxu0 %v5343
    %v5654 = vpop.f32.mrb[0].mxu0
    %v5655 = vadd.f32 0.0, %v5654
    %v5656 = vpop.f32.mrb[0].mxu0
    %v5657 = vadd.f32 0.0, %v5656
    %5658 = vdwg.mxu0
    %v5659 = vadd.f32 %v5513, %v5584
    %v5660 = vadd.f32 %v5514, %v5586
    %v5661 = vadd.f32 %v5515, %v5655
    %v5662 = vadd.f32 %v5516, %v5657
    %v5663 = vxor.u32 %v5659, 2147483648
    %v5664 = vmul.f32 %v5663, 1.442695
    %v5665 = vpow.pop %v5664
    %v5666 = vadd.f32 %v5665, 1.0
    %v5667 = vrcp.pop %v5666
    %v5668 = vmul.f32 1.0, %v5667
    %v5669 = vxor.u32 %v5660, 2147483648
    %v5670 = vmul.f32 %v5669, 1.442695
    %v5671 = vpow.pop %v5670
    %v5672 = vadd.f32 %v5671, 1.0
    %v5673 = vrcp.pop %v5672
    %v5674 = vmul.f32 1.0, %v5673
    %v5675 = vtanh.pop %v5661
    %v5676 = vxor.u32 %v5662, 2147483648
    %v5677 = vmul.f32 %v5676, 1.442695
    %v5678 = vpow.pop %v5677
    %v5679 = vadd.f32 %v5678, 1.0
    %v5680 = vrcp.pop %v5679
    %v5681 = vmul.f32 1.0, %v5680
    %v5682 = vmul.f32 %v5674, %v5341
    %v5683 = vmul.f32 %v5668, %v5675
    %v5684 = vadd.f32 %v5682, %v5683
    %v5685 = vtanh.pop %v5684
    %v5686 = vmul.f32 %v5681, %v5685
    %5687 = vmatprep.subr.mxu0 %v4336
    %5688 = vmatpush1.msra.mxu0 %v4335
    %5689 = vmatprep.subr.mxu0 %v4340
    %5690 = vmatpush1.msra.mxu0 %v4339
    %5691 = vmatprep.subr.mxu0 %v4344
    %5692 = vmatpush1.msra.mxu0 %v4343
    %5693 = vmatprep.subr.mxu0 %v4348
    %5694 = vmatpush1.msra.mxu0 %v4347
    %5695 = vmatprep.subr.mxu0 %v4352
    %5696 = vmatpush1.msra.mxu0 %v4351
    %5697 = vmatprep.subr.mxu0 %v4356
    %5698 = vmatpush1.msra.mxu0 %v4355
    %5699 = vmatprep.subr.mxu0 %v4360
    %5700 = vmatpush1.msra.mxu0 %v4359
    %5701 = vmatprep.subr.mxu0 %v4364
    %5702 = vmatpush1.msra.mxu0 %v4363
    %5703 = vmatprep.subr.mxu0 %v4368
    %5704 = vmatpush1.msra.mxu0 %v4367
    %5705 = vmatprep.subr.mxu0 %v4372
    %5706 = vmatpush1.msra.mxu0 %v4371
    %5707 = vmatprep.subr.mxu0 %v4376
    %5708 = vmatpush1.msra.mxu0 %v4375
    %5709 = vmatprep.subr.mxu0 %v4380
    %5710 = vmatpush1.msra.mxu0 %v4379
    %5711 = vmatprep.subr.mxu0 %v4384
    %5712 = vmatpush1.msra.mxu0 %v4383
    %5713 = vmatprep.subr.mxu0 %v4388
    %5714 = vmatpush1.msra.mxu0 %v4387
    %5715 = vmatprep.subr.mxu0 %v4392
    %5716 = vmatpush1.msra.mxu0 %v4391
    %5717 = vmatprep.subr.mxu0 %v4396
    %5718 = vmatpush1.msra.mxu0 %v4395
    %5719 = vmatprep.subr.mxu0 %v4400
    %5720 = vmatpush1.msra.mxu0 %v4399
    %5721 = vmatprep.subr.mxu0 %v4404
    %5722 = vmatpush1.msra.mxu0 %v4403
    %5723 = vmatprep.subr.mxu0 %v4408
    %5724 = vmatpush1.msra.mxu0 %v4407
    %5725 = vmatprep.subr.mxu0 %v4412
    %5726 = vmatpush1.msra.mxu0 %v4411
    %5727 = vmatprep.subr.mxu0 %v4416
    %5728 = vmatpush1.msra.mxu0 %v4415
    %5729 = vmatprep.subr.mxu0 %v4420
    %5730 = vmatpush1.msra.mxu0 %v4419
    %5731 = vmatprep.subr.mxu0 %v4424
    %5732 = vmatpush1.msra.mxu0 %v4423
    %5733 = vmatprep.subr.mxu0 %v4428
    %5734 = vmatpush1.msra.mxu0 %v4427
    %5735 = vmatprep.subr.mxu0 %v4432
    %5736 = vmatpush1.msra.mxu0 %v4431
    %5737 = vmatprep.subr.mxu0 %v4436
    %5738 = vmatpush1.msra.mxu0 %v4435
    %5739 = vmatprep.subr.mxu0 %v4440
    %5740 = vmatpush1.msra.mxu0 %v4439
    %5741 = vmatprep.subr.mxu0 %v4444
    %5742 = vmatpush1.msra.mxu0 %v4443
    %5743 = vmatprep.subr.mxu0 %v4448
    %5744 = vmatpush1.msra.mxu0 %v4447
    %5745 = vmatprep.subr.mxu0 %v4452
    %5746 = vmatpush1.msra.mxu0 %v4451
    %5747 = vmatprep.subr.mxu0 %v4456
    %5748 = vmatpush1.msra.mxu0 %v4455
    %5749 = vmatprep.subr.mxu0 %v4460
    %5750 = vmatpush1.msra.mxu0 %v4459
    %5751 = vmatprep.mubr.f32.mxu0 %v5509
    %5752 = vmatmul.mubr.f32.gmra.mrb[0].mxu0 %v5686
    %v5753 = vpop.f32.mrb[0].mxu0
    %v5754 = vadd.f32 %v4468, %v5753
    %v5755 = vpop.f32.mrb[0].mxu0
    %v5756 = vadd.f32 %v4472, %v5755
    %5757 = vdwg.mxu0
    %5758 = vmatprep.subr.mxu0 %v4338
    %5759 = vmatpush1.msra.mxu0 %v4337
    %5760 = vmatprep.subr.mxu0 %v4342
    %5761 = vmatpush1.msra.mxu0 %v4341
    %5762 = vmatprep.subr.mxu0 %v4346
    %5763 = vmatpush1.msra.mxu0 %v4345
    %5764 = vmatprep.subr.mxu0 %v4350
    %5765 = vmatpush1.msra.mxu0 %v4349
    %5766 = vmatprep.subr.mxu0 %v4354
    %5767 = vmatpush1.msra.mxu0 %v4353
    %5768 = vmatprep.subr.mxu0 %v4358
    %5769 = vmatpush1.msra.mxu0 %v4357
    %5770 = vmatprep.subr.mxu0 %v4362
    %5771 = vmatpush1.msra.mxu0 %v4361
    %5772 = vmatprep.subr.mxu0 %v4366
    %5773 = vmatpush1.msra.mxu0 %v4365
    %5774 = vmatprep.subr.mxu0 %v4370
    %5775 = vmatpush1.msra.mxu0 %v4369
    %5776 = vmatprep.subr.mxu0 %v4374
    %5777 = vmatpush1.msra.mxu0 %v4373
    %5778 = vmatprep.subr.mxu0 %v4378
    %5779 = vmatpush1.msra.mxu0 %v4377
    %5780 = vmatprep.subr.mxu0 %v4382
    %5781 = vmatpush1.msra.mxu0 %v4381
    %5782 = vmatprep.subr.mxu0 %v4386
    %5783 = vmatpush1.msra.mxu0 %v4385
    %5784 = vmatprep.subr.mxu0 %v4390
    %5785 = vmatpush1.msra.mxu0 %v4389
    %5786 = vmatprep.subr.mxu0 %v4394
    %5787 = vmatpush1.msra.mxu0 %v4393
    %5788 = vmatprep.subr.mxu0 %v4398
    %5789 = vmatpush1.msra.mxu0 %v4397
    %5790 = vmatprep.subr.mxu0 %v4402
    %5791 = vmatpush1.msra.mxu0 %v4401
    %5792 = vmatprep.subr.mxu0 %v4406
    %5793 = vmatpush1.msra.mxu0 %v4405
    %5794 = vmatprep.subr.mxu0 %v4410
    %5795 = vmatpush1.msra.mxu0 %v4409
    %5796 = vmatprep.subr.mxu0 %v4414
    %5797 = vmatpush1.msra.mxu0 %v4413
    %5798 = vmatprep.subr.mxu0 %v4418
    %5799 = vmatpush1.msra.mxu0 %v4417
    %5800 = vmatprep.subr.mxu0 %v4422
    %5801 = vmatpush1.msra.mxu0 %v4421
    %5802 = vmatprep.subr.mxu0 %v4426
    %5803 = vmatpush1.msra.mxu0 %v4425
    %5804 = vmatprep.subr.mxu0 %v4430
    %5805 = vmatpush1.msra.mxu0 %v4429
    %5806 = vmatprep.subr.mxu0 %v4434
    %5807 = vmatpush1.msra.mxu0 %v4433
    %5808 = vmatprep.subr.mxu0 %v4438
    %5809 = vmatpush1.msra.mxu0 %v4437
    %5810 = vmatprep.subr.mxu0 %v4442
    %5811 = vmatpush1.msra.mxu0 %v4441
    %5812 = vmatprep.subr.mxu0 %v4446
    %5813 = vmatpush1.msra.mxu0 %v4445
    %5814 = vmatprep.subr.mxu0 %v4450
    %5815 = vmatpush1.msra.mxu0 %v4449
    %5816 = vmatprep.subr.mxu0 %v4454
    %5817 = vmatpush1.msra.mxu0 %v4453
    %5818 = vmatprep.subr.mxu0 %v4458
    %5819 = vmatpush1.msra.mxu0 %v4457
    %5820 = vmatprep.subr.mxu0 %v4462
    %5821 = vmatpush1.msra.mxu0 %v4461
    %5822 = vmatprep.mubr.f32.mxu0 %v5509
    %5823 = vmatmul.mubr.f32.gmra.mrb[0].mxu0 %v5686
    %v5824 = vpop.f32.mrb[0].mxu0
    %v5825 = vadd.f32 %v4476, %v5824
    %v5826 = vpop.f32.mrb[0].mxu0
    %v5827 = vadd.f32 %v4480, %v5826
    %5828 = vdwg.mxu0
    %v5829 = vxor.u32 %v5754, 2147483648
    %v5830 = vmul.f32 %v5829, 1.442695
    %v5831 = vpow.pop %v5830
    %v5832 = vadd.f32 %v5831, 1.0
    %v5833 = vrcp.pop %v5832
    %v5834 = vmul.f32 1.0, %v5833
    %v5835 = vxor.u32 %v5756, 2147483648
    %v5836 = vmul.f32 %v5835, 1.442695
    %v5837 = vpow.pop %v5836
    %v5838 = vadd.f32 %v5837, 1.0
    %v5839 = vrcp.pop %v5838
    %v5840 = vmul.f32 1.0, %v5839
    %v5841 = vtanh.pop %v5825
    %v5842 = vxor.u32 %v5827, 2147483648
    %v5843 = vmul.f32 %v5842, 1.442695
    %v5844 = vpow.pop %v5843
    %v5845 = vadd.f32 %v5844, 1.0
    %v5846 = vrcp.pop %v5845
    %v5847 = vmul.f32 1.0, %v5846
    %v5848 = vmul.f32 %v5840, %v5507
    %v5849 = vmul.f32 %v5834, %v5841
    %v5850 = vadd.f32 %v5848, %v5849
    %v5851 = vtanh.pop %v5850
    %v5852 = vmul.f32 %v5847, %v5851
    %s5853 = scalar_lea.vmem [#allocation4], 24
    %5854 = vst [vmem:[%s5853] sm:$0xff] %v5852
    %s5855 = scalar_lea.vmem [#allocation3], 128
    %v5856 = vld [vmem:[%s5855] sm:$0xff]
    %v5857 = vld [vmem:[%s5855 + $0x8] sm:$0xff]
    %v5858 = vld [vmem:[%s5855 + $0x10] sm:$0xff]
    %v5859 = vld [vmem:[%s5855 + $0x18] sm:$0xff]
    %5860 = vmatprep.subr.mxu0 %v4272
    %5861 = vmatpush1.msra.mxu0 %v4271
    %5862 = vmatprep.subr.mxu0 %v4276
    %5863 = vmatpush1.msra.mxu0 %v4275
    %5864 = vmatprep.subr.mxu0 %v4280
    %5865 = vmatpush1.msra.mxu0 %v4279
    %5866 = vmatprep.subr.mxu0 %v4284
    %5867 = vmatpush1.msra.mxu0 %v4283
    %5868 = vmatprep.subr.mxu0 %v4288
    %5869 = vmatpush1.msra.mxu0 %v4287
    %5870 = vmatprep.subr.mxu0 %v4292
    %5871 = vmatpush1.msra.mxu0 %v4291
    %5872 = vmatprep.subr.mxu0 %v4296
    %5873 = vmatpush1.msra.mxu0 %v4295
    %5874 = vmatprep.subr.mxu0 %v4300
    %5875 = vmatpush1.msra.mxu0 %v4299
    %5876 = vmatprep.subr.mxu0 %v4304
    %5877 = vmatpush1.msra.mxu0 %v4303
    %5878 = vmatprep.subr.mxu0 %v4308
    %5879 = vmatpush1.msra.mxu0 %v4307
    %5880 = vmatprep.subr.mxu0 %v4312
    %5881 = vmatpush1.msra.mxu0 %v4311
    %5882 = vmatprep.subr.mxu0 %v4316
    %5883 = vmatpush1.msra.mxu0 %v4315
    %5884 = vmatprep.subr.mxu0 %v4320
    %5885 = vmatpush1.msra.mxu0 %v4319
    %5886 = vmatprep.subr.mxu0 %v4324
    %5887 = vmatpush1.msra.mxu0 %v4323
    %5888 = vmatprep.subr.mxu0 %v4328
    %5889 = vmatpush1.msra.mxu0 %v4327
    %5890 = vmatprep.subr.mxu0 %v4332
    %5891 = vmatpush1.msra.mxu0 %v4331
    %5892 = vmatprep.subr.mxu0 0.0
    %5893 = vmatpush1.msra.mxu0 0.0
    %5894 = vmatprep.subr.mxu0 0.0
    %5895 = vmatpush1.msra.mxu0 0.0
    %5896 = vmatprep.subr.mxu0 0.0
    %5897 = vmatpush1.msra.mxu0 0.0
    %5898 = vmatprep.subr.mxu0 0.0
    %5899 = vmatpush1.msra.mxu0 0.0
    %5900 = vmatprep.subr.mxu0 0.0
    %5901 = vmatpush1.msra.mxu0 0.0
    %5902 = vmatprep.subr.mxu0 0.0
    %5903 = vmatpush1.msra.mxu0 0.0
    %5904 = vmatprep.subr.mxu0 0.0
    %5905 = vmatpush1.msra.mxu0 0.0
    %5906 = vmatprep.subr.mxu0 0.0
    %5907 = vmatpush1.msra.mxu0 0.0
    %5908 = vmatprep.subr.mxu0 0.0
    %5909 = vmatpush1.msra.mxu0 0.0
    %5910 = vmatprep.subr.mxu0 0.0
    %5911 = vmatpush1.msra.mxu0 0.0
    %5912 = vmatprep.subr.mxu0 0.0
    %5913 = vmatpush1.msra.mxu0 0.0
    %5914 = vmatprep.subr.mxu0 0.0
    %5915 = vmatpush1.msra.mxu0 0.0
    %5916 = vmatprep.subr.mxu0 0.0
    %5917 = vmatpush1.msra.mxu0 0.0
    %5918 = vmatprep.subr.mxu0 0.0
    %5919 = vmatpush1.msra.mxu0 0.0
    %5920 = vmatprep.subr.mxu0 0.0
    %5921 = vmatpush1.msra.mxu0 0.0
    %5922 = vmatprep.subr.mxu0 0.0
    %5923 = vmatpush1.msra.mxu0 0.0
    %5924 = vmatprep.mubr.f32.mxu0 0.0
    %5925 = vmatmul.mubr.f32.gmra.mrb[0].mxu0 %v5686
    %v5926 = vpop.f32.mrb[0].mxu0
    %v5927 = vadd.f32 0.0, %v5926
    %v5928 = vpop.f32.mrb[0].mxu0
    %v5929 = vadd.f32 0.0, %v5928
    %5930 = vdwg.mxu0
    %5931 = vmatprep.subr.mxu0 %v4274
    %5932 = vmatpush1.msra.mxu0 %v4273
    %5933 = vmatprep.subr.mxu0 %v4278
    %5934 = vmatpush1.msra.mxu0 %v4277
    %5935 = vmatprep.subr.mxu0 %v4282
    %5936 = vmatpush1.msra.mxu0 %v4281
    %5937 = vmatprep.subr.mxu0 %v4286
    %5938 = vmatpush1.msra.mxu0 %v4285
    %5939 = vmatprep.subr.mxu0 %v4290
    %5940 = vmatpush1.msra.mxu0 %v4289
    %5941 = vmatprep.subr.mxu0 %v4294
    %5942 = vmatpush1.msra.mxu0 %v4293
    %5943 = vmatprep.subr.mxu0 %v4298
    %5944 = vmatpush1.msra.mxu0 %v4297
    %5945 = vmatprep.subr.mxu0 %v4302
    %5946 = vmatpush1.msra.mxu0 %v4301
    %5947 = vmatprep.subr.mxu0 %v4306
    %5948 = vmatpush1.msra.mxu0 %v4305
    %5949 = vmatprep.subr.mxu0 %v4310
    %5950 = vmatpush1.msra.mxu0 %v4309
    %5951 = vmatprep.subr.mxu0 %v4314
    %5952 = vmatpush1.msra.mxu0 %v4313
    %5953 = vmatprep.subr.mxu0 %v4318
    %5954 = vmatpush1.msra.mxu0 %v4317
    %5955 = vmatprep.subr.mxu0 %v4322
    %5956 = vmatpush1.msra.mxu0 %v4321
    %5957 = vmatprep.subr.mxu0 %v4326
    %5958 = vmatpush1.msra.mxu0 %v4325
    %5959 = vmatprep.subr.mxu0 %v4330
    %5960 = vmatpush1.msra.mxu0 %v4329
    %5961 = vmatprep.subr.mxu0 %v4334
    %5962 = vmatpush1.msra.mxu0 %v4333
    %5963 = vmatprep.subr.mxu0 0.0
    %5964 = vmatpush1.msra.mxu0 0.0
    %5965 = vmatprep.subr.mxu0 0.0
    %5966 = vmatpush1.msra.mxu0 0.0
    %5967 = vmatprep.subr.mxu0 0.0
    %5968 = vmatpush1.msra.mxu0 0.0
    %5969 = vmatprep.subr.mxu0 0.0
    %5970 = vmatpush1.msra.mxu0 0.0
    %5971 = vmatprep.subr.mxu0 0.0
    %5972 = vmatpush1.msra.mxu0 0.0
    %5973 = vmatprep.subr.mxu0 0.0
    %5974 = vmatpush1.msra.mxu0 0.0
    %5975 = vmatprep.subr.mxu0 0.0
    %5976 = vmatpush1.msra.mxu0 0.0
    %5977 = vmatprep.subr.mxu0 0.0
    %5978 = vmatpush1.msra.mxu0 0.0
    %5979 = vmatprep.subr.mxu0 0.0
    %5980 = vmatpush1.msra.mxu0 0.0
    %5981 = vmatprep.subr.mxu0 0.0
    %5982 = vmatpush1.msra.mxu0 0.0
    %5983 = vmatprep.subr.mxu0 0.0
    %5984 = vmatpush1.msra.mxu0 0.0
    %5985 = vmatprep.subr.mxu0 0.0
    %5986 = vmatpush1.msra.mxu0 0.0
    %5987 = vmatprep.subr.mxu0 0.0
    %5988 = vmatpush1.msra.mxu0 0.0
    %5989 = vmatprep.subr.mxu0 0.0
    %5990 = vmatpush1.msra.mxu0 0.0
    %5991 = vmatprep.subr.mxu0 0.0
    %5992 = vmatpush1.msra.mxu0 0.0
    %5993 = vmatprep.subr.mxu0 0.0
    %5994 = vmatpush1.msra.mxu0 0.0
    %5995 = vmatprep.mubr.f32.mxu0 0.0
    %5996 = vmatmul.mubr.f32.gmra.mrb[0].mxu0 %v5686
    %v5997 = vpop.f32.mrb[0].mxu0
    %v5998 = vadd.f32 0.0, %v5997
    %v5999 = vpop.f32.mrb[0].mxu0
    %v6000 = vadd.f32 0.0, %v5999
    %6001 = vdwg.mxu0
    %v6002 = vadd.f32 %v5856, %v5927
    %v6003 = vadd.f32 %v5857, %v5929
    %v6004 = vadd.f32 %v5858, %v5998
    %v6005 = vadd.f32 %v5859, %v6000
    %v6006 = vxor.u32 %v6002, 2147483648
    %v6007 = vmul.f32 %v6006, 1.442695
    %v6008 = vpow.pop %v6007
    %v6009 = vadd.f32 %v6008, 1.0
    %v6010 = vrcp.pop %v6009
    %v6011 = vmul.f32 1.0, %v6010
    %v6012 = vxor.u32 %v6003, 2147483648
    %v6013 = vmul.f32 %v6012, 1.442695
    %v6014 = vpow.pop %v6013
    %v6015 = vadd.f32 %v6014, 1.0
    %v6016 = vrcp.pop %v6015
    %v6017 = vmul.f32 1.0, %v6016
    %v6018 = vtanh.pop %v6004
    %v6019 = vxor.u32 %v6005, 2147483648
    %v6020 = vmul.f32 %v6019, 1.442695
    %v6021 = vpow.pop %v6020
    %v6022 = vadd.f32 %v6021, 1.0
    %v6023 = vrcp.pop %v6022
    %v6024 = vmul.f32 1.0, %v6023
    %v6025 = vmul.f32 %v6017, %v5684
    %v6026 = vmul.f32 %v6011, %v6018
    %v6027 = vadd.f32 %v6025, %v6026
    %v6028 = vtanh.pop %v6027
    %v6029 = vmul.f32 %v6024, %v6028
    %6030 = vmatprep.subr.mxu0 %v4336
    %6031 = vmatpush1.msra.mxu0 %v4335
    %6032 = vmatprep.subr.mxu0 %v4340
    %6033 = vmatpush1.msra.mxu0 %v4339
    %6034 = vmatprep.subr.mxu0 %v4344
    %6035 = vmatpush1.msra.mxu0 %v4343
    %6036 = vmatprep.subr.mxu0 %v4348
    %6037 = vmatpush1.msra.mxu0 %v4347
    %6038 = vmatprep.subr.mxu0 %v4352
    %6039 = vmatpush1.msra.mxu0 %v4351
    %6040 = vmatprep.subr.mxu0 %v4356
    %6041 = vmatpush1.msra.mxu0 %v4355
    %6042 = vmatprep.subr.mxu0 %v4360
    %6043 = vmatpush1.msra.mxu0 %v4359
    %6044 = vmatprep.subr.mxu0 %v4364
    %6045 = vmatpush1.msra.mxu0 %v4363
    %6046 = vmatprep.subr.mxu0 %v4368
    %6047 = vmatpush1.msra.mxu0 %v4367
    %6048 = vmatprep.subr.mxu0 %v4372
    %6049 = vmatpush1.msra.mxu0 %v4371
    %6050 = vmatprep.subr.mxu0 %v4376
    %6051 = vmatpush1.msra.mxu0 %v4375
    %6052 = vmatprep.subr.mxu0 %v4380
    %6053 = vmatpush1.msra.mxu0 %v4379
    %6054 = vmatprep.subr.mxu0 %v4384
    %6055 = vmatpush1.msra.mxu0 %v4383
    %6056 = vmatprep.subr.mxu0 %v4388
    %6057 = vmatpush1.msra.mxu0 %v4387
    %6058 = vmatprep.subr.mxu0 %v4392
    %6059 = vmatpush1.msra.mxu0 %v4391
    %6060 = vmatprep.subr.mxu0 %v4396
    %6061 = vmatpush1.msra.mxu0 %v4395
    %6062 = vmatprep.subr.mxu0 %v4400
    %6063 = vmatpush1.msra.mxu0 %v4399
    %6064 = vmatprep.subr.mxu0 %v4404
    %6065 = vmatpush1.msra.mxu0 %v4403
    %6066 = vmatprep.subr.mxu0 %v4408
    %6067 = vmatpush1.msra.mxu0 %v4407
    %6068 = vmatprep.subr.mxu0 %v4412
    %6069 = vmatpush1.msra.mxu0 %v4411
    %6070 = vmatprep.subr.mxu0 %v4416
    %6071 = vmatpush1.msra.mxu0 %v4415
    %6072 = vmatprep.subr.mxu0 %v4420
    %6073 = vmatpush1.msra.mxu0 %v4419
    %6074 = vmatprep.subr.mxu0 %v4424
    %6075 = vmatpush1.msra.mxu0 %v4423
    %6076 = vmatprep.subr.mxu0 %v4428
    %6077 = vmatpush1.msra.mxu0 %v4427
    %6078 = vmatprep.subr.mxu0 %v4432
    %6079 = vmatpush1.msra.mxu0 %v4431
    %6080 = vmatprep.subr.mxu0 %v4436
    %6081 = vmatpush1.msra.mxu0 %v4435
    %6082 = vmatprep.subr.mxu0 %v4440
    %6083 = vmatpush1.msra.mxu0 %v4439
    %6084 = vmatprep.subr.mxu0 %v4444
    %6085 = vmatpush1.msra.mxu0 %v4443
    %6086 = vmatprep.subr.mxu0 %v4448
    %6087 = vmatpush1.msra.mxu0 %v4447
    %6088 = vmatprep.subr.mxu0 %v4452
    %6089 = vmatpush1.msra.mxu0 %v4451
    %6090 = vmatprep.subr.mxu0 %v4456
    %6091 = vmatpush1.msra.mxu0 %v4455
    %6092 = vmatprep.subr.mxu0 %v4460
    %6093 = vmatpush1.msra.mxu0 %v4459
    %6094 = vmatprep.mubr.f32.mxu0 %v5852
    %6095 = vmatmul.mubr.f32.gmra.mrb[0].mxu0 %v6029
    %v6096 = vpop.f32.mrb[0].mxu0
    %v6097 = vadd.f32 %v4468, %v6096
    %v6098 = vpop.f32.mrb[0].mxu0
    %v6099 = vadd.f32 %v4472, %v6098
    %6100 = vdwg.mxu0
    %6101 = vmatprep.subr.mxu0 %v4338
    %6102 = vmatpush1.msra.mxu0 %v4337
    %6103 = vmatprep.subr.mxu0 %v4342
    %6104 = vmatpush1.msra.mxu0 %v4341
    %6105 = vmatprep.subr.mxu0 %v4346
    %6106 = vmatpush1.msra.mxu0 %v4345
    %6107 = vmatprep.subr.mxu0 %v4350
    %6108 = vmatpush1.msra.mxu0 %v4349
    %6109 = vmatprep.subr.mxu0 %v4354
    %6110 = vmatpush1.msra.mxu0 %v4353
    %6111 = vmatprep.subr.mxu0 %v4358
    %6112 = vmatpush1.msra.mxu0 %v4357
    %6113 = vmatprep.subr.mxu0 %v4362
    %6114 = vmatpush1.msra.mxu0 %v4361
    %6115 = vmatprep.subr.mxu0 %v4366
    %6116 = vmatpush1.msra.mxu0 %v4365
    %6117 = vmatprep.subr.mxu0 %v4370
    %6118 = vmatpush1.msra.mxu0 %v4369
    %6119 = vmatprep.subr.mxu0 %v4374
    %6120 = vmatpush1.msra.mxu0 %v4373
    %6121 = vmatprep.subr.mxu0 %v4378
    %6122 = vmatpush1.msra.mxu0 %v4377
    %6123 = vmatprep.subr.mxu0 %v4382
    %6124 = vmatpush1.msra.mxu0 %v4381
    %6125 = vmatprep.subr.mxu0 %v4386
    %6126 = vmatpush1.msra.mxu0 %v4385
    %6127 = vmatprep.subr.mxu0 %v4390
    %6128 = vmatpush1.msra.mxu0 %v4389
    %6129 = vmatprep.subr.mxu0 %v4394
    %6130 = vmatpush1.msra.mxu0 %v4393
    %6131 = vmatprep.subr.mxu0 %v4398
    %6132 = vmatpush1.msra.mxu0 %v4397
    %6133 = vmatprep.subr.mxu0 %v4402
    %6134 = vmatpush1.msra.mxu0 %v4401
    %6135 = vmatprep.subr.mxu0 %v4406
    %6136 = vmatpush1.msra.mxu0 %v4405
    %6137 = vmatprep.subr.mxu0 %v4410
    %6138 = vmatpush1.msra.mxu0 %v4409
    %6139 = vmatprep.subr.mxu0 %v4414
    %6140 = vmatpush1.msra.mxu0 %v4413
    %6141 = vmatprep.subr.mxu0 %v4418
    %6142 = vmatpush1.msra.mxu0 %v4417
    %6143 = vmatprep.subr.mxu0 %v4422
    %6144 = vmatpush1.msra.mxu0 %v4421
    %6145 = vmatprep.subr.mxu0 %v4426
    %6146 = vmatpush1.msra.mxu0 %v4425
    %6147 = vmatprep.subr.mxu0 %v4430
    %6148 = vmatpush1.msra.mxu0 %v4429
    %6149 = vmatprep.subr.mxu0 %v4434
    %6150 = vmatpush1.msra.mxu0 %v4433
    %6151 = vmatprep.subr.mxu0 %v4438
    %6152 = vmatpush1.msra.mxu0 %v4437
    %6153 = vmatprep.subr.mxu0 %v4442
    %6154 = vmatpush1.msra.mxu0 %v4441
    %6155 = vmatprep.subr.mxu0 %v4446
    %6156 = vmatpush1.msra.mxu0 %v4445
    %6157 = vmatprep.subr.mxu0 %v4450
    %6158 = vmatpush1.msra.mxu0 %v4449
    %6159 = vmatprep.subr.mxu0 %v4454
    %6160 = vmatpush1.msra.mxu0 %v4453
    %6161 = vmatprep.subr.mxu0 %v4458
    %6162 = vmatpush1.msra.mxu0 %v4457
    %6163 = vmatprep.subr.mxu0 %v4462
    %6164 = vmatpush1.msra.mxu0 %v4461
    %6165 = vmatprep.mubr.f32.mxu0 %v5852
    %6166 = vmatmul.mubr.f32.gmra.mrb[0].mxu0 %v6029
    %v6167 = vpop.f32.mrb[0].mxu0
    %v6168 = vadd.f32 %v4476, %v6167
    %v6169 = vpop.f32.mrb[0].mxu0
    %v6170 = vadd.f32 %v4480, %v6169
    %6171 = vdwg.mxu0
    %v6172 = vxor.u32 %v6097, 2147483648
    %v6173 = vmul.f32 %v6172, 1.442695
    %v6174 = vpow.pop %v6173
    %v6175 = vadd.f32 %v6174, 1.0
    %v6176 = vrcp.pop %v6175
    %v6177 = vmul.f32 1.0, %v6176
    %v6178 = vxor.u32 %v6099, 2147483648
    %v6179 = vmul.f32 %v6178, 1.442695
    %v6180 = vpow.pop %v6179
    %v6181 = vadd.f32 %v6180, 1.0
    %v6182 = vrcp.pop %v6181
    %v6183 = vmul.f32 1.0, %v6182
    %v6184 = vtanh.pop %v6168
    %v6185 = vxor.u32 %v6170, 2147483648
    %v6186 = vmul.f32 %v6185, 1.442695
    %v6187 = vpow.pop %v6186
    %v6188 = vadd.f32 %v6187, 1.0
    %v6189 = vrcp.pop %v6188
    %v6190 = vmul.f32 1.0, %v6189
    %v6191 = vmul.f32 %v6183, %v5850
    %v6192 = vmul.f32 %v6177, %v6184
    %v6193 = vadd.f32 %v6191, %v6192
    %v6194 = vtanh.pop %v6193
    %v6195 = vmul.f32 %v6190, %v6194
    %s6196 = scalar_lea.vmem [#allocation4], 32
    %6197 = vst [vmem:[%s6196] sm:$0xff] %v6195
    %s6198 = scalar_lea.vmem [#allocation3], 160
    %v6199 = vld [vmem:[%s6198] sm:$0xff]
    %v6200 = vld [vmem:[%s6198 + $0x8] sm:$0xff]
    %v6201 = vld [vmem:[%s6198 + $0x10] sm:$0xff]
    %v6202 = vld [vmem:[%s6198 + $0x18] sm:$0xff]
    %6203 = vmatprep.subr.mxu0 %v4272
    %6204 = vmatpush1.msra.mxu0 %v4271
    %6205 = vmatprep.subr.mxu0 %v4276
    %6206 = vmatpush1.msra.mxu0 %v4275
    %6207 = vmatprep.subr.mxu0 %v4280
    %6208 = vmatpush1.msra.mxu0 %v4279
    %6209 = vmatprep.subr.mxu0 %v4284
    %6210 = vmatpush1.msra.mxu0 %v4283
    %6211 = vmatprep.subr.mxu0 %v4288
    %6212 = vmatpush1.msra.mxu0 %v4287
    %6213 = vmatprep.subr.mxu0 %v4292
    %6214 = vmatpush1.msra.mxu0 %v4291
    %6215 = vmatprep.subr.mxu0 %v4296
    %6216 = vmatpush1.msra.mxu0 %v4295
    %6217 = vmatprep.subr.mxu0 %v4300
    %6218 = vmatpush1.msra.mxu0 %v4299
    %6219 = vmatprep.subr.mxu0 %v4304
    %6220 = vmatpush1.msra.mxu0 %v4303
    %6221 = vmatprep.subr.mxu0 %v4308
    %6222 = vmatpush1.msra.mxu0 %v4307
    %6223 = vmatprep.subr.mxu0 %v4312
    %6224 = vmatpush1.msra.mxu0 %v4311
    %6225 = vmatprep.subr.mxu0 %v4316
    %6226 = vmatpush1.msra.mxu0 %v4315
    %6227 = vmatprep.subr.mxu0 %v4320
    %6228 = vmatpush1.msra.mxu0 %v4319
    %6229 = vmatprep.subr.mxu0 %v4324
    %6230 = vmatpush1.msra.mxu0 %v4323
    %6231 = vmatprep.subr.mxu0 %v4328
    %6232 = vmatpush1.msra.mxu0 %v4327
    %6233 = vmatprep.subr.mxu0 %v4332
    %6234 = vmatpush1.msra.mxu0 %v4331
    %6235 = vmatprep.subr.mxu0 0.0
    %6236 = vmatpush1.msra.mxu0 0.0
    %6237 = vmatprep.subr.mxu0 0.0
    %6238 = vmatpush1.msra.mxu0 0.0
    %6239 = vmatprep.subr.mxu0 0.0
    %6240 = vmatpush1.msra.mxu0 0.0
    %6241 = vmatprep.subr.mxu0 0.0
    %6242 = vmatpush1.msra.mxu0 0.0
    %6243 = vmatprep.subr.mxu0 0.0
    %6244 = vmatpush1.msra.mxu0 0.0
    %6245 = vmatprep.subr.mxu0 0.0
    %6246 = vmatpush1.msra.mxu0 0.0
    %6247 = vmatprep.subr.mxu0 0.0
    %6248 = vmatpush1.msra.mxu0 0.0
    %6249 = vmatprep.subr.mxu0 0.0
    %6250 = vmatpush1.msra.mxu0 0.0
    %6251 = vmatprep.subr.mxu0 0.0
    %6252 = vmatpush1.msra.mxu0 0.0
    %6253 = vmatprep.subr.mxu0 0.0
    %6254 = vmatpush1.msra.mxu0 0.0
    %6255 = vmatprep.subr.mxu0 0.0
    %6256 = vmatpush1.msra.mxu0 0.0
    %6257 = vmatprep.subr.mxu0 0.0
    %6258 = vmatpush1.msra.mxu0 0.0
    %6259 = vmatprep.subr.mxu0 0.0
    %6260 = vmatpush1.msra.mxu0 0.0
    %6261 = vmatprep.subr.mxu0 0.0
    %6262 = vmatpush1.msra.mxu0 0.0
    %6263 = vmatprep.subr.mxu0 0.0
    %6264 = vmatpush1.msra.mxu0 0.0
    %6265 = vmatprep.subr.mxu0 0.0
    %6266 = vmatpush1.msra.mxu0 0.0
    %6267 = vmatprep.mubr.f32.mxu0 0.0
    %6268 = vmatmul.mubr.f32.gmra.mrb[0].mxu0 %v6029
    %v6269 = vpop.f32.mrb[0].mxu0
    %v6270 = vadd.f32 0.0, %v6269
    %v6271 = vpop.f32.mrb[0].mxu0
    %v6272 = vadd.f32 0.0, %v6271
    %6273 = vdwg.mxu0
    %6274 = vmatprep.subr.mxu0 %v4274
    %6275 = vmatpush1.msra.mxu0 %v4273
    %6276 = vmatprep.subr.mxu0 %v4278
    %6277 = vmatpush1.msra.mxu0 %v4277
    %6278 = vmatprep.subr.mxu0 %v4282
    %6279 = vmatpush1.msra.mxu0 %v4281
    %6280 = vmatprep.subr.mxu0 %v4286
    %6281 = vmatpush1.msra.mxu0 %v4285
    %6282 = vmatprep.subr.mxu0 %v4290
    %6283 = vmatpush1.msra.mxu0 %v4289
    %6284 = vmatprep.subr.mxu0 %v4294
    %6285 = vmatpush1.msra.mxu0 %v4293
    %6286 = vmatprep.subr.mxu0 %v4298
    %6287 = vmatpush1.msra.mxu0 %v4297
    %6288 = vmatprep.subr.mxu0 %v4302
    %6289 = vmatpush1.msra.mxu0 %v4301
    %6290 = vmatprep.subr.mxu0 %v4306
    %6291 = vmatpush1.msra.mxu0 %v4305
    %6292 = vmatprep.subr.mxu0 %v4310
    %6293 = vmatpush1.msra.mxu0 %v4309
    %6294 = vmatprep.subr.mxu0 %v4314
    %6295 = vmatpush1.msra.mxu0 %v4313
    %6296 = vmatprep.subr.mxu0 %v4318
    %6297 = vmatpush1.msra.mxu0 %v4317
    %6298 = vmatprep.subr.mxu0 %v4322
    %6299 = vmatpush1.msra.mxu0 %v4321
    %6300 = vmatprep.subr.mxu0 %v4326
    %6301 = vmatpush1.msra.mxu0 %v4325
    %6302 = vmatprep.subr.mxu0 %v4330
    %6303 = vmatpush1.msra.mxu0 %v4329
    %6304 = vmatprep.subr.mxu0 %v4334
    %6305 = vmatpush1.msra.mxu0 %v4333
    %6306 = vmatprep.subr.mxu0 0.0
    %6307 = vmatpush1.msra.mxu0 0.0
    %6308 = vmatprep.subr.mxu0 0.0
    %6309 = vmatpush1.msra.mxu0 0.0
    %6310 = vmatprep.subr.mxu0 0.0
    %6311 = vmatpush1.msra.mxu0 0.0
    %6312 = vmatprep.subr.mxu0 0.0
    %6313 = vmatpush1.msra.mxu0 0.0
    %6314 = vmatprep.subr.mxu0 0.0
    %6315 = vmatpush1.msra.mxu0 0.0
    %6316 = vmatprep.subr.mxu0 0.0
    %6317 = vmatpush1.msra.mxu0 0.0
    %6318 = vmatprep.subr.mxu0 0.0
    %6319 = vmatpush1.msra.mxu0 0.0
    %6320 = vmatprep.subr.mxu0 0.0
    %6321 = vmatpush1.msra.mxu0 0.0
    %6322 = vmatprep.subr.mxu0 0.0
    %6323 = vmatpush1.msra.mxu0 0.0
    %6324 = vmatprep.subr.mxu0 0.0
    %6325 = vmatpush1.msra.mxu0 0.0
    %6326 = vmatprep.subr.mxu0 0.0
    %6327 = vmatpush1.msra.mxu0 0.0
    %6328 = vmatprep.subr.mxu0 0.0
    %6329 = vmatpush1.msra.mxu0 0.0
    %6330 = vmatprep.subr.mxu0 0.0
    %6331 = vmatpush1.msra.mxu0 0.0
    %6332 = vmatprep.subr.mxu0 0.0
    %6333 = vmatpush1.msra.mxu0 0.0
    %6334 = vmatprep.subr.mxu0 0.0
    %6335 = vmatpush1.msra.mxu0 0.0
    %6336 = vmatprep.subr.mxu0 0.0
    %6337 = vmatpush1.msra.mxu0 0.0
    %6338 = vmatprep.mubr.f32.mxu0 0.0
    %6339 = vmatmul.mubr.f32.gmra.mrb[0].mxu0 %v6029
    %v6340 = vpop.f32.mrb[0].mxu0
    %v6341 = vadd.f32 0.0, %v6340
    %v6342 = vpop.f32.mrb[0].mxu0
    %v6343 = vadd.f32 0.0, %v6342
    %6344 = vdwg.mxu0
    %v6345 = vadd.f32 %v6199, %v6270
    %v6346 = vadd.f32 %v6200, %v6272
    %v6347 = vadd.f32 %v6201, %v6341
    %v6348 = vadd.f32 %v6202, %v6343
    %v6349 = vxor.u32 %v6345, 2147483648
    %v6350 = vmul.f32 %v6349, 1.442695
    %v6351 = vpow.pop %v6350
    %v6352 = vadd.f32 %v6351, 1.0
    %v6353 = vrcp.pop %v6352
    %v6354 = vmul.f32 1.0, %v6353
    %v6355 = vxor.u32 %v6346, 2147483648
    %v6356 = vmul.f32 %v6355, 1.442695
    %v6357 = vpow.pop %v6356
    %v6358 = vadd.f32 %v6357, 1.0
    %v6359 = vrcp.pop %v6358
    %v6360 = vmul.f32 1.0, %v6359
    %v6361 = vtanh.pop %v6347
    %v6362 = vxor.u32 %v6348, 2147483648
    %v6363 = vmul.f32 %v6362, 1.442695
    %v6364 = vpow.pop %v6363
    %v6365 = vadd.f32 %v6364, 1.0
    %v6366 = vrcp.pop %v6365
    %v6367 = vmul.f32 1.0, %v6366
    %v6368 = vmul.f32 %v6360, %v6027
    %v6369 = vmul.f32 %v6354, %v6361
    %v6370 = vadd.f32 %v6368, %v6369
    %v6371 = vtanh.pop %v6370
    %v6372 = vmul.f32 %v6367, %v6371
    %6373 = vmatprep.subr.mxu0 %v4336
    %6374 = vmatpush1.msra.mxu0 %v4335
    %6375 = vmatprep.subr.mxu0 %v4340
    %6376 = vmatpush1.msra.mxu0 %v4339
    %6377 = vmatprep.subr.mxu0 %v4344
    %6378 = vmatpush1.msra.mxu0 %v4343
    %6379 = vmatprep.subr.mxu0 %v4348
    %6380 = vmatpush1.msra.mxu0 %v4347
    %6381 = vmatprep.subr.mxu0 %v4352
    %6382 = vmatpush1.msra.mxu0 %v4351
    %6383 = vmatprep.subr.mxu0 %v4356
    %6384 = vmatpush1.msra.mxu0 %v4355
    %6385 = vmatprep.subr.mxu0 %v4360
    %6386 = vmatpush1.msra.mxu0 %v4359
    %6387 = vmatprep.subr.mxu0 %v4364
    %6388 = vmatpush1.msra.mxu0 %v4363
    %6389 = vmatprep.subr.mxu0 %v4368
    %6390 = vmatpush1.msra.mxu0 %v4367
    %6391 = vmatprep.subr.mxu0 %v4372
    %6392 = vmatpush1.msra.mxu0 %v4371
    %6393 = vmatprep.subr.mxu0 %v4376
    %6394 = vmatpush1.msra.mxu0 %v4375
    %6395 = vmatprep.subr.mxu0 %v4380
    %6396 = vmatpush1.msra.mxu0 %v4379
    %6397 = vmatprep.subr.mxu0 %v4384
    %6398 = vmatpush1.msra.mxu0 %v4383
    %6399 = vmatprep.subr.mxu0 %v4388
    %6400 = vmatpush1.msra.mxu0 %v4387
    %6401 = vmatprep.subr.mxu0 %v4392
    %6402 = vmatpush1.msra.mxu0 %v4391
    %6403 = vmatprep.subr.mxu0 %v4396
    %6404 = vmatpush1.msra.mxu0 %v4395
    %6405 = vmatprep.subr.mxu0 %v4400
    %6406 = vmatpush1.msra.mxu0 %v4399
    %6407 = vmatprep.subr.mxu0 %v4404
    %6408 = vmatpush1.msra.mxu0 %v4403
    %6409 = vmatprep.subr.mxu0 %v4408
    %6410 = vmatpush1.msra.mxu0 %v4407
    %6411 = vmatprep.subr.mxu0 %v4412
    %6412 = vmatpush1.msra.mxu0 %v4411
    %6413 = vmatprep.subr.mxu0 %v4416
    %6414 = vmatpush1.msra.mxu0 %v4415
    %6415 = vmatprep.subr.mxu0 %v4420
    %6416 = vmatpush1.msra.mxu0 %v4419
    %6417 = vmatprep.subr.mxu0 %v4424
    %6418 = vmatpush1.msra.mxu0 %v4423
    %6419 = vmatprep.subr.mxu0 %v4428
    %6420 = vmatpush1.msra.mxu0 %v4427
    %6421 = vmatprep.subr.mxu0 %v4432
    %6422 = vmatpush1.msra.mxu0 %v4431
    %6423 = vmatprep.subr.mxu0 %v4436
    %6424 = vmatpush1.msra.mxu0 %v4435
    %6425 = vmatprep.subr.mxu0 %v4440
    %6426 = vmatpush1.msra.mxu0 %v4439
    %6427 = vmatprep.subr.mxu0 %v4444
    %6428 = vmatpush1.msra.mxu0 %v4443
    %6429 = vmatprep.subr.mxu0 %v4448
    %6430 = vmatpush1.msra.mxu0 %v4447
    %6431 = vmatprep.subr.mxu0 %v4452
    %6432 = vmatpush1.msra.mxu0 %v4451
    %6433 = vmatprep.subr.mxu0 %v4456
    %6434 = vmatpush1.msra.mxu0 %v4455
    %6435 = vmatprep.subr.mxu0 %v4460
    %6436 = vmatpush1.msra.mxu0 %v4459
    %6437 = vmatprep.mubr.f32.mxu0 %v6195
    %6438 = vmatmul.mubr.f32.gmra.mrb[0].mxu0 %v6372
    %v6439 = vpop.f32.mrb[0].mxu0
    %v6440 = vadd.f32 %v4468, %v6439
    %v6441 = vpop.f32.mrb[0].mxu0
    %v6442 = vadd.f32 %v4472, %v6441
    %6443 = vdwg.mxu0
    %6444 = vmatprep.subr.mxu0 %v4338
    %6445 = vmatpush1.msra.mxu0 %v4337
    %6446 = vmatprep.subr.mxu0 %v4342
    %6447 = vmatpush1.msra.mxu0 %v4341
    %6448 = vmatprep.subr.mxu0 %v4346
    %6449 = vmatpush1.msra.mxu0 %v4345
    %6450 = vmatprep.subr.mxu0 %v4350
    %6451 = vmatpush1.msra.mxu0 %v4349
    %6452 = vmatprep.subr.mxu0 %v4354
    %6453 = vmatpush1.msra.mxu0 %v4353
    %6454 = vmatprep.subr.mxu0 %v4358
    %6455 = vmatpush1.msra.mxu0 %v4357
    %6456 = vmatprep.subr.mxu0 %v4362
    %6457 = vmatpush1.msra.mxu0 %v4361
    %6458 = vmatprep.subr.mxu0 %v4366
    %6459 = vmatpush1.msra.mxu0 %v4365
    %6460 = vmatprep.subr.mxu0 %v4370
    %6461 = vmatpush1.msra.mxu0 %v4369
    %6462 = vmatprep.subr.mxu0 %v4374
    %6463 = vmatpush1.msra.mxu0 %v4373
    %6464 = vmatprep.subr.mxu0 %v4378
    %6465 = vmatpush1.msra.mxu0 %v4377
    %6466 = vmatprep.subr.mxu0 %v4382
    %6467 = vmatpush1.msra.mxu0 %v4381
    %6468 = vmatprep.subr.mxu0 %v4386
    %6469 = vmatpush1.msra.mxu0 %v4385
    %6470 = vmatprep.subr.mxu0 %v4390
    %6471 = vmatpush1.msra.mxu0 %v4389
    %6472 = vmatprep.subr.mxu0 %v4394
    %6473 = vmatpush1.msra.mxu0 %v4393
    %6474 = vmatprep.subr.mxu0 %v4398
    %6475 = vmatpush1.msra.mxu0 %v4397
    %6476 = vmatprep.subr.mxu0 %v4402
    %6477 = vmatpush1.msra.mxu0 %v4401
    %6478 = vmatprep.subr.mxu0 %v4406
    %6479 = vmatpush1.msra.mxu0 %v4405
    %6480 = vmatprep.subr.mxu0 %v4410
    %6481 = vmatpush1.msra.mxu0 %v4409
    %6482 = vmatprep.subr.mxu0 %v4414
    %6483 = vmatpush1.msra.mxu0 %v4413
    %6484 = vmatprep.subr.mxu0 %v4418
    %6485 = vmatpush1.msra.mxu0 %v4417
    %6486 = vmatprep.subr.mxu0 %v4422
    %6487 = vmatpush1.msra.mxu0 %v4421
    %6488 = vmatprep.subr.mxu0 %v4426
    %6489 = vmatpush1.msra.mxu0 %v4425
    %6490 = vmatprep.subr.mxu0 %v4430
    %6491 = vmatpush1.msra.mxu0 %v4429
    %6492 = vmatprep.subr.mxu0 %v4434
    %6493 = vmatpush1.msra.mxu0 %v4433
    %6494 = vmatprep.subr.mxu0 %v4438
    %6495 = vmatpush1.msra.mxu0 %v4437
    %6496 = vmatprep.subr.mxu0 %v4442
    %6497 = vmatpush1.msra.mxu0 %v4441
    %6498 = vmatprep.subr.mxu0 %v4446
    %6499 = vmatpush1.msra.mxu0 %v4445
    %6500 = vmatprep.subr.mxu0 %v4450
    %6501 = vmatpush1.msra.mxu0 %v4449
    %6502 = vmatprep.subr.mxu0 %v4454
    %6503 = vmatpush1.msra.mxu0 %v4453
    %6504 = vmatprep.subr.mxu0 %v4458
    %6505 = vmatpush1.msra.mxu0 %v4457
    %6506 = vmatprep.subr.mxu0 %v4462
    %6507 = vmatpush1.msra.mxu0 %v4461
    %6508 = vmatprep.mubr.f32.mxu0 %v6195
    %6509 = vmatmul.mubr.f32.gmra.mrb[0].mxu0 %v6372
    %v6510 = vpop.f32.mrb[0].mxu0
    %v6511 = vadd.f32 %v4476, %v6510
    %v6512 = vpop.f32.mrb[0].mxu0
    %v6513 = vadd.f32 %v4480, %v6512
    %6514 = vdwg.mxu0
    %v6515 = vxor.u32 %v6440, 2147483648
    %v6516 = vmul.f32 %v6515, 1.442695
    %v6517 = vpow.pop %v6516
    %v6518 = vadd.f32 %v6517, 1.0
    %v6519 = vrcp.pop %v6518
    %v6520 = vmul.f32 1.0, %v6519
    %v6521 = vxor.u32 %v6442, 2147483648
    %v6522 = vmul.f32 %v6521, 1.442695
    %v6523 = vpow.pop %v6522
    %v6524 = vadd.f32 %v6523, 1.0
    %v6525 = vrcp.pop %v6524
    %v6526 = vmul.f32 1.0, %v6525
    %v6527 = vtanh.pop %v6511
    %v6528 = vxor.u32 %v6513, 2147483648
    %v6529 = vmul.f32 %v6528, 1.442695
    %v6530 = vpow.pop %v6529
    %v6531 = vadd.f32 %v6530, 1.0
    %v6532 = vrcp.pop %v6531
    %v6533 = vmul.f32 1.0, %v6532
    %v6534 = vmul.f32 %v6526, %v6193
    %v6535 = vmul.f32 %v6520, %v6527
    %v6536 = vadd.f32 %v6534, %v6535
    %v6537 = vtanh.pop %v6536
    %v6538 = vmul.f32 %v6533, %v6537
    %s6539 = scalar_lea.vmem [#allocation4], 40
    %6540 = vst [vmem:[%s6539] sm:$0xff] %v6538
    %s6541 = scalar_lea.vmem [#allocation3], 192
    %v6542 = vld [vmem:[%s6541] sm:$0xff]
    %v6543 = vld [vmem:[%s6541 + $0x8] sm:$0xff]
    %v6544 = vld [vmem:[%s6541 + $0x10] sm:$0xff]
    %v6545 = vld [vmem:[%s6541 + $0x18] sm:$0xff]
    %6546 = vmatprep.subr.mxu0 %v4272
    %6547 = vmatpush1.msra.mxu0 %v4271
    %6548 = vmatprep.subr.mxu0 %v4276
    %6549 = vmatpush1.msra.mxu0 %v4275
    %6550 = vmatprep.subr.mxu0 %v4280
    %6551 = vmatpush1.msra.mxu0 %v4279
    %6552 = vmatprep.subr.mxu0 %v4284
    %6553 = vmatpush1.msra.mxu0 %v4283
    %6554 = vmatprep.subr.mxu0 %v4288
    %6555 = vmatpush1.msra.mxu0 %v4287
    %6556 = vmatprep.subr.mxu0 %v4292
    %6557 = vmatpush1.msra.mxu0 %v4291
    %6558 = vmatprep.subr.mxu0 %v4296
    %6559 = vmatpush1.msra.mxu0 %v4295
    %6560 = vmatprep.subr.mxu0 %v4300
    %6561 = vmatpush1.msra.mxu0 %v4299
    %6562 = vmatprep.subr.mxu0 %v4304
    %6563 = vmatpush1.msra.mxu0 %v4303
    %6564 = vmatprep.subr.mxu0 %v4308
    %6565 = vmatpush1.msra.mxu0 %v4307
    %6566 = vmatprep.subr.mxu0 %v4312
    %6567 = vmatpush1.msra.mxu0 %v4311
    %6568 = vmatprep.subr.mxu0 %v4316
    %6569 = vmatpush1.msra.mxu0 %v4315
    %6570 = vmatprep.subr.mxu0 %v4320
    %6571 = vmatpush1.msra.mxu0 %v4319
    %6572 = vmatprep.subr.mxu0 %v4324
    %6573 = vmatpush1.msra.mxu0 %v4323
    %6574 = vmatprep.subr.mxu0 %v4328
    %6575 = vmatpush1.msra.mxu0 %v4327
    %6576 = vmatprep.subr.mxu0 %v4332
    %6577 = vmatpush1.msra.mxu0 %v4331
    %6578 = vmatprep.subr.mxu0 0.0
    %6579 = vmatpush1.msra.mxu0 0.0
    %6580 = vmatprep.subr.mxu0 0.0
    %6581 = vmatpush1.msra.mxu0 0.0
    %6582 = vmatprep.subr.mxu0 0.0
    %6583 = vmatpush1.msra.mxu0 0.0
    %6584 = vmatprep.subr.mxu0 0.0
    %6585 = vmatpush1.msra.mxu0 0.0
    %6586 = vmatprep.subr.mxu0 0.0
    %6587 = vmatpush1.msra.mxu0 0.0
    %6588 = vmatprep.subr.mxu0 0.0
    %6589 = vmatpush1.msra.mxu0 0.0
    %6590 = vmatprep.subr.mxu0 0.0
    %6591 = vmatpush1.msra.mxu0 0.0
    %6592 = vmatprep.subr.mxu0 0.0
    %6593 = vmatpush1.msra.mxu0 0.0
    %6594 = vmatprep.subr.mxu0 0.0
    %6595 = vmatpush1.msra.mxu0 0.0
    %6596 = vmatprep.subr.mxu0 0.0
    %6597 = vmatpush1.msra.mxu0 0.0
    %6598 = vmatprep.subr.mxu0 0.0
    %6599 = vmatpush1.msra.mxu0 0.0
    %6600 = vmatprep.subr.mxu0 0.0
    %6601 = vmatpush1.msra.mxu0 0.0
    %6602 = vmatprep.subr.mxu0 0.0
    %6603 = vmatpush1.msra.mxu0 0.0
    %6604 = vmatprep.subr.mxu0 0.0
    %6605 = vmatpush1.msra.mxu0 0.0
    %6606 = vmatprep.subr.mxu0 0.0
    %6607 = vmatpush1.msra.mxu0 0.0
    %6608 = vmatprep.subr.mxu0 0.0
    %6609 = vmatpush1.msra.mxu0 0.0
    %6610 = vmatprep.mubr.f32.mxu0 0.0
    %6611 = vmatmul.mubr.f32.gmra.mrb[0].mxu0 %v6372
    %v6612 = vpop.f32.mrb[0].mxu0
    %v6613 = vadd.f32 0.0, %v6612
    %v6614 = vpop.f32.mrb[0].mxu0
    %v6615 = vadd.f32 0.0, %v6614
    %6616 = vdwg.mxu0
    %6617 = vmatprep.subr.mxu0 %v4274
    %6618 = vmatpush1.msra.mxu0 %v4273
    %6619 = vmatprep.subr.mxu0 %v4278
    %6620 = vmatpush1.msra.mxu0 %v4277
    %6621 = vmatprep.subr.mxu0 %v4282
    %6622 = vmatpush1.msra.mxu0 %v4281
    %6623 = vmatprep.subr.mxu0 %v4286
    %6624 = vmatpush1.msra.mxu0 %v4285
    %6625 = vmatprep.subr.mxu0 %v4290
    %6626 = vmatpush1.msra.mxu0 %v4289
    %6627 = vmatprep.subr.mxu0 %v4294
    %6628 = vmatpush1.msra.mxu0 %v4293
    %6629 = vmatprep.subr.mxu0 %v4298
    %6630 = vmatpush1.msra.mxu0 %v4297
    %6631 = vmatprep.subr.mxu0 %v4302
    %6632 = vmatpush1.msra.mxu0 %v4301
    %6633 = vmatprep.subr.mxu0 %v4306
    %6634 = vmatpush1.msra.mxu0 %v4305
    %6635 = vmatprep.subr.mxu0 %v4310
    %6636 = vmatpush1.msra.mxu0 %v4309
    %6637 = vmatprep.subr.mxu0 %v4314
    %6638 = vmatpush1.msra.mxu0 %v4313
    %6639 = vmatprep.subr.mxu0 %v4318
    %6640 = vmatpush1.msra.mxu0 %v4317
    %6641 = vmatprep.subr.mxu0 %v4322
    %6642 = vmatpush1.msra.mxu0 %v4321
    %6643 = vmatprep.subr.mxu0 %v4326
    %6644 = vmatpush1.msra.mxu0 %v4325
    %6645 = vmatprep.subr.mxu0 %v4330
    %6646 = vmatpush1.msra.mxu0 %v4329
    %6647 = vmatprep.subr.mxu0 %v4334
    %6648 = vmatpush1.msra.mxu0 %v4333
    %6649 = vmatprep.subr.mxu0 0.0
    %6650 = vmatpush1.msra.mxu0 0.0
    %6651 = vmatprep.subr.mxu0 0.0
    %6652 = vmatpush1.msra.mxu0 0.0
    %6653 = vmatprep.subr.mxu0 0.0
    %6654 = vmatpush1.msra.mxu0 0.0
    %6655 = vmatprep.subr.mxu0 0.0
    %6656 = vmatpush1.msra.mxu0 0.0
    %6657 = vmatprep.subr.mxu0 0.0
    %6658 = vmatpush1.msra.mxu0 0.0
    %6659 = vmatprep.subr.mxu0 0.0
    %6660 = vmatpush1.msra.mxu0 0.0
    %6661 = vmatprep.subr.mxu0 0.0
    %6662 = vmatpush1.msra.mxu0 0.0
    %6663 = vmatprep.subr.mxu0 0.0
    %6664 = vmatpush1.msra.mxu0 0.0
    %6665 = vmatprep.subr.mxu0 0.0
    %6666 = vmatpush1.msra.mxu0 0.0
    %6667 = vmatprep.subr.mxu0 0.0
    %6668 = vmatpush1.msra.mxu0 0.0
    %6669 = vmatprep.subr.mxu0 0.0
    %6670 = vmatpush1.msra.mxu0 0.0
    %6671 = vmatprep.subr.mxu0 0.0
    %6672 = vmatpush1.msra.mxu0 0.0
    %6673 = vmatprep.subr.mxu0 0.0
    %6674 = vmatpush1.msra.mxu0 0.0
    %6675 = vmatprep.subr.mxu0 0.0
    %6676 = vmatpush1.msra.mxu0 0.0
    %6677 = vmatprep.subr.mxu0 0.0
    %6678 = vmatpush1.msra.mxu0 0.0
    %6679 = vmatprep.subr.mxu0 0.0
    %6680 = vmatpush1.msra.mxu0 0.0
    %6681 = vmatprep.mubr.f32.mxu0 0.0
    %6682 = vmatmul.mubr.f32.gmra.mrb[0].mxu0 %v6372
    %v6683 = vpop.f32.mrb[0].mxu0
    %v6684 = vadd.f32 0.0, %v6683
    %v6685 = vpop.f32.mrb[0].mxu0
    %v6686 = vadd.f32 0.0, %v6685
    %6687 = vdwg.mxu0
    %v6688 = vadd.f32 %v6542, %v6613
    %v6689 = vadd.f32 %v6543, %v6615
    %v6690 = vadd.f32 %v6544, %v6684
    %v6691 = vadd.f32 %v6545, %v6686
    %v6692 = vxor.u32 %v6688, 2147483648
    %v6693 = vmul.f32 %v6692, 1.442695
    %v6694 = vpow.pop %v6693
    %v6695 = vadd.f32 %v6694, 1.0
    %v6696 = vrcp.pop %v6695
    %v6697 = vmul.f32 1.0, %v6696
    %v6698 = vxor.u32 %v6689, 2147483648
    %v6699 = vmul.f32 %v6698, 1.442695
    %v6700 = vpow.pop %v6699
    %v6701 = vadd.f32 %v6700, 1.0
    %v6702 = vrcp.pop %v6701
    %v6703 = vmul.f32 1.0, %v6702
    %v6704 = vtanh.pop %v6690
    %v6705 = vxor.u32 %v6691, 2147483648
    %v6706 = vmul.f32 %v6705, 1.442695
    %v6707 = vpow.pop %v6706
    %v6708 = vadd.f32 %v6707, 1.0
    %v6709 = vrcp.pop %v6708
    %v6710 = vmul.f32 1.0, %v6709
    %v6711 = vmul.f32 %v6703, %v6370
    %v6712 = vmul.f32 %v6697, %v6704
    %v6713 = vadd.f32 %v6711, %v6712
    %v6714 = vtanh.pop %v6713
    %v6715 = vmul.f32 %v6710, %v6714
    %6716 = vmatprep.subr.mxu0 %v4336
    %6717 = vmatpush1.msra.mxu0 %v4335
    %6718 = vmatprep.subr.mxu0 %v4340
    %6719 = vmatpush1.msra.mxu0 %v4339
    %6720 = vmatprep.subr.mxu0 %v4344
    %6721 = vmatpush1.msra.mxu0 %v4343
    %6722 = vmatprep.subr.mxu0 %v4348
    %6723 = vmatpush1.msra.mxu0 %v4347
    %6724 = vmatprep.subr.mxu0 %v4352
    %6725 = vmatpush1.msra.mxu0 %v4351
    %6726 = vmatprep.subr.mxu0 %v4356
    %6727 = vmatpush1.msra.mxu0 %v4355
    %6728 = vmatprep.subr.mxu0 %v4360
    %6729 = vmatpush1.msra.mxu0 %v4359
    %6730 = vmatprep.subr.mxu0 %v4364
    %6731 = vmatpush1.msra.mxu0 %v4363
    %6732 = vmatprep.subr.mxu0 %v4368
    %6733 = vmatpush1.msra.mxu0 %v4367
    %6734 = vmatprep.subr.mxu0 %v4372
    %6735 = vmatpush1.msra.mxu0 %v4371
    %6736 = vmatprep.subr.mxu0 %v4376
    %6737 = vmatpush1.msra.mxu0 %v4375
    %6738 = vmatprep.subr.mxu0 %v4380
    %6739 = vmatpush1.msra.mxu0 %v4379
    %6740 = vmatprep.subr.mxu0 %v4384
    %6741 = vmatpush1.msra.mxu0 %v4383
    %6742 = vmatprep.subr.mxu0 %v4388
    %6743 = vmatpush1.msra.mxu0 %v4387
    %6744 = vmatprep.subr.mxu0 %v4392
    %6745 = vmatpush1.msra.mxu0 %v4391
    %6746 = vmatprep.subr.mxu0 %v4396
    %6747 = vmatpush1.msra.mxu0 %v4395
    %6748 = vmatprep.subr.mxu0 %v4400
    %6749 = vmatpush1.msra.mxu0 %v4399
    %6750 = vmatprep.subr.mxu0 %v4404
    %6751 = vmatpush1.msra.mxu0 %v4403
    %6752 = vmatprep.subr.mxu0 %v4408
    %6753 = vmatpush1.msra.mxu0 %v4407
    %6754 = vmatprep.subr.mxu0 %v4412
    %6755 = vmatpush1.msra.mxu0 %v4411
    %6756 = vmatprep.subr.mxu0 %v4416
    %6757 = vmatpush1.msra.mxu0 %v4415
    %6758 = vmatprep.subr.mxu0 %v4420
    %6759 = vmatpush1.msra.mxu0 %v4419
    %6760 = vmatprep.subr.mxu0 %v4424
    %6761 = vmatpush1.msra.mxu0 %v4423
    %6762 = vmatprep.subr.mxu0 %v4428
    %6763 = vmatpush1.msra.mxu0 %v4427
    %6764 = vmatprep.subr.mxu0 %v4432
    %6765 = vmatpush1.msra.mxu0 %v4431
    %6766 = vmatprep.subr.mxu0 %v4436
    %6767 = vmatpush1.msra.mxu0 %v4435
    %6768 = vmatprep.subr.mxu0 %v4440
    %6769 = vmatpush1.msra.mxu0 %v4439
    %6770 = vmatprep.subr.mxu0 %v4444
    %6771 = vmatpush1.msra.mxu0 %v4443
    %6772 = vmatprep.subr.mxu0 %v4448
    %6773 = vmatpush1.msra.mxu0 %v4447
    %6774 = vmatprep.subr.mxu0 %v4452
    %6775 = vmatpush1.msra.mxu0 %v4451
    %6776 = vmatprep.subr.mxu0 %v4456
    %6777 = vmatpush1.msra.mxu0 %v4455
    %6778 = vmatprep.subr.mxu0 %v4460
    %6779 = vmatpush1.msra.mxu0 %v4459
    %6780 = vmatprep.mubr.f32.mxu0 %v6538
    %6781 = vmatmul.mubr.f32.gmra.mrb[0].mxu0 %v6715
    %v6782 = vpop.f32.mrb[0].mxu0
    %v6783 = vadd.f32 %v4468, %v6782
    %v6784 = vpop.f32.mrb[0].mxu0
    %v6785 = vadd.f32 %v4472, %v6784
    %6786 = vdwg.mxu0
    %6787 = vmatprep.subr.mxu0 %v4338
    %6788 = vmatpush1.msra.mxu0 %v4337
    %6789 = vmatprep.subr.mxu0 %v4342
    %6790 = vmatpush1.msra.mxu0 %v4341
    %6791 = vmatprep.subr.mxu0 %v4346
    %6792 = vmatpush1.msra.mxu0 %v4345
    %6793 = vmatprep.subr.mxu0 %v4350
    %6794 = vmatpush1.msra.mxu0 %v4349
    %6795 = vmatprep.subr.mxu0 %v4354
    %6796 = vmatpush1.msra.mxu0 %v4353
    %6797 = vmatprep.subr.mxu0 %v4358
    %6798 = vmatpush1.msra.mxu0 %v4357
    %6799 = vmatprep.subr.mxu0 %v4362
    %6800 = vmatpush1.msra.mxu0 %v4361
    %6801 = vmatprep.subr.mxu0 %v4366
    %6802 = vmatpush1.msra.mxu0 %v4365
    %6803 = vmatprep.subr.mxu0 %v4370
    %6804 = vmatpush1.msra.mxu0 %v4369
    %6805 = vmatprep.subr.mxu0 %v4374
    %6806 = vmatpush1.msra.mxu0 %v4373
    %6807 = vmatprep.subr.mxu0 %v4378
    %6808 = vmatpush1.msra.mxu0 %v4377
    %6809 = vmatprep.subr.mxu0 %v4382
    %6810 = vmatpush1.msra.mxu0 %v4381
    %6811 = vmatprep.subr.mxu0 %v4386
    %6812 = vmatpush1.msra.mxu0 %v4385
    %6813 = vmatprep.subr.mxu0 %v4390
    %6814 = vmatpush1.msra.mxu0 %v4389
    %6815 = vmatprep.subr.mxu0 %v4394
    %6816 = vmatpush1.msra.mxu0 %v4393
    %6817 = vmatprep.subr.mxu0 %v4398
    %6818 = vmatpush1.msra.mxu0 %v4397
    %6819 = vmatprep.subr.mxu0 %v4402
    %6820 = vmatpush1.msra.mxu0 %v4401
    %6821 = vmatprep.subr.mxu0 %v4406
    %6822 = vmatpush1.msra.mxu0 %v4405
    %6823 = vmatprep.subr.mxu0 %v4410
    %6824 = vmatpush1.msra.mxu0 %v4409
    %6825 = vmatprep.subr.mxu0 %v4414
    %6826 = vmatpush1.msra.mxu0 %v4413
    %6827 = vmatprep.subr.mxu0 %v4418
    %6828 = vmatpush1.msra.mxu0 %v4417
    %6829 = vmatprep.subr.mxu0 %v4422
    %6830 = vmatpush1.msra.mxu0 %v4421
    %6831 = vmatprep.subr.mxu0 %v4426
    %6832 = vmatpush1.msra.mxu0 %v4425
    %6833 = vmatprep.subr.mxu0 %v4430
    %6834 = vmatpush1.msra.mxu0 %v4429
    %6835 = vmatprep.subr.mxu0 %v4434
    %6836 = vmatpush1.msra.mxu0 %v4433
    %6837 = vmatprep.subr.mxu0 %v4438
    %6838 = vmatpush1.msra.mxu0 %v4437
    %6839 = vmatprep.subr.mxu0 %v4442
    %6840 = vmatpush1.msra.mxu0 %v4441
    %6841 = vmatprep.subr.mxu0 %v4446
    %6842 = vmatpush1.msra.mxu0 %v4445
    %6843 = vmatprep.subr.mxu0 %v4450
    %6844 = vmatpush1.msra.mxu0 %v4449
    %6845 = vmatprep.subr.mxu0 %v4454
    %6846 = vmatpush1.msra.mxu0 %v4453
    %6847 = vmatprep.subr.mxu0 %v4458
    %6848 = vmatpush1.msra.mxu0 %v4457
    %6849 = vmatprep.subr.mxu0 %v4462
    %6850 = vmatpush1.msra.mxu0 %v4461
    %6851 = vmatprep.mubr.f32.mxu0 %v6538
    %6852 = vmatmul.mubr.f32.gmra.mrb[0].mxu0 %v6715
    %v6853 = vpop.f32.mrb[0].mxu0
    %v6854 = vadd.f32 %v4476, %v6853
    %v6855 = vpop.f32.mrb[0].mxu0
    %v6856 = vadd.f32 %v4480, %v6855
    %6857 = vdwg.mxu0
    %v6858 = vxor.u32 %v6783, 2147483648
    %v6859 = vmul.f32 %v6858, 1.442695
    %v6860 = vpow.pop %v6859
    %v6861 = vadd.f32 %v6860, 1.0
    %v6862 = vrcp.pop %v6861
    %v6863 = vmul.f32 1.0, %v6862
    %v6864 = vxor.u32 %v6785, 2147483648
    %v6865 = vmul.f32 %v6864, 1.442695
    %v6866 = vpow.pop %v6865
    %v6867 = vadd.f32 %v6866, 1.0
    %v6868 = vrcp.pop %v6867
    %v6869 = vmul.f32 1.0, %v6868
    %v6870 = vtanh.pop %v6854
    %v6871 = vxor.u32 %v6856, 2147483648
    %v6872 = vmul.f32 %v6871, 1.442695
    %v6873 = vpow.pop %v6872
    %v6874 = vadd.f32 %v6873, 1.0
    %v6875 = vrcp.pop %v6874
    %v6876 = vmul.f32 1.0, %v6875
    %v6877 = vmul.f32 %v6869, %v6536
    %v6878 = vmul.f32 %v6863, %v6870
    %v6879 = vadd.f32 %v6877, %v6878
    %v6880 = vtanh.pop %v6879
    %v6881 = vmul.f32 %v6876, %v6880
    %s6882 = scalar_lea.vmem [#allocation4], 48
    %6883 = vst [vmem:[%s6882] sm:$0xff] %v6881
    %s6884 = scalar_lea.vmem [#allocation3], 224
    %v6885 = vld [vmem:[%s6884] sm:$0xff]
    %v6886 = vld [vmem:[%s6884 + $0x8] sm:$0xff]
    %v6887 = vld [vmem:[%s6884 + $0x10] sm:$0xff]
    %v6888 = vld [vmem:[%s6884 + $0x18] sm:$0xff]
    %6889 = vmatprep.subr.mxu0 %v4272
    %6890 = vmatpush1.msra.mxu0 %v4271
    %6891 = vmatprep.subr.mxu0 %v4276
    %6892 = vmatpush1.msra.mxu0 %v4275
    %6893 = vmatprep.subr.mxu0 %v4280
    %6894 = vmatpush1.msra.mxu0 %v4279
    %6895 = vmatprep.subr.mxu0 %v4284
    %6896 = vmatpush1.msra.mxu0 %v4283
    %6897 = vmatprep.subr.mxu0 %v4288
    %6898 = vmatpush1.msra.mxu0 %v4287
    %6899 = vmatprep.subr.mxu0 %v4292
    %6900 = vmatpush1.msra.mxu0 %v4291
    %6901 = vmatprep.subr.mxu0 %v4296
    %6902 = vmatpush1.msra.mxu0 %v4295
    %6903 = vmatprep.subr.mxu0 %v4300
    %6904 = vmatpush1.msra.mxu0 %v4299
    %6905 = vmatprep.subr.mxu0 %v4304
    %6906 = vmatpush1.msra.mxu0 %v4303
    %6907 = vmatprep.subr.mxu0 %v4308
    %6908 = vmatpush1.msra.mxu0 %v4307
    %6909 = vmatprep.subr.mxu0 %v4312
    %6910 = vmatpush1.msra.mxu0 %v4311
    %6911 = vmatprep.subr.mxu0 %v4316
    %6912 = vmatpush1.msra.mxu0 %v4315
    %6913 = vmatprep.subr.mxu0 %v4320
    %6914 = vmatpush1.msra.mxu0 %v4319
    %6915 = vmatprep.subr.mxu0 %v4324
    %6916 = vmatpush1.msra.mxu0 %v4323
    %6917 = vmatprep.subr.mxu0 %v4328
    %6918 = vmatpush1.msra.mxu0 %v4327
    %6919 = vmatprep.subr.mxu0 %v4332
    %6920 = vmatpush1.msra.mxu0 %v4331
    %6921 = vmatprep.subr.mxu0 0.0
    %6922 = vmatpush1.msra.mxu0 0.0
    %6923 = vmatprep.subr.mxu0 0.0
    %6924 = vmatpush1.msra.mxu0 0.0
    %6925 = vmatprep.subr.mxu0 0.0
    %6926 = vmatpush1.msra.mxu0 0.0
    %6927 = vmatprep.subr.mxu0 0.0
    %6928 = vmatpush1.msra.mxu0 0.0
    %6929 = vmatprep.subr.mxu0 0.0
    %6930 = vmatpush1.msra.mxu0 0.0
    %6931 = vmatprep.subr.mxu0 0.0
    %6932 = vmatpush1.msra.mxu0 0.0
    %6933 = vmatprep.subr.mxu0 0.0
    %6934 = vmatpush1.msra.mxu0 0.0
    %6935 = vmatprep.subr.mxu0 0.0
    %6936 = vmatpush1.msra.mxu0 0.0
    %6937 = vmatprep.subr.mxu0 0.0
    %6938 = vmatpush1.msra.mxu0 0.0
    %6939 = vmatprep.subr.mxu0 0.0
    %6940 = vmatpush1.msra.mxu0 0.0
    %6941 = vmatprep.subr.mxu0 0.0
    %6942 = vmatpush1.msra.mxu0 0.0
    %6943 = vmatprep.subr.mxu0 0.0
    %6944 = vmatpush1.msra.mxu0 0.0
    %6945 = vmatprep.subr.mxu0 0.0
    %6946 = vmatpush1.msra.mxu0 0.0
    %6947 = vmatprep.subr.mxu0 0.0
    %6948 = vmatpush1.msra.mxu0 0.0
    %6949 = vmatprep.subr.mxu0 0.0
    %6950 = vmatpush1.msra.mxu0 0.0
    %6951 = vmatprep.subr.mxu0 0.0
    %6952 = vmatpush1.msra.mxu0 0.0
    %6953 = vmatprep.mubr.f32.mxu0 0.0
    %6954 = vmatmul.mubr.f32.gmra.mrb[0].mxu0 %v6715
    %v6955 = vpop.f32.mrb[0].mxu0
    %v6956 = vadd.f32 0.0, %v6955
    %v6957 = vpop.f32.mrb[0].mxu0
    %v6958 = vadd.f32 0.0, %v6957
    %6959 = vdwg.mxu0
    %6960 = vmatprep.subr.mxu0 %v4274
    %6961 = vmatpush1.msra.mxu0 %v4273
    %6962 = vmatprep.subr.mxu0 %v4278
    %6963 = vmatpush1.msra.mxu0 %v4277
    %6964 = vmatprep.subr.mxu0 %v4282
    %6965 = vmatpush1.msra.mxu0 %v4281
    %6966 = vmatprep.subr.mxu0 %v4286
    %6967 = vmatpush1.msra.mxu0 %v4285
    %6968 = vmatprep.subr.mxu0 %v4290
    %6969 = vmatpush1.msra.mxu0 %v4289
    %6970 = vmatprep.subr.mxu0 %v4294
    %6971 = vmatpush1.msra.mxu0 %v4293
    %6972 = vmatprep.subr.mxu0 %v4298
    %6973 = vmatpush1.msra.mxu0 %v4297
    %6974 = vmatprep.subr.mxu0 %v4302
    %6975 = vmatpush1.msra.mxu0 %v4301
    %6976 = vmatprep.subr.mxu0 %v4306
    %6977 = vmatpush1.msra.mxu0 %v4305
    %6978 = vmatprep.subr.mxu0 %v4310
    %6979 = vmatpush1.msra.mxu0 %v4309
    %6980 = vmatprep.subr.mxu0 %v4314
    %6981 = vmatpush1.msra.mxu0 %v4313
    %6982 = vmatprep.subr.mxu0 %v4318
    %6983 = vmatpush1.msra.mxu0 %v4317
    %6984 = vmatprep.subr.mxu0 %v4322
    %6985 = vmatpush1.msra.mxu0 %v4321
    %6986 = vmatprep.subr.mxu0 %v4326
    %6987 = vmatpush1.msra.mxu0 %v4325
    %6988 = vmatprep.subr.mxu0 %v4330
    %6989 = vmatpush1.msra.mxu0 %v4329
    %6990 = vmatprep.subr.mxu0 %v4334
    %6991 = vmatpush1.msra.mxu0 %v4333
    %6992 = vmatprep.subr.mxu0 0.0
    %6993 = vmatpush1.msra.mxu0 0.0
    %6994 = vmatprep.subr.mxu0 0.0
    %6995 = vmatpush1.msra.mxu0 0.0
    %6996 = vmatprep.subr.mxu0 0.0
    %6997 = vmatpush1.msra.mxu0 0.0
    %6998 = vmatprep.subr.mxu0 0.0
    %6999 = vmatpush1.msra.mxu0 0.0
    %7000 = vmatprep.subr.mxu0 0.0
    %7001 = vmatpush1.msra.mxu0 0.0
    %7002 = vmatprep.subr.mxu0 0.0
    %7003 = vmatpush1.msra.mxu0 0.0
    %7004 = vmatprep.subr.mxu0 0.0
    %7005 = vmatpush1.msra.mxu0 0.0
    %7006 = vmatprep.subr.mxu0 0.0
    %7007 = vmatpush1.msra.mxu0 0.0
    %7008 = vmatprep.subr.mxu0 0.0
    %7009 = vmatpush1.msra.mxu0 0.0
    %7010 = vmatprep.subr.mxu0 0.0
    %7011 = vmatpush1.msra.mxu0 0.0
    %7012 = vmatprep.subr.mxu0 0.0
    %7013 = vmatpush1.msra.mxu0 0.0
    %7014 = vmatprep.subr.mxu0 0.0
    %7015 = vmatpush1.msra.mxu0 0.0
    %7016 = vmatprep.subr.mxu0 0.0
    %7017 = vmatpush1.msra.mxu0 0.0
    %7018 = vmatprep.subr.mxu0 0.0
    %7019 = vmatpush1.msra.mxu0 0.0
    %7020 = vmatprep.subr.mxu0 0.0
    %7021 = vmatpush1.msra.mxu0 0.0
    %7022 = vmatprep.subr.mxu0 0.0
    %7023 = vmatpush1.msra.mxu0 0.0
    %7024 = vmatprep.mubr.f32.mxu0 0.0
    %7025 = vmatmul.mubr.f32.gmra.mrb[0].mxu0 %v6715
    %v7026 = vpop.f32.mrb[0].mxu0
    %v7027 = vadd.f32 0.0, %v7026
    %v7028 = vpop.f32.mrb[0].mxu0
    %v7029 = vadd.f32 0.0, %v7028
    %7030 = vdwg.mxu0
    %v7031 = vadd.f32 %v6885, %v6956
    %v7032 = vadd.f32 %v6886, %v6958
    %v7033 = vadd.f32 %v6887, %v7027
    %v7034 = vadd.f32 %v6888, %v7029
    %v7035 = vxor.u32 %v7031, 2147483648
    %v7036 = vmul.f32 %v7035, 1.442695
    %v7037 = vpow.pop %v7036
    %v7038 = vadd.f32 %v7037, 1.0
    %v7039 = vrcp.pop %v7038
    %v7040 = vmul.f32 1.0, %v7039
    %v7041 = vxor.u32 %v7032, 2147483648
    %v7042 = vmul.f32 %v7041, 1.442695
    %v7043 = vpow.pop %v7042
    %v7044 = vadd.f32 %v7043, 1.0
    %v7045 = vrcp.pop %v7044
    %v7046 = vmul.f32 1.0, %v7045
    %v7047 = vtanh.pop %v7033
    %v7048 = vxor.u32 %v7034, 2147483648
    %v7049 = vmul.f32 %v7048, 1.442695
    %v7050 = vpow.pop %v7049
    %v7051 = vadd.f32 %v7050, 1.0
    %v7052 = vrcp.pop %v7051
    %v7053 = vmul.f32 1.0, %v7052
    %v7054 = vmul.f32 %v7046, %v6713
    %v7055 = vmul.f32 %v7040, %v7047
    %v7056 = vadd.f32 %v7054, %v7055
    %v7057 = vtanh.pop %v7056
    %v7058 = vmul.f32 %v7053, %v7057
    %7059 = vmatprep.subr.mxu0 %v4336
    %7060 = vmatpush1.msra.mxu0 %v4335
    %7061 = vmatprep.subr.mxu0 %v4340
    %7062 = vmatpush1.msra.mxu0 %v4339
    %7063 = vmatprep.subr.mxu0 %v4344
    %7064 = vmatpush1.msra.mxu0 %v4343
    %7065 = vmatprep.subr.mxu0 %v4348
    %7066 = vmatpush1.msra.mxu0 %v4347
    %7067 = vmatprep.subr.mxu0 %v4352
    %7068 = vmatpush1.msra.mxu0 %v4351
    %7069 = vmatprep.subr.mxu0 %v4356
    %7070 = vmatpush1.msra.mxu0 %v4355
    %7071 = vmatprep.subr.mxu0 %v4360
    %7072 = vmatpush1.msra.mxu0 %v4359
    %7073 = vmatprep.subr.mxu0 %v4364
    %7074 = vmatpush1.msra.mxu0 %v4363
    %7075 = vmatprep.subr.mxu0 %v4368
    %7076 = vmatpush1.msra.mxu0 %v4367
    %7077 = vmatprep.subr.mxu0 %v4372
    %7078 = vmatpush1.msra.mxu0 %v4371
    %7079 = vmatprep.subr.mxu0 %v4376
    %7080 = vmatpush1.msra.mxu0 %v4375
    %7081 = vmatprep.subr.mxu0 %v4380
    %7082 = vmatpush1.msra.mxu0 %v4379
    %7083 = vmatprep.subr.mxu0 %v4384
    %7084 = vmatpush1.msra.mxu0 %v4383
    %7085 = vmatprep.subr.mxu0 %v4388
    %7086 = vmatpush1.msra.mxu0 %v4387
    %7087 = vmatprep.subr.mxu0 %v4392
    %7088 = vmatpush1.msra.mxu0 %v4391
    %7089 = vmatprep.subr.mxu0 %v4396
    %7090 = vmatpush1.msra.mxu0 %v4395
    %7091 = vmatprep.subr.mxu0 %v4400
    %7092 = vmatpush1.msra.mxu0 %v4399
    %7093 = vmatprep.subr.mxu0 %v4404
    %7094 = vmatpush1.msra.mxu0 %v4403
    %7095 = vmatprep.subr.mxu0 %v4408
    %7096 = vmatpush1.msra.mxu0 %v4407
    %7097 = vmatprep.subr.mxu0 %v4412
    %7098 = vmatpush1.msra.mxu0 %v4411
    %7099 = vmatprep.subr.mxu0 %v4416
    %7100 = vmatpush1.msra.mxu0 %v4415
    %7101 = vmatprep.subr.mxu0 %v4420
    %7102 = vmatpush1.msra.mxu0 %v4419
    %7103 = vmatprep.subr.mxu0 %v4424
    %7104 = vmatpush1.msra.mxu0 %v4423
    %7105 = vmatprep.subr.mxu0 %v4428
    %7106 = vmatpush1.msra.mxu0 %v4427
    %7107 = vmatprep.subr.mxu0 %v4432
    %7108 = vmatpush1.msra.mxu0 %v4431
    %7109 = vmatprep.subr.mxu0 %v4436
    %7110 = vmatpush1.msra.mxu0 %v4435
    %7111 = vmatprep.subr.mxu0 %v4440
    %7112 = vmatpush1.msra.mxu0 %v4439
    %7113 = vmatprep.subr.mxu0 %v4444
    %7114 = vmatpush1.msra.mxu0 %v4443
    %7115 = vmatprep.subr.mxu0 %v4448
    %7116 = vmatpush1.msra.mxu0 %v4447
    %7117 = vmatprep.subr.mxu0 %v4452
    %7118 = vmatpush1.msra.mxu0 %v4451
    %7119 = vmatprep.subr.mxu0 %v4456
    %7120 = vmatpush1.msra.mxu0 %v4455
    %7121 = vmatprep.subr.mxu0 %v4460
    %7122 = vmatpush1.msra.mxu0 %v4459
    %7123 = vmatprep.mubr.f32.mxu0 %v6881
    %7124 = vmatmul.mubr.f32.gmra.mrb[0].mxu0 %v7058
    %v7125 = vpop.f32.mrb[0].mxu0
    %v7126 = vadd.f32 %v4468, %v7125
    %v7127 = vpop.f32.mrb[0].mxu0
    %v7128 = vadd.f32 %v4472, %v7127
    %7129 = vdwg.mxu0
    %7130 = vmatprep.subr.mxu0 %v4338
    %7131 = vmatpush1.msra.mxu0 %v4337
    %7132 = vmatprep.subr.mxu0 %v4342
    %7133 = vmatpush1.msra.mxu0 %v4341
    %7134 = vmatprep.subr.mxu0 %v4346
    %7135 = vmatpush1.msra.mxu0 %v4345
    %7136 = vmatprep.subr.mxu0 %v4350
    %7137 = vmatpush1.msra.mxu0 %v4349
    %7138 = vmatprep.subr.mxu0 %v4354
    %7139 = vmatpush1.msra.mxu0 %v4353
    %7140 = vmatprep.subr.mxu0 %v4358
    %7141 = vmatpush1.msra.mxu0 %v4357
    %7142 = vmatprep.subr.mxu0 %v4362
    %7143 = vmatpush1.msra.mxu0 %v4361
    %7144 = vmatprep.subr.mxu0 %v4366
    %7145 = vmatpush1.msra.mxu0 %v4365
    %7146 = vmatprep.subr.mxu0 %v4370
    %7147 = vmatpush1.msra.mxu0 %v4369
    %7148 = vmatprep.subr.mxu0 %v4374
    %7149 = vmatpush1.msra.mxu0 %v4373
    %7150 = vmatprep.subr.mxu0 %v4378
    %7151 = vmatpush1.msra.mxu0 %v4377
    %7152 = vmatprep.subr.mxu0 %v4382
    %7153 = vmatpush1.msra.mxu0 %v4381
    %7154 = vmatprep.subr.mxu0 %v4386
    %7155 = vmatpush1.msra.mxu0 %v4385
    %7156 = vmatprep.subr.mxu0 %v4390
    %7157 = vmatpush1.msra.mxu0 %v4389
    %7158 = vmatprep.subr.mxu0 %v4394
    %7159 = vmatpush1.msra.mxu0 %v4393
    %7160 = vmatprep.subr.mxu0 %v4398
    %7161 = vmatpush1.msra.mxu0 %v4397
    %7162 = vmatprep.subr.mxu0 %v4402
    %7163 = vmatpush1.msra.mxu0 %v4401
    %7164 = vmatprep.subr.mxu0 %v4406
    %7165 = vmatpush1.msra.mxu0 %v4405
    %7166 = vmatprep.subr.mxu0 %v4410
    %7167 = vmatpush1.msra.mxu0 %v4409
    %7168 = vmatprep.subr.mxu0 %v4414
    %7169 = vmatpush1.msra.mxu0 %v4413
    %7170 = vmatprep.subr.mxu0 %v4418
    %7171 = vmatpush1.msra.mxu0 %v4417
    %7172 = vmatprep.subr.mxu0 %v4422
    %7173 = vmatpush1.msra.mxu0 %v4421
    %7174 = vmatprep.subr.mxu0 %v4426
    %7175 = vmatpush1.msra.mxu0 %v4425
    %7176 = vmatprep.subr.mxu0 %v4430
    %7177 = vmatpush1.msra.mxu0 %v4429
    %7178 = vmatprep.subr.mxu0 %v4434
    %7179 = vmatpush1.msra.mxu0 %v4433
    %7180 = vmatprep.subr.mxu0 %v4438
    %7181 = vmatpush1.msra.mxu0 %v4437
    %7182 = vmatprep.subr.mxu0 %v4442
    %7183 = vmatpush1.msra.mxu0 %v4441
    %7184 = vmatprep.subr.mxu0 %v4446
    %7185 = vmatpush1.msra.mxu0 %v4445
    %7186 = vmatprep.subr.mxu0 %v4450
    %7187 = vmatpush1.msra.mxu0 %v4449
    %7188 = vmatprep.subr.mxu0 %v4454
    %7189 = vmatpush1.msra.mxu0 %v4453
    %7190 = vmatprep.subr.mxu0 %v4458
    %7191 = vmatpush1.msra.mxu0 %v4457
    %7192 = vmatprep.subr.mxu0 %v4462
    %7193 = vmatpush1.msra.mxu0 %v4461
    %7194 = vmatprep.mubr.f32.mxu0 %v6881
    %7195 = vmatmul.mubr.f32.gmra.mrb[0].mxu0 %v7058
    %v7196 = vpop.f32.mrb[0].mxu0
    %v7197 = vadd.f32 %v4476, %v7196
    %v7198 = vpop.f32.mrb[0].mxu0
    %v7199 = vadd.f32 %v4480, %v7198
    %7200 = vdwg.mxu0
    %v7201 = vxor.u32 %v7126, 2147483648
    %v7202 = vmul.f32 %v7201, 1.442695
    %v7203 = vpow.pop %v7202
    %v7204 = vadd.f32 %v7203, 1.0
    %v7205 = vrcp.pop %v7204
    %v7206 = vmul.f32 1.0, %v7205
    %v7207 = vxor.u32 %v7128, 2147483648
    %v7208 = vmul.f32 %v7207, 1.442695
    %v7209 = vpow.pop %v7208
    %v7210 = vadd.f32 %v7209, 1.0
    %v7211 = vrcp.pop %v7210
    %v7212 = vmul.f32 1.0, %v7211
    %v7213 = vtanh.pop %v7197
    %v7214 = vxor.u32 %v7199, 2147483648
    %v7215 = vmul.f32 %v7214, 1.442695
    %v7216 = vpow.pop %v7215
    %v7217 = vadd.f32 %v7216, 1.0
    %v7218 = vrcp.pop %v7217
    %v7219 = vmul.f32 1.0, %v7218
    %v7220 = vmul.f32 %v7212, %v6879
    %v7221 = vmul.f32 %v7206, %v7213
    %v7222 = vadd.f32 %v7220, %v7221
    %v7223 = vtanh.pop %v7222
    %v7224 = vmul.f32 %v7219, %v7223
    %s7225 = scalar_lea.vmem [#allocation4], 56
    %7226 = vst [vmem:[%s7225] sm:$0xff] %v7224
    %v7227 = vld [vmem:[#allocation4] sm:$0xff]
    %v7228 = vld [vmem:[#allocation4 + $0x8] sm:$0xff]
    %v7229 = vld [vmem:[#allocation4 + $0x10] sm:$0xff]
    %v7230 = vld [vmem:[#allocation4 + $0x18] sm:$0xff]
    %v7231 = vld [vmem:[#allocation4 + $0x20] sm:$0xff]
    %v7232 = vld [vmem:[#allocation4 + $0x28] sm:$0xff]
    %v7233 = vld [vmem:[#allocation4 + $0x30] sm:$0xff]
    %v7234 = vld [vmem:[#allocation4 + $0x38] sm:$0xff]
    %v7235 = vld [vmem:[#allocation13] sm:$0xff]
    %v7236 = vld [vmem:[#allocation13 + $0x8] sm:$0xff]
    %v7237 = vld [vmem:[#allocation13 + $0x10] sm:$0xff]
    %v7238 = vld [vmem:[#allocation13 + $0x18] sm:$0xff]
    %v7239 = vld [vmem:[#allocation13 + $0x20] sm:$0xff]
    %v7240 = vld [vmem:[#allocation13 + $0x28] sm:$0xff]
    %v7241 = vld [vmem:[#allocation13 + $0x30] sm:$0xff]
    %v7242 = vld [vmem:[#allocation13 + $0x38] sm:$0xff]
    %v7243 = vld [vmem:[#allocation13 + $0x40] sm:$0xff]
    %v7244 = vld [vmem:[#allocation13 + $0x48] sm:$0xff]
    %v7245 = vld [vmem:[#allocation13 + $0x50] sm:$0xff]
    %v7246 = vld [vmem:[#allocation13 + $0x58] sm:$0xff]
    %v7247 = vld [vmem:[#allocation13 + $0x60] sm:$0xff]
    %v7248 = vld [vmem:[#allocation13 + $0x68] sm:$0xff]
    %v7249 = vld [vmem:[#allocation13 + $0x70] sm:$0xff]
    %v7250 = vld [vmem:[#allocation13 + $0x78] sm:$0xff]
    %v7251 = vld [vmem:[#allocation15] sm:$0x1]
    %v7253 = vlaneseq
    %v7254 = vshrl.u32 %v7253, 7
    %v7255 = vsub.s32 0, %v7254
    %v7256 = vrot.slane %v7251, %v7255
    %7258 = vmatprep.subr.mxu0 0.0
    %7259 = vmatpush1.msra.mxu0 %v7235
    %7260 = vmatprep.subr.mxu0 0.0
    %7261 = vmatpush1.msra.mxu0 %v7236
    %7262 = vmatprep.subr.mxu0 0.0
    %7263 = vmatpush1.msra.mxu0 %v7237
    %7264 = vmatprep.subr.mxu0 0.0
    %7265 = vmatpush1.msra.mxu0 %v7238
    %7266 = vmatprep.subr.mxu0 0.0
    %7267 = vmatpush1.msra.mxu0 %v7239
    %7268 = vmatprep.subr.mxu0 0.0
    %7269 = vmatpush1.msra.mxu0 %v7240
    %7270 = vmatprep.subr.mxu0 0.0
    %7271 = vmatpush1.msra.mxu0 %v7241
    %7272 = vmatprep.subr.mxu0 0.0
    %7273 = vmatpush1.msra.mxu0 %v7242
    %7274 = vmatprep.subr.mxu0 0.0
    %7275 = vmatpush1.msra.mxu0 %v7243
    %7276 = vmatprep.subr.mxu0 0.0
    %7277 = vmatpush1.msra.mxu0 %v7244
    %7278 = vmatprep.subr.mxu0 0.0
    %7279 = vmatpush1.msra.mxu0 %v7245
    %7280 = vmatprep.subr.mxu0 0.0
    %7281 = vmatpush1.msra.mxu0 %v7246
    %7282 = vmatprep.subr.mxu0 0.0
    %7283 = vmatpush1.msra.mxu0 %v7247
    %7284 = vmatprep.subr.mxu0 0.0
    %7285 = vmatpush1.msra.mxu0 %v7248
    %7286 = vmatprep.subr.mxu0 0.0
    %7287 = vmatpush1.msra.mxu0 %v7249
    %7288 = vmatprep.subr.mxu0 0.0
    %7289 = vmatpush1.msra.mxu0 %v7250
    %7290 = vmatprep.subr.mxu0 0.0
    %7291 = vmatpush1.msra.mxu0 0.0
    %7292 = vmatprep.subr.mxu0 0.0
    %7293 = vmatpush1.msra.mxu0 0.0
    %7294 = vmatprep.subr.mxu0 0.0
    %7295 = vmatpush1.msra.mxu0 0.0
    %7296 = vmatprep.subr.mxu0 0.0
    %7297 = vmatpush1.msra.mxu0 0.0
    %7298 = vmatprep.subr.mxu0 0.0
    %7299 = vmatpush1.msra.mxu0 0.0
    %7300 = vmatprep.subr.mxu0 0.0
    %7301 = vmatpush1.msra.mxu0 0.0
    %7302 = vmatprep.subr.mxu0 0.0
    %7303 = vmatpush1.msra.mxu0 0.0
    %7304 = vmatprep.subr.mxu0 0.0
    %7305 = vmatpush1.msra.mxu0 0.0
    %7306 = vmatprep.subr.mxu0 0.0
    %7307 = vmatpush1.msra.mxu0 0.0
    %7308 = vmatprep.subr.mxu0 0.0
    %7309 = vmatpush1.msra.mxu0 0.0
    %7310 = vmatprep.subr.mxu0 0.0
    %7311 = vmatpush1.msra.mxu0 0.0
    %7312 = vmatprep.subr.mxu0 0.0
    %7313 = vmatpush1.msra.mxu0 0.0
    %7314 = vmatprep.subr.mxu0 0.0
    %7315 = vmatpush1.msra.mxu0 0.0
    %7316 = vmatprep.subr.mxu0 0.0
    %7317 = vmatpush1.msra.mxu0 0.0
    %7318 = vmatprep.subr.mxu0 0.0
    %7319 = vmatpush1.msra.mxu0 0.0
    %7320 = vmatprep.subr.mxu0 0.0
    %7321 = vmatpush1.msra.mxu0 0.0
    %7322 = vmatprep.mubr.f32.mxu0 0.0
    %7323 = vmatmul.mubr.f32.gmra.mrb[0].mxu0 %v7227
    %v7324 = vpop.f32.mrb[0].mxu0
    %v7325 = vadd.f32 %v7256, %v7324
    %v7326 = vpop.f32.mrb[0].mxu0
    %7327 = vmatprep.mubr.f32.mxu0 0.0
    %7328 = vmatmul.mubr.f32.gmra.mrb[0].mxu0 %v7228
    %v7329 = vpop.f32.mrb[0].mxu0
    %v7330 = vadd.f32 %v7256, %v7329
    %v7331 = vpop.f32.mrb[0].mxu0
    %7332 = vmatprep.mubr.f32.mxu0 0.0
    %7333 = vmatmul.mubr.f32.gmra.mrb[0].mxu0 %v7229
    %v7334 = vpop.f32.mrb[0].mxu0
    %v7335 = vadd.f32 %v7256, %v7334
    %v7336 = vpop.f32.mrb[0].mxu0
    %7337 = vmatprep.mubr.f32.mxu0 0.0
    %7338 = vmatmul.mubr.f32.gmra.mrb[0].mxu0 %v7230
    %v7339 = vpop.f32.mrb[0].mxu0
    %v7340 = vadd.f32 %v7256, %v7339
    %v7341 = vpop.f32.mrb[0].mxu0
    %7342 = vmatprep.mubr.f32.mxu0 0.0
    %7343 = vmatmul.mubr.f32.gmra.mrb[0].mxu0 %v7231
    %v7344 = vpop.f32.mrb[0].mxu0
    %v7345 = vadd.f32 %v7256, %v7344
    %v7346 = vpop.f32.mrb[0].mxu0
    %7347 = vmatprep.mubr.f32.mxu0 0.0
    %7348 = vmatmul.mubr.f32.gmra.mrb[0].mxu0 %v7232
    %v7349 = vpop.f32.mrb[0].mxu0
    %v7350 = vadd.f32 %v7256, %v7349
    %v7351 = vpop.f32.mrb[0].mxu0
    %7352 = vmatprep.mubr.f32.mxu0 0.0
    %7353 = vmatmul.mubr.f32.gmra.mrb[0].mxu0 %v7233
    %v7354 = vpop.f32.mrb[0].mxu0
    %v7355 = vadd.f32 %v7256, %v7354
    %v7356 = vpop.f32.mrb[0].mxu0
    %7357 = vmatprep.mubr.f32.mxu0 0.0
    %7358 = vmatmul.mubr.f32.gmra.mrb[0].mxu0 %v7234
    %v7359 = vpop.f32.mrb[0].mxu0
    %v7360 = vadd.f32 %v7256, %v7359
    %v7361 = vpop.f32.mrb[0].mxu0
    %7362 = vdwg.mxu0
    %7363 = vst [vmem:[%s18] sm:$0xff] %v7325
    %7364 = vst [vmem:[%s18 + $0x8] sm:$0xff] %v7330
    %7365 = vst [vmem:[%s18 + $0x10] sm:$0xff] %v7335
    %7366 = vst [vmem:[%s18 + $0x18] sm:$0xff] %v7340
    %7367 = vst [vmem:[%s18 + $0x20] sm:$0xff] %v7345
    %7368 = vst [vmem:[%s18 + $0x28] sm:$0xff] %v7350
    %7369 = vst [vmem:[%s18 + $0x30] sm:$0xff] %v7355
    %7370 = vst [vmem:[%s18 + $0x38] sm:$0xff] %v7360
    // Predicated region
    $region102: #{seq2seq_forward.1} parent=1 // pred_check
      _
    $region103: #{seq2seq_forward.1} parent=1 // pred_check_branch
      %7372 = sbr.rel (0) target = $region105
    $region104: #{seq2seq_forward.1} parent=1 // pred_region
      _
    $region105: #{seq2seq_forward.1} parent=1 // pred_fallthru
      _
    // Predicated region
    $region106: #{seq2seq_forward.1} parent=1 // pred_check
      _
    $region107: #{seq2seq_forward.1} parent=1 // pred_check_branch
      %7374 = sbr.rel (0) target = $region109
    $region108: #{seq2seq_forward.1} parent=1 // pred_region
      _
    $region109: #{seq2seq_forward.1} parent=1 // pred_fallthru
      _
    %7375 = vsyncpa [#allocation6], 1
    %7376 = vsyncpa [#allocation8], 1
    %7377 = vsyncpa [#allocation11], 1
    %7378 = vsyncpa [#allocation14], 1

</llo_original>
